<compile_context>
chip_gen: v6e
topology: v6e:2x2x1
jax: 0.10.0
libtpu: 0.0.40
codegen_flags: <defaults>
</compile_context>

<pallas_src>
import numpy as np

import jax
import jax.numpy as jnp
from jax.experimental import pallas as pl
from jax.experimental.pallas import tpu as pltpu


# ----------------------------------------------------------------------------
# posmlp (two 1x1 convs over log-spaced position deltas) -- plain JAX
# ----------------------------------------------------------------------------
def posmlp_bias(pin, w1, b1, w2, b2):
    h = jnp.maximum(pin @ w1 + b1, 0.0)
    return h @ w2 + b2


# ----------------------------------------------------------------------------
# Kernel 1: fused (optional) norm1 + window attention, WB windows per grid step
# ----------------------------------------------------------------------------
def _make_attn_kernel(WB, N, C, num_heads, scale, apply_ln, eps=1e-5):
    HD = C // num_heads

    def kernel(x_ref, g1_ref, be1_ref, wqkv_ref, bqkv_ref, wp_ref, bp_ref,
               bias_ref, o_ref):
        x = x_ref[...].reshape(WB * N, C)                          # f32
        if apply_ln:
            mu = jnp.mean(x, axis=-1, keepdims=True)
            var = jnp.mean((x - mu) ** 2, axis=-1, keepdims=True)
            xn = (x - mu) * jax.lax.rsqrt(var + eps) * g1_ref[...] + be1_ref[...]
        else:
            xn = x                                                 # already normed outside
        xn = xn.astype(jnp.bfloat16)

        # QKV projection for all WB windows at once: (WB*N, 3C)
        qkv = jnp.dot(xn, wqkv_ref[...],
                      preferred_element_type=jnp.float32) + bqkv_ref[...]
        qkv = qkv.astype(jnp.bfloat16).reshape(WB, N, 3 * C)

        wp = wp_ref[...]                                           # (C, C) bf16
        bias = bias_ref[...]                                       # (1|WB, nh, N, N) f32
        bias_bcast = bias.shape[0] == 1                            # static (trace time)

        acc = jnp.zeros((WB * N, C), jnp.float32)
        for h in range(num_heads):
            qh = qkv[:, :, h * HD:(h + 1) * HD]                    # (WB, N, HD)
            kh = qkv[:, :, C + h * HD:C + (h + 1) * HD]
            vh = qkv[:, :, 2 * C + h * HD:2 * C + (h + 1) * HD]
            s = jnp.einsum("bnd,bmd->bnm", qh, kh,
                           preferred_element_type=jnp.float32) * scale
            if bias_bcast:
                s = s + bias[0, h][None]                           # same bias for all windows
            else:
                s = s + bias[:, h]                                 # per-window bias (+ shift mask)
            s = s - jnp.max(s, axis=-1, keepdims=True)
            p = jnp.exp(s)
            p = p * pl.reciprocal(jnp.sum(p, axis=-1, keepdims=True), approx=True)
            oh = jnp.einsum("bnm,bmd->bnd", p.astype(jnp.bfloat16), vh,
                            preferred_element_type=jnp.float32)    # (WB, N, HD)
            # Accumulate through the output projection (sublane/row slice of wp)
            # instead of lane-concatenating heads.
            acc = acc + jnp.dot(oh.reshape(WB * N, HD).astype(jnp.bfloat16),
                                wp[h * HD:(h + 1) * HD, :],
                                preferred_element_type=jnp.float32)
        # NOTE: at demo scale C=32 < 128 the store is a masked partial store;
        # real Swin dims (C multiple of 128) are lane-dense.
        o_ref[...] = (acc + bp_ref[...]).reshape(WB, N, C)

    return kernel


def _pick_window_batch(B_, nW, shifted, target=16):
    """Largest WB <= target dividing B_ (and nW when the shift mask is used)."""
    for cand in range(min(target, B_), 0, -1):
        if B_ % cand == 0 and (not shifted or nW % cand == 0):
            return cand
    return 1


def window_attention_pallas(x_windows, bias_pw, params, num_heads, scale,
                            WB, apply_ln):
    B_, N, C = x_windows.shape
    nWb = bias_pw.shape[0]                     # 1 (no shift) or nW (shifted)
    bias_wb = 1 if nWb == 1 else WB
    n_bias_blocks = nWb // bias_wb

    kernel = _make_attn_kernel(WB, N, C, num_heads, scale, apply_ln)
    wqkv = params["wqkv"].astype(jnp.bfloat16)
    wp = params["wp"].astype(jnp.bfloat16)

    return pl.pallas_call(
        kernel,
        out_shape=jax.ShapeDtypeStruct((B_, N, C), jnp.float32),
        grid=(B_ // WB,),
        in_specs=[
            pl.BlockSpec((WB, N, C), lambda i: (i, 0, 0)),
            pl.BlockSpec((1, C), lambda i: (0, 0)),
            pl.BlockSpec((1, C), lambda i: (0, 0)),
            pl.BlockSpec((C, 3 * C), lambda i: (0, 0)),
            pl.BlockSpec((1, 3 * C), lambda i: (0, 0)),
            pl.BlockSpec((C, C), lambda i: (0, 0)),
            pl.BlockSpec((1, C), lambda i: (0, 0)),
            # Bias stays VMEM-resident: constant block index when unshifted,
            # wraps over nW//WB blocks when shifted (no nW-fold tiling in HBM).
            pl.BlockSpec((bias_wb, num_heads, N, N),
                         lambda i: (i % n_bias_blocks, 0, 0, 0)),
        ],
        out_specs=pl.BlockSpec((WB, N, C), lambda i: (i, 0, 0)),
        compiler_params=pltpu.CompilerParams(
            dimension_semantics=("parallel",)),   # windows independent
    )(x_windows, params["g1"], params["be1"], wqkv, params["bqkv"],
      wp, params["bp"], bias_pw)


# ----------------------------------------------------------------------------
# Kernel 2: fused norm2 + MLP + residual, tiled over tokens
# ----------------------------------------------------------------------------
def _mlp_kernel(x_ref, g2_ref, be2_ref, w1_ref, b1_ref, w2_ref, b2_ref, o_ref):
    eps = 1e-5
    x = x_ref[...]                                                 # (TM, C) f32
    mu = jnp.mean(x, axis=-1, keepdims=True)
    var = jnp.mean((x - mu) ** 2, axis=-1, keepdims=True)
    xn = (x - mu) * jax.lax.rsqrt(var + eps) * g2_ref[...] + be2_ref[...]
    h = jnp.dot(xn.astype(jnp.bfloat16), w1_ref[...],
                preferred_element_type=jnp.float32) + b1_ref[...]
    h = jax.nn.gelu(h, approximate=False)                          # exact GELU (torch default)
    y = jnp.dot(h.astype(jnp.bfloat16), w2_ref[...],
                preferred_element_type=jnp.float32) + b2_ref[...]
    o_ref[...] = x + y                                             # residual (f32)


def mlp_pallas(x_flat, params, tm=512):
    R, C = x_flat.shape
    hidden = params["mlp_w1"].shape[1]
    TM = min(tm, max(8, ((R + 7) // 8) * 8))
    R_pad = ((R + TM - 1) // TM) * TM
    xp = jnp.pad(x_flat, ((0, R_pad - R), (0, 0))) if R_pad != R else x_flat
    w1 = params["mlp_w1"].astype(jnp.bfloat16)
    w2 = params["mlp_w2"].astype(jnp.bfloat16)
    # TODO(synk): at real Swin dims (C >= 384, hidden = 4C) K-tile the hidden dim
    # with a second ("arbitrary") grid axis / set vmem_limit_bytes for v7x's 64 MiB VMEM.
    out = pl.pallas_call(
        _mlp_kernel,
        out_shape=jax.ShapeDtypeStruct((R_pad, C), jnp.float32),
        grid=(R_pad // TM,),
        in_specs=[
            pl.BlockSpec((TM, C), lambda i: (i, 0)),
            pl.BlockSpec((1, C), lambda i: (0, 0)),
            pl.BlockSpec((1, C), lambda i: (0, 0)),
            pl.BlockSpec((C, hidden), lambda i: (0, 0)),
            pl.BlockSpec((1, hidden), lambda i: (0, 0)),
            pl.BlockSpec((hidden, C), lambda i: (0, 0)),
            pl.BlockSpec((1, C), lambda i: (0, 0)),
        ],
        out_specs=pl.BlockSpec((TM, C), lambda i: (i, 0)),
        compiler_params=pltpu.CompilerParams(dimension_semantics=("parallel",)),
    )(xp, params["g2"], params["be2"], w1, params["mlp_b1"], w2, params["mlp_b2"])
    return out[:R] if R_pad != R else out


# ----------------------------------------------------------------------------
# Pure-JAX glue (window partition / reverse, shift mask, position deltas)
# ----------------------------------------------------------------------------
def window_partition(x, ws):
    B, H, W, C = x.shape
    x = x.reshape(B, H // ws, ws, W // ws, ws, C)
    return x.transpose(0, 1, 3, 2, 4, 5).reshape(-1, ws, ws, C)


def window_reverse(windows, ws, H, W):
    B = windows.shape[0] // (H * W // ws // ws)
    x = windows.reshape(B, H // ws, W // ws, ws, ws, -1)
    return x.transpose(0, 1, 3, 2, 4, 5).reshape(B, H, W, -1)


def make_pos_input(ws):
    """Log-spaced pairwise coordinate deltas, flattened to (N*N, 2)."""
    N = ws * ws
    ii, jj = jnp.meshgrid(jnp.arange(ws, dtype=jnp.float32),
                          jnp.arange(ws, dtype=jnp.float32), indexing="ij")
    pos = jnp.stack([ii.reshape(N), jj.reshape(N)], axis=0)        # (2, N)
    rel = pos[:, None, :] - pos[:, :, None]                        # rel[c,a,b] = pos[c,b]-pos[c,a]
    rel = jnp.sign(rel) * jnp.log1p(jnp.abs(rel))
    return rel.transpose(1, 2, 0).reshape(N * N, 2)                # (N*N, 2)


def make_attn_mask(H_pad, W_pad, ws, shift_size):
    if shift_size == 0:
        return None
    img_mask = np.zeros((1, H_pad, W_pad, 1), dtype=np.float32)
    slices = (slice(0, -ws), slice(-ws, -shift_size), slice(-shift_size, None))
    cnt = 0
    for hs in slices:
        for wsl in slices:
            img_mask[:, hs, wsl, :] = cnt
            cnt += 1
    mw = window_partition(jnp.asarray(img_mask), ws).reshape(-1, ws * ws)
    diff = mw[:, None, :] - mw[:, :, None]
    return jnp.where(diff != 0, -100.0, 0.0)                       # (nW, N, N)


def _layernorm(x, g, b, eps=1e-5):
    mu = x.mean(-1, keepdims=True)
    var = ((x - mu) ** 2).mean(-1, keepdims=True)
    return (x - mu) / jnp.sqrt(var + eps) * g + b


# ----------------------------------------------------------------------------
# SwinBlock forward (Pallas path)
# ----------------------------------------------------------------------------
def swin_block_forward(params, x, hw, *, num_heads, window_size, shift_size):
    # TODO(synk): drop_path (stochastic depth) is identity at drop_path=0.0 and
    # training-only; downsample=None is also omitted (matching module defaults).
    H, W = hw
    B, L, C = x.shape
    assert L == H * W
    ws, ss = window_size, shift_size
    if min(H, W) <= ws:
        ss = 0
        ws = min(H, W)
    scale = (C // num_heads) ** (-0.5)
    N = ws * ws

    shortcut = x
    pad_r = (ws - W % ws) % ws
    pad_b = (ws - H % ws) % ws
    if pad_r > 0 or pad_b > 0:
        # Pad *after* norm1 (as PyTorch does) so padded tokens are exact zeros
        # in normed space; the norm is then skipped inside the kernel.
        xs = _layernorm(x, params["g1"], params["be1"]).reshape(B, H, W, C)
        fuse_ln = False
    else:
        xs = x.reshape(B, H, W, C)
        fuse_ln = True
    xs = jnp.pad(xs, ((0, 0), (0, pad_b), (0, pad_r), (0, 0)))
    H_pad, W_pad = xs.shape[1], xs.shape[2]

    attn_mask = make_attn_mask(H_pad, W_pad, ws, ss)
    if ss > 0:
        xs = jnp.roll(xs, shift=(-ss, -ss), axis=(1, 2))

    x_windows = window_partition(xs, ws).reshape(-1, N, C)
    B_ = x_windows.shape[0]
    nW = (H_pad // ws) * (W_pad // ws)

    # relative position bias (tiny one-shot; plain JAX)
    pin = make_pos_input(ws)
    bias_flat = posmlp_bias(pin, params["pm_w1"], params["pm_b1"],
                            params["pm_w2"], params["pm_b2"])      # (N*N, nh)
    rel_bias = bias_flat.reshape(N, N, num_heads).transpose(2, 0, 1)  # (nh, N, N)

    if attn_mask is not None:
        bias_pw = rel_bias[None] + attn_mask[:, None]              # (nW, nh, N, N)
    else:
        bias_pw = rel_bias[None]                                   # (1, nh, N, N)

    WB = _pick_window_batch(B_, nW, attn_mask is not None)
    attn_windows = window_attention_pallas(x_windows, bias_pw, params,
                                           num_heads, scale, WB, fuse_ln)

    attn_windows = attn_windows.reshape(-1, ws, ws, C)
    shifted_x = window_reverse(attn_windows, ws, H_pad, W_pad)
    if ss > 0:
        shifted_x = jnp.roll(shifted_x, shift=(ss, ss), axis=(1, 2))
    shifted_x = shifted_x[:, :H, :W, :]
    x = shortcut + shifted_x.reshape(B, H * W, C)

    # norm2 + MLP + residual (fused Pallas kernel)
    y = mlp_pallas(x.reshape(B * L, C), params).reshape(B, L, C)
    return y, (H, W)


# ----------------------------------------------------------------------------
# Pure-JAX reference (mirrors the PyTorch forward) for correctness checking
# ----------------------------------------------------------------------------
def reference_forward(params, x, hw, *, num_heads, window_size, shift_size):
    H, W = hw
    B, L, C = x.shape
    ws, ss = window_size, shift_size
    if min(H, W) <= ws:
        ss = 0
        ws = min(H, W)
    scale = (C // num_heads) ** (-0.5)
    N = ws * ws
    hd = C // num_heads

    shortcut = x
    xn = _layernorm(x, params["g1"][0], params["be1"][0])
    xs = xn.reshape(B, H, W, C)
    pad_r = (ws - W % ws) % ws
    pad_b = (ws - H % ws) % ws
    xs = jnp.pad(xs, ((0, 0), (0, pad_b), (0, pad_r), (0, 0)))
    H_pad, W_pad = xs.shape[1], xs.shape[2]
    attn_mask = make_attn_mask(H_pad, W_pad, ws, ss)
    if ss > 0:
        xs = jnp.roll(xs, shift=(-ss, -ss), axis=(1, 2))
    xw = window_partition(xs, ws).reshape(-1, N, C)
    B_ = xw.shape[0]

    pin = make_pos_input(ws)
    h = jnp.maximum(pin @ params["pm_w1"] + params["pm_b1"], 0.0)
    rel_bias = (h @ params["pm_w2"] + params["pm_b2"]).reshape(N, N, num_heads)
    rel_bias = rel_bias.transpose(2, 0, 1)                         # (nh, N, N)

    qkv = xw @ params["wqkv"] + params["bqkv"]
    qkv = qkv.reshape(B_, N, 3, num_heads, hd).transpose(2, 0, 3, 1, 4)
    q, k, v = qkv[0] * scale, qkv[1], qkv[2]
    attn = jnp.einsum("bhnd,bhmd->bhnm", q, k) + rel_bias[None]
    if attn_mask is not None:
        nW = attn_mask.shape[0]
        attn = attn.reshape(B_ // nW, nW, num_heads, N, N) + attn_mask[None, :, None]
        attn = attn.reshape(B_, num_heads, N, N)
    attn = jax.nn.softmax(attn, axis=-1)
    out = jnp.einsum("bhnm,bhmd->bhnd", attn, v).transpose(0, 2, 1, 3).reshape(B_, N, C)
    out = out @ params["wp"] + params["bp"]

    out = out.reshape(-1, ws, ws, C)
    sx = window_reverse(out, ws, H_pad, W_pad)
    if ss > 0:
        sx = jnp.roll(sx, shift=(ss, ss), axis=(1, 2))
    sx = sx[:, :H, :W, :].reshape(B, H * W, C)
    x = shortcut + sx

    xn2 = _layernorm(x, params["g2"][0], params["be2"][0])
    hmid = jax.nn.gelu(xn2 @ params["mlp_w1"] + params["mlp_b1"], approximate=False)
    y = hmid @ params["mlp_w2"] + params["mlp_b2"]
    return x + y, (H, W)


# ----------------------------------------------------------------------------
# Demo
# ----------------------------------------------------------------------------
if __name__ == "__main__":
    B, H, W = 2, 16, 16
    dim, num_heads = 32, 4
    posmlp_dim = 32
    mlp_hidden = int(dim * 4.0)
    L = H * W

    key = jax.random.PRNGKey(0)
    ks = jax.random.split(key, 12)
    s = 0.02
    params = {
        "g1": jnp.ones((1, dim), jnp.float32),
        "be1": jnp.zeros((1, dim), jnp.float32),
        "g2": jnp.ones((1, dim), jnp.float32),
        "be2": jnp.zeros((1, dim), jnp.float32),
        "wqkv": s * jax.random.normal(ks[0], (dim, 3 * dim), jnp.float32),
        "bqkv": s * jax.random.normal(ks[1], (1, 3 * dim), jnp.float32),
        "wp": s * jax.random.normal(ks[2], (dim, dim), jnp.float32),
        "bp": s * jax.random.normal(ks[3], (1, dim), jnp.float32),
        "pm_w1": 0.1 * jax.random.normal(ks[4], (2, posmlp_dim), jnp.float32),
        "pm_b1": 0.1 * jax.random.normal(ks[5], (1, posmlp_dim), jnp.float32),
        "pm_w2": 0.1 * jax.random.normal(ks[6], (posmlp_dim, num_heads), jnp.float32),
        "pm_b2": 0.1 * jax.random.normal(ks[7], (1, num_heads), jnp.float32),
        "mlp_w1": s * jax.random.normal(ks[8], (dim, mlp_hidden), jnp.float32),
        "mlp_b1": s * jax.random.normal(ks[9], (1, mlp_hidden), jnp.float32),
        "mlp_w2": s * jax.random.normal(ks[10], (mlp_hidden, dim), jnp.float32),
        "mlp_b2": s * jax.random.normal(ks[11], (1, dim), jnp.float32),
    }

    x = jax.random.normal(jax.random.PRNGKey(42), (B, L, dim), jnp.float32)

    # Test both the unshifted (shared bias block) and shifted (per-window mask)
    # attention paths.
    for (window_size, shift_size) in [(8, 0), (8, 4)]:
        out, (Ho, Wo) = swin_block_forward(params, x, (H, W),
                                           num_heads=num_heads,
                                           window_size=window_size,
                                           shift_size=shift_size)
        out = jax.block_until_ready(out)

        ref, _ = reference_forward(params, x, (H, W),
                                   num_heads=num_heads,
                                   window_size=window_size,
                                   shift_size=shift_size)
        ref = jax.block_until_ready(ref)

        assert out.shape == (B, L, dim) and (Ho, Wo) == (H, W)
        assert bool(jnp.allclose(out, ref, atol=2e-2, rtol=2e-2)), (
            f"mismatch at ws={window_size}, ss={shift_size}")

    print("KERNEL_OK")
</pallas_src>

<mosaic_0001>
module attributes {stable_mosaic.version = 11 : i64} {
  func.func @kernel(%arg0: i32, %arg1: memref<8x64x32xf32, #tpu.memory_space<vmem>>, %arg2: memref<1x32xf32, #tpu.memory_space<vmem>>, %arg3: memref<1x32xf32, #tpu.memory_space<vmem>>, %arg4: memref<32x96xbf16, #tpu.memory_space<vmem>>, %arg5: memref<1x96xf32, #tpu.memory_space<vmem>>, %arg6: memref<32x32xbf16, #tpu.memory_space<vmem>>, %arg7: memref<1x32xf32, #tpu.memory_space<vmem>>, %arg8: memref<1x4x64x64xf32, #tpu.memory_space<vmem>>, %arg9: memref<8x64x32xf32, #tpu.memory_space<vmem>>) attributes {dimension_semantics = [#tpu.dimension_semantics<parallel>], iteration_bounds = array<i64: 1>, scalar_prefetch = 0 : i64, scratch_operands = 0 : i64, tpu.core_type = #tpu.core_type<tc>, window_params = [{transform_indices = @transform_0, window_bounds = array<i64: 8, 64, 32>}, {pipeline_mode = #tpu.pipeline_mode<synchronous>, transform_indices = @transform_1, window_bounds = array<i64: 1, 32>}, {pipeline_mode = #tpu.pipeline_mode<synchronous>, transform_indices = @transform_2, window_bounds = array<i64: 1, 32>}, {pipeline_mode = #tpu.pipeline_mode<synchronous>, transform_indices = @transform_3, window_bounds = array<i64: 32, 96>}, {pipeline_mode = #tpu.pipeline_mode<synchronous>, transform_indices = @transform_4, window_bounds = array<i64: 1, 96>}, {pipeline_mode = #tpu.pipeline_mode<synchronous>, transform_indices = @transform_5, window_bounds = array<i64: 32, 32>}, {pipeline_mode = #tpu.pipeline_mode<synchronous>, transform_indices = @transform_6, window_bounds = array<i64: 1, 32>}, {transform_indices = @transform_7, window_bounds = array<i64: 1, 4, 64, 64>}, {transform_indices = @transform_8, window_bounds = array<i64: 8, 64, 32>}]} {
    %c0 = arith.constant 0 : index
    %c0_0 = arith.constant 0 : index
    %c0_1 = arith.constant 0 : index
    %0 = vector.load %arg1[%c0, %c0_0, %c0_1] : memref<8x64x32xf32, #tpu.memory_space<vmem>>, vector<8x64x32xf32>
    %1 = vector.shape_cast %0 : vector<8x64x32xf32> to vector<512x32xf32>
    %cst = arith.constant dense<0.000000e+00> : vector<512xf32>
    %2 = vector.multi_reduction <add>, %1, %cst [1] : vector<512x32xf32> to vector<512xf32>
    %3 = vector.shape_cast %2 : vector<512xf32> to vector<512x1xf32>
    %cst_2 = arith.constant 3.200000e+01 : f32
    %4 = vector.broadcast %cst_2 : f32 to vector<512x1xf32>
    %5 = arith.divf %3, %4 : vector<512x1xf32>
    %6 = vector.broadcast %5 : vector<512x1xf32> to vector<512x32xf32>
    %7 = arith.subf %1, %6 : vector<512x32xf32>
    %8 = arith.mulf %7, %7 : vector<512x32xf32>
    %cst_3 = arith.constant dense<0.000000e+00> : vector<512xf32>
    %9 = vector.multi_reduction <add>, %8, %cst_3 [1] : vector<512x32xf32> to vector<512xf32>
    %10 = vector.shape_cast %9 : vector<512xf32> to vector<512x1xf32>
    %cst_4 = arith.constant 3.200000e+01 : f32
    %11 = vector.broadcast %cst_4 : f32 to vector<512x1xf32>
    %12 = arith.divf %10, %11 : vector<512x1xf32>
    %13 = vector.broadcast %5 : vector<512x1xf32> to vector<512x32xf32>
    %14 = arith.subf %1, %13 : vector<512x32xf32>
    %cst_5 = arith.constant 9.99999974E-6 : f32
    %15 = vector.broadcast %cst_5 : f32 to vector<512x1xf32>
    %16 = arith.addf %12, %15 : vector<512x1xf32>
    %17 = math.rsqrt %16 : vector<512x1xf32>
    %18 = vector.broadcast %17 : vector<512x1xf32> to vector<512x32xf32>
    %19 = arith.mulf %14, %18 : vector<512x32xf32>
    %c0_6 = arith.constant 0 : index
    %c0_7 = arith.constant 0 : index
    %20 = vector.load %arg2[%c0_6, %c0_7] : memref<1x32xf32, #tpu.memory_space<vmem>>, vector<1x32xf32>
    %21 = vector.broadcast %20 : vector<1x32xf32> to vector<512x32xf32>
    %22 = arith.mulf %19, %21 : vector<512x32xf32>
    %c0_8 = arith.constant 0 : index
    %c0_9 = arith.constant 0 : index
    %23 = vector.load %arg3[%c0_8, %c0_9] : memref<1x32xf32, #tpu.memory_space<vmem>>, vector<1x32xf32>
    %24 = vector.broadcast %23 : vector<1x32xf32> to vector<512x32xf32>
    %25 = arith.addf %22, %24 : vector<512x32xf32>
    %26 = arith.truncf %25 : vector<512x32xf32> to vector<512x32xbf16>
    %c0_10 = arith.constant 0 : index
    %c0_11 = arith.constant 0 : index
    %27 = vector.load %arg4[%c0_10, %c0_11] : memref<32x96xbf16, #tpu.memory_space<vmem>>, vector<32x96xbf16>
    %cst_12 = arith.constant dense<0.000000e+00> : vector<512x96xf32>
    %28 = tpu.matmul %26, %27, %cst_12 {dimension_numbers = #tpu.dot_dimension_numbers<[1], [0], [0], [1], [0, 0, 1, 1], [], []>} : vector<512x32xbf16>, vector<32x96xbf16>, vector<512x96xf32> -> vector<512x96xf32>
    %c0_13 = arith.constant 0 : index
    %c0_14 = arith.constant 0 : index
    %29 = vector.load %arg5[%c0_13, %c0_14] : memref<1x96xf32, #tpu.memory_space<vmem>>, vector<1x96xf32>
    %30 = vector.broadcast %29 : vector<1x96xf32> to vector<512x96xf32>
    %31 = arith.addf %28, %30 : vector<512x96xf32>
    %32 = arith.truncf %31 : vector<512x96xf32> to vector<512x96xbf16>
    %33 = vector.shape_cast %32 : vector<512x96xbf16> to vector<8x64x96xbf16>
    %c0_15 = arith.constant 0 : index
    %c0_16 = arith.constant 0 : index
    %34 = vector.load %arg6[%c0_15, %c0_16] : memref<32x32xbf16, #tpu.memory_space<vmem>>, vector<32x32xbf16>
    %c0_17 = arith.constant 0 : index
    %c0_18 = arith.constant 0 : index
    %c0_19 = arith.constant 0 : index
    %c0_20 = arith.constant 0 : index
    %35 = vector.load %arg8[%c0_17, %c0_18, %c0_19, %c0_20] : memref<1x4x64x64xf32, #tpu.memory_space<vmem>>, vector<1x4x64x64xf32>
    %cst_21 = arith.constant 0.000000e+00 : f32
    %36 = vector.broadcast %cst_21 : f32 to vector<512x32xf32>
    %37 = vector.extract_strided_slice %33 {offsets = [0, 0, 0], sizes = [8, 64, 8], strides = [1, 1, 1]} : vector<8x64x96xbf16> to vector<8x64x8xbf16>
    %38 = vector.extract_strided_slice %33 {offsets = [0, 0, 32], sizes = [8, 64, 8], strides = [1, 1, 1]} : vector<8x64x96xbf16> to vector<8x64x8xbf16>
    %39 = vector.extract_strided_slice %33 {offsets = [0, 0, 64], sizes = [8, 64, 8], strides = [1, 1, 1]} : vector<8x64x96xbf16> to vector<8x64x8xbf16>
    "tpu.trace_start"() <{level = 10 : i32, message = "bnd,bmd->bnm"}> : () -> ()
    %cst_22 = arith.constant dense<0.000000e+00> : vector<8x64x64xf32>
    %40 = tpu.matmul %37, %38, %cst_22 {dimension_numbers = #tpu.dot_dimension_numbers<[2], [2], [1], [1], [0, 0, 0, 1, 1, 1], [0], [0]>} : vector<8x64x8xbf16>, vector<8x64x8xbf16>, vector<8x64x64xf32> -> vector<8x64x64xf32>
    "tpu.trace_stop"() : () -> ()
    %cst_23 = arith.constant 0.353553385 : f32
    %41 = vector.broadcast %cst_23 : f32 to vector<8x64x64xf32>
    %42 = arith.mulf %40, %41 : vector<8x64x64xf32>
    %43 = vector.extract_strided_slice %35 {offsets = [0, 0, 0, 0], sizes = [1, 1, 64, 64], strides = [1, 1, 1, 1]} : vector<1x4x64x64xf32> to vector<1x1x64x64xf32>
    %44 = vector.shape_cast %43 : vector<1x1x64x64xf32> to vector<64x64xf32>
    %45 = vector.shape_cast %44 : vector<64x64xf32> to vector<1x64x64xf32>
    %46 = vector.broadcast %45 : vector<1x64x64xf32> to vector<8x64x64xf32>
    %47 = arith.addf %42, %46 : vector<8x64x64xf32>
    %cst_24 = arith.constant dense<0xFF800000> : vector<8x64xf32>
    %48 = vector.multi_reduction <maximumf>, %47, %cst_24 [2] : vector<8x64x64xf32> to vector<8x64xf32>
    %49 = vector.shape_cast %48 : vector<8x64xf32> to vector<8x64x1xf32>
    %50 = vector.broadcast %49 : vector<8x64x1xf32> to vector<8x64x64xf32>
    %51 = arith.subf %47, %50 : vector<8x64x64xf32>
    %52 = math.exp %51 : vector<8x64x64xf32>
    %cst_25 = arith.constant dense<0.000000e+00> : vector<8x64xf32>
    %53 = vector.multi_reduction <add>, %52, %cst_25 [2] : vector<8x64x64xf32> to vector<8x64xf32>
    %54 = vector.shape_cast %53 : vector<8x64xf32> to vector<8x64x1xf32>
    %55 = tpu.reciprocal %54 {approx = true} : vector<8x64x1xf32> -> vector<8x64x1xf32>
    %56 = vector.broadcast %55 : vector<8x64x1xf32> to vector<8x64x64xf32>
    %57 = arith.mulf %52, %56 : vector<8x64x64xf32>
    %58 = arith.truncf %57 : vector<8x64x64xf32> to vector<8x64x64xbf16>
    "tpu.trace_start"() <{level = 10 : i32, message = "bnm,bmd->bnd"}> : () -> ()
    %cst_26 = arith.constant dense<0.000000e+00> : vector<8x64x8xf32>
    %59 = tpu.matmul %58, %39, %cst_26 {dimension_numbers = #tpu.dot_dimension_numbers<[2], [1], [1], [2], [0, 0, 0, 1, 1, 2], [0], [0]>} : vector<8x64x64xbf16>, vector<8x64x8xbf16>, vector<8x64x8xf32> -> vector<8x64x8xf32>
    "tpu.trace_stop"() : () -> ()
    %60 = vector.shape_cast %59 : vector<8x64x8xf32> to vector<512x8xf32>
    %61 = arith.truncf %60 : vector<512x8xf32> to vector<512x8xbf16>
    %62 = vector.extract_strided_slice %34 {offsets = [0, 0], sizes = [8, 32], strides = [1, 1]} : vector<32x32xbf16> to vector<8x32xbf16>
    %cst_27 = arith.constant dense<0.000000e+00> : vector<512x32xf32>
    %63 = tpu.matmul %61, %62, %cst_27 {dimension_numbers = #tpu.dot_dimension_numbers<[1], [0], [0], [1], [0, 0, 1, 1], [], []>} : vector<512x8xbf16>, vector<8x32xbf16>, vector<512x32xf32> -> vector<512x32xf32>
    %64 = arith.addf %36, %63 : vector<512x32xf32>
    %65 = vector.extract_strided_slice %33 {offsets = [0, 0, 8], sizes = [8, 64, 8], strides = [1, 1, 1]} : vector<8x64x96xbf16> to vector<8x64x8xbf16>
    %66 = vector.extract_strided_slice %33 {offsets = [0, 0, 40], sizes = [8, 64, 8], strides = [1, 1, 1]} : vector<8x64x96xbf16> to vector<8x64x8xbf16>
    %67 = vector.extract_strided_slice %33 {offsets = [0, 0, 72], sizes = [8, 64, 8], strides = [1, 1, 1]} : vector<8x64x96xbf16> to vector<8x64x8xbf16>
    "tpu.trace_start"() <{level = 10 : i32, message = "bnd,bmd->bnm"}> : () -> ()
    %cst_28 = arith.constant dense<0.000000e+00> : vector<8x64x64xf32>
    %68 = tpu.matmul %65, %66, %cst_28 {dimension_numbers = #tpu.dot_dimension_numbers<[2], [2], [1], [1], [0, 0, 0, 1, 1, 1], [0], [0]>} : vector<8x64x8xbf16>, vector<8x64x8xbf16>, vector<8x64x64xf32> -> vector<8x64x64xf32>
    "tpu.trace_stop"() : () -> ()
    %cst_29 = arith.constant 0.353553385 : f32
    %69 = vector.broadcast %cst_29 : f32 to vector<8x64x64xf32>
    %70 = arith.mulf %68, %69 : vector<8x64x64xf32>
    %71 = vector.extract_strided_slice %35 {offsets = [0, 1, 0, 0], sizes = [1, 1, 64, 64], strides = [1, 1, 1, 1]} : vector<1x4x64x64xf32> to vector<1x1x64x64xf32>
    %72 = vector.shape_cast %71 : vector<1x1x64x64xf32> to vector<64x64xf32>
    %73 = vector.shape_cast %72 : vector<64x64xf32> to vector<1x64x64xf32>
    %74 = vector.broadcast %73 : vector<1x64x64xf32> to vector<8x64x64xf32>
    %75 = arith.addf %70, %74 : vector<8x64x64xf32>
    %cst_30 = arith.constant dense<0xFF800000> : vector<8x64xf32>
    %76 = vector.multi_reduction <maximumf>, %75, %cst_30 [2] : vector<8x64x64xf32> to vector<8x64xf32>
    %77 = vector.shape_cast %76 : vector<8x64xf32> to vector<8x64x1xf32>
    %78 = vector.broadcast %77 : vector<8x64x1xf32> to vector<8x64x64xf32>
    %79 = arith.subf %75, %78 : vector<8x64x64xf32>
    %80 = math.exp %79 : vector<8x64x64xf32>
    %cst_31 = arith.constant dense<0.000000e+00> : vector<8x64xf32>
    %81 = vector.multi_reduction <add>, %80, %cst_31 [2] : vector<8x64x64xf32> to vector<8x64xf32>
    %82 = vector.shape_cast %81 : vector<8x64xf32> to vector<8x64x1xf32>
    %83 = tpu.reciprocal %82 {approx = true} : vector<8x64x1xf32> -> vector<8x64x1xf32>
    %84 = vector.broadcast %83 : vector<8x64x1xf32> to vector<8x64x64xf32>
    %85 = arith.mulf %80, %84 : vector<8x64x64xf32>
    %86 = arith.truncf %85 : vector<8x64x64xf32> to vector<8x64x64xbf16>
    "tpu.trace_start"() <{level = 10 : i32, message = "bnm,bmd->bnd"}> : () -> ()
    %cst_32 = arith.constant dense<0.000000e+00> : vector<8x64x8xf32>
    %87 = tpu.matmul %86, %67, %cst_32 {dimension_numbers = #tpu.dot_dimension_numbers<[2], [1], [1], [2], [0, 0, 0, 1, 1, 2], [0], [0]>} : vector<8x64x64xbf16>, vector<8x64x8xbf16>, vector<8x64x8xf32> -> vector<8x64x8xf32>
    "tpu.trace_stop"() : () -> ()
    %88 = vector.shape_cast %87 : vector<8x64x8xf32> to vector<512x8xf32>
    %89 = arith.truncf %88 : vector<512x8xf32> to vector<512x8xbf16>
    %90 = vector.extract_strided_slice %34 {offsets = [8, 0], sizes = [8, 32], strides = [1, 1]} : vector<32x32xbf16> to vector<8x32xbf16>
    %cst_33 = arith.constant dense<0.000000e+00> : vector<512x32xf32>
    %91 = tpu.matmul %89, %90, %cst_33 {dimension_numbers = #tpu.dot_dimension_numbers<[1], [0], [0], [1], [0, 0, 1, 1], [], []>} : vector<512x8xbf16>, vector<8x32xbf16>, vector<512x32xf32> -> vector<512x32xf32>
    %92 = arith.addf %64, %91 : vector<512x32xf32>
    %93 = vector.extract_strided_slice %33 {offsets = [0, 0, 16], sizes = [8, 64, 8], strides = [1, 1, 1]} : vector<8x64x96xbf16> to vector<8x64x8xbf16>
    %94 = vector.extract_strided_slice %33 {offsets = [0, 0, 48], sizes = [8, 64, 8], strides = [1, 1, 1]} : vector<8x64x96xbf16> to vector<8x64x8xbf16>
    %95 = vector.extract_strided_slice %33 {offsets = [0, 0, 80], sizes = [8, 64, 8], strides = [1, 1, 1]} : vector<8x64x96xbf16> to vector<8x64x8xbf16>
    "tpu.trace_start"() <{level = 10 : i32, message = "bnd,bmd->bnm"}> : () -> ()
    %cst_34 = arith.constant dense<0.000000e+00> : vector<8x64x64xf32>
    %96 = tpu.matmul %93, %94, %cst_34 {dimension_numbers = #tpu.dot_dimension_numbers<[2], [2], [1], [1], [0, 0, 0, 1, 1, 1], [0], [0]>} : vector<8x64x8xbf16>, vector<8x64x8xbf16>, vector<8x64x64xf32> -> vector<8x64x64xf32>
    "tpu.trace_stop"() : () -> ()
    %cst_35 = arith.constant 0.353553385 : f32
    %97 = vector.broadcast %cst_35 : f32 to vector<8x64x64xf32>
    %98 = arith.mulf %96, %97 : vector<8x64x64xf32>
    %99 = vector.extract_strided_slice %35 {offsets = [0, 2, 0, 0], sizes = [1, 1, 64, 64], strides = [1, 1, 1, 1]} : vector<1x4x64x64xf32> to vector<1x1x64x64xf32>
    %100 = vector.shape_cast %99 : vector<1x1x64x64xf32> to vector<64x64xf32>
    %101 = vector.shape_cast %100 : vector<64x64xf32> to vector<1x64x64xf32>
    %102 = vector.broadcast %101 : vector<1x64x64xf32> to vector<8x64x64xf32>
    %103 = arith.addf %98, %102 : vector<8x64x64xf32>
    %cst_36 = arith.constant dense<0xFF800000> : vector<8x64xf32>
    %104 = vector.multi_reduction <maximumf>, %103, %cst_36 [2] : vector<8x64x64xf32> to vector<8x64xf32>
    %105 = vector.shape_cast %104 : vector<8x64xf32> to vector<8x64x1xf32>
    %106 = vector.broadcast %105 : vector<8x64x1xf32> to vector<8x64x64xf32>
    %107 = arith.subf %103, %106 : vector<8x64x64xf32>
    %108 = math.exp %107 : vector<8x64x64xf32>
    %cst_37 = arith.constant dense<0.000000e+00> : vector<8x64xf32>
    %109 = vector.multi_reduction <add>, %108, %cst_37 [2] : vector<8x64x64xf32> to vector<8x64xf32>
    %110 = vector.shape_cast %109 : vector<8x64xf32> to vector<8x64x1xf32>
    %111 = tpu.reciprocal %110 {approx = true} : vector<8x64x1xf32> -> vector<8x64x1xf32>
    %112 = vector.broadcast %111 : vector<8x64x1xf32> to vector<8x64x64xf32>
    %113 = arith.mulf %108, %112 : vector<8x64x64xf32>
    %114 = arith.truncf %113 : vector<8x64x64xf32> to vector<8x64x64xbf16>
    "tpu.trace_start"() <{level = 10 : i32, message = "bnm,bmd->bnd"}> : () -> ()
    %cst_38 = arith.constant dense<0.000000e+00> : vector<8x64x8xf32>
    %115 = tpu.matmul %114, %95, %cst_38 {dimension_numbers = #tpu.dot_dimension_numbers<[2], [1], [1], [2], [0, 0, 0, 1, 1, 2], [0], [0]>} : vector<8x64x64xbf16>, vector<8x64x8xbf16>, vector<8x64x8xf32> -> vector<8x64x8xf32>
    "tpu.trace_stop"() : () -> ()
    %116 = vector.shape_cast %115 : vector<8x64x8xf32> to vector<512x8xf32>
    %117 = arith.truncf %116 : vector<512x8xf32> to vector<512x8xbf16>
    %118 = vector.extract_strided_slice %34 {offsets = [16, 0], sizes = [8, 32], strides = [1, 1]} : vector<32x32xbf16> to vector<8x32xbf16>
    %cst_39 = arith.constant dense<0.000000e+00> : vector<512x32xf32>
    %119 = tpu.matmul %117, %118, %cst_39 {dimension_numbers = #tpu.dot_dimension_numbers<[1], [0], [0], [1], [0, 0, 1, 1], [], []>} : vector<512x8xbf16>, vector<8x32xbf16>, vector<512x32xf32> -> vector<512x32xf32>
    %120 = arith.addf %92, %119 : vector<512x32xf32>
    %121 = vector.extract_strided_slice %33 {offsets = [0, 0, 24], sizes = [8, 64, 8], strides = [1, 1, 1]} : vector<8x64x96xbf16> to vector<8x64x8xbf16>
    %122 = vector.extract_strided_slice %33 {offsets = [0, 0, 56], sizes = [8, 64, 8], strides = [1, 1, 1]} : vector<8x64x96xbf16> to vector<8x64x8xbf16>
    %123 = vector.extract_strided_slice %33 {offsets = [0, 0, 88], sizes = [8, 64, 8], strides = [1, 1, 1]} : vector<8x64x96xbf16> to vector<8x64x8xbf16>
    "tpu.trace_start"() <{level = 10 : i32, message = "bnd,bmd->bnm"}> : () -> ()
    %cst_40 = arith.constant dense<0.000000e+00> : vector<8x64x64xf32>
    %124 = tpu.matmul %121, %122, %cst_40 {dimension_numbers = #tpu.dot_dimension_numbers<[2], [2], [1], [1], [0, 0, 0, 1, 1, 1], [0], [0]>} : vector<8x64x8xbf16>, vector<8x64x8xbf16>, vector<8x64x64xf32> -> vector<8x64x64xf32>
    "tpu.trace_stop"() : () -> ()
    %cst_41 = arith.constant 0.353553385 : f32
    %125 = vector.broadcast %cst_41 : f32 to vector<8x64x64xf32>
    %126 = arith.mulf %124, %125 : vector<8x64x64xf32>
    %127 = vector.extract_strided_slice %35 {offsets = [0, 3, 0, 0], sizes = [1, 1, 64, 64], strides = [1, 1, 1, 1]} : vector<1x4x64x64xf32> to vector<1x1x64x64xf32>
    %128 = vector.shape_cast %127 : vector<1x1x64x64xf32> to vector<64x64xf32>
    %129 = vector.shape_cast %128 : vector<64x64xf32> to vector<1x64x64xf32>
    %130 = vector.broadcast %129 : vector<1x64x64xf32> to vector<8x64x64xf32>
    %131 = arith.addf %126, %130 : vector<8x64x64xf32>
    %cst_42 = arith.constant dense<0xFF800000> : vector<8x64xf32>
    %132 = vector.multi_reduction <maximumf>, %131, %cst_42 [2] : vector<8x64x64xf32> to vector<8x64xf32>
    %133 = vector.shape_cast %132 : vector<8x64xf32> to vector<8x64x1xf32>
    %134 = vector.broadcast %133 : vector<8x64x1xf32> to vector<8x64x64xf32>
    %135 = arith.subf %131, %134 : vector<8x64x64xf32>
    %136 = math.exp %135 : vector<8x64x64xf32>
    %cst_43 = arith.constant dense<0.000000e+00> : vector<8x64xf32>
    %137 = vector.multi_reduction <add>, %136, %cst_43 [2] : vector<8x64x64xf32> to vector<8x64xf32>
    %138 = vector.shape_cast %137 : vector<8x64xf32> to vector<8x64x1xf32>
    %139 = tpu.reciprocal %138 {approx = true} : vector<8x64x1xf32> -> vector<8x64x1xf32>
    %140 = vector.broadcast %139 : vector<8x64x1xf32> to vector<8x64x64xf32>
    %141 = arith.mulf %136, %140 : vector<8x64x64xf32>
    %142 = arith.truncf %141 : vector<8x64x64xf32> to vector<8x64x64xbf16>
    "tpu.trace_start"() <{level = 10 : i32, message = "bnm,bmd->bnd"}> : () -> ()
    %cst_44 = arith.constant dense<0.000000e+00> : vector<8x64x8xf32>
    %143 = tpu.matmul %142, %123, %cst_44 {dimension_numbers = #tpu.dot_dimension_numbers<[2], [1], [1], [2], [0, 0, 0, 1, 1, 2], [0], [0]>} : vector<8x64x64xbf16>, vector<8x64x8xbf16>, vector<8x64x8xf32> -> vector<8x64x8xf32>
    "tpu.trace_stop"() : () -> ()
    %144 = vector.shape_cast %143 : vector<8x64x8xf32> to vector<512x8xf32>
    %145 = arith.truncf %144 : vector<512x8xf32> to vector<512x8xbf16>
    %146 = vector.extract_strided_slice %34 {offsets = [24, 0], sizes = [8, 32], strides = [1, 1]} : vector<32x32xbf16> to vector<8x32xbf16>
    %cst_45 = arith.constant dense<0.000000e+00> : vector<512x32xf32>
    %147 = tpu.matmul %145, %146, %cst_45 {dimension_numbers = #tpu.dot_dimension_numbers<[1], [0], [0], [1], [0, 0, 1, 1], [], []>} : vector<512x8xbf16>, vector<8x32xbf16>, vector<512x32xf32> -> vector<512x32xf32>
    %148 = arith.addf %120, %147 : vector<512x32xf32>
    %c0_46 = arith.constant 0 : index
    %c0_47 = arith.constant 0 : index
    %149 = vector.load %arg7[%c0_46, %c0_47] : memref<1x32xf32, #tpu.memory_space<vmem>>, vector<1x32xf32>
    %150 = vector.broadcast %149 : vector<1x32xf32> to vector<512x32xf32>
    %151 = arith.addf %148, %150 : vector<512x32xf32>
    %152 = vector.shape_cast %151 : vector<512x32xf32> to vector<8x64x32xf32>
    %c0_48 = arith.constant 0 : index
    %c0_49 = arith.constant 0 : index
    %c0_50 = arith.constant 0 : index
    %153 = vector.load %arg9[%c0_48, %c0_49, %c0_50] : memref<8x64x32xf32, #tpu.memory_space<vmem>>, vector<8x64x32xf32>
    tpu.vector_store %arg9[%c0_48, %c0_49, %c0_50], %152 {strides = array<i32>} : memref<8x64x32xf32, #tpu.memory_space<vmem>>, vector<8x64x32xf32>,
    return
  }
  func.func @transform_0(%arg0: i32) -> (i32, i32, i32) {
    %c0_i32 = arith.constant 0 : i32
    %c0_i32_0 = arith.constant 0 : i32
    %c0_i32_1 = arith.constant 0 : i32
    return %arg0, %c0_i32, %c0_i32_0 : i32, i32, i32
  }
  func.func @transform_1(%arg0: i32) -> (i32, i32) {
    %c0_i32 = arith.constant 0 : i32
    %c0_i32_0 = arith.constant 0 : i32
    %c0_i32_1 = arith.constant 0 : i32
    return %c0_i32, %c0_i32_0 : i32, i32
  }
  func.func @transform_2(%arg0: i32) -> (i32, i32) {
    %c0_i32 = arith.constant 0 : i32
    %c0_i32_0 = arith.constant 0 : i32
    %c0_i32_1 = arith.constant 0 : i32
    return %c0_i32, %c0_i32_0 : i32, i32
  }
  func.func @transform_3(%arg0: i32) -> (i32, i32) {
    %c0_i32 = arith.constant 0 : i32
    %c0_i32_0 = arith.constant 0 : i32
    %c0_i32_1 = arith.constant 0 : i32
    return %c0_i32, %c0_i32_0 : i32, i32
  }
  func.func @transform_4(%arg0: i32) -> (i32, i32) {
    %c0_i32 = arith.constant 0 : i32
    %c0_i32_0 = arith.constant 0 : i32
    %c0_i32_1 = arith.constant 0 : i32
    return %c0_i32, %c0_i32_0 : i32, i32
  }
  func.func @transform_5(%arg0: i32) -> (i32, i32) {
    %c0_i32 = arith.constant 0 : i32
    %c0_i32_0 = arith.constant 0 : i32
    %c0_i32_1 = arith.constant 0 : i32
    return %c0_i32, %c0_i32_0 : i32, i32
  }
  func.func @transform_6(%arg0: i32) -> (i32, i32) {
    %c0_i32 = arith.constant 0 : i32
    %c0_i32_0 = arith.constant 0 : i32
    %c0_i32_1 = arith.constant 0 : i32
    return %c0_i32, %c0_i32_0 : i32, i32
  }
  func.func @transform_7(%arg0: i32) -> (i32, i32, i32, i32) {
    %c1_i32 = arith.constant 1 : i32
    %c0_i32 = arith.constant 0 : i32
    %0 = arith.cmpi eq, %c1_i32, %c0_i32 : i32
    %c1_i32_0 = arith.constant 1 : i32
    %1 = arith.select %0, %c1_i32_0, %c1_i32 : i32
    %2 = arith.remsi %arg0, %1 : i32
    %c0_i32_1 = arith.constant 0 : i32
    %3 = arith.cmpi ne, %2, %c0_i32_1 : i32
    %c0_i32_2 = arith.constant 0 : i32
    %4 = arith.cmpi slt, %2, %c0_i32_2 : i32
    %c0_i32_3 = arith.constant 0 : i32
    %5 = arith.cmpi slt, %1, %c0_i32_3 : i32
    %6 = arith.xori %4, %5 : i1
    %7 = arith.andi %6, %3 : i1
    %8 = arith.addi %2, %1 : i32
    %9 = arith.select %7, %8, %2 : i32
    %c0_i32_4 = arith.constant 0 : i32
    %c0_i32_5 = arith.constant 0 : i32
    %c0_i32_6 = arith.constant 0 : i32
    %c0_i32_7 = arith.constant 0 : i32
    return %9, %c0_i32_4, %c0_i32_5, %c0_i32_6 : i32, i32, i32, i32
  }
  func.func @transform_8(%arg0: i32) -> (i32, i32, i32) {
    %c0_i32 = arith.constant 0 : i32
    %c0_i32_0 = arith.constant 0 : i32
    %c0_i32_1 = arith.constant 0 : i32
    return %arg0, %c0_i32, %c0_i32_0 : i32, i32, i32
  }
}

</mosaic_0001>

<llo_original>
// kernel: tpu_custom_call.1
$region0: #{tpu_custom_call.1}
  #allocation0 [shape = 'u32[]', space=smem, size = 0x4, offset = 0x4, fixed_abs, tag = 'smem constant byte address 0x4 - core index']
  #allocation1 [shape = 'u32[144,128]{1,0:T(1,128)}', space=vmem, size = 0x12000, scoped, tag = 'internal scratch']
  %s0 = inlined_call_operand.vmem [shape: f32[8,64,32], index: 0, kind: input, shape index: {}]
  %s1 = inlined_call_operand.vmem [shape: f32[1,32], index: 1, kind: input, shape index: {}]
  %s2 = inlined_call_operand.vmem [shape: f32[1,32], index: 2, kind: input, shape index: {}]
  %s3 = inlined_call_operand.vmem [shape: bf16[32,96], index: 3, kind: input, shape index: {}]
  %s4 = inlined_call_operand.vmem [shape: f32[1,96], index: 4, kind: input, shape index: {}]
  %s5 = inlined_call_operand.vmem [shape: bf16[32,32], index: 5, kind: input, shape index: {}]
  %s6 = inlined_call_operand.vmem [shape: f32[1,32], index: 6, kind: input, shape index: {}]
  %s7 = inlined_call_operand.vmem [shape: f32[1,4,64,64], index: 7, kind: input, shape index: {}]
  %s8 = inlined_call_operand.vmem [shape: f32[8,64,32], index: 8, kind: output, shape index: {}]
  %s9 = sld [smem:[#allocation0]]
  $region42: #{tpu_custom_call.1} parent=0
    _
  %s11 = ssub.s32 1, %s9
  %s12 = scalar_select 0, %s11, %s9
  // Predicated region
  $region2: #{tpu_custom_call.1} parent=0 // pred_check
    _
  $region3: #{tpu_custom_call.1} parent=0 // pred_check_branch
    %14 = sbr.rel (0) target = $region5
  $region4: #{tpu_custom_call.1} parent=0 // pred_region
    _
  $region5: #{tpu_custom_call.1} parent=0 // pred_fallthru
    _
  // Predicated region
  $region6: #{tpu_custom_call.1} parent=0 // pred_check
    _
  $region7: #{tpu_custom_call.1} parent=0 // pred_check_branch
    %16 = sbr.rel (0) target = $region9
  $region8: #{tpu_custom_call.1} parent=0 // pred_region
    _
  $region9: #{tpu_custom_call.1} parent=0 // pred_fallthru
    _
  // Predicated region
  $region10: #{tpu_custom_call.1} parent=0 // pred_check
    _
  $region11: #{tpu_custom_call.1} parent=0 // pred_check_branch
    %18 = sbr.rel (0) target = $region13
  $region12: #{tpu_custom_call.1} parent=0 // pred_region
    _
  $region13: #{tpu_custom_call.1} parent=0 // pred_fallthru
    _
  // Predicated region
  $region14: #{tpu_custom_call.1} parent=0 // pred_check
    _
  $region15: #{tpu_custom_call.1} parent=0 // pred_check_branch
    %20 = sbr.rel (0) target = $region17
  $region16: #{tpu_custom_call.1} parent=0 // pred_region
    _
  $region17: #{tpu_custom_call.1} parent=0 // pred_fallthru
    _
  // Predicated region
  $region18: #{tpu_custom_call.1} parent=0 // pred_check
    _
  $region19: #{tpu_custom_call.1} parent=0 // pred_check_branch
    %22 = sbr.rel (0) target = $region21
  $region20: #{tpu_custom_call.1} parent=0 // pred_region
    _
  $region21: #{tpu_custom_call.1} parent=0 // pred_fallthru
    _
  // Predicated region
  $region22: #{tpu_custom_call.1} parent=0 // pred_check
    _
  $region23: #{tpu_custom_call.1} parent=0 // pred_check_branch
    %24 = sbr.rel (0) target = $region25
  $region24: #{tpu_custom_call.1} parent=0 // pred_region
    _
  $region25: #{tpu_custom_call.1} parent=0 // pred_fallthru
    _
  // Predicated region
  $region26: #{tpu_custom_call.1} parent=0 // pred_check
    _
  $region27: #{tpu_custom_call.1} parent=0 // pred_check_branch
    %26 = sbr.rel (0) target = $region29
  $region28: #{tpu_custom_call.1} parent=0 // pred_region
    _
  $region29: #{tpu_custom_call.1} parent=0 // pred_fallthru
    _
  // Predicated region
  $region30: #{tpu_custom_call.1} parent=0 // pred_check
    _
  $region31: #{tpu_custom_call.1} parent=0 // pred_check_branch
    %28 = sbr.rel (0) target = $region33
  $region32: #{tpu_custom_call.1} parent=0 // pred_region
    _
  $region33: #{tpu_custom_call.1} parent=0 // pred_fallthru
    _
  %v30 = vld [vmem:[%s0] sm:$0xff]
  %v31 = vld [vmem:[%s0 + $0x8] sm:$0xff]
  %v32 = vld [vmem:[%s0 + $0x10] sm:$0xff]
  %v33 = vld [vmem:[%s0 + $0x18] sm:$0xff]
  %v34 = vld [vmem:[%s0 + $0x20] sm:$0xff]
  %v35 = vld [vmem:[%s0 + $0x28] sm:$0xff]
  %v36 = vld [vmem:[%s0 + $0x30] sm:$0xff]
  %v37 = vld [vmem:[%s0 + $0x38] sm:$0xff]
  %v38 = vld [vmem:[%s0 + $0x40] sm:$0xff]
  %v39 = vld [vmem:[%s0 + $0x48] sm:$0xff]
  %v40 = vld [vmem:[%s0 + $0x50] sm:$0xff]
  %v41 = vld [vmem:[%s0 + $0x58] sm:$0xff]
  %v42 = vld [vmem:[%s0 + $0x60] sm:$0xff]
  %v43 = vld [vmem:[%s0 + $0x68] sm:$0xff]
  %v44 = vld [vmem:[%s0 + $0x70] sm:$0xff]
  %v45 = vld [vmem:[%s0 + $0x78] sm:$0xff]
  %v46 = vld [vmem:[%s0 + $0x80] sm:$0xff]
  %v47 = vld [vmem:[%s0 + $0x88] sm:$0xff]
  %v48 = vld [vmem:[%s0 + $0x90] sm:$0xff]
  %v49 = vld [vmem:[%s0 + $0x98] sm:$0xff]
  %v50 = vld [vmem:[%s0 + $0xa0] sm:$0xff]
  %v51 = vld [vmem:[%s0 + $0xa8] sm:$0xff]
  %v52 = vld [vmem:[%s0 + $0xb0] sm:$0xff]
  %v53 = vld [vmem:[%s0 + $0xb8] sm:$0xff]
  %v54 = vld [vmem:[%s0 + $0xc0] sm:$0xff]
  %v55 = vld [vmem:[%s0 + $0xc8] sm:$0xff]
  %v56 = vld [vmem:[%s0 + $0xd0] sm:$0xff]
  %v57 = vld [vmem:[%s0 + $0xd8] sm:$0xff]
  %v58 = vld [vmem:[%s0 + $0xe0] sm:$0xff]
  %v59 = vld [vmem:[%s0 + $0xe8] sm:$0xff]
  %v60 = vld [vmem:[%s0 + $0xf0] sm:$0xff]
  %v61 = vld [vmem:[%s0 + $0xf8] sm:$0xff]
  %v62 = vld [vmem:[%s0 + $0x100] sm:$0xff]
  %v63 = vld [vmem:[%s0 + $0x108] sm:$0xff]
  %v64 = vld [vmem:[%s0 + $0x110] sm:$0xff]
  %v65 = vld [vmem:[%s0 + $0x118] sm:$0xff]
  %v66 = vld [vmem:[%s0 + $0x120] sm:$0xff]
  %v67 = vld [vmem:[%s0 + $0x128] sm:$0xff]
  %v68 = vld [vmem:[%s0 + $0x130] sm:$0xff]
  %v69 = vld [vmem:[%s0 + $0x138] sm:$0xff]
  %v70 = vld [vmem:[%s0 + $0x140] sm:$0xff]
  %v71 = vld [vmem:[%s0 + $0x148] sm:$0xff]
  %v72 = vld [vmem:[%s0 + $0x150] sm:$0xff]
  %v73 = vld [vmem:[%s0 + $0x158] sm:$0xff]
  %v74 = vld [vmem:[%s0 + $0x160] sm:$0xff]
  %v75 = vld [vmem:[%s0 + $0x168] sm:$0xff]
  %v76 = vld [vmem:[%s0 + $0x170] sm:$0xff]
  %v77 = vld [vmem:[%s0 + $0x178] sm:$0xff]
  %v78 = vld [vmem:[%s0 + $0x180] sm:$0xff]
  %v79 = vld [vmem:[%s0 + $0x188] sm:$0xff]
  %v80 = vld [vmem:[%s0 + $0x190] sm:$0xff]
  %v81 = vld [vmem:[%s0 + $0x198] sm:$0xff]
  %v82 = vld [vmem:[%s0 + $0x1a0] sm:$0xff]
  %v83 = vld [vmem:[%s0 + $0x1a8] sm:$0xff]
  %v84 = vld [vmem:[%s0 + $0x1b0] sm:$0xff]
  %v85 = vld [vmem:[%s0 + $0x1b8] sm:$0xff]
  %v86 = vld [vmem:[%s0 + $0x1c0] sm:$0xff]
  %v87 = vld [vmem:[%s0 + $0x1c8] sm:$0xff]
  %v88 = vld [vmem:[%s0 + $0x1d0] sm:$0xff]
  %v89 = vld [vmem:[%s0 + $0x1d8] sm:$0xff]
  %v90 = vld [vmem:[%s0 + $0x1e0] sm:$0xff]
  %v91 = vld [vmem:[%s0 + $0x1e8] sm:$0xff]
  %v92 = vld [vmem:[%s0 + $0x1f0] sm:$0xff]
  %v93 = vld [vmem:[%s0 + $0x1f8] sm:$0xff]
  %vm94 = vcmask 261120
  %v95 = vsel %vm94, %v30, 0.0
  %96 = vadd.xlane.f32.xlu0 %v95
  %v97 = vpop.xlane.xlu0 %96
  %v98 = vsel %vm94, %v31, 0.0
  %99 = vadd.xlane.f32.xlu0 %v98
  %v100 = vpop.xlane.xlu0 %99
  %v101 = vsel %vm94, %v32, 0.0
  %102 = vadd.xlane.f32.xlu0 %v101
  %v103 = vpop.xlane.xlu0 %102
  %v104 = vsel %vm94, %v33, 0.0
  %105 = vadd.xlane.f32.xlu0 %v104
  %v106 = vpop.xlane.xlu0 %105
  %v107 = vsel %vm94, %v34, 0.0
  %108 = vadd.xlane.f32.xlu0 %v107
  %v109 = vpop.xlane.xlu0 %108
  %v110 = vsel %vm94, %v35, 0.0
  %111 = vadd.xlane.f32.xlu0 %v110
  %v112 = vpop.xlane.xlu0 %111
  %v113 = vsel %vm94, %v36, 0.0
  %114 = vadd.xlane.f32.xlu0 %v113
  %v115 = vpop.xlane.xlu0 %114
  %v116 = vsel %vm94, %v37, 0.0
  %117 = vadd.xlane.f32.xlu0 %v116
  %v118 = vpop.xlane.xlu0 %117
  %v119 = vsel %vm94, %v38, 0.0
  %120 = vadd.xlane.f32.xlu0 %v119
  %v121 = vpop.xlane.xlu0 %120
  %v122 = vsel %vm94, %v39, 0.0
  %123 = vadd.xlane.f32.xlu0 %v122
  %v124 = vpop.xlane.xlu0 %123
  %v125 = vsel %vm94, %v40, 0.0
  %126 = vadd.xlane.f32.xlu0 %v125
  %v127 = vpop.xlane.xlu0 %126
  %v128 = vsel %vm94, %v41, 0.0
  %129 = vadd.xlane.f32.xlu0 %v128
  %v130 = vpop.xlane.xlu0 %129
  %v131 = vsel %vm94, %v42, 0.0
  %132 = vadd.xlane.f32.xlu0 %v131
  %v133 = vpop.xlane.xlu0 %132
  %v134 = vsel %vm94, %v43, 0.0
  %135 = vadd.xlane.f32.xlu0 %v134
  %v136 = vpop.xlane.xlu0 %135
  %v137 = vsel %vm94, %v44, 0.0
  %138 = vadd.xlane.f32.xlu0 %v137
  %v139 = vpop.xlane.xlu0 %138
  %v140 = vsel %vm94, %v45, 0.0
  %141 = vadd.xlane.f32.xlu0 %v140
  %v142 = vpop.xlane.xlu0 %141
  %v143 = vsel %vm94, %v46, 0.0
  %144 = vadd.xlane.f32.xlu0 %v143
  %v145 = vpop.xlane.xlu0 %144
  %v146 = vsel %vm94, %v47, 0.0
  %147 = vadd.xlane.f32.xlu0 %v146
  %v148 = vpop.xlane.xlu0 %147
  %v149 = vsel %vm94, %v48, 0.0
  %150 = vadd.xlane.f32.xlu0 %v149
  %v151 = vpop.xlane.xlu0 %150
  %v152 = vsel %vm94, %v49, 0.0
  %153 = vadd.xlane.f32.xlu0 %v152
  %v154 = vpop.xlane.xlu0 %153
  %v155 = vsel %vm94, %v50, 0.0
  %156 = vadd.xlane.f32.xlu0 %v155
  %v157 = vpop.xlane.xlu0 %156
  %v158 = vsel %vm94, %v51, 0.0
  %159 = vadd.xlane.f32.xlu0 %v158
  %v160 = vpop.xlane.xlu0 %159
  %v161 = vsel %vm94, %v52, 0.0
  %162 = vadd.xlane.f32.xlu0 %v161
  %v163 = vpop.xlane.xlu0 %162
  %v164 = vsel %vm94, %v53, 0.0
  %165 = vadd.xlane.f32.xlu0 %v164
  %v166 = vpop.xlane.xlu0 %165
  %v167 = vsel %vm94, %v54, 0.0
  %168 = vadd.xlane.f32.xlu0 %v167
  %v169 = vpop.xlane.xlu0 %168
  %v170 = vsel %vm94, %v55, 0.0
  %171 = vadd.xlane.f32.xlu0 %v170
  %v172 = vpop.xlane.xlu0 %171
  %v173 = vsel %vm94, %v56, 0.0
  %174 = vadd.xlane.f32.xlu0 %v173
  %v175 = vpop.xlane.xlu0 %174
  %v176 = vsel %vm94, %v57, 0.0
  %177 = vadd.xlane.f32.xlu0 %v176
  %v178 = vpop.xlane.xlu0 %177
  %v179 = vsel %vm94, %v58, 0.0
  %180 = vadd.xlane.f32.xlu0 %v179
  %v181 = vpop.xlane.xlu0 %180
  %v182 = vsel %vm94, %v59, 0.0
  %183 = vadd.xlane.f32.xlu0 %v182
  %v184 = vpop.xlane.xlu0 %183
  %v185 = vsel %vm94, %v60, 0.0
  %186 = vadd.xlane.f32.xlu0 %v185
  %v187 = vpop.xlane.xlu0 %186
  %v188 = vsel %vm94, %v61, 0.0
  %189 = vadd.xlane.f32.xlu0 %v188
  %v190 = vpop.xlane.xlu0 %189
  %v191 = vsel %vm94, %v62, 0.0
  %192 = vadd.xlane.f32.xlu0 %v191
  %v193 = vpop.xlane.xlu0 %192
  %v194 = vsel %vm94, %v63, 0.0
  %195 = vadd.xlane.f32.xlu0 %v194
  %v196 = vpop.xlane.xlu0 %195
  %v197 = vsel %vm94, %v64, 0.0
  %198 = vadd.xlane.f32.xlu0 %v197
  %v199 = vpop.xlane.xlu0 %198
  %v200 = vsel %vm94, %v65, 0.0
  %201 = vadd.xlane.f32.xlu0 %v200
  %v202 = vpop.xlane.xlu0 %201
  %v203 = vsel %vm94, %v66, 0.0
  %204 = vadd.xlane.f32.xlu0 %v203
  %v205 = vpop.xlane.xlu0 %204
  %v206 = vsel %vm94, %v67, 0.0
  %207 = vadd.xlane.f32.xlu0 %v206
  %v208 = vpop.xlane.xlu0 %207
  %v209 = vsel %vm94, %v68, 0.0
  %210 = vadd.xlane.f32.xlu0 %v209
  %v211 = vpop.xlane.xlu0 %210
  %v212 = vsel %vm94, %v69, 0.0
  %213 = vadd.xlane.f32.xlu0 %v212
  %v214 = vpop.xlane.xlu0 %213
  %v215 = vsel %vm94, %v70, 0.0
  %216 = vadd.xlane.f32.xlu0 %v215
  %v217 = vpop.xlane.xlu0 %216
  %v218 = vsel %vm94, %v71, 0.0
  %219 = vadd.xlane.f32.xlu0 %v218
  %v220 = vpop.xlane.xlu0 %219
  %v221 = vsel %vm94, %v72, 0.0
  %222 = vadd.xlane.f32.xlu0 %v221
  %v223 = vpop.xlane.xlu0 %222
  %v224 = vsel %vm94, %v73, 0.0
  %225 = vadd.xlane.f32.xlu0 %v224
  %v226 = vpop.xlane.xlu0 %225
  %v227 = vsel %vm94, %v74, 0.0
  %228 = vadd.xlane.f32.xlu0 %v227
  %v229 = vpop.xlane.xlu0 %228
  %v230 = vsel %vm94, %v75, 0.0
  %231 = vadd.xlane.f32.xlu0 %v230
  %v232 = vpop.xlane.xlu0 %231
  %v233 = vsel %vm94, %v76, 0.0
  %234 = vadd.xlane.f32.xlu0 %v233
  %v235 = vpop.xlane.xlu0 %234
  %v236 = vsel %vm94, %v77, 0.0
  %237 = vadd.xlane.f32.xlu0 %v236
  %v238 = vpop.xlane.xlu0 %237
  %v239 = vsel %vm94, %v78, 0.0
  %240 = vadd.xlane.f32.xlu0 %v239
  %v241 = vpop.xlane.xlu0 %240
  %v242 = vsel %vm94, %v79, 0.0
  %243 = vadd.xlane.f32.xlu0 %v242
  %v244 = vpop.xlane.xlu0 %243
  %v245 = vsel %vm94, %v80, 0.0
  %246 = vadd.xlane.f32.xlu0 %v245
  %v247 = vpop.xlane.xlu0 %246
  %v248 = vsel %vm94, %v81, 0.0
  %249 = vadd.xlane.f32.xlu0 %v248
  %v250 = vpop.xlane.xlu0 %249
  %v251 = vsel %vm94, %v82, 0.0
  %252 = vadd.xlane.f32.xlu0 %v251
  %v253 = vpop.xlane.xlu0 %252
  %v254 = vsel %vm94, %v83, 0.0
  %255 = vadd.xlane.f32.xlu0 %v254
  %v256 = vpop.xlane.xlu0 %255
  %v257 = vsel %vm94, %v84, 0.0
  %258 = vadd.xlane.f32.xlu0 %v257
  %v259 = vpop.xlane.xlu0 %258
  %v260 = vsel %vm94, %v85, 0.0
  %261 = vadd.xlane.f32.xlu0 %v260
  %v262 = vpop.xlane.xlu0 %261
  %v263 = vsel %vm94, %v86, 0.0
  %264 = vadd.xlane.f32.xlu0 %v263
  %v265 = vpop.xlane.xlu0 %264
  %v266 = vsel %vm94, %v87, 0.0
  %267 = vadd.xlane.f32.xlu0 %v266
  %v268 = vpop.xlane.xlu0 %267
  %v269 = vsel %vm94, %v88, 0.0
  %270 = vadd.xlane.f32.xlu0 %v269
  %v271 = vpop.xlane.xlu0 %270
  %v272 = vsel %vm94, %v89, 0.0
  %273 = vadd.xlane.f32.xlu0 %v272
  %v274 = vpop.xlane.xlu0 %273
  %v275 = vsel %vm94, %v90, 0.0
  %276 = vadd.xlane.f32.xlu0 %v275
  %v277 = vpop.xlane.xlu0 %276
  %v278 = vsel %vm94, %v91, 0.0
  %279 = vadd.xlane.f32.xlu0 %v278
  %v280 = vpop.xlane.xlu0 %279
  %v281 = vsel %vm94, %v92, 0.0
  %282 = vadd.xlane.f32.xlu0 %v281
  %v283 = vpop.xlane.xlu0 %282
  %v284 = vsel %vm94, %v93, 0.0
  %285 = vadd.xlane.f32.xlu0 %v284
  %v286 = vpop.xlane.xlu0 %285
  %v287 = vrcp.pop 32.0
  %v288 = vmul.f32 %v97, %v287
  %v289 = vmul.f32 %v100, %v287
  %v290 = vmul.f32 %v103, %v287
  %v291 = vmul.f32 %v106, %v287
  %v292 = vmul.f32 %v109, %v287
  %v293 = vmul.f32 %v112, %v287
  %v294 = vmul.f32 %v115, %v287
  %v295 = vmul.f32 %v118, %v287
  %v296 = vmul.f32 %v121, %v287
  %v297 = vmul.f32 %v124, %v287
  %v298 = vmul.f32 %v127, %v287
  %v299 = vmul.f32 %v130, %v287
  %v300 = vmul.f32 %v133, %v287
  %v301 = vmul.f32 %v136, %v287
  %v302 = vmul.f32 %v139, %v287
  %v303 = vmul.f32 %v142, %v287
  %v304 = vmul.f32 %v145, %v287
  %v305 = vmul.f32 %v148, %v287
  %v306 = vmul.f32 %v151, %v287
  %v307 = vmul.f32 %v154, %v287
  %v308 = vmul.f32 %v157, %v287
  %v309 = vmul.f32 %v160, %v287
  %v310 = vmul.f32 %v163, %v287
  %v311 = vmul.f32 %v166, %v287
  %v312 = vmul.f32 %v169, %v287
  %v313 = vmul.f32 %v172, %v287
  %v314 = vmul.f32 %v175, %v287
  %v315 = vmul.f32 %v178, %v287
  %v316 = vmul.f32 %v181, %v287
  %v317 = vmul.f32 %v184, %v287
  %v318 = vmul.f32 %v187, %v287
  %v319 = vmul.f32 %v190, %v287
  %v320 = vmul.f32 %v193, %v287
  %v321 = vmul.f32 %v196, %v287
  %v322 = vmul.f32 %v199, %v287
  %v323 = vmul.f32 %v202, %v287
  %v324 = vmul.f32 %v205, %v287
  %v325 = vmul.f32 %v208, %v287
  %v326 = vmul.f32 %v211, %v287
  %v327 = vmul.f32 %v214, %v287
  %v328 = vmul.f32 %v217, %v287
  %v329 = vmul.f32 %v220, %v287
  %v330 = vmul.f32 %v223, %v287
  %v331 = vmul.f32 %v226, %v287
  %v332 = vmul.f32 %v229, %v287
  %v333 = vmul.f32 %v232, %v287
  %v334 = vmul.f32 %v235, %v287
  %v335 = vmul.f32 %v238, %v287
  %v336 = vmul.f32 %v241, %v287
  %v337 = vmul.f32 %v244, %v287
  %v338 = vmul.f32 %v247, %v287
  %v339 = vmul.f32 %v250, %v287
  %v340 = vmul.f32 %v253, %v287
  %v341 = vmul.f32 %v256, %v287
  %v342 = vmul.f32 %v259, %v287
  %v343 = vmul.f32 %v262, %v287
  %v344 = vmul.f32 %v265, %v287
  %v345 = vmul.f32 %v268, %v287
  %v346 = vmul.f32 %v271, %v287
  %v347 = vmul.f32 %v274, %v287
  %v348 = vmul.f32 %v277, %v287
  %v349 = vmul.f32 %v280, %v287
  %v350 = vmul.f32 %v283, %v287
  %v351 = vmul.f32 %v286, %v287
  %v352 = vsub.f32 %v30, %v288
  %v353 = vsub.f32 %v31, %v289
  %v354 = vsub.f32 %v32, %v290
  %v355 = vsub.f32 %v33, %v291
  %v356 = vsub.f32 %v34, %v292
  %v357 = vsub.f32 %v35, %v293
  %v358 = vsub.f32 %v36, %v294
  %v359 = vsub.f32 %v37, %v295
  %v360 = vsub.f32 %v38, %v296
  %v361 = vsub.f32 %v39, %v297
  %v362 = vsub.f32 %v40, %v298
  %v363 = vsub.f32 %v41, %v299
  %v364 = vsub.f32 %v42, %v300
  %v365 = vsub.f32 %v43, %v301
  %v366 = vsub.f32 %v44, %v302
  %v367 = vsub.f32 %v45, %v303
  %v368 = vsub.f32 %v46, %v304
  %v369 = vsub.f32 %v47, %v305
  %v370 = vsub.f32 %v48, %v306
  %v371 = vsub.f32 %v49, %v307
  %v372 = vsub.f32 %v50, %v308
  %v373 = vsub.f32 %v51, %v309
  %v374 = vsub.f32 %v52, %v310
  %v375 = vsub.f32 %v53, %v311
  %v376 = vsub.f32 %v54, %v312
  %v377 = vsub.f32 %v55, %v313
  %v378 = vsub.f32 %v56, %v314
  %v379 = vsub.f32 %v57, %v315
  %v380 = vsub.f32 %v58, %v316
  %v381 = vsub.f32 %v59, %v317
  %v382 = vsub.f32 %v60, %v318
  %v383 = vsub.f32 %v61, %v319
  %v384 = vsub.f32 %v62, %v320
  %v385 = vsub.f32 %v63, %v321
  %v386 = vsub.f32 %v64, %v322
  %v387 = vsub.f32 %v65, %v323
  %v388 = vsub.f32 %v66, %v324
  %v389 = vsub.f32 %v67, %v325
  %v390 = vsub.f32 %v68, %v326
  %v391 = vsub.f32 %v69, %v327
  %v392 = vsub.f32 %v70, %v328
  %v393 = vsub.f32 %v71, %v329
  %v394 = vsub.f32 %v72, %v330
  %v395 = vsub.f32 %v73, %v331
  %v396 = vsub.f32 %v74, %v332
  %v397 = vsub.f32 %v75, %v333
  %v398 = vsub.f32 %v76, %v334
  %v399 = vsub.f32 %v77, %v335
  %v400 = vsub.f32 %v78, %v336
  %v401 = vsub.f32 %v79, %v337
  %v402 = vsub.f32 %v80, %v338
  %v403 = vsub.f32 %v81, %v339
  %v404 = vsub.f32 %v82, %v340
  %v405 = vsub.f32 %v83, %v341
  %v406 = vsub.f32 %v84, %v342
  %v407 = vsub.f32 %v85, %v343
  %v408 = vsub.f32 %v86, %v344
  %v409 = vsub.f32 %v87, %v345
  %v410 = vsub.f32 %v88, %v346
  %v411 = vsub.f32 %v89, %v347
  %v412 = vsub.f32 %v90, %v348
  %v413 = vsub.f32 %v91, %v349
  %v414 = vsub.f32 %v92, %v350
  %v415 = vsub.f32 %v93, %v351
  %v416 = vmul.f32 %v352, %v352
  %v417 = vmul.f32 %v353, %v353
  %v418 = vmul.f32 %v354, %v354
  %v419 = vmul.f32 %v355, %v355
  %v420 = vmul.f32 %v356, %v356
  %v421 = vmul.f32 %v357, %v357
  %v422 = vmul.f32 %v358, %v358
  %v423 = vmul.f32 %v359, %v359
  %v424 = vmul.f32 %v360, %v360
  %v425 = vmul.f32 %v361, %v361
  %v426 = vmul.f32 %v362, %v362
  %v427 = vmul.f32 %v363, %v363
  %v428 = vmul.f32 %v364, %v364
  %v429 = vmul.f32 %v365, %v365
  %v430 = vmul.f32 %v366, %v366
  %v431 = vmul.f32 %v367, %v367
  %v432 = vmul.f32 %v368, %v368
  %v433 = vmul.f32 %v369, %v369
  %v434 = vmul.f32 %v370, %v370
  %v435 = vmul.f32 %v371, %v371
  %v436 = vmul.f32 %v372, %v372
  %v437 = vmul.f32 %v373, %v373
  %v438 = vmul.f32 %v374, %v374
  %v439 = vmul.f32 %v375, %v375
  %v440 = vmul.f32 %v376, %v376
  %v441 = vmul.f32 %v377, %v377
  %v442 = vmul.f32 %v378, %v378
  %v443 = vmul.f32 %v379, %v379
  %v444 = vmul.f32 %v380, %v380
  %v445 = vmul.f32 %v381, %v381
  %v446 = vmul.f32 %v382, %v382
  %v447 = vmul.f32 %v383, %v383
  %v448 = vmul.f32 %v384, %v384
  %v449 = vmul.f32 %v385, %v385
  %v450 = vmul.f32 %v386, %v386
  %v451 = vmul.f32 %v387, %v387
  %v452 = vmul.f32 %v388, %v388
  %v453 = vmul.f32 %v389, %v389
  %v454 = vmul.f32 %v390, %v390
  %v455 = vmul.f32 %v391, %v391
  %v456 = vmul.f32 %v392, %v392
  %v457 = vmul.f32 %v393, %v393
  %v458 = vmul.f32 %v394, %v394
  %v459 = vmul.f32 %v395, %v395
  %v460 = vmul.f32 %v396, %v396
  %v461 = vmul.f32 %v397, %v397
  %v462 = vmul.f32 %v398, %v398
  %v463 = vmul.f32 %v399, %v399
  %v464 = vmul.f32 %v400, %v400
  %v465 = vmul.f32 %v401, %v401
  %v466 = vmul.f32 %v402, %v402
  %v467 = vmul.f32 %v403, %v403
  %v468 = vmul.f32 %v404, %v404
  %v469 = vmul.f32 %v405, %v405
  %v470 = vmul.f32 %v406, %v406
  %v471 = vmul.f32 %v407, %v407
  %v472 = vmul.f32 %v408, %v408
  %v473 = vmul.f32 %v409, %v409
  %v474 = vmul.f32 %v410, %v410
  %v475 = vmul.f32 %v411, %v411
  %v476 = vmul.f32 %v412, %v412
  %v477 = vmul.f32 %v413, %v413
  %v478 = vmul.f32 %v414, %v414
  %v479 = vmul.f32 %v415, %v415
  %v480 = vsel %vm94, %v416, 0.0
  %481 = vadd.xlane.f32.xlu0 %v480
  %v482 = vpop.xlane.xlu0 %481
  %v483 = vsel %vm94, %v417, 0.0
  %484 = vadd.xlane.f32.xlu0 %v483
  %v485 = vpop.xlane.xlu0 %484
  %v486 = vsel %vm94, %v418, 0.0
  %487 = vadd.xlane.f32.xlu0 %v486
  %v488 = vpop.xlane.xlu0 %487
  %v489 = vsel %vm94, %v419, 0.0
  %490 = vadd.xlane.f32.xlu0 %v489
  %v491 = vpop.xlane.xlu0 %490
  %v492 = vsel %vm94, %v420, 0.0
  %493 = vadd.xlane.f32.xlu0 %v492
  %v494 = vpop.xlane.xlu0 %493
  %v495 = vsel %vm94, %v421, 0.0
  %496 = vadd.xlane.f32.xlu0 %v495
  %v497 = vpop.xlane.xlu0 %496
  %v498 = vsel %vm94, %v422, 0.0
  %499 = vadd.xlane.f32.xlu0 %v498
  %v500 = vpop.xlane.xlu0 %499
  %v501 = vsel %vm94, %v423, 0.0
  %502 = vadd.xlane.f32.xlu0 %v501
  %v503 = vpop.xlane.xlu0 %502
  %v504 = vsel %vm94, %v424, 0.0
  %505 = vadd.xlane.f32.xlu0 %v504
  %v506 = vpop.xlane.xlu0 %505
  %v507 = vsel %vm94, %v425, 0.0
  %508 = vadd.xlane.f32.xlu0 %v507
  %v509 = vpop.xlane.xlu0 %508
  %v510 = vsel %vm94, %v426, 0.0
  %511 = vadd.xlane.f32.xlu0 %v510
  %v512 = vpop.xlane.xlu0 %511
  %v513 = vsel %vm94, %v427, 0.0
  %514 = vadd.xlane.f32.xlu0 %v513
  %v515 = vpop.xlane.xlu0 %514
  %v516 = vsel %vm94, %v428, 0.0
  %517 = vadd.xlane.f32.xlu0 %v516
  %v518 = vpop.xlane.xlu0 %517
  %v519 = vsel %vm94, %v429, 0.0
  %520 = vadd.xlane.f32.xlu0 %v519
  %v521 = vpop.xlane.xlu0 %520
  %v522 = vsel %vm94, %v430, 0.0
  %523 = vadd.xlane.f32.xlu0 %v522
  %v524 = vpop.xlane.xlu0 %523
  %v525 = vsel %vm94, %v431, 0.0
  %526 = vadd.xlane.f32.xlu0 %v525
  %v527 = vpop.xlane.xlu0 %526
  %v528 = vsel %vm94, %v432, 0.0
  %529 = vadd.xlane.f32.xlu0 %v528
  %v530 = vpop.xlane.xlu0 %529
  %v531 = vsel %vm94, %v433, 0.0
  %532 = vadd.xlane.f32.xlu0 %v531
  %v533 = vpop.xlane.xlu0 %532
  %v534 = vsel %vm94, %v434, 0.0
  %535 = vadd.xlane.f32.xlu0 %v534
  %v536 = vpop.xlane.xlu0 %535
  %v537 = vsel %vm94, %v435, 0.0
  %538 = vadd.xlane.f32.xlu0 %v537
  %v539 = vpop.xlane.xlu0 %538
  %v540 = vsel %vm94, %v436, 0.0
  %541 = vadd.xlane.f32.xlu0 %v540
  %v542 = vpop.xlane.xlu0 %541
  %v543 = vsel %vm94, %v437, 0.0
  %544 = vadd.xlane.f32.xlu0 %v543
  %v545 = vpop.xlane.xlu0 %544
  %v546 = vsel %vm94, %v438, 0.0
  %547 = vadd.xlane.f32.xlu0 %v546
  %v548 = vpop.xlane.xlu0 %547
  %v549 = vsel %vm94, %v439, 0.0
  %550 = vadd.xlane.f32.xlu0 %v549
  %v551 = vpop.xlane.xlu0 %550
  %v552 = vsel %vm94, %v440, 0.0
  %553 = vadd.xlane.f32.xlu0 %v552
  %v554 = vpop.xlane.xlu0 %553
  %v555 = vsel %vm94, %v441, 0.0
  %556 = vadd.xlane.f32.xlu0 %v555
  %v557 = vpop.xlane.xlu0 %556
  %v558 = vsel %vm94, %v442, 0.0
  %559 = vadd.xlane.f32.xlu0 %v558
  %v560 = vpop.xlane.xlu0 %559
  %v561 = vsel %vm94, %v443, 0.0
  %562 = vadd.xlane.f32.xlu0 %v561
  %v563 = vpop.xlane.xlu0 %562
  %v564 = vsel %vm94, %v444, 0.0
  %565 = vadd.xlane.f32.xlu0 %v564
  %v566 = vpop.xlane.xlu0 %565
  %v567 = vsel %vm94, %v445, 0.0
  %568 = vadd.xlane.f32.xlu0 %v567
  %v569 = vpop.xlane.xlu0 %568
  %v570 = vsel %vm94, %v446, 0.0
  %571 = vadd.xlane.f32.xlu0 %v570
  %v572 = vpop.xlane.xlu0 %571
  %v573 = vsel %vm94, %v447, 0.0
  %574 = vadd.xlane.f32.xlu0 %v573
  %v575 = vpop.xlane.xlu0 %574
  %v576 = vsel %vm94, %v448, 0.0
  %577 = vadd.xlane.f32.xlu0 %v576
  %v578 = vpop.xlane.xlu0 %577
  %v579 = vsel %vm94, %v449, 0.0
  %580 = vadd.xlane.f32.xlu0 %v579
  %v581 = vpop.xlane.xlu0 %580
  %v582 = vsel %vm94, %v450, 0.0
  %583 = vadd.xlane.f32.xlu0 %v582
  %v584 = vpop.xlane.xlu0 %583
  %v585 = vsel %vm94, %v451, 0.0
  %586 = vadd.xlane.f32.xlu0 %v585
  %v587 = vpop.xlane.xlu0 %586
  %v588 = vsel %vm94, %v452, 0.0
  %589 = vadd.xlane.f32.xlu0 %v588
  %v590 = vpop.xlane.xlu0 %589
  %v591 = vsel %vm94, %v453, 0.0
  %592 = vadd.xlane.f32.xlu0 %v591
  %v593 = vpop.xlane.xlu0 %592
  %v594 = vsel %vm94, %v454, 0.0
  %595 = vadd.xlane.f32.xlu0 %v594
  %v596 = vpop.xlane.xlu0 %595
  %v597 = vsel %vm94, %v455, 0.0
  %598 = vadd.xlane.f32.xlu0 %v597
  %v599 = vpop.xlane.xlu0 %598
  %v600 = vsel %vm94, %v456, 0.0
  %601 = vadd.xlane.f32.xlu0 %v600
  %v602 = vpop.xlane.xlu0 %601
  %v603 = vsel %vm94, %v457, 0.0
  %604 = vadd.xlane.f32.xlu0 %v603
  %v605 = vpop.xlane.xlu0 %604
  %v606 = vsel %vm94, %v458, 0.0
  %607 = vadd.xlane.f32.xlu0 %v606
  %v608 = vpop.xlane.xlu0 %607
  %v609 = vsel %vm94, %v459, 0.0
  %610 = vadd.xlane.f32.xlu0 %v609
  %v611 = vpop.xlane.xlu0 %610
  %v612 = vsel %vm94, %v460, 0.0
  %613 = vadd.xlane.f32.xlu0 %v612
  %v614 = vpop.xlane.xlu0 %613
  %v615 = vsel %vm94, %v461, 0.0
  %616 = vadd.xlane.f32.xlu0 %v615
  %v617 = vpop.xlane.xlu0 %616
  %v618 = vsel %vm94, %v462, 0.0
  %619 = vadd.xlane.f32.xlu0 %v618
  %v620 = vpop.xlane.xlu0 %619
  %v621 = vsel %vm94, %v463, 0.0
  %622 = vadd.xlane.f32.xlu0 %v621
  %v623 = vpop.xlane.xlu0 %622
  %v624 = vsel %vm94, %v464, 0.0
  %625 = vadd.xlane.f32.xlu0 %v624
  %v626 = vpop.xlane.xlu0 %625
  %v627 = vsel %vm94, %v465, 0.0
  %628 = vadd.xlane.f32.xlu0 %v627
  %v629 = vpop.xlane.xlu0 %628
  %v630 = vsel %vm94, %v466, 0.0
  %631 = vadd.xlane.f32.xlu0 %v630
  %v632 = vpop.xlane.xlu0 %631
  %v633 = vsel %vm94, %v467, 0.0
  %634 = vadd.xlane.f32.xlu0 %v633
  %v635 = vpop.xlane.xlu0 %634
  %v636 = vsel %vm94, %v468, 0.0
  %637 = vadd.xlane.f32.xlu0 %v636
  %v638 = vpop.xlane.xlu0 %637
  %v639 = vsel %vm94, %v469, 0.0
  %640 = vadd.xlane.f32.xlu0 %v639
  %v641 = vpop.xlane.xlu0 %640
  %v642 = vsel %vm94, %v470, 0.0
  %643 = vadd.xlane.f32.xlu0 %v642
  %v644 = vpop.xlane.xlu0 %643
  %v645 = vsel %vm94, %v471, 0.0
  %646 = vadd.xlane.f32.xlu0 %v645
  %v647 = vpop.xlane.xlu0 %646
  %v648 = vsel %vm94, %v472, 0.0
  %649 = vadd.xlane.f32.xlu0 %v648
  %v650 = vpop.xlane.xlu0 %649
  %v651 = vsel %vm94, %v473, 0.0
  %652 = vadd.xlane.f32.xlu0 %v651
  %v653 = vpop.xlane.xlu0 %652
  %v654 = vsel %vm94, %v474, 0.0
  %655 = vadd.xlane.f32.xlu0 %v654
  %v656 = vpop.xlane.xlu0 %655
  %v657 = vsel %vm94, %v475, 0.0
  %658 = vadd.xlane.f32.xlu0 %v657
  %v659 = vpop.xlane.xlu0 %658
  %v660 = vsel %vm94, %v476, 0.0
  %661 = vadd.xlane.f32.xlu0 %v660
  %v662 = vpop.xlane.xlu0 %661
  %v663 = vsel %vm94, %v477, 0.0
  %664 = vadd.xlane.f32.xlu0 %v663
  %v665 = vpop.xlane.xlu0 %664
  %v666 = vsel %vm94, %v478, 0.0
  %667 = vadd.xlane.f32.xlu0 %v666
  %v668 = vpop.xlane.xlu0 %667
  %v669 = vsel %vm94, %v479, 0.0
  %670 = vadd.xlane.f32.xlu0 %v669
  %v671 = vpop.xlane.xlu0 %670
  %v672 = vmul.f32 %v482, %v287
  %v673 = vmul.f32 %v485, %v287
  %v674 = vmul.f32 %v488, %v287
  %v675 = vmul.f32 %v491, %v287
  %v676 = vmul.f32 %v494, %v287
  %v677 = vmul.f32 %v497, %v287
  %v678 = vmul.f32 %v500, %v287
  %v679 = vmul.f32 %v503, %v287
  %v680 = vmul.f32 %v506, %v287
  %v681 = vmul.f32 %v509, %v287
  %v682 = vmul.f32 %v512, %v287
  %v683 = vmul.f32 %v515, %v287
  %v684 = vmul.f32 %v518, %v287
  %v685 = vmul.f32 %v521, %v287
  %v686 = vmul.f32 %v524, %v287
  %v687 = vmul.f32 %v527, %v287
  %v688 = vmul.f32 %v530, %v287
  %v689 = vmul.f32 %v533, %v287
  %v690 = vmul.f32 %v536, %v287
  %v691 = vmul.f32 %v539, %v287
  %v692 = vmul.f32 %v542, %v287
  %v693 = vmul.f32 %v545, %v287
  %v694 = vmul.f32 %v548, %v287
  %v695 = vmul.f32 %v551, %v287
  %v696 = vmul.f32 %v554, %v287
  %v697 = vmul.f32 %v557, %v287
  %v698 = vmul.f32 %v560, %v287
  %v699 = vmul.f32 %v563, %v287
  %v700 = vmul.f32 %v566, %v287
  %v701 = vmul.f32 %v569, %v287
  %v702 = vmul.f32 %v572, %v287
  %v703 = vmul.f32 %v575, %v287
  %v704 = vmul.f32 %v578, %v287
  %v705 = vmul.f32 %v581, %v287
  %v706 = vmul.f32 %v584, %v287
  %v707 = vmul.f32 %v587, %v287
  %v708 = vmul.f32 %v590, %v287
  %v709 = vmul.f32 %v593, %v287
  %v710 = vmul.f32 %v596, %v287
  %v711 = vmul.f32 %v599, %v287
  %v712 = vmul.f32 %v602, %v287
  %v713 = vmul.f32 %v605, %v287
  %v714 = vmul.f32 %v608, %v287
  %v715 = vmul.f32 %v611, %v287
  %v716 = vmul.f32 %v614, %v287
  %v717 = vmul.f32 %v617, %v287
  %v718 = vmul.f32 %v620, %v287
  %v719 = vmul.f32 %v623, %v287
  %v720 = vmul.f32 %v626, %v287
  %v721 = vmul.f32 %v629, %v287
  %v722 = vmul.f32 %v632, %v287
  %v723 = vmul.f32 %v635, %v287
  %v724 = vmul.f32 %v638, %v287
  %v725 = vmul.f32 %v641, %v287
  %v726 = vmul.f32 %v644, %v287
  %v727 = vmul.f32 %v647, %v287
  %v728 = vmul.f32 %v650, %v287
  %v729 = vmul.f32 %v653, %v287
  %v730 = vmul.f32 %v656, %v287
  %v731 = vmul.f32 %v659, %v287
  %v732 = vmul.f32 %v662, %v287
  %v733 = vmul.f32 %v665, %v287
  %v734 = vmul.f32 %v668, %v287
  %v735 = vmul.f32 %v671, %v287
  %v736 = vadd.f32 %v672, 1e-05
  %v737 = vadd.f32 %v673, 1e-05
  %v738 = vadd.f32 %v674, 1e-05
  %v739 = vadd.f32 %v675, 1e-05
  %v740 = vadd.f32 %v676, 1e-05
  %v741 = vadd.f32 %v677, 1e-05
  %v742 = vadd.f32 %v678, 1e-05
  %v743 = vadd.f32 %v679, 1e-05
  %v744 = vadd.f32 %v680, 1e-05
  %v745 = vadd.f32 %v681, 1e-05
  %v746 = vadd.f32 %v682, 1e-05
  %v747 = vadd.f32 %v683, 1e-05
  %v748 = vadd.f32 %v684, 1e-05
  %v749 = vadd.f32 %v685, 1e-05
  %v750 = vadd.f32 %v686, 1e-05
  %v751 = vadd.f32 %v687, 1e-05
  %v752 = vadd.f32 %v688, 1e-05
  %v753 = vadd.f32 %v689, 1e-05
  %v754 = vadd.f32 %v690, 1e-05
  %v755 = vadd.f32 %v691, 1e-05
  %v756 = vadd.f32 %v692, 1e-05
  %v757 = vadd.f32 %v693, 1e-05
  %v758 = vadd.f32 %v694, 1e-05
  %v759 = vadd.f32 %v695, 1e-05
  %v760 = vadd.f32 %v696, 1e-05
  %v761 = vadd.f32 %v697, 1e-05
  %v762 = vadd.f32 %v698, 1e-05
  %v763 = vadd.f32 %v699, 1e-05
  %v764 = vadd.f32 %v700, 1e-05
  %v765 = vadd.f32 %v701, 1e-05
  %v766 = vadd.f32 %v702, 1e-05
  %v767 = vadd.f32 %v703, 1e-05
  %v768 = vadd.f32 %v704, 1e-05
  %v769 = vadd.f32 %v705, 1e-05
  %v770 = vadd.f32 %v706, 1e-05
  %v771 = vadd.f32 %v707, 1e-05
  %v772 = vadd.f32 %v708, 1e-05
  %v773 = vadd.f32 %v709, 1e-05
  %v774 = vadd.f32 %v710, 1e-05
  %v775 = vadd.f32 %v711, 1e-05
  %v776 = vadd.f32 %v712, 1e-05
  %v777 = vadd.f32 %v713, 1e-05
  %v778 = vadd.f32 %v714, 1e-05
  %v779 = vadd.f32 %v715, 1e-05
  %v780 = vadd.f32 %v716, 1e-05
  %v781 = vadd.f32 %v717, 1e-05
  %v782 = vadd.f32 %v718, 1e-05
  %v783 = vadd.f32 %v719, 1e-05
  %v784 = vadd.f32 %v720, 1e-05
  %v785 = vadd.f32 %v721, 1e-05
  %v786 = vadd.f32 %v722, 1e-05
  %v787 = vadd.f32 %v723, 1e-05
  %v788 = vadd.f32 %v724, 1e-05
  %v789 = vadd.f32 %v725, 1e-05
  %v790 = vadd.f32 %v726, 1e-05
  %v791 = vadd.f32 %v727, 1e-05
  %v792 = vadd.f32 %v728, 1e-05
  %v793 = vadd.f32 %v729, 1e-05
  %v794 = vadd.f32 %v730, 1e-05
  %v795 = vadd.f32 %v731, 1e-05
  %v796 = vadd.f32 %v732, 1e-05
  %v797 = vadd.f32 %v733, 1e-05
  %v798 = vadd.f32 %v734, 1e-05
  %v799 = vadd.f32 %v735, 1e-05
  %v800 = vrsqrt.pop %v736
  %v801 = vrsqrt.pop %v737
  %v802 = vrsqrt.pop %v738
  %v803 = vrsqrt.pop %v739
  %v804 = vrsqrt.pop %v740
  %v805 = vrsqrt.pop %v741
  %v806 = vrsqrt.pop %v742
  %v807 = vrsqrt.pop %v743
  %v808 = vrsqrt.pop %v744
  %v809 = vrsqrt.pop %v745
  %v810 = vrsqrt.pop %v746
  %v811 = vrsqrt.pop %v747
  %v812 = vrsqrt.pop %v748
  %v813 = vrsqrt.pop %v749
  %v814 = vrsqrt.pop %v750
  %v815 = vrsqrt.pop %v751
  %v816 = vrsqrt.pop %v752
  %v817 = vrsqrt.pop %v753
  %v818 = vrsqrt.pop %v754
  %v819 = vrsqrt.pop %v755
  %v820 = vrsqrt.pop %v756
  %v821 = vrsqrt.pop %v757
  %v822 = vrsqrt.pop %v758
  %v823 = vrsqrt.pop %v759
  %v824 = vrsqrt.pop %v760
  %v825 = vrsqrt.pop %v761
  %v826 = vrsqrt.pop %v762
  %v827 = vrsqrt.pop %v763
  %v828 = vrsqrt.pop %v764
  %v829 = vrsqrt.pop %v765
  %v830 = vrsqrt.pop %v766
  %v831 = vrsqrt.pop %v767
  %v832 = vrsqrt.pop %v768
  %v833 = vrsqrt.pop %v769
  %v834 = vrsqrt.pop %v770
  %v835 = vrsqrt.pop %v771
  %v836 = vrsqrt.pop %v772
  %v837 = vrsqrt.pop %v773
  %v838 = vrsqrt.pop %v774
  %v839 = vrsqrt.pop %v775
  %v840 = vrsqrt.pop %v776
  %v841 = vrsqrt.pop %v777
  %v842 = vrsqrt.pop %v778
  %v843 = vrsqrt.pop %v779
  %v844 = vrsqrt.pop %v780
  %v845 = vrsqrt.pop %v781
  %v846 = vrsqrt.pop %v782
  %v847 = vrsqrt.pop %v783
  %v848 = vrsqrt.pop %v784
  %v849 = vrsqrt.pop %v785
  %v850 = vrsqrt.pop %v786
  %v851 = vrsqrt.pop %v787
  %v852 = vrsqrt.pop %v788
  %v853 = vrsqrt.pop %v789
  %v854 = vrsqrt.pop %v790
  %v855 = vrsqrt.pop %v791
  %v856 = vrsqrt.pop %v792
  %v857 = vrsqrt.pop %v793
  %v858 = vrsqrt.pop %v794
  %v859 = vrsqrt.pop %v795
  %v860 = vrsqrt.pop %v796
  %v861 = vrsqrt.pop %v797
  %v862 = vrsqrt.pop %v798
  %v863 = vrsqrt.pop %v799
  %v864 = vmul.f32 %v352, %v800
  %v865 = vmul.f32 %v353, %v801
  %v866 = vmul.f32 %v354, %v802
  %v867 = vmul.f32 %v355, %v803
  %v868 = vmul.f32 %v356, %v804
  %v869 = vmul.f32 %v357, %v805
  %v870 = vmul.f32 %v358, %v806
  %v871 = vmul.f32 %v359, %v807
  %v872 = vmul.f32 %v360, %v808
  %v873 = vmul.f32 %v361, %v809
  %v874 = vmul.f32 %v362, %v810
  %v875 = vmul.f32 %v363, %v811
  %v876 = vmul.f32 %v364, %v812
  %v877 = vmul.f32 %v365, %v813
  %v878 = vmul.f32 %v366, %v814
  %v879 = vmul.f32 %v367, %v815
  %v880 = vmul.f32 %v368, %v816
  %v881 = vmul.f32 %v369, %v817
  %v882 = vmul.f32 %v370, %v818
  %v883 = vmul.f32 %v371, %v819
  %v884 = vmul.f32 %v372, %v820
  %v885 = vmul.f32 %v373, %v821
  %v886 = vmul.f32 %v374, %v822
  %v887 = vmul.f32 %v375, %v823
  %v888 = vmul.f32 %v376, %v824
  %v889 = vmul.f32 %v377, %v825
  %v890 = vmul.f32 %v378, %v826
  %v891 = vmul.f32 %v379, %v827
  %v892 = vmul.f32 %v380, %v828
  %v893 = vmul.f32 %v381, %v829
  %v894 = vmul.f32 %v382, %v830
  %v895 = vmul.f32 %v383, %v831
  %v896 = vmul.f32 %v384, %v832
  %v897 = vmul.f32 %v385, %v833
  %v898 = vmul.f32 %v386, %v834
  %v899 = vmul.f32 %v387, %v835
  %v900 = vmul.f32 %v388, %v836
  %v901 = vmul.f32 %v389, %v837
  %v902 = vmul.f32 %v390, %v838
  %v903 = vmul.f32 %v391, %v839
  %v904 = vmul.f32 %v392, %v840
  %v905 = vmul.f32 %v393, %v841
  %v906 = vmul.f32 %v394, %v842
  %v907 = vmul.f32 %v395, %v843
  %v908 = vmul.f32 %v396, %v844
  %v909 = vmul.f32 %v397, %v845
  %v910 = vmul.f32 %v398, %v846
  %v911 = vmul.f32 %v399, %v847
  %v912 = vmul.f32 %v400, %v848
  %v913 = vmul.f32 %v401, %v849
  %v914 = vmul.f32 %v402, %v850
  %v915 = vmul.f32 %v403, %v851
  %v916 = vmul.f32 %v404, %v852
  %v917 = vmul.f32 %v405, %v853
  %v918 = vmul.f32 %v406, %v854
  %v919 = vmul.f32 %v407, %v855
  %v920 = vmul.f32 %v408, %v856
  %v921 = vmul.f32 %v409, %v857
  %v922 = vmul.f32 %v410, %v858
  %v923 = vmul.f32 %v411, %v859
  %v924 = vmul.f32 %v412, %v860
  %v925 = vmul.f32 %v413, %v861
  %v926 = vmul.f32 %v414, %v862
  %v927 = vmul.f32 %v415, %v863
  %v928 = vld [vmem:[%s1] sm:$0x1]
  %v930 = vlaneseq
  %v931 = vshrl.u32 %v930, 7
  %v932 = vsub.s32 0, %v931
  %v933 = vrot.slane %v928, %v932
  %v935 = vmul.f32 %v864, %v933
  %v936 = vmul.f32 %v865, %v933
  %v937 = vmul.f32 %v866, %v933
  %v938 = vmul.f32 %v867, %v933
  %v939 = vmul.f32 %v868, %v933
  %v940 = vmul.f32 %v869, %v933
  %v941 = vmul.f32 %v870, %v933
  %v942 = vmul.f32 %v871, %v933
  %v943 = vmul.f32 %v872, %v933
  %v944 = vmul.f32 %v873, %v933
  %v945 = vmul.f32 %v874, %v933
  %v946 = vmul.f32 %v875, %v933
  %v947 = vmul.f32 %v876, %v933
  %v948 = vmul.f32 %v877, %v933
  %v949 = vmul.f32 %v878, %v933
  %v950 = vmul.f32 %v879, %v933
  %v951 = vmul.f32 %v880, %v933
  %v952 = vmul.f32 %v881, %v933
  %v953 = vmul.f32 %v882, %v933
  %v954 = vmul.f32 %v883, %v933
  %v955 = vmul.f32 %v884, %v933
  %v956 = vmul.f32 %v885, %v933
  %v957 = vmul.f32 %v886, %v933
  %v958 = vmul.f32 %v887, %v933
  %v959 = vmul.f32 %v888, %v933
  %v960 = vmul.f32 %v889, %v933
  %v961 = vmul.f32 %v890, %v933
  %v962 = vmul.f32 %v891, %v933
  %v963 = vmul.f32 %v892, %v933
  %v964 = vmul.f32 %v893, %v933
  %v965 = vmul.f32 %v894, %v933
  %v966 = vmul.f32 %v895, %v933
  %v967 = vmul.f32 %v896, %v933
  %v968 = vmul.f32 %v897, %v933
  %v969 = vmul.f32 %v898, %v933
  %v970 = vmul.f32 %v899, %v933
  %v971 = vmul.f32 %v900, %v933
  %v972 = vmul.f32 %v901, %v933
  %v973 = vmul.f32 %v902, %v933
  %v974 = vmul.f32 %v903, %v933
  %v975 = vmul.f32 %v904, %v933
  %v976 = vmul.f32 %v905, %v933
  %v977 = vmul.f32 %v906, %v933
  %v978 = vmul.f32 %v907, %v933
  %v979 = vmul.f32 %v908, %v933
  %v980 = vmul.f32 %v909, %v933
  %v981 = vmul.f32 %v910, %v933
  %v982 = vmul.f32 %v911, %v933
  %v983 = vmul.f32 %v912, %v933
  %v984 = vmul.f32 %v913, %v933
  %v985 = vmul.f32 %v914, %v933
  %v986 = vmul.f32 %v915, %v933
  %v987 = vmul.f32 %v916, %v933
  %v988 = vmul.f32 %v917, %v933
  %v989 = vmul.f32 %v918, %v933
  %v990 = vmul.f32 %v919, %v933
  %v991 = vmul.f32 %v920, %v933
  %v992 = vmul.f32 %v921, %v933
  %v993 = vmul.f32 %v922, %v933
  %v994 = vmul.f32 %v923, %v933
  %v995 = vmul.f32 %v924, %v933
  %v996 = vmul.f32 %v925, %v933
  %v997 = vmul.f32 %v926, %v933
  %v998 = vmul.f32 %v927, %v933
  %v999 = vld [vmem:[%s2] sm:$0x1]
  %v1001 = vlaneseq
  %v1002 = vshrl.u32 %v1001, 7
  %v1003 = vsub.s32 0, %v1002
  %v1004 = vrot.slane %v999, %v1003
  %v1006 = vadd.f32 %v935, %v1004
  %v1007 = vadd.f32 %v936, %v1004
  %v1008 = vadd.f32 %v937, %v1004
  %v1009 = vadd.f32 %v938, %v1004
  %v1010 = vadd.f32 %v939, %v1004
  %v1011 = vadd.f32 %v940, %v1004
  %v1012 = vadd.f32 %v941, %v1004
  %v1013 = vadd.f32 %v942, %v1004
  %v1014 = vadd.f32 %v943, %v1004
  %v1015 = vadd.f32 %v944, %v1004
  %v1016 = vadd.f32 %v945, %v1004
  %v1017 = vadd.f32 %v946, %v1004
  %v1018 = vadd.f32 %v947, %v1004
  %v1019 = vadd.f32 %v948, %v1004
  %v1020 = vadd.f32 %v949, %v1004
  %v1021 = vadd.f32 %v950, %v1004
  %v1022 = vadd.f32 %v951, %v1004
  %v1023 = vadd.f32 %v952, %v1004
  %v1024 = vadd.f32 %v953, %v1004
  %v1025 = vadd.f32 %v954, %v1004
  %v1026 = vadd.f32 %v955, %v1004
  %v1027 = vadd.f32 %v956, %v1004
  %v1028 = vadd.f32 %v957, %v1004
  %v1029 = vadd.f32 %v958, %v1004
  %v1030 = vadd.f32 %v959, %v1004
  %v1031 = vadd.f32 %v960, %v1004
  %v1032 = vadd.f32 %v961, %v1004
  %v1033 = vadd.f32 %v962, %v1004
  %v1034 = vadd.f32 %v963, %v1004
  %v1035 = vadd.f32 %v964, %v1004
  %v1036 = vadd.f32 %v965, %v1004
  %v1037 = vadd.f32 %v966, %v1004
  %v1038 = vadd.f32 %v967, %v1004
  %v1039 = vadd.f32 %v968, %v1004
  %v1040 = vadd.f32 %v969, %v1004
  %v1041 = vadd.f32 %v970, %v1004
  %v1042 = vadd.f32 %v971, %v1004
  %v1043 = vadd.f32 %v972, %v1004
  %v1044 = vadd.f32 %v973, %v1004
  %v1045 = vadd.f32 %v974, %v1004
  %v1046 = vadd.f32 %v975, %v1004
  %v1047 = vadd.f32 %v976, %v1004
  %v1048 = vadd.f32 %v977, %v1004
  %v1049 = vadd.f32 %v978, %v1004
  %v1050 = vadd.f32 %v979, %v1004
  %v1051 = vadd.f32 %v980, %v1004
  %v1052 = vadd.f32 %v981, %v1004
  %v1053 = vadd.f32 %v982, %v1004
  %v1054 = vadd.f32 %v983, %v1004
  %v1055 = vadd.f32 %v984, %v1004
  %v1056 = vadd.f32 %v985, %v1004
  %v1057 = vadd.f32 %v986, %v1004
  %v1058 = vadd.f32 %v987, %v1004
  %v1059 = vadd.f32 %v988, %v1004
  %v1060 = vadd.f32 %v989, %v1004
  %v1061 = vadd.f32 %v990, %v1004
  %v1062 = vadd.f32 %v991, %v1004
  %v1063 = vadd.f32 %v992, %v1004
  %v1064 = vadd.f32 %v993, %v1004
  %v1065 = vadd.f32 %v994, %v1004
  %v1066 = vadd.f32 %v995, %v1004
  %v1067 = vadd.f32 %v996, %v1004
  %v1068 = vadd.f32 %v997, %v1004
  %v1069 = vadd.f32 %v998, %v1004
  %v1070 = vpack.c.bf16 %v1007, %v1006
  %v1071 = vpack.c.bf16 %v1009, %v1008
  %v1072 = vpack.c.bf16 %v1011, %v1010
  %v1073 = vpack.c.bf16 %v1013, %v1012
  %v1074 = vpack.c.bf16 %v1015, %v1014
  %v1075 = vpack.c.bf16 %v1017, %v1016
  %v1076 = vpack.c.bf16 %v1019, %v1018
  %v1077 = vpack.c.bf16 %v1021, %v1020
  %v1078 = vpack.c.bf16 %v1023, %v1022
  %v1079 = vpack.c.bf16 %v1025, %v1024
  %v1080 = vpack.c.bf16 %v1027, %v1026
  %v1081 = vpack.c.bf16 %v1029, %v1028
  %v1082 = vpack.c.bf16 %v1031, %v1030
  %v1083 = vpack.c.bf16 %v1033, %v1032
  %v1084 = vpack.c.bf16 %v1035, %v1034
  %v1085 = vpack.c.bf16 %v1037, %v1036
  %v1086 = vpack.c.bf16 %v1039, %v1038
  %v1087 = vpack.c.bf16 %v1041, %v1040
  %v1088 = vpack.c.bf16 %v1043, %v1042
  %v1089 = vpack.c.bf16 %v1045, %v1044
  %v1090 = vpack.c.bf16 %v1047, %v1046
  %v1091 = vpack.c.bf16 %v1049, %v1048
  %v1092 = vpack.c.bf16 %v1051, %v1050
  %v1093 = vpack.c.bf16 %v1053, %v1052
  %v1094 = vpack.c.bf16 %v1055, %v1054
  %v1095 = vpack.c.bf16 %v1057, %v1056
  %v1096 = vpack.c.bf16 %v1059, %v1058
  %v1097 = vpack.c.bf16 %v1061, %v1060
  %v1098 = vpack.c.bf16 %v1063, %v1062
  %v1099 = vpack.c.bf16 %v1065, %v1064
  %v1100 = vpack.c.bf16 %v1067, %v1066
  %v1101 = vpack.c.bf16 %v1069, %v1068
  %v1102 = vld [vmem:[%s3] sm:$0xf]
  %v1103 = vld [vmem:[%s3 + $0x4] sm:$0xf]
  %v1104 = vld [vmem:[%s3 + $0x8] sm:$0xf]
  %v1105 = vld [vmem:[%s3 + $0xc] sm:$0xf]
  %v1106 = vld [vmem:[%s4] sm:$0x1]
  %v1108 = vlaneseq
  %v1109 = vshrl.u32 %v1108, 7
  %v1110 = vsub.s32 0, %v1109
  %v1111 = vrot.slane %v1106, %v1110
  %v1117 = vunpack.c.l.b16 %v1102
  %v1118 = vunpack.c.l.b16 %v1103
  %v1119 = vunpack.c.l.b16 %v1104
  %v1120 = vunpack.c.l.b16 %v1105
  %v1121 = vpack.c.b16 %v1118, %v1117
  %v1122 = vpack.c.b16 %v1120, %v1119
  %v1126 = vsel %vm94, %v1070, 0
  %v1129 = vsel %vm94, %v1071, 0
  %v1132 = vsel %vm94, %v1072, 0
  %v1135 = vsel %vm94, %v1073, 0
  %v1138 = vsel %vm94, %v1074, 0
  %v1141 = vsel %vm94, %v1075, 0
  %v1144 = vsel %vm94, %v1076, 0
  %v1147 = vsel %vm94, %v1077, 0
  %v1150 = vsel %vm94, %v1078, 0
  %v1153 = vsel %vm94, %v1079, 0
  %v1156 = vsel %vm94, %v1080, 0
  %v1159 = vsel %vm94, %v1081, 0
  %v1162 = vsel %vm94, %v1082, 0
  %v1165 = vsel %vm94, %v1083, 0
  %v1168 = vsel %vm94, %v1084, 0
  %v1171 = vsel %vm94, %v1085, 0
  %v1174 = vsel %vm94, %v1086, 0
  %v1177 = vsel %vm94, %v1087, 0
  %v1180 = vsel %vm94, %v1088, 0
  %v1183 = vsel %vm94, %v1089, 0
  %v1186 = vsel %vm94, %v1090, 0
  %v1189 = vsel %vm94, %v1091, 0
  %v1192 = vsel %vm94, %v1092, 0
  %v1195 = vsel %vm94, %v1093, 0
  %v1198 = vsel %vm94, %v1094, 0
  %v1201 = vsel %vm94, %v1095, 0
  %v1204 = vsel %vm94, %v1096, 0
  %v1207 = vsel %vm94, %v1097, 0
  %v1210 = vsel %vm94, %v1098, 0
  %v1213 = vsel %vm94, %v1099, 0
  %v1216 = vsel %vm94, %v1100, 0
  %v1219 = vsel %vm94, %v1101, 0
  %1221 = vmatprep.subr.bf16.mxu0 0
  %1222 = vmatpush1.bf16.msra.mxu0 0
  %1223 = vmatprep.subr.bf16.mxu0 0
  %1224 = vmatpush1.bf16.msra.mxu0 0
  %1225 = vmatprep.subr.bf16.mxu0 0
  %1226 = vmatpush1.bf16.msra.mxu0 0
  %1227 = vmatprep.subr.bf16.mxu0 0
  %1228 = vmatpush1.bf16.msra.mxu0 0
  %1229 = vmatprep.subr.bf16.mxu0 0
  %1230 = vmatpush1.bf16.msra.mxu0 0
  %1231 = vmatprep.subr.bf16.mxu0 0
  %1232 = vmatpush1.bf16.msra.mxu0 0
  %1233 = vmatprep.subr.bf16.mxu0 0
  %1234 = vmatpush1.bf16.msra.mxu0 %v1122
  %1235 = vmatprep.subr.bf16.mxu0 0
  %1236 = vmatpush1.bf16.msra.mxu0 %v1121
  %1237 = vmatprep.subr.bf16.mxu0 0
  %1238 = vmatpush2.bf16.msra.mxu0 0
  %1239 = vmatprep.subr.bf16.mxu0 0
  %1240 = vmatpush2.bf16.msra.mxu0 0
  %1241 = vmatprep.subr.bf16.mxu0 0
  %1242 = vmatpush2.bf16.msra.mxu0 0
  %1243 = vmatprep.subr.bf16.mxu0 0
  %1244 = vmatpush2.bf16.msra.mxu0 0
  %1245 = vmatprep.subr.bf16.mxu0 0
  %1246 = vmatpush2.bf16.msra.mxu0 0
  %1247 = vmatprep.subr.bf16.mxu0 0
  %1248 = vmatpush2.bf16.msra.mxu0 0
  %1249 = vmatprep.subr.bf16.mxu0 0
  %1250 = vmatpush2.bf16.msra.mxu0 0
  %1251 = vmatprep.subr.bf16.mxu0 0
  %1252 = vmatpush2.bf16.msra.mxu0 0
  %1253 = vmatprep.mubr.bf16.mxu0 0
  %1254 = vmatmul.mubr.bf16.gmra.mxu0 %v1126
  %v1255 = vpop.f32.mrf.mxu0
  %v1256 = vadd.f32 %v1111, %v1255
  %v1257 = vpop.f32.mrf.mxu0
  %v1258 = vpop.f32.mrf.mxu0
  %v1259 = vadd.f32 %v1111, %v1258
  %v1260 = vpop.f32.mrf.mxu0
  %1261 = vmatprep.mubr.bf16.mxu0 0
  %1262 = vmatmul.mubr.bf16.gmra.mxu0 %v1129
  %v1263 = vpop.f32.mrf.mxu0
  %v1264 = vadd.f32 %v1111, %v1263
  %v1265 = vpop.f32.mrf.mxu0
  %v1266 = vpop.f32.mrf.mxu0
  %v1267 = vadd.f32 %v1111, %v1266
  %v1268 = vpop.f32.mrf.mxu0
  %1269 = vmatprep.mubr.bf16.mxu0 0
  %1270 = vmatmul.mubr.bf16.gmra.mxu0 %v1132
  %v1271 = vpop.f32.mrf.mxu0
  %v1272 = vadd.f32 %v1111, %v1271
  %v1273 = vpop.f32.mrf.mxu0
  %v1274 = vpop.f32.mrf.mxu0
  %v1275 = vadd.f32 %v1111, %v1274
  %v1276 = vpop.f32.mrf.mxu0
  %1277 = vmatprep.mubr.bf16.mxu0 0
  %1278 = vmatmul.mubr.bf16.gmra.mxu0 %v1135
  %v1279 = vpop.f32.mrf.mxu0
  %v1280 = vadd.f32 %v1111, %v1279
  %v1281 = vpop.f32.mrf.mxu0
  %v1282 = vpop.f32.mrf.mxu0
  %v1283 = vadd.f32 %v1111, %v1282
  %v1284 = vpop.f32.mrf.mxu0
  %1285 = vmatprep.mubr.bf16.mxu0 0
  %1286 = vmatmul.mubr.bf16.gmra.mxu0 %v1138
  %v1287 = vpop.f32.mrf.mxu0
  %v1288 = vadd.f32 %v1111, %v1287
  %v1289 = vpop.f32.mrf.mxu0
  %v1290 = vpop.f32.mrf.mxu0
  %v1291 = vadd.f32 %v1111, %v1290
  %v1292 = vpop.f32.mrf.mxu0
  %1293 = vmatprep.mubr.bf16.mxu0 0
  %1294 = vmatmul.mubr.bf16.gmra.mxu0 %v1141
  %v1295 = vpop.f32.mrf.mxu0
  %v1296 = vadd.f32 %v1111, %v1295
  %v1297 = vpop.f32.mrf.mxu0
  %v1298 = vpop.f32.mrf.mxu0
  %v1299 = vadd.f32 %v1111, %v1298
  %v1300 = vpop.f32.mrf.mxu0
  %1301 = vmatprep.mubr.bf16.mxu0 0
  %1302 = vmatmul.mubr.bf16.gmra.mxu0 %v1144
  %v1303 = vpop.f32.mrf.mxu0
  %v1304 = vadd.f32 %v1111, %v1303
  %v1305 = vpop.f32.mrf.mxu0
  %v1306 = vpop.f32.mrf.mxu0
  %v1307 = vadd.f32 %v1111, %v1306
  %v1308 = vpop.f32.mrf.mxu0
  %1309 = vmatprep.mubr.bf16.mxu0 0
  %1310 = vmatmul.mubr.bf16.gmra.mxu0 %v1147
  %v1311 = vpop.f32.mrf.mxu0
  %v1312 = vadd.f32 %v1111, %v1311
  %v1313 = vpop.f32.mrf.mxu0
  %v1314 = vpop.f32.mrf.mxu0
  %v1315 = vadd.f32 %v1111, %v1314
  %v1316 = vpop.f32.mrf.mxu0
  %1317 = vmatprep.mubr.bf16.mxu0 0
  %1318 = vmatmul.mubr.bf16.gmra.mxu0 %v1150
  %v1319 = vpop.f32.mrf.mxu0
  %v1320 = vadd.f32 %v1111, %v1319
  %v1321 = vpop.f32.mrf.mxu0
  %v1322 = vpop.f32.mrf.mxu0
  %v1323 = vadd.f32 %v1111, %v1322
  %v1324 = vpop.f32.mrf.mxu0
  %1325 = vmatprep.mubr.bf16.mxu0 0
  %1326 = vmatmul.mubr.bf16.gmra.mxu0 %v1153
  %v1327 = vpop.f32.mrf.mxu0
  %v1328 = vadd.f32 %v1111, %v1327
  %v1329 = vpop.f32.mrf.mxu0
  %v1330 = vpop.f32.mrf.mxu0
  %v1331 = vadd.f32 %v1111, %v1330
  %v1332 = vpop.f32.mrf.mxu0
  %1333 = vmatprep.mubr.bf16.mxu0 0
  %1334 = vmatmul.mubr.bf16.gmra.mxu0 %v1156
  %v1335 = vpop.f32.mrf.mxu0
  %v1336 = vadd.f32 %v1111, %v1335
  %v1337 = vpop.f32.mrf.mxu0
  %v1338 = vpop.f32.mrf.mxu0
  %v1339 = vadd.f32 %v1111, %v1338
  %v1340 = vpop.f32.mrf.mxu0
  %1341 = vmatprep.mubr.bf16.mxu0 0
  %1342 = vmatmul.mubr.bf16.gmra.mxu0 %v1159
  %v1343 = vpop.f32.mrf.mxu0
  %v1344 = vadd.f32 %v1111, %v1343
  %v1345 = vpop.f32.mrf.mxu0
  %v1346 = vpop.f32.mrf.mxu0
  %v1347 = vadd.f32 %v1111, %v1346
  %v1348 = vpop.f32.mrf.mxu0
  %1349 = vmatprep.mubr.bf16.mxu0 0
  %1350 = vmatmul.mubr.bf16.gmra.mxu0 %v1162
  %v1351 = vpop.f32.mrf.mxu0
  %v1352 = vadd.f32 %v1111, %v1351
  %v1353 = vpop.f32.mrf.mxu0
  %v1354 = vpop.f32.mrf.mxu0
  %v1355 = vadd.f32 %v1111, %v1354
  %v1356 = vpop.f32.mrf.mxu0
  %1357 = vmatprep.mubr.bf16.mxu0 0
  %1358 = vmatmul.mubr.bf16.gmra.mxu0 %v1165
  %v1359 = vpop.f32.mrf.mxu0
  %v1360 = vadd.f32 %v1111, %v1359
  %v1361 = vpop.f32.mrf.mxu0
  %v1362 = vpop.f32.mrf.mxu0
  %v1363 = vadd.f32 %v1111, %v1362
  %v1364 = vpop.f32.mrf.mxu0
  %1365 = vmatprep.mubr.bf16.mxu0 0
  %1366 = vmatmul.mubr.bf16.gmra.mxu0 %v1168
  %v1367 = vpop.f32.mrf.mxu0
  %v1368 = vadd.f32 %v1111, %v1367
  %v1369 = vpop.f32.mrf.mxu0
  %v1370 = vpop.f32.mrf.mxu0
  %v1371 = vadd.f32 %v1111, %v1370
  %v1372 = vpop.f32.mrf.mxu0
  %1373 = vmatprep.mubr.bf16.mxu0 0
  %1374 = vmatmul.mubr.bf16.gmra.mxu0 %v1171
  %v1375 = vpop.f32.mrf.mxu0
  %v1376 = vadd.f32 %v1111, %v1375
  %v1377 = vpop.f32.mrf.mxu0
  %v1378 = vpop.f32.mrf.mxu0
  %v1379 = vadd.f32 %v1111, %v1378
  %v1380 = vpop.f32.mrf.mxu0
  %1381 = vmatprep.mubr.bf16.mxu0 0
  %1382 = vmatmul.mubr.bf16.gmra.mxu0 %v1174
  %v1383 = vpop.f32.mrf.mxu0
  %v1384 = vadd.f32 %v1111, %v1383
  %v1385 = vpop.f32.mrf.mxu0
  %v1386 = vpop.f32.mrf.mxu0
  %v1387 = vadd.f32 %v1111, %v1386
  %v1388 = vpop.f32.mrf.mxu0
  %1389 = vmatprep.mubr.bf16.mxu0 0
  %1390 = vmatmul.mubr.bf16.gmra.mxu0 %v1177
  %v1391 = vpop.f32.mrf.mxu0
  %v1392 = vadd.f32 %v1111, %v1391
  %v1393 = vpop.f32.mrf.mxu0
  %v1394 = vpop.f32.mrf.mxu0
  %v1395 = vadd.f32 %v1111, %v1394
  %v1396 = vpop.f32.mrf.mxu0
  %1397 = vmatprep.mubr.bf16.mxu0 0
  %1398 = vmatmul.mubr.bf16.gmra.mxu0 %v1180
  %v1399 = vpop.f32.mrf.mxu0
  %v1400 = vadd.f32 %v1111, %v1399
  %v1401 = vpop.f32.mrf.mxu0
  %v1402 = vpop.f32.mrf.mxu0
  %v1403 = vadd.f32 %v1111, %v1402
  %v1404 = vpop.f32.mrf.mxu0
  %1405 = vmatprep.mubr.bf16.mxu0 0
  %1406 = vmatmul.mubr.bf16.gmra.mxu0 %v1183
  %v1407 = vpop.f32.mrf.mxu0
  %v1408 = vadd.f32 %v1111, %v1407
  %v1409 = vpop.f32.mrf.mxu0
  %v1410 = vpop.f32.mrf.mxu0
  %v1411 = vadd.f32 %v1111, %v1410
  %v1412 = vpop.f32.mrf.mxu0
  %1413 = vmatprep.mubr.bf16.mxu0 0
  %1414 = vmatmul.mubr.bf16.gmra.mxu0 %v1186
  %v1415 = vpop.f32.mrf.mxu0
  %v1416 = vadd.f32 %v1111, %v1415
  %v1417 = vpop.f32.mrf.mxu0
  %v1418 = vpop.f32.mrf.mxu0
  %v1419 = vadd.f32 %v1111, %v1418
  %v1420 = vpop.f32.mrf.mxu0
  %1421 = vmatprep.mubr.bf16.mxu0 0
  %1422 = vmatmul.mubr.bf16.gmra.mxu0 %v1189
  %v1423 = vpop.f32.mrf.mxu0
  %v1424 = vadd.f32 %v1111, %v1423
  %v1425 = vpop.f32.mrf.mxu0
  %v1426 = vpop.f32.mrf.mxu0
  %v1427 = vadd.f32 %v1111, %v1426
  %v1428 = vpop.f32.mrf.mxu0
  %1429 = vmatprep.mubr.bf16.mxu0 0
  %1430 = vmatmul.mubr.bf16.gmra.mxu0 %v1192
  %v1431 = vpop.f32.mrf.mxu0
  %v1432 = vadd.f32 %v1111, %v1431
  %v1433 = vpop.f32.mrf.mxu0
  %v1434 = vpop.f32.mrf.mxu0
  %v1435 = vadd.f32 %v1111, %v1434
  %v1436 = vpop.f32.mrf.mxu0
  %1437 = vmatprep.mubr.bf16.mxu0 0
  %1438 = vmatmul.mubr.bf16.gmra.mxu0 %v1195
  %v1439 = vpop.f32.mrf.mxu0
  %v1440 = vadd.f32 %v1111, %v1439
  %v1441 = vpop.f32.mrf.mxu0
  %v1442 = vpop.f32.mrf.mxu0
  %v1443 = vadd.f32 %v1111, %v1442
  %v1444 = vpop.f32.mrf.mxu0
  %1445 = vmatprep.mubr.bf16.mxu0 0
  %1446 = vmatmul.mubr.bf16.gmra.mxu0 %v1198
  %v1447 = vpop.f32.mrf.mxu0
  %v1448 = vadd.f32 %v1111, %v1447
  %v1449 = vpop.f32.mrf.mxu0
  %v1450 = vpop.f32.mrf.mxu0
  %v1451 = vadd.f32 %v1111, %v1450
  %v1452 = vpop.f32.mrf.mxu0
  %1453 = vmatprep.mubr.bf16.mxu0 0
  %1454 = vmatmul.mubr.bf16.gmra.mxu0 %v1201
  %v1455 = vpop.f32.mrf.mxu0
  %v1456 = vadd.f32 %v1111, %v1455
  %v1457 = vpop.f32.mrf.mxu0
  %v1458 = vpop.f32.mrf.mxu0
  %v1459 = vadd.f32 %v1111, %v1458
  %v1460 = vpop.f32.mrf.mxu0
  %1461 = vmatprep.mubr.bf16.mxu0 0
  %1462 = vmatmul.mubr.bf16.gmra.mxu0 %v1204
  %v1463 = vpop.f32.mrf.mxu0
  %v1464 = vadd.f32 %v1111, %v1463
  %v1465 = vpop.f32.mrf.mxu0
  %v1466 = vpop.f32.mrf.mxu0
  %v1467 = vadd.f32 %v1111, %v1466
  %v1468 = vpop.f32.mrf.mxu0
  %1469 = vmatprep.mubr.bf16.mxu0 0
  %1470 = vmatmul.mubr.bf16.gmra.mxu0 %v1207
  %v1471 = vpop.f32.mrf.mxu0
  %v1472 = vadd.f32 %v1111, %v1471
  %v1473 = vpop.f32.mrf.mxu0
  %v1474 = vpop.f32.mrf.mxu0
  %v1475 = vadd.f32 %v1111, %v1474
  %v1476 = vpop.f32.mrf.mxu0
  %1477 = vmatprep.mubr.bf16.mxu0 0
  %1478 = vmatmul.mubr.bf16.gmra.mxu0 %v1210
  %v1479 = vpop.f32.mrf.mxu0
  %v1480 = vadd.f32 %v1111, %v1479
  %v1481 = vpop.f32.mrf.mxu0
  %v1482 = vpop.f32.mrf.mxu0
  %v1483 = vadd.f32 %v1111, %v1482
  %v1484 = vpop.f32.mrf.mxu0
  %1485 = vmatprep.mubr.bf16.mxu0 0
  %1486 = vmatmul.mubr.bf16.gmra.mxu0 %v1213
  %v1487 = vpop.f32.mrf.mxu0
  %v1488 = vadd.f32 %v1111, %v1487
  %v1489 = vpop.f32.mrf.mxu0
  %v1490 = vpop.f32.mrf.mxu0
  %v1491 = vadd.f32 %v1111, %v1490
  %v1492 = vpop.f32.mrf.mxu0
  %1493 = vmatprep.mubr.bf16.mxu0 0
  %1494 = vmatmul.mubr.bf16.gmra.mxu0 %v1216
  %v1495 = vpop.f32.mrf.mxu0
  %v1496 = vadd.f32 %v1111, %v1495
  %v1497 = vpop.f32.mrf.mxu0
  %v1498 = vpop.f32.mrf.mxu0
  %v1499 = vadd.f32 %v1111, %v1498
  %v1500 = vpop.f32.mrf.mxu0
  %1501 = vmatprep.mubr.bf16.mxu0 0
  %1502 = vmatmul.mubr.bf16.gmra.mxu0 %v1219
  %v1503 = vpop.f32.mrf.mxu0
  %v1504 = vadd.f32 %v1111, %v1503
  %v1505 = vpop.f32.mrf.mxu0
  %v1506 = vpop.f32.mrf.mxu0
  %v1507 = vadd.f32 %v1111, %v1506
  %v1508 = vpop.f32.mrf.mxu0
  %1509 = vdwg.mxu0
  %v1510 = vpack.c.bf16 %v1259, %v1256
  %v1511 = vpack.c.bf16 %v1267, %v1264
  %v1512 = vpack.c.bf16 %v1275, %v1272
  %v1513 = vpack.c.bf16 %v1283, %v1280
  %v1514 = vpack.c.bf16 %v1291, %v1288
  %v1515 = vpack.c.bf16 %v1299, %v1296
  %v1516 = vpack.c.bf16 %v1307, %v1304
  %v1517 = vpack.c.bf16 %v1315, %v1312
  %v1518 = vpack.c.bf16 %v1323, %v1320
  %v1519 = vpack.c.bf16 %v1331, %v1328
  %v1520 = vpack.c.bf16 %v1339, %v1336
  %v1521 = vpack.c.bf16 %v1347, %v1344
  %v1522 = vpack.c.bf16 %v1355, %v1352
  %v1523 = vpack.c.bf16 %v1363, %v1360
  %v1524 = vpack.c.bf16 %v1371, %v1368
  %v1525 = vpack.c.bf16 %v1379, %v1376
  %v1526 = vpack.c.bf16 %v1387, %v1384
  %v1527 = vpack.c.bf16 %v1395, %v1392
  %v1528 = vpack.c.bf16 %v1403, %v1400
  %v1529 = vpack.c.bf16 %v1411, %v1408
  %v1530 = vpack.c.bf16 %v1419, %v1416
  %v1531 = vpack.c.bf16 %v1427, %v1424
  %v1532 = vpack.c.bf16 %v1435, %v1432
  %v1533 = vpack.c.bf16 %v1443, %v1440
  %v1534 = vpack.c.bf16 %v1451, %v1448
  %v1535 = vpack.c.bf16 %v1459, %v1456
  %v1536 = vpack.c.bf16 %v1467, %v1464
  %v1537 = vpack.c.bf16 %v1475, %v1472
  %v1538 = vpack.c.bf16 %v1483, %v1480
  %v1539 = vpack.c.bf16 %v1491, %v1488
  %v1540 = vpack.c.bf16 %v1499, %v1496
  %v1541 = vpack.c.bf16 %v1507, %v1504
  %v1542 = vld [vmem:[%s5] sm:$0xf]
  %v1543 = vld [vmem:[%s5 + $0x4] sm:$0xf]
  %v1544 = vld [vmem:[%s5 + $0x8] sm:$0xf]
  %v1545 = vld [vmem:[%s5 + $0xc] sm:$0xf]
  %v1546 = vld [vmem:[%s7] sm:$0xff]
  %v1547 = vld [vmem:[%s7 + $0x8] sm:$0xff]
  %v1548 = vld [vmem:[%s7 + $0x10] sm:$0xff]
  %v1549 = vld [vmem:[%s7 + $0x18] sm:$0xff]
  %v1550 = vld [vmem:[%s7 + $0x20] sm:$0xff]
  %v1551 = vld [vmem:[%s7 + $0x28] sm:$0xff]
  %v1552 = vld [vmem:[%s7 + $0x30] sm:$0xff]
  %v1553 = vld [vmem:[%s7 + $0x38] sm:$0xff]
  %v1554 = vld [vmem:[%s7 + $0x40] sm:$0xff]
  %v1555 = vld [vmem:[%s7 + $0x48] sm:$0xff]
  %v1556 = vld [vmem:[%s7 + $0x50] sm:$0xff]
  %v1557 = vld [vmem:[%s7 + $0x58] sm:$0xff]
  %v1558 = vld [vmem:[%s7 + $0x60] sm:$0xff]
  %v1559 = vld [vmem:[%s7 + $0x68] sm:$0xff]
  %v1560 = vld [vmem:[%s7 + $0x70] sm:$0xff]
  %v1561 = vld [vmem:[%s7 + $0x78] sm:$0xff]
  %v1562 = vld [vmem:[%s7 + $0x80] sm:$0xff]
  %v1563 = vld [vmem:[%s7 + $0x88] sm:$0xff]
  %v1564 = vld [vmem:[%s7 + $0x90] sm:$0xff]
  %v1565 = vld [vmem:[%s7 + $0x98] sm:$0xff]
  %v1566 = vld [vmem:[%s7 + $0xa0] sm:$0xff]
  %v1567 = vld [vmem:[%s7 + $0xa8] sm:$0xff]
  %v1568 = vld [vmem:[%s7 + $0xb0] sm:$0xff]
  %v1569 = vld [vmem:[%s7 + $0xb8] sm:$0xff]
  %v1570 = vld [vmem:[%s7 + $0xc0] sm:$0xff]
  %v1571 = vld [vmem:[%s7 + $0xc8] sm:$0xff]
  %v1572 = vld [vmem:[%s7 + $0xd0] sm:$0xff]
  %v1573 = vld [vmem:[%s7 + $0xd8] sm:$0xff]
  %v1574 = vld [vmem:[%s7 + $0xe0] sm:$0xff]
  %v1575 = vld [vmem:[%s7 + $0xe8] sm:$0xff]
  %v1576 = vld [vmem:[%s7 + $0xf0] sm:$0xff]
  %v1577 = vld [vmem:[%s7 + $0xf8] sm:$0xff]
  %1582 = vrot.lane.b32.xlu0 %v1510, 96
  %v1583 = vpop.permute.xlu0 %1582
  %1584 = vrot.lane.b32.xlu0 %v1511, 96
  %v1585 = vpop.permute.xlu0 %1584
  %1586 = vrot.lane.b32.xlu0 %v1512, 96
  %v1587 = vpop.permute.xlu0 %1586
  %1588 = vrot.lane.b32.xlu0 %v1513, 96
  %v1589 = vpop.permute.xlu0 %1588
  %vm1590 = vcmask 64512
  %v1592 = vsel %vm1590, %v1510, 0
  %v1595 = vsel %vm1590, %v1511, 0
  %v1598 = vsel %vm1590, %v1512, 0
  %v1601 = vsel %vm1590, %v1513, 0
  %v1604 = vsel %vm1590, %v1583, 0
  %v1607 = vsel %vm1590, %v1585, 0
  %v1610 = vsel %vm1590, %v1587, 0
  %v1613 = vsel %vm1590, %v1589, 0
  %1615 = vmatprep.subr.bf16.mxu0 0
  %1616 = vmatpush1.bf16.xpose.msra.mxu0 0
  %1617 = vmatprep.subr.bf16.mxu0 0
  %1618 = vmatpush1.bf16.xpose.msra.mxu0 0
  %1619 = vmatprep.subr.bf16.mxu0 0
  %1620 = vmatpush1.bf16.xpose.msra.mxu0 0
  %1621 = vmatprep.subr.bf16.mxu0 0
  %1622 = vmatpush1.bf16.xpose.msra.mxu0 0
  %1623 = vmatprep.subr.bf16.mxu0 0
  %1624 = vmatpush1.bf16.xpose.msra.mxu0 %v1613
  %1625 = vmatprep.subr.bf16.mxu0 0
  %1626 = vmatpush1.bf16.xpose.msra.mxu0 %v1610
  %1627 = vmatprep.subr.bf16.mxu0 0
  %1628 = vmatpush1.bf16.xpose.msra.mxu0 %v1607
  %1629 = vmatprep.subr.bf16.mxu0 0
  %1630 = vmatpush1.bf16.xpose.msra.mxu0 %v1604
  %1631 = vmatprep.subr.bf16.mxu0 0
  %1632 = vmatpush2.bf16.xpose.msra.mxu0 0
  %1633 = vmatprep.subr.bf16.mxu0 0
  %1634 = vmatpush2.bf16.xpose.msra.mxu0 0
  %1635 = vmatprep.subr.bf16.mxu0 0
  %1636 = vmatpush2.bf16.xpose.msra.mxu0 0
  %1637 = vmatprep.subr.bf16.mxu0 0
  %1638 = vmatpush2.bf16.xpose.msra.mxu0 0
  %1639 = vmatprep.subr.bf16.mxu0 0
  %1640 = vmatpush2.bf16.xpose.msra.mxu0 0
  %1641 = vmatprep.subr.bf16.mxu0 0
  %1642 = vmatpush2.bf16.xpose.msra.mxu0 0
  %1643 = vmatprep.subr.bf16.mxu0 0
  %1644 = vmatpush2.bf16.xpose.msra.mxu0 0
  %1645 = vmatprep.subr.bf16.mxu0 0
  %1646 = vmatpush2.bf16.xpose.msra.mxu0 0
  %1647 = vmatprep.mubr.bf16.mxu0 0
  %1648 = vmatmul.mubr.bf16.gmra.mxu0 %v1592
  %v1649 = vpop.f32.mrf.mxu0
  %v1650 = vadd.f32 0.0, %v1649
  %v1651 = vpop.f32.mrf.mxu0
  %v1652 = vpop.f32.mrf.mxu0
  %v1653 = vadd.f32 0.0, %v1652
  %v1654 = vpop.f32.mrf.mxu0
  %1655 = vmatprep.mubr.bf16.mxu0 0
  %1656 = vmatmul.mubr.bf16.gmra.mxu0 %v1595
  %v1657 = vpop.f32.mrf.mxu0
  %v1658 = vadd.f32 0.0, %v1657
  %v1659 = vpop.f32.mrf.mxu0
  %v1660 = vpop.f32.mrf.mxu0
  %v1661 = vadd.f32 0.0, %v1660
  %v1662 = vpop.f32.mrf.mxu0
  %1663 = vmatprep.mubr.bf16.mxu0 0
  %1664 = vmatmul.mubr.bf16.gmra.mxu0 %v1598
  %v1665 = vpop.f32.mrf.mxu0
  %v1666 = vadd.f32 0.0, %v1665
  %v1667 = vpop.f32.mrf.mxu0
  %v1668 = vpop.f32.mrf.mxu0
  %v1669 = vadd.f32 0.0, %v1668
  %v1670 = vpop.f32.mrf.mxu0
  %1671 = vmatprep.mubr.bf16.mxu0 0
  %1672 = vmatmul.mubr.bf16.gmra.mxu0 %v1601
  %v1673 = vpop.f32.mrf.mxu0
  %v1674 = vadd.f32 0.0, %v1673
  %v1675 = vpop.f32.mrf.mxu0
  %v1676 = vpop.f32.mrf.mxu0
  %v1677 = vadd.f32 0.0, %v1676
  %v1678 = vpop.f32.mrf.mxu0
  %1679 = vdwg.mxu0
  %1684 = vrot.lane.b32.xlu0 %v1514, 96
  %v1685 = vpop.permute.xlu0 %1684
  %1686 = vrot.lane.b32.xlu0 %v1515, 96
  %v1687 = vpop.permute.xlu0 %1686
  %1688 = vrot.lane.b32.xlu0 %v1516, 96
  %v1689 = vpop.permute.xlu0 %1688
  %1690 = vrot.lane.b32.xlu0 %v1517, 96
  %v1691 = vpop.permute.xlu0 %1690
  %v1693 = vsel %vm1590, %v1514, 0
  %v1696 = vsel %vm1590, %v1515, 0
  %v1699 = vsel %vm1590, %v1516, 0
  %v1702 = vsel %vm1590, %v1517, 0
  %v1705 = vsel %vm1590, %v1685, 0
  %v1708 = vsel %vm1590, %v1687, 0
  %v1711 = vsel %vm1590, %v1689, 0
  %v1714 = vsel %vm1590, %v1691, 0
  %1716 = vmatprep.subr.bf16.mxu0 0
  %1717 = vmatpush1.bf16.xpose.msra.mxu0 0
  %1718 = vmatprep.subr.bf16.mxu0 0
  %1719 = vmatpush1.bf16.xpose.msra.mxu0 0
  %1720 = vmatprep.subr.bf16.mxu0 0
  %1721 = vmatpush1.bf16.xpose.msra.mxu0 0
  %1722 = vmatprep.subr.bf16.mxu0 0
  %1723 = vmatpush1.bf16.xpose.msra.mxu0 0
  %1724 = vmatprep.subr.bf16.mxu0 0
  %1725 = vmatpush1.bf16.xpose.msra.mxu0 %v1714
  %1726 = vmatprep.subr.bf16.mxu0 0
  %1727 = vmatpush1.bf16.xpose.msra.mxu0 %v1711
  %1728 = vmatprep.subr.bf16.mxu0 0
  %1729 = vmatpush1.bf16.xpose.msra.mxu0 %v1708
  %1730 = vmatprep.subr.bf16.mxu0 0
  %1731 = vmatpush1.bf16.xpose.msra.mxu0 %v1705
  %1732 = vmatprep.subr.bf16.mxu0 0
  %1733 = vmatpush2.bf16.xpose.msra.mxu0 0
  %1734 = vmatprep.subr.bf16.mxu0 0
  %1735 = vmatpush2.bf16.xpose.msra.mxu0 0
  %1736 = vmatprep.subr.bf16.mxu0 0
  %1737 = vmatpush2.bf16.xpose.msra.mxu0 0
  %1738 = vmatprep.subr.bf16.mxu0 0
  %1739 = vmatpush2.bf16.xpose.msra.mxu0 0
  %1740 = vmatprep.subr.bf16.mxu0 0
  %1741 = vmatpush2.bf16.xpose.msra.mxu0 0
  %1742 = vmatprep.subr.bf16.mxu0 0
  %1743 = vmatpush2.bf16.xpose.msra.mxu0 0
  %1744 = vmatprep.subr.bf16.mxu0 0
  %1745 = vmatpush2.bf16.xpose.msra.mxu0 0
  %1746 = vmatprep.subr.bf16.mxu0 0
  %1747 = vmatpush2.bf16.xpose.msra.mxu0 0
  %1748 = vmatprep.mubr.bf16.mxu0 0
  %1749 = vmatmul.mubr.bf16.gmra.mxu0 %v1693
  %v1750 = vpop.f32.mrf.mxu0
  %v1751 = vadd.f32 0.0, %v1750
  %v1752 = vpop.f32.mrf.mxu0
  %v1753 = vpop.f32.mrf.mxu0
  %v1754 = vadd.f32 0.0, %v1753
  %v1755 = vpop.f32.mrf.mxu0
  %1756 = vmatprep.mubr.bf16.mxu0 0
  %1757 = vmatmul.mubr.bf16.gmra.mxu0 %v1696
  %v1758 = vpop.f32.mrf.mxu0
  %v1759 = vadd.f32 0.0, %v1758
  %v1760 = vpop.f32.mrf.mxu0
  %v1761 = vpop.f32.mrf.mxu0
  %v1762 = vadd.f32 0.0, %v1761
  %v1763 = vpop.f32.mrf.mxu0
  %1764 = vmatprep.mubr.bf16.mxu0 0
  %1765 = vmatmul.mubr.bf16.gmra.mxu0 %v1699
  %v1766 = vpop.f32.mrf.mxu0
  %v1767 = vadd.f32 0.0, %v1766
  %v1768 = vpop.f32.mrf.mxu0
  %v1769 = vpop.f32.mrf.mxu0
  %v1770 = vadd.f32 0.0, %v1769
  %v1771 = vpop.f32.mrf.mxu0
  %1772 = vmatprep.mubr.bf16.mxu0 0
  %1773 = vmatmul.mubr.bf16.gmra.mxu0 %v1702
  %v1774 = vpop.f32.mrf.mxu0
  %v1775 = vadd.f32 0.0, %v1774
  %v1776 = vpop.f32.mrf.mxu0
  %v1777 = vpop.f32.mrf.mxu0
  %v1778 = vadd.f32 0.0, %v1777
  %v1779 = vpop.f32.mrf.mxu0
  %1780 = vdwg.mxu0
  %1785 = vrot.lane.b32.xlu0 %v1518, 96
  %v1786 = vpop.permute.xlu0 %1785
  %1787 = vrot.lane.b32.xlu0 %v1519, 96
  %v1788 = vpop.permute.xlu0 %1787
  %1789 = vrot.lane.b32.xlu0 %v1520, 96
  %v1790 = vpop.permute.xlu0 %1789
  %1791 = vrot.lane.b32.xlu0 %v1521, 96
  %v1792 = vpop.permute.xlu0 %1791
  %v1794 = vsel %vm1590, %v1518, 0
  %v1797 = vsel %vm1590, %v1519, 0
  %v1800 = vsel %vm1590, %v1520, 0
  %v1803 = vsel %vm1590, %v1521, 0
  %v1806 = vsel %vm1590, %v1786, 0
  %v1809 = vsel %vm1590, %v1788, 0
  %v1812 = vsel %vm1590, %v1790, 0
  %v1815 = vsel %vm1590, %v1792, 0
  %1817 = vmatprep.subr.bf16.mxu0 0
  %1818 = vmatpush1.bf16.xpose.msra.mxu0 0
  %1819 = vmatprep.subr.bf16.mxu0 0
  %1820 = vmatpush1.bf16.xpose.msra.mxu0 0
  %1821 = vmatprep.subr.bf16.mxu0 0
  %1822 = vmatpush1.bf16.xpose.msra.mxu0 0
  %1823 = vmatprep.subr.bf16.mxu0 0
  %1824 = vmatpush1.bf16.xpose.msra.mxu0 0
  %1825 = vmatprep.subr.bf16.mxu0 0
  %1826 = vmatpush1.bf16.xpose.msra.mxu0 %v1815
  %1827 = vmatprep.subr.bf16.mxu0 0
  %1828 = vmatpush1.bf16.xpose.msra.mxu0 %v1812
  %1829 = vmatprep.subr.bf16.mxu0 0
  %1830 = vmatpush1.bf16.xpose.msra.mxu0 %v1809
  %1831 = vmatprep.subr.bf16.mxu0 0
  %1832 = vmatpush1.bf16.xpose.msra.mxu0 %v1806
  %1833 = vmatprep.subr.bf16.mxu0 0
  %1834 = vmatpush2.bf16.xpose.msra.mxu0 0
  %1835 = vmatprep.subr.bf16.mxu0 0
  %1836 = vmatpush2.bf16.xpose.msra.mxu0 0
  %1837 = vmatprep.subr.bf16.mxu0 0
  %1838 = vmatpush2.bf16.xpose.msra.mxu0 0
  %1839 = vmatprep.subr.bf16.mxu0 0
  %1840 = vmatpush2.bf16.xpose.msra.mxu0 0
  %1841 = vmatprep.subr.bf16.mxu0 0
  %1842 = vmatpush2.bf16.xpose.msra.mxu0 0
  %1843 = vmatprep.subr.bf16.mxu0 0
  %1844 = vmatpush2.bf16.xpose.msra.mxu0 0
  %1845 = vmatprep.subr.bf16.mxu0 0
  %1846 = vmatpush2.bf16.xpose.msra.mxu0 0
  %1847 = vmatprep.subr.bf16.mxu0 0
  %1848 = vmatpush2.bf16.xpose.msra.mxu0 0
  %1849 = vmatprep.mubr.bf16.mxu0 0
  %1850 = vmatmul.mubr.bf16.gmra.mxu0 %v1794
  %v1851 = vpop.f32.mrf.mxu0
  %v1852 = vadd.f32 0.0, %v1851
  %v1853 = vpop.f32.mrf.mxu0
  %v1854 = vpop.f32.mrf.mxu0
  %v1855 = vadd.f32 0.0, %v1854
  %v1856 = vpop.f32.mrf.mxu0
  %1857 = vmatprep.mubr.bf16.mxu0 0
  %1858 = vmatmul.mubr.bf16.gmra.mxu0 %v1797
  %v1859 = vpop.f32.mrf.mxu0
  %v1860 = vadd.f32 0.0, %v1859
  %v1861 = vpop.f32.mrf.mxu0
  %v1862 = vpop.f32.mrf.mxu0
  %v1863 = vadd.f32 0.0, %v1862
  %v1864 = vpop.f32.mrf.mxu0
  %1865 = vmatprep.mubr.bf16.mxu0 0
  %1866 = vmatmul.mubr.bf16.gmra.mxu0 %v1800
  %v1867 = vpop.f32.mrf.mxu0
  %v1868 = vadd.f32 0.0, %v1867
  %v1869 = vpop.f32.mrf.mxu0
  %v1870 = vpop.f32.mrf.mxu0
  %v1871 = vadd.f32 0.0, %v1870
  %v1872 = vpop.f32.mrf.mxu0
  %1873 = vmatprep.mubr.bf16.mxu0 0
  %1874 = vmatmul.mubr.bf16.gmra.mxu0 %v1803
  %v1875 = vpop.f32.mrf.mxu0
  %v1876 = vadd.f32 0.0, %v1875
  %v1877 = vpop.f32.mrf.mxu0
  %v1878 = vpop.f32.mrf.mxu0
  %v1879 = vadd.f32 0.0, %v1878
  %v1880 = vpop.f32.mrf.mxu0
  %1881 = vdwg.mxu0
  %1886 = vrot.lane.b32.xlu0 %v1522, 96
  %v1887 = vpop.permute.xlu0 %1886
  %1888 = vrot.lane.b32.xlu0 %v1523, 96
  %v1889 = vpop.permute.xlu0 %1888
  %1890 = vrot.lane.b32.xlu0 %v1524, 96
  %v1891 = vpop.permute.xlu0 %1890
  %1892 = vrot.lane.b32.xlu0 %v1525, 96
  %v1893 = vpop.permute.xlu0 %1892
  %v1895 = vsel %vm1590, %v1522, 0
  %v1898 = vsel %vm1590, %v1523, 0
  %v1901 = vsel %vm1590, %v1524, 0
  %v1904 = vsel %vm1590, %v1525, 0
  %v1907 = vsel %vm1590, %v1887, 0
  %v1910 = vsel %vm1590, %v1889, 0
  %v1913 = vsel %vm1590, %v1891, 0
  %v1916 = vsel %vm1590, %v1893, 0
  %1918 = vmatprep.subr.bf16.mxu0 0
  %1919 = vmatpush1.bf16.xpose.msra.mxu0 0
  %1920 = vmatprep.subr.bf16.mxu0 0
  %1921 = vmatpush1.bf16.xpose.msra.mxu0 0
  %1922 = vmatprep.subr.bf16.mxu0 0
  %1923 = vmatpush1.bf16.xpose.msra.mxu0 0
  %1924 = vmatprep.subr.bf16.mxu0 0
  %1925 = vmatpush1.bf16.xpose.msra.mxu0 0
  %1926 = vmatprep.subr.bf16.mxu0 0
  %1927 = vmatpush1.bf16.xpose.msra.mxu0 %v1916
  %1928 = vmatprep.subr.bf16.mxu0 0
  %1929 = vmatpush1.bf16.xpose.msra.mxu0 %v1913
  %1930 = vmatprep.subr.bf16.mxu0 0
  %1931 = vmatpush1.bf16.xpose.msra.mxu0 %v1910
  %1932 = vmatprep.subr.bf16.mxu0 0
  %1933 = vmatpush1.bf16.xpose.msra.mxu0 %v1907
  %1934 = vmatprep.subr.bf16.mxu0 0
  %1935 = vmatpush2.bf16.xpose.msra.mxu0 0
  %1936 = vmatprep.subr.bf16.mxu0 0
  %1937 = vmatpush2.bf16.xpose.msra.mxu0 0
  %1938 = vmatprep.subr.bf16.mxu0 0
  %1939 = vmatpush2.bf16.xpose.msra.mxu0 0
  %1940 = vmatprep.subr.bf16.mxu0 0
  %1941 = vmatpush2.bf16.xpose.msra.mxu0 0
  %1942 = vmatprep.subr.bf16.mxu0 0
  %1943 = vmatpush2.bf16.xpose.msra.mxu0 0
  %1944 = vmatprep.subr.bf16.mxu0 0
  %1945 = vmatpush2.bf16.xpose.msra.mxu0 0
  %1946 = vmatprep.subr.bf16.mxu0 0
  %1947 = vmatpush2.bf16.xpose.msra.mxu0 0
  %1948 = vmatprep.subr.bf16.mxu0 0
  %1949 = vmatpush2.bf16.xpose.msra.mxu0 0
  %1950 = vmatprep.mubr.bf16.mxu0 0
  %1951 = vmatmul.mubr.bf16.gmra.mxu0 %v1895
  %v1952 = vpop.f32.mrf.mxu0
  %v1953 = vadd.f32 0.0, %v1952
  %v1954 = vpop.f32.mrf.mxu0
  %v1955 = vpop.f32.mrf.mxu0
  %v1956 = vadd.f32 0.0, %v1955
  %v1957 = vpop.f32.mrf.mxu0
  %1958 = vmatprep.mubr.bf16.mxu0 0
  %1959 = vmatmul.mubr.bf16.gmra.mxu0 %v1898
  %v1960 = vpop.f32.mrf.mxu0
  %v1961 = vadd.f32 0.0, %v1960
  %v1962 = vpop.f32.mrf.mxu0
  %v1963 = vpop.f32.mrf.mxu0
  %v1964 = vadd.f32 0.0, %v1963
  %v1965 = vpop.f32.mrf.mxu0
  %1966 = vmatprep.mubr.bf16.mxu0 0
  %1967 = vmatmul.mubr.bf16.gmra.mxu0 %v1901
  %v1968 = vpop.f32.mrf.mxu0
  %v1969 = vadd.f32 0.0, %v1968
  %v1970 = vpop.f32.mrf.mxu0
  %v1971 = vpop.f32.mrf.mxu0
  %v1972 = vadd.f32 0.0, %v1971
  %v1973 = vpop.f32.mrf.mxu0
  %1974 = vmatprep.mubr.bf16.mxu0 0
  %1975 = vmatmul.mubr.bf16.gmra.mxu0 %v1904
  %v1976 = vpop.f32.mrf.mxu0
  %v1977 = vadd.f32 0.0, %v1976
  %v1978 = vpop.f32.mrf.mxu0
  %v1979 = vpop.f32.mrf.mxu0
  %v1980 = vadd.f32 0.0, %v1979
  %v1981 = vpop.f32.mrf.mxu0
  %1982 = vdwg.mxu0
  %1987 = vrot.lane.b32.xlu0 %v1526, 96
  %v1988 = vpop.permute.xlu0 %1987
  %1989 = vrot.lane.b32.xlu0 %v1527, 96
  %v1990 = vpop.permute.xlu0 %1989
  %1991 = vrot.lane.b32.xlu0 %v1528, 96
  %v1992 = vpop.permute.xlu0 %1991
  %1993 = vrot.lane.b32.xlu0 %v1529, 96
  %v1994 = vpop.permute.xlu0 %1993
  %v1996 = vsel %vm1590, %v1526, 0
  %v1999 = vsel %vm1590, %v1527, 0
  %v2002 = vsel %vm1590, %v1528, 0
  %v2005 = vsel %vm1590, %v1529, 0
  %v2008 = vsel %vm1590, %v1988, 0
  %v2011 = vsel %vm1590, %v1990, 0
  %v2014 = vsel %vm1590, %v1992, 0
  %v2017 = vsel %vm1590, %v1994, 0
  %2019 = vmatprep.subr.bf16.mxu0 0
  %2020 = vmatpush1.bf16.xpose.msra.mxu0 0
  %2021 = vmatprep.subr.bf16.mxu0 0
  %2022 = vmatpush1.bf16.xpose.msra.mxu0 0
  %2023 = vmatprep.subr.bf16.mxu0 0
  %2024 = vmatpush1.bf16.xpose.msra.mxu0 0
  %2025 = vmatprep.subr.bf16.mxu0 0
  %2026 = vmatpush1.bf16.xpose.msra.mxu0 0
  %2027 = vmatprep.subr.bf16.mxu0 0
  %2028 = vmatpush1.bf16.xpose.msra.mxu0 %v2017
  %2029 = vmatprep.subr.bf16.mxu0 0
  %2030 = vmatpush1.bf16.xpose.msra.mxu0 %v2014
  %2031 = vmatprep.subr.bf16.mxu0 0
  %2032 = vmatpush1.bf16.xpose.msra.mxu0 %v2011
  %2033 = vmatprep.subr.bf16.mxu0 0
  %2034 = vmatpush1.bf16.xpose.msra.mxu0 %v2008
  %2035 = vmatprep.subr.bf16.mxu0 0
  %2036 = vmatpush2.bf16.xpose.msra.mxu0 0
  %2037 = vmatprep.subr.bf16.mxu0 0
  %2038 = vmatpush2.bf16.xpose.msra.mxu0 0
  %2039 = vmatprep.subr.bf16.mxu0 0
  %2040 = vmatpush2.bf16.xpose.msra.mxu0 0
  %2041 = vmatprep.subr.bf16.mxu0 0
  %2042 = vmatpush2.bf16.xpose.msra.mxu0 0
  %2043 = vmatprep.subr.bf16.mxu0 0
  %2044 = vmatpush2.bf16.xpose.msra.mxu0 0
  %2045 = vmatprep.subr.bf16.mxu0 0
  %2046 = vmatpush2.bf16.xpose.msra.mxu0 0
  %2047 = vmatprep.subr.bf16.mxu0 0
  %2048 = vmatpush2.bf16.xpose.msra.mxu0 0
  %2049 = vmatprep.subr.bf16.mxu0 0
  %2050 = vmatpush2.bf16.xpose.msra.mxu0 0
  %2051 = vmatprep.mubr.bf16.mxu0 0
  %2052 = vmatmul.mubr.bf16.gmra.mxu0 %v1996
  %v2053 = vpop.f32.mrf.mxu0
  %v2054 = vadd.f32 0.0, %v2053
  %v2055 = vpop.f32.mrf.mxu0
  %v2056 = vpop.f32.mrf.mxu0
  %v2057 = vadd.f32 0.0, %v2056
  %v2058 = vpop.f32.mrf.mxu0
  %2059 = vmatprep.mubr.bf16.mxu0 0
  %2060 = vmatmul.mubr.bf16.gmra.mxu0 %v1999
  %v2061 = vpop.f32.mrf.mxu0
  %v2062 = vadd.f32 0.0, %v2061
  %v2063 = vpop.f32.mrf.mxu0
  %v2064 = vpop.f32.mrf.mxu0
  %v2065 = vadd.f32 0.0, %v2064
  %v2066 = vpop.f32.mrf.mxu0
  %2067 = vmatprep.mubr.bf16.mxu0 0
  %2068 = vmatmul.mubr.bf16.gmra.mxu0 %v2002
  %v2069 = vpop.f32.mrf.mxu0
  %v2070 = vadd.f32 0.0, %v2069
  %v2071 = vpop.f32.mrf.mxu0
  %v2072 = vpop.f32.mrf.mxu0
  %v2073 = vadd.f32 0.0, %v2072
  %v2074 = vpop.f32.mrf.mxu0
  %2075 = vmatprep.mubr.bf16.mxu0 0
  %2076 = vmatmul.mubr.bf16.gmra.mxu0 %v2005
  %v2077 = vpop.f32.mrf.mxu0
  %v2078 = vadd.f32 0.0, %v2077
  %v2079 = vpop.f32.mrf.mxu0
  %v2080 = vpop.f32.mrf.mxu0
  %v2081 = vadd.f32 0.0, %v2080
  %v2082 = vpop.f32.mrf.mxu0
  %2083 = vdwg.mxu0
  %2088 = vrot.lane.b32.xlu0 %v1530, 96
  %v2089 = vpop.permute.xlu0 %2088
  %2090 = vrot.lane.b32.xlu0 %v1531, 96
  %v2091 = vpop.permute.xlu0 %2090
  %2092 = vrot.lane.b32.xlu0 %v1532, 96
  %v2093 = vpop.permute.xlu0 %2092
  %2094 = vrot.lane.b32.xlu0 %v1533, 96
  %v2095 = vpop.permute.xlu0 %2094
  %v2097 = vsel %vm1590, %v1530, 0
  %v2100 = vsel %vm1590, %v1531, 0
  %v2103 = vsel %vm1590, %v1532, 0
  %v2106 = vsel %vm1590, %v1533, 0
  %v2109 = vsel %vm1590, %v2089, 0
  %v2112 = vsel %vm1590, %v2091, 0
  %v2115 = vsel %vm1590, %v2093, 0
  %v2118 = vsel %vm1590, %v2095, 0
  %2120 = vmatprep.subr.bf16.mxu0 0
  %2121 = vmatpush1.bf16.xpose.msra.mxu0 0
  %2122 = vmatprep.subr.bf16.mxu0 0
  %2123 = vmatpush1.bf16.xpose.msra.mxu0 0
  %2124 = vmatprep.subr.bf16.mxu0 0
  %2125 = vmatpush1.bf16.xpose.msra.mxu0 0
  %2126 = vmatprep.subr.bf16.mxu0 0
  %2127 = vmatpush1.bf16.xpose.msra.mxu0 0
  %2128 = vmatprep.subr.bf16.mxu0 0
  %2129 = vmatpush1.bf16.xpose.msra.mxu0 %v2118
  %2130 = vmatprep.subr.bf16.mxu0 0
  %2131 = vmatpush1.bf16.xpose.msra.mxu0 %v2115
  %2132 = vmatprep.subr.bf16.mxu0 0
  %2133 = vmatpush1.bf16.xpose.msra.mxu0 %v2112
  %2134 = vmatprep.subr.bf16.mxu0 0
  %2135 = vmatpush1.bf16.xpose.msra.mxu0 %v2109
  %2136 = vmatprep.subr.bf16.mxu0 0
  %2137 = vmatpush2.bf16.xpose.msra.mxu0 0
  %2138 = vmatprep.subr.bf16.mxu0 0
  %2139 = vmatpush2.bf16.xpose.msra.mxu0 0
  %2140 = vmatprep.subr.bf16.mxu0 0
  %2141 = vmatpush2.bf16.xpose.msra.mxu0 0
  %2142 = vmatprep.subr.bf16.mxu0 0
  %2143 = vmatpush2.bf16.xpose.msra.mxu0 0
  %2144 = vmatprep.subr.bf16.mxu0 0
  %2145 = vmatpush2.bf16.xpose.msra.mxu0 0
  %2146 = vmatprep.subr.bf16.mxu0 0
  %2147 = vmatpush2.bf16.xpose.msra.mxu0 0
  %2148 = vmatprep.subr.bf16.mxu0 0
  %2149 = vmatpush2.bf16.xpose.msra.mxu0 0
  %2150 = vmatprep.subr.bf16.mxu0 0
  %2151 = vmatpush2.bf16.xpose.msra.mxu0 0
  %2152 = vmatprep.mubr.bf16.mxu0 0
  %2153 = vmatmul.mubr.bf16.gmra.mxu0 %v2097
  %v2154 = vpop.f32.mrf.mxu0
  %v2155 = vadd.f32 0.0, %v2154
  %v2156 = vpop.f32.mrf.mxu0
  %v2157 = vpop.f32.mrf.mxu0
  %v2158 = vadd.f32 0.0, %v2157
  %v2159 = vpop.f32.mrf.mxu0
  %2160 = vmatprep.mubr.bf16.mxu0 0
  %2161 = vmatmul.mubr.bf16.gmra.mxu0 %v2100
  %v2162 = vpop.f32.mrf.mxu0
  %v2163 = vadd.f32 0.0, %v2162
  %v2164 = vpop.f32.mrf.mxu0
  %v2165 = vpop.f32.mrf.mxu0
  %v2166 = vadd.f32 0.0, %v2165
  %v2167 = vpop.f32.mrf.mxu0
  %2168 = vmatprep.mubr.bf16.mxu0 0
  %2169 = vmatmul.mubr.bf16.gmra.mxu0 %v2103
  %v2170 = vpop.f32.mrf.mxu0
  %v2171 = vadd.f32 0.0, %v2170
  %v2172 = vpop.f32.mrf.mxu0
  %v2173 = vpop.f32.mrf.mxu0
  %v2174 = vadd.f32 0.0, %v2173
  %v2175 = vpop.f32.mrf.mxu0
  %2176 = vmatprep.mubr.bf16.mxu0 0
  %2177 = vmatmul.mubr.bf16.gmra.mxu0 %v2106
  %v2178 = vpop.f32.mrf.mxu0
  %v2179 = vadd.f32 0.0, %v2178
  %v2180 = vpop.f32.mrf.mxu0
  %v2181 = vpop.f32.mrf.mxu0
  %v2182 = vadd.f32 0.0, %v2181
  %v2183 = vpop.f32.mrf.mxu0
  %2184 = vdwg.mxu0
  %2189 = vrot.lane.b32.xlu0 %v1534, 96
  %v2190 = vpop.permute.xlu0 %2189
  %2191 = vrot.lane.b32.xlu0 %v1535, 96
  %v2192 = vpop.permute.xlu0 %2191
  %2193 = vrot.lane.b32.xlu0 %v1536, 96
  %v2194 = vpop.permute.xlu0 %2193
  %2195 = vrot.lane.b32.xlu0 %v1537, 96
  %v2196 = vpop.permute.xlu0 %2195
  %v2198 = vsel %vm1590, %v1534, 0
  %v2201 = vsel %vm1590, %v1535, 0
  %v2204 = vsel %vm1590, %v1536, 0
  %v2207 = vsel %vm1590, %v1537, 0
  %v2210 = vsel %vm1590, %v2190, 0
  %v2213 = vsel %vm1590, %v2192, 0
  %v2216 = vsel %vm1590, %v2194, 0
  %v2219 = vsel %vm1590, %v2196, 0
  %2221 = vmatprep.subr.bf16.mxu0 0
  %2222 = vmatpush1.bf16.xpose.msra.mxu0 0
  %2223 = vmatprep.subr.bf16.mxu0 0
  %2224 = vmatpush1.bf16.xpose.msra.mxu0 0
  %2225 = vmatprep.subr.bf16.mxu0 0
  %2226 = vmatpush1.bf16.xpose.msra.mxu0 0
  %2227 = vmatprep.subr.bf16.mxu0 0
  %2228 = vmatpush1.bf16.xpose.msra.mxu0 0
  %2229 = vmatprep.subr.bf16.mxu0 0
  %2230 = vmatpush1.bf16.xpose.msra.mxu0 %v2219
  %2231 = vmatprep.subr.bf16.mxu0 0
  %2232 = vmatpush1.bf16.xpose.msra.mxu0 %v2216
  %2233 = vmatprep.subr.bf16.mxu0 0
  %2234 = vmatpush1.bf16.xpose.msra.mxu0 %v2213
  %2235 = vmatprep.subr.bf16.mxu0 0
  %2236 = vmatpush1.bf16.xpose.msra.mxu0 %v2210
  %2237 = vmatprep.subr.bf16.mxu0 0
  %2238 = vmatpush2.bf16.xpose.msra.mxu0 0
  %2239 = vmatprep.subr.bf16.mxu0 0
  %2240 = vmatpush2.bf16.xpose.msra.mxu0 0
  %2241 = vmatprep.subr.bf16.mxu0 0
  %2242 = vmatpush2.bf16.xpose.msra.mxu0 0
  %2243 = vmatprep.subr.bf16.mxu0 0
  %2244 = vmatpush2.bf16.xpose.msra.mxu0 0
  %2245 = vmatprep.subr.bf16.mxu0 0
  %2246 = vmatpush2.bf16.xpose.msra.mxu0 0
  %2247 = vmatprep.subr.bf16.mxu0 0
  %2248 = vmatpush2.bf16.xpose.msra.mxu0 0
  %2249 = vmatprep.subr.bf16.mxu0 0
  %2250 = vmatpush2.bf16.xpose.msra.mxu0 0
  %2251 = vmatprep.subr.bf16.mxu0 0
  %2252 = vmatpush2.bf16.xpose.msra.mxu0 0
  %2253 = vmatprep.mubr.bf16.mxu0 0
  %2254 = vmatmul.mubr.bf16.gmra.mxu0 %v2198
  %v2255 = vpop.f32.mrf.mxu0
  %v2256 = vadd.f32 0.0, %v2255
  %v2257 = vpop.f32.mrf.mxu0
  %v2258 = vpop.f32.mrf.mxu0
  %v2259 = vadd.f32 0.0, %v2258
  %v2260 = vpop.f32.mrf.mxu0
  %2261 = vmatprep.mubr.bf16.mxu0 0
  %2262 = vmatmul.mubr.bf16.gmra.mxu0 %v2201
  %v2263 = vpop.f32.mrf.mxu0
  %v2264 = vadd.f32 0.0, %v2263
  %v2265 = vpop.f32.mrf.mxu0
  %v2266 = vpop.f32.mrf.mxu0
  %v2267 = vadd.f32 0.0, %v2266
  %v2268 = vpop.f32.mrf.mxu0
  %2269 = vmatprep.mubr.bf16.mxu0 0
  %2270 = vmatmul.mubr.bf16.gmra.mxu0 %v2204
  %v2271 = vpop.f32.mrf.mxu0
  %v2272 = vadd.f32 0.0, %v2271
  %v2273 = vpop.f32.mrf.mxu0
  %v2274 = vpop.f32.mrf.mxu0
  %v2275 = vadd.f32 0.0, %v2274
  %v2276 = vpop.f32.mrf.mxu0
  %2277 = vmatprep.mubr.bf16.mxu0 0
  %2278 = vmatmul.mubr.bf16.gmra.mxu0 %v2207
  %v2279 = vpop.f32.mrf.mxu0
  %v2280 = vadd.f32 0.0, %v2279
  %v2281 = vpop.f32.mrf.mxu0
  %v2282 = vpop.f32.mrf.mxu0
  %v2283 = vadd.f32 0.0, %v2282
  %v2284 = vpop.f32.mrf.mxu0
  %2285 = vdwg.mxu0
  %2290 = vrot.lane.b32.xlu0 %v1538, 96
  %v2291 = vpop.permute.xlu0 %2290
  %2292 = vrot.lane.b32.xlu0 %v1539, 96
  %v2293 = vpop.permute.xlu0 %2292
  %2294 = vrot.lane.b32.xlu0 %v1540, 96
  %v2295 = vpop.permute.xlu0 %2294
  %2296 = vrot.lane.b32.xlu0 %v1541, 96
  %v2297 = vpop.permute.xlu0 %2296
  %v2299 = vsel %vm1590, %v1538, 0
  %v2302 = vsel %vm1590, %v1539, 0
  %v2305 = vsel %vm1590, %v1540, 0
  %v2308 = vsel %vm1590, %v1541, 0
  %v2311 = vsel %vm1590, %v2291, 0
  %v2314 = vsel %vm1590, %v2293, 0
  %v2317 = vsel %vm1590, %v2295, 0
  %v2320 = vsel %vm1590, %v2297, 0
  %2322 = vmatprep.subr.bf16.mxu0 0
  %2323 = vmatpush1.bf16.xpose.msra.mxu0 0
  %2324 = vmatprep.subr.bf16.mxu0 0
  %2325 = vmatpush1.bf16.xpose.msra.mxu0 0
  %2326 = vmatprep.subr.bf16.mxu0 0
  %2327 = vmatpush1.bf16.xpose.msra.mxu0 0
  %2328 = vmatprep.subr.bf16.mxu0 0
  %2329 = vmatpush1.bf16.xpose.msra.mxu0 0
  %2330 = vmatprep.subr.bf16.mxu0 0
  %2331 = vmatpush1.bf16.xpose.msra.mxu0 %v2320
  %2332 = vmatprep.subr.bf16.mxu0 0
  %2333 = vmatpush1.bf16.xpose.msra.mxu0 %v2317
  %2334 = vmatprep.subr.bf16.mxu0 0
  %2335 = vmatpush1.bf16.xpose.msra.mxu0 %v2314
  %2336 = vmatprep.subr.bf16.mxu0 0
  %2337 = vmatpush1.bf16.xpose.msra.mxu0 %v2311
  %2338 = vmatprep.subr.bf16.mxu0 0
  %2339 = vmatpush2.bf16.xpose.msra.mxu0 0
  %2340 = vmatprep.subr.bf16.mxu0 0
  %2341 = vmatpush2.bf16.xpose.msra.mxu0 0
  %2342 = vmatprep.subr.bf16.mxu0 0
  %2343 = vmatpush2.bf16.xpose.msra.mxu0 0
  %2344 = vmatprep.subr.bf16.mxu0 0
  %2345 = vmatpush2.bf16.xpose.msra.mxu0 0
  %2346 = vmatprep.subr.bf16.mxu0 0
  %2347 = vmatpush2.bf16.xpose.msra.mxu0 0
  %2348 = vmatprep.subr.bf16.mxu0 0
  %2349 = vmatpush2.bf16.xpose.msra.mxu0 0
  %2350 = vmatprep.subr.bf16.mxu0 0
  %2351 = vmatpush2.bf16.xpose.msra.mxu0 0
  %2352 = vmatprep.subr.bf16.mxu0 0
  %2353 = vmatpush2.bf16.xpose.msra.mxu0 0
  %2354 = vmatprep.mubr.bf16.mxu0 0
  %2355 = vmatmul.mubr.bf16.gmra.mxu0 %v2299
  %v2356 = vpop.f32.mrf.mxu0
  %v2357 = vadd.f32 0.0, %v2356
  %v2358 = vpop.f32.mrf.mxu0
  %v2359 = vpop.f32.mrf.mxu0
  %v2360 = vadd.f32 0.0, %v2359
  %v2361 = vpop.f32.mrf.mxu0
  %2362 = vmatprep.mubr.bf16.mxu0 0
  %2363 = vmatmul.mubr.bf16.gmra.mxu0 %v2302
  %v2364 = vpop.f32.mrf.mxu0
  %v2365 = vadd.f32 0.0, %v2364
  %v2366 = vpop.f32.mrf.mxu0
  %v2367 = vpop.f32.mrf.mxu0
  %v2368 = vadd.f32 0.0, %v2367
  %v2369 = vpop.f32.mrf.mxu0
  %2370 = vmatprep.mubr.bf16.mxu0 0
  %2371 = vmatmul.mubr.bf16.gmra.mxu0 %v2305
  %v2372 = vpop.f32.mrf.mxu0
  %v2373 = vadd.f32 0.0, %v2372
  %v2374 = vpop.f32.mrf.mxu0
  %v2375 = vpop.f32.mrf.mxu0
  %v2376 = vadd.f32 0.0, %v2375
  %v2377 = vpop.f32.mrf.mxu0
  %2378 = vmatprep.mubr.bf16.mxu0 0
  %2379 = vmatmul.mubr.bf16.gmra.mxu0 %v2308
  %v2380 = vpop.f32.mrf.mxu0
  %v2381 = vadd.f32 0.0, %v2380
  %v2382 = vpop.f32.mrf.mxu0
  %v2383 = vpop.f32.mrf.mxu0
  %v2384 = vadd.f32 0.0, %v2383
  %v2385 = vpop.f32.mrf.mxu0
  %2386 = vdwg.mxu0
  %v2387 = vmul.f32 %v1650, 0.35355338
  %v2388 = vmul.f32 %v1653, 0.35355338
  %v2389 = vmul.f32 %v1658, 0.35355338
  %v2390 = vmul.f32 %v1661, 0.35355338
  %v2391 = vmul.f32 %v1666, 0.35355338
  %v2392 = vmul.f32 %v1669, 0.35355338
  %v2393 = vmul.f32 %v1674, 0.35355338
  %v2394 = vmul.f32 %v1677, 0.35355338
  %v2395 = vmul.f32 %v1751, 0.35355338
  %v2396 = vmul.f32 %v1754, 0.35355338
  %v2397 = vmul.f32 %v1759, 0.35355338
  %v2398 = vmul.f32 %v1762, 0.35355338
  %v2399 = vmul.f32 %v1767, 0.35355338
  %v2400 = vmul.f32 %v1770, 0.35355338
  %v2401 = vmul.f32 %v1775, 0.35355338
  %v2402 = vmul.f32 %v1778, 0.35355338
  %v2403 = vmul.f32 %v1852, 0.35355338
  %v2404 = vmul.f32 %v1855, 0.35355338
  %v2405 = vmul.f32 %v1860, 0.35355338
  %v2406 = vmul.f32 %v1863, 0.35355338
  %v2407 = vmul.f32 %v1868, 0.35355338
  %v2408 = vmul.f32 %v1871, 0.35355338
  %v2409 = vmul.f32 %v1876, 0.35355338
  %v2410 = vmul.f32 %v1879, 0.35355338
  %v2411 = vmul.f32 %v1953, 0.35355338
  %v2412 = vmul.f32 %v1956, 0.35355338
  %v2413 = vmul.f32 %v1961, 0.35355338
  %v2414 = vmul.f32 %v1964, 0.35355338
  %v2415 = vmul.f32 %v1969, 0.35355338
  %v2416 = vmul.f32 %v1972, 0.35355338
  %v2417 = vmul.f32 %v1977, 0.35355338
  %v2418 = vmul.f32 %v1980, 0.35355338
  %v2419 = vmul.f32 %v2054, 0.35355338
  %v2420 = vmul.f32 %v2057, 0.35355338
  %v2421 = vmul.f32 %v2062, 0.35355338
  %v2422 = vmul.f32 %v2065, 0.35355338
  %v2423 = vmul.f32 %v2070, 0.35355338
  %v2424 = vmul.f32 %v2073, 0.35355338
  %v2425 = vmul.f32 %v2078, 0.35355338
  %v2426 = vmul.f32 %v2081, 0.35355338
  %v2427 = vmul.f32 %v2155, 0.35355338
  %v2428 = vmul.f32 %v2158, 0.35355338
  %v2429 = vmul.f32 %v2163, 0.35355338
  %v2430 = vmul.f32 %v2166, 0.35355338
  %v2431 = vmul.f32 %v2171, 0.35355338
  %v2432 = vmul.f32 %v2174, 0.35355338
  %v2433 = vmul.f32 %v2179, 0.35355338
  %v2434 = vmul.f32 %v2182, 0.35355338
  %v2435 = vmul.f32 %v2256, 0.35355338
  %v2436 = vmul.f32 %v2259, 0.35355338
  %v2437 = vmul.f32 %v2264, 0.35355338
  %v2438 = vmul.f32 %v2267, 0.35355338
  %v2439 = vmul.f32 %v2272, 0.35355338
  %v2440 = vmul.f32 %v2275, 0.35355338
  %v2441 = vmul.f32 %v2280, 0.35355338
  %v2442 = vmul.f32 %v2283, 0.35355338
  %v2443 = vmul.f32 %v2357, 0.35355338
  %v2444 = vmul.f32 %v2360, 0.35355338
  %v2445 = vmul.f32 %v2365, 0.35355338
  %v2446 = vmul.f32 %v2368, 0.35355338
  %v2447 = vmul.f32 %v2373, 0.35355338
  %v2448 = vmul.f32 %v2376, 0.35355338
  %v2449 = vmul.f32 %v2381, 0.35355338
  %v2450 = vmul.f32 %v2384, 0.35355338
  %v2451 = vadd.f32 %v2387, %v1546
  %v2452 = vadd.f32 %v2388, %v1547
  %v2453 = vadd.f32 %v2389, %v1548
  %v2454 = vadd.f32 %v2390, %v1549
  %v2455 = vadd.f32 %v2391, %v1550
  %v2456 = vadd.f32 %v2392, %v1551
  %v2457 = vadd.f32 %v2393, %v1552
  %v2458 = vadd.f32 %v2394, %v1553
  %v2459 = vadd.f32 %v2395, %v1546
  %v2460 = vadd.f32 %v2396, %v1547
  %v2461 = vadd.f32 %v2397, %v1548
  %v2462 = vadd.f32 %v2398, %v1549
  %v2463 = vadd.f32 %v2399, %v1550
  %v2464 = vadd.f32 %v2400, %v1551
  %v2465 = vadd.f32 %v2401, %v1552
  %v2466 = vadd.f32 %v2402, %v1553
  %v2467 = vadd.f32 %v2403, %v1546
  %v2468 = vadd.f32 %v2404, %v1547
  %v2469 = vadd.f32 %v2405, %v1548
  %v2470 = vadd.f32 %v2406, %v1549
  %v2471 = vadd.f32 %v2407, %v1550
  %v2472 = vadd.f32 %v2408, %v1551
  %v2473 = vadd.f32 %v2409, %v1552
  %v2474 = vadd.f32 %v2410, %v1553
  %v2475 = vadd.f32 %v2411, %v1546
  %v2476 = vadd.f32 %v2412, %v1547
  %v2477 = vadd.f32 %v2413, %v1548
  %v2478 = vadd.f32 %v2414, %v1549
  %v2479 = vadd.f32 %v2415, %v1550
  %v2480 = vadd.f32 %v2416, %v1551
  %v2481 = vadd.f32 %v2417, %v1552
  %v2482 = vadd.f32 %v2418, %v1553
  %v2483 = vadd.f32 %v2419, %v1546
  %v2484 = vadd.f32 %v2420, %v1547
  %v2485 = vadd.f32 %v2421, %v1548
  %v2486 = vadd.f32 %v2422, %v1549
  %v2487 = vadd.f32 %v2423, %v1550
  %v2488 = vadd.f32 %v2424, %v1551
  %v2489 = vadd.f32 %v2425, %v1552
  %v2490 = vadd.f32 %v2426, %v1553
  %v2491 = vadd.f32 %v2427, %v1546
  %v2492 = vadd.f32 %v2428, %v1547
  %v2493 = vadd.f32 %v2429, %v1548
  %v2494 = vadd.f32 %v2430, %v1549
  %v2495 = vadd.f32 %v2431, %v1550
  %v2496 = vadd.f32 %v2432, %v1551
  %v2497 = vadd.f32 %v2433, %v1552
  %v2498 = vadd.f32 %v2434, %v1553
  %v2499 = vadd.f32 %v2435, %v1546
  %v2500 = vadd.f32 %v2436, %v1547
  %v2501 = vadd.f32 %v2437, %v1548
  %v2502 = vadd.f32 %v2438, %v1549
  %v2503 = vadd.f32 %v2439, %v1550
  %v2504 = vadd.f32 %v2440, %v1551
  %v2505 = vadd.f32 %v2441, %v1552
  %v2506 = vadd.f32 %v2442, %v1553
  %v2507 = vadd.f32 %v2443, %v1546
  %v2508 = vadd.f32 %v2444, %v1547
  %v2509 = vadd.f32 %v2445, %v1548
  %v2510 = vadd.f32 %v2446, %v1549
  %v2511 = vadd.f32 %v2447, %v1550
  %v2512 = vadd.f32 %v2448, %v1551
  %v2513 = vadd.f32 %v2449, %v1552
  %v2514 = vadd.f32 %v2450, %v1553
  %vm2515 = vcmask 523264
  %v2516 = vsel %vm2515, %v2451, -inf
  %2517 = vmax.xlane.f32.xlu0 %v2516
  %v2518 = vpop.xlane.xlu0 %2517
  %v2519 = vsel %vm2515, %v2452, -inf
  %2520 = vmax.xlane.f32.xlu0 %v2519
  %v2521 = vpop.xlane.xlu0 %2520
  %v2522 = vsel %vm2515, %v2453, -inf
  %2523 = vmax.xlane.f32.xlu0 %v2522
  %v2524 = vpop.xlane.xlu0 %2523
  %v2525 = vsel %vm2515, %v2454, -inf
  %2526 = vmax.xlane.f32.xlu0 %v2525
  %v2527 = vpop.xlane.xlu0 %2526
  %v2528 = vsel %vm2515, %v2455, -inf
  %2529 = vmax.xlane.f32.xlu0 %v2528
  %v2530 = vpop.xlane.xlu0 %2529
  %v2531 = vsel %vm2515, %v2456, -inf
  %2532 = vmax.xlane.f32.xlu0 %v2531
  %v2533 = vpop.xlane.xlu0 %2532
  %v2534 = vsel %vm2515, %v2457, -inf
  %2535 = vmax.xlane.f32.xlu0 %v2534
  %v2536 = vpop.xlane.xlu0 %2535
  %v2537 = vsel %vm2515, %v2458, -inf
  %2538 = vmax.xlane.f32.xlu0 %v2537
  %v2539 = vpop.xlane.xlu0 %2538
  %v2540 = vsel %vm2515, %v2459, -inf
  %2541 = vmax.xlane.f32.xlu0 %v2540
  %v2542 = vpop.xlane.xlu0 %2541
  %v2543 = vsel %vm2515, %v2460, -inf
  %2544 = vmax.xlane.f32.xlu0 %v2543
  %v2545 = vpop.xlane.xlu0 %2544
  %v2546 = vsel %vm2515, %v2461, -inf
  %2547 = vmax.xlane.f32.xlu0 %v2546
  %v2548 = vpop.xlane.xlu0 %2547
  %v2549 = vsel %vm2515, %v2462, -inf
  %2550 = vmax.xlane.f32.xlu0 %v2549
  %v2551 = vpop.xlane.xlu0 %2550
  %v2552 = vsel %vm2515, %v2463, -inf
  %2553 = vmax.xlane.f32.xlu0 %v2552
  %v2554 = vpop.xlane.xlu0 %2553
  %v2555 = vsel %vm2515, %v2464, -inf
  %2556 = vmax.xlane.f32.xlu0 %v2555
  %v2557 = vpop.xlane.xlu0 %2556
  %v2558 = vsel %vm2515, %v2465, -inf
  %2559 = vmax.xlane.f32.xlu0 %v2558
  %v2560 = vpop.xlane.xlu0 %2559
  %v2561 = vsel %vm2515, %v2466, -inf
  %2562 = vmax.xlane.f32.xlu0 %v2561
  %v2563 = vpop.xlane.xlu0 %2562
  %v2564 = vsel %vm2515, %v2467, -inf
  %2565 = vmax.xlane.f32.xlu0 %v2564
  %v2566 = vpop.xlane.xlu0 %2565
  %v2567 = vsel %vm2515, %v2468, -inf
  %2568 = vmax.xlane.f32.xlu0 %v2567
  %v2569 = vpop.xlane.xlu0 %2568
  %v2570 = vsel %vm2515, %v2469, -inf
  %2571 = vmax.xlane.f32.xlu0 %v2570
  %v2572 = vpop.xlane.xlu0 %2571
  %v2573 = vsel %vm2515, %v2470, -inf
  %2574 = vmax.xlane.f32.xlu0 %v2573
  %v2575 = vpop.xlane.xlu0 %2574
  %v2576 = vsel %vm2515, %v2471, -inf
  %2577 = vmax.xlane.f32.xlu0 %v2576
  %v2578 = vpop.xlane.xlu0 %2577
  %v2579 = vsel %vm2515, %v2472, -inf
  %2580 = vmax.xlane.f32.xlu0 %v2579
  %v2581 = vpop.xlane.xlu0 %2580
  %v2582 = vsel %vm2515, %v2473, -inf
  %2583 = vmax.xlane.f32.xlu0 %v2582
  %v2584 = vpop.xlane.xlu0 %2583
  %v2585 = vsel %vm2515, %v2474, -inf
  %2586 = vmax.xlane.f32.xlu0 %v2585
  %v2587 = vpop.xlane.xlu0 %2586
  %v2588 = vsel %vm2515, %v2475, -inf
  %2589 = vmax.xlane.f32.xlu0 %v2588
  %v2590 = vpop.xlane.xlu0 %2589
  %v2591 = vsel %vm2515, %v2476, -inf
  %2592 = vmax.xlane.f32.xlu0 %v2591
  %v2593 = vpop.xlane.xlu0 %2592
  %v2594 = vsel %vm2515, %v2477, -inf
  %2595 = vmax.xlane.f32.xlu0 %v2594
  %v2596 = vpop.xlane.xlu0 %2595
  %v2597 = vsel %vm2515, %v2478, -inf
  %2598 = vmax.xlane.f32.xlu0 %v2597
  %v2599 = vpop.xlane.xlu0 %2598
  %v2600 = vsel %vm2515, %v2479, -inf
  %2601 = vmax.xlane.f32.xlu0 %v2600
  %v2602 = vpop.xlane.xlu0 %2601
  %v2603 = vsel %vm2515, %v2480, -inf
  %2604 = vmax.xlane.f32.xlu0 %v2603
  %v2605 = vpop.xlane.xlu0 %2604
  %v2606 = vsel %vm2515, %v2481, -inf
  %2607 = vmax.xlane.f32.xlu0 %v2606
  %v2608 = vpop.xlane.xlu0 %2607
  %v2609 = vsel %vm2515, %v2482, -inf
  %2610 = vmax.xlane.f32.xlu0 %v2609
  %v2611 = vpop.xlane.xlu0 %2610
  %v2612 = vsel %vm2515, %v2483, -inf
  %2613 = vmax.xlane.f32.xlu0 %v2612
  %v2614 = vpop.xlane.xlu0 %2613
  %v2615 = vsel %vm2515, %v2484, -inf
  %2616 = vmax.xlane.f32.xlu0 %v2615
  %v2617 = vpop.xlane.xlu0 %2616
  %v2618 = vsel %vm2515, %v2485, -inf
  %2619 = vmax.xlane.f32.xlu0 %v2618
  %v2620 = vpop.xlane.xlu0 %2619
  %v2621 = vsel %vm2515, %v2486, -inf
  %2622 = vmax.xlane.f32.xlu0 %v2621
  %v2623 = vpop.xlane.xlu0 %2622
  %v2624 = vsel %vm2515, %v2487, -inf
  %2625 = vmax.xlane.f32.xlu0 %v2624
  %v2626 = vpop.xlane.xlu0 %2625
  %v2627 = vsel %vm2515, %v2488, -inf
  %2628 = vmax.xlane.f32.xlu0 %v2627
  %v2629 = vpop.xlane.xlu0 %2628
  %v2630 = vsel %vm2515, %v2489, -inf
  %2631 = vmax.xlane.f32.xlu0 %v2630
  %v2632 = vpop.xlane.xlu0 %2631
  %v2633 = vsel %vm2515, %v2490, -inf
  %2634 = vmax.xlane.f32.xlu0 %v2633
  %v2635 = vpop.xlane.xlu0 %2634
  %v2636 = vsel %vm2515, %v2491, -inf
  %2637 = vmax.xlane.f32.xlu0 %v2636
  %v2638 = vpop.xlane.xlu0 %2637
  %v2639 = vsel %vm2515, %v2492, -inf
  %2640 = vmax.xlane.f32.xlu0 %v2639
  %v2641 = vpop.xlane.xlu0 %2640
  %v2642 = vsel %vm2515, %v2493, -inf
  %2643 = vmax.xlane.f32.xlu0 %v2642
  %v2644 = vpop.xlane.xlu0 %2643
  %v2645 = vsel %vm2515, %v2494, -inf
  %2646 = vmax.xlane.f32.xlu0 %v2645
  %v2647 = vpop.xlane.xlu0 %2646
  %v2648 = vsel %vm2515, %v2495, -inf
  %2649 = vmax.xlane.f32.xlu0 %v2648
  %v2650 = vpop.xlane.xlu0 %2649
  %v2651 = vsel %vm2515, %v2496, -inf
  %2652 = vmax.xlane.f32.xlu0 %v2651
  %v2653 = vpop.xlane.xlu0 %2652
  %v2654 = vsel %vm2515, %v2497, -inf
  %2655 = vmax.xlane.f32.xlu0 %v2654
  %v2656 = vpop.xlane.xlu0 %2655
  %v2657 = vsel %vm2515, %v2498, -inf
  %2658 = vmax.xlane.f32.xlu0 %v2657
  %v2659 = vpop.xlane.xlu0 %2658
  %v2660 = vsel %vm2515, %v2499, -inf
  %2661 = vmax.xlane.f32.xlu0 %v2660
  %v2662 = vpop.xlane.xlu0 %2661
  %v2663 = vsel %vm2515, %v2500, -inf
  %2664 = vmax.xlane.f32.xlu0 %v2663
  %v2665 = vpop.xlane.xlu0 %2664
  %v2666 = vsel %vm2515, %v2501, -inf
  %2667 = vmax.xlane.f32.xlu0 %v2666
  %v2668 = vpop.xlane.xlu0 %2667
  %v2669 = vsel %vm2515, %v2502, -inf
  %2670 = vmax.xlane.f32.xlu0 %v2669
  %v2671 = vpop.xlane.xlu0 %2670
  %v2672 = vsel %vm2515, %v2503, -inf
  %2673 = vmax.xlane.f32.xlu0 %v2672
  %v2674 = vpop.xlane.xlu0 %2673
  %v2675 = vsel %vm2515, %v2504, -inf
  %2676 = vmax.xlane.f32.xlu0 %v2675
  %v2677 = vpop.xlane.xlu0 %2676
  %v2678 = vsel %vm2515, %v2505, -inf
  %2679 = vmax.xlane.f32.xlu0 %v2678
  %v2680 = vpop.xlane.xlu0 %2679
  %v2681 = vsel %vm2515, %v2506, -inf
  %2682 = vmax.xlane.f32.xlu0 %v2681
  %v2683 = vpop.xlane.xlu0 %2682
  %v2684 = vsel %vm2515, %v2507, -inf
  %2685 = vmax.xlane.f32.xlu0 %v2684
  %v2686 = vpop.xlane.xlu0 %2685
  %v2687 = vsel %vm2515, %v2508, -inf
  %2688 = vmax.xlane.f32.xlu0 %v2687
  %v2689 = vpop.xlane.xlu0 %2688
  %v2690 = vsel %vm2515, %v2509, -inf
  %2691 = vmax.xlane.f32.xlu0 %v2690
  %v2692 = vpop.xlane.xlu0 %2691
  %v2693 = vsel %vm2515, %v2510, -inf
  %2694 = vmax.xlane.f32.xlu0 %v2693
  %v2695 = vpop.xlane.xlu0 %2694
  %v2696 = vsel %vm2515, %v2511, -inf
  %2697 = vmax.xlane.f32.xlu0 %v2696
  %v2698 = vpop.xlane.xlu0 %2697
  %v2699 = vsel %vm2515, %v2512, -inf
  %2700 = vmax.xlane.f32.xlu0 %v2699
  %v2701 = vpop.xlane.xlu0 %2700
  %v2702 = vsel %vm2515, %v2513, -inf
  %2703 = vmax.xlane.f32.xlu0 %v2702
  %v2704 = vpop.xlane.xlu0 %2703
  %v2705 = vsel %vm2515, %v2514, -inf
  %2706 = vmax.xlane.f32.xlu0 %v2705
  %v2707 = vpop.xlane.xlu0 %2706
  %v2708 = vsub.f32 %v2451, %v2518
  %v2709 = vsub.f32 %v2452, %v2521
  %v2710 = vsub.f32 %v2453, %v2524
  %v2711 = vsub.f32 %v2454, %v2527
  %v2712 = vsub.f32 %v2455, %v2530
  %v2713 = vsub.f32 %v2456, %v2533
  %v2714 = vsub.f32 %v2457, %v2536
  %v2715 = vsub.f32 %v2458, %v2539
  %v2716 = vsub.f32 %v2459, %v2542
  %v2717 = vsub.f32 %v2460, %v2545
  %v2718 = vsub.f32 %v2461, %v2548
  %v2719 = vsub.f32 %v2462, %v2551
  %v2720 = vsub.f32 %v2463, %v2554
  %v2721 = vsub.f32 %v2464, %v2557
  %v2722 = vsub.f32 %v2465, %v2560
  %v2723 = vsub.f32 %v2466, %v2563
  %v2724 = vsub.f32 %v2467, %v2566
  %v2725 = vsub.f32 %v2468, %v2569
  %v2726 = vsub.f32 %v2469, %v2572
  %v2727 = vsub.f32 %v2470, %v2575
  %v2728 = vsub.f32 %v2471, %v2578
  %v2729 = vsub.f32 %v2472, %v2581
  %v2730 = vsub.f32 %v2473, %v2584
  %v2731 = vsub.f32 %v2474, %v2587
  %v2732 = vsub.f32 %v2475, %v2590
  %v2733 = vsub.f32 %v2476, %v2593
  %v2734 = vsub.f32 %v2477, %v2596
  %v2735 = vsub.f32 %v2478, %v2599
  %v2736 = vsub.f32 %v2479, %v2602
  %v2737 = vsub.f32 %v2480, %v2605
  %v2738 = vsub.f32 %v2481, %v2608
  %v2739 = vsub.f32 %v2482, %v2611
  %v2740 = vsub.f32 %v2483, %v2614
  %v2741 = vsub.f32 %v2484, %v2617
  %v2742 = vsub.f32 %v2485, %v2620
  %v2743 = vsub.f32 %v2486, %v2623
  %v2744 = vsub.f32 %v2487, %v2626
  %v2745 = vsub.f32 %v2488, %v2629
  %v2746 = vsub.f32 %v2489, %v2632
  %v2747 = vsub.f32 %v2490, %v2635
  %v2748 = vsub.f32 %v2491, %v2638
  %v2749 = vsub.f32 %v2492, %v2641
  %v2750 = vsub.f32 %v2493, %v2644
  %v2751 = vsub.f32 %v2494, %v2647
  %v2752 = vsub.f32 %v2495, %v2650
  %v2753 = vsub.f32 %v2496, %v2653
  %v2754 = vsub.f32 %v2497, %v2656
  %v2755 = vsub.f32 %v2498, %v2659
  %v2756 = vsub.f32 %v2499, %v2662
  %v2757 = vsub.f32 %v2500, %v2665
  %v2758 = vsub.f32 %v2501, %v2668
  %v2759 = vsub.f32 %v2502, %v2671
  %v2760 = vsub.f32 %v2503, %v2674
  %v2761 = vsub.f32 %v2504, %v2677
  %v2762 = vsub.f32 %v2505, %v2680
  %v2763 = vsub.f32 %v2506, %v2683
  %v2764 = vsub.f32 %v2507, %v2686
  %v2765 = vsub.f32 %v2508, %v2689
  %v2766 = vsub.f32 %v2509, %v2692
  %v2767 = vsub.f32 %v2510, %v2695
  %v2768 = vsub.f32 %v2511, %v2698
  %v2769 = vsub.f32 %v2512, %v2701
  %v2770 = vsub.f32 %v2513, %v2704
  %v2771 = vsub.f32 %v2514, %v2707
  %v2772 = vmul.f32 %v2708, 1.442695
  %v2773 = vpow.pop %v2772
  %v2774 = vmul.f32 %v2709, 1.442695
  %v2775 = vpow.pop %v2774
  %v2776 = vmul.f32 %v2710, 1.442695
  %v2777 = vpow.pop %v2776
  %v2778 = vmul.f32 %v2711, 1.442695
  %v2779 = vpow.pop %v2778
  %v2780 = vmul.f32 %v2712, 1.442695
  %v2781 = vpow.pop %v2780
  %v2782 = vmul.f32 %v2713, 1.442695
  %v2783 = vpow.pop %v2782
  %v2784 = vmul.f32 %v2714, 1.442695
  %v2785 = vpow.pop %v2784
  %v2786 = vmul.f32 %v2715, 1.442695
  %v2787 = vpow.pop %v2786
  %v2788 = vmul.f32 %v2716, 1.442695
  %v2789 = vpow.pop %v2788
  %v2790 = vmul.f32 %v2717, 1.442695
  %v2791 = vpow.pop %v2790
  %v2792 = vmul.f32 %v2718, 1.442695
  %v2793 = vpow.pop %v2792
  %v2794 = vmul.f32 %v2719, 1.442695
  %v2795 = vpow.pop %v2794
  %v2796 = vmul.f32 %v2720, 1.442695
  %v2797 = vpow.pop %v2796
  %v2798 = vmul.f32 %v2721, 1.442695
  %v2799 = vpow.pop %v2798
  %v2800 = vmul.f32 %v2722, 1.442695
  %v2801 = vpow.pop %v2800
  %v2802 = vmul.f32 %v2723, 1.442695
  %v2803 = vpow.pop %v2802
  %v2804 = vmul.f32 %v2724, 1.442695
  %v2805 = vpow.pop %v2804
  %v2806 = vmul.f32 %v2725, 1.442695
  %v2807 = vpow.pop %v2806
  %v2808 = vmul.f32 %v2726, 1.442695
  %v2809 = vpow.pop %v2808
  %v2810 = vmul.f32 %v2727, 1.442695
  %v2811 = vpow.pop %v2810
  %v2812 = vmul.f32 %v2728, 1.442695
  %v2813 = vpow.pop %v2812
  %v2814 = vmul.f32 %v2729, 1.442695
  %v2815 = vpow.pop %v2814
  %v2816 = vmul.f32 %v2730, 1.442695
  %v2817 = vpow.pop %v2816
  %v2818 = vmul.f32 %v2731, 1.442695
  %v2819 = vpow.pop %v2818
  %v2820 = vmul.f32 %v2732, 1.442695
  %v2821 = vpow.pop %v2820
  %v2822 = vmul.f32 %v2733, 1.442695
  %v2823 = vpow.pop %v2822
  %v2824 = vmul.f32 %v2734, 1.442695
  %v2825 = vpow.pop %v2824
  %v2826 = vmul.f32 %v2735, 1.442695
  %v2827 = vpow.pop %v2826
  %v2828 = vmul.f32 %v2736, 1.442695
  %v2829 = vpow.pop %v2828
  %v2830 = vmul.f32 %v2737, 1.442695
  %v2831 = vpow.pop %v2830
  %v2832 = vmul.f32 %v2738, 1.442695
  %v2833 = vpow.pop %v2832
  %v2834 = vmul.f32 %v2739, 1.442695
  %v2835 = vpow.pop %v2834
  %v2836 = vmul.f32 %v2740, 1.442695
  %v2837 = vpow.pop %v2836
  %v2838 = vmul.f32 %v2741, 1.442695
  %v2839 = vpow.pop %v2838
  %v2840 = vmul.f32 %v2742, 1.442695
  %v2841 = vpow.pop %v2840
  %v2842 = vmul.f32 %v2743, 1.442695
  %v2843 = vpow.pop %v2842
  %v2844 = vmul.f32 %v2744, 1.442695
  %v2845 = vpow.pop %v2844
  %v2846 = vmul.f32 %v2745, 1.442695
  %v2847 = vpow.pop %v2846
  %v2848 = vmul.f32 %v2746, 1.442695
  %v2849 = vpow.pop %v2848
  %v2850 = vmul.f32 %v2747, 1.442695
  %v2851 = vpow.pop %v2850
  %v2852 = vmul.f32 %v2748, 1.442695
  %v2853 = vpow.pop %v2852
  %v2854 = vmul.f32 %v2749, 1.442695
  %v2855 = vpow.pop %v2854
  %v2856 = vmul.f32 %v2750, 1.442695
  %v2857 = vpow.pop %v2856
  %v2858 = vmul.f32 %v2751, 1.442695
  %v2859 = vpow.pop %v2858
  %v2860 = vmul.f32 %v2752, 1.442695
  %v2861 = vpow.pop %v2860
  %v2862 = vmul.f32 %v2753, 1.442695
  %v2863 = vpow.pop %v2862
  %v2864 = vmul.f32 %v2754, 1.442695
  %v2865 = vpow.pop %v2864
  %v2866 = vmul.f32 %v2755, 1.442695
  %v2867 = vpow.pop %v2866
  %v2868 = vmul.f32 %v2756, 1.442695
  %v2869 = vpow.pop %v2868
  %v2870 = vmul.f32 %v2757, 1.442695
  %v2871 = vpow.pop %v2870
  %v2872 = vmul.f32 %v2758, 1.442695
  %v2873 = vpow.pop %v2872
  %v2874 = vmul.f32 %v2759, 1.442695
  %v2875 = vpow.pop %v2874
  %v2876 = vmul.f32 %v2760, 1.442695
  %v2877 = vpow.pop %v2876
  %v2878 = vmul.f32 %v2761, 1.442695
  %v2879 = vpow.pop %v2878
  %v2880 = vmul.f32 %v2762, 1.442695
  %v2881 = vpow.pop %v2880
  %v2882 = vmul.f32 %v2763, 1.442695
  %v2883 = vpow.pop %v2882
  %v2884 = vmul.f32 %v2764, 1.442695
  %v2885 = vpow.pop %v2884
  %v2886 = vmul.f32 %v2765, 1.442695
  %v2887 = vpow.pop %v2886
  %v2888 = vmul.f32 %v2766, 1.442695
  %v2889 = vpow.pop %v2888
  %v2890 = vmul.f32 %v2767, 1.442695
  %v2891 = vpow.pop %v2890
  %v2892 = vmul.f32 %v2768, 1.442695
  %v2893 = vpow.pop %v2892
  %v2894 = vmul.f32 %v2769, 1.442695
  %v2895 = vpow.pop %v2894
  %v2896 = vmul.f32 %v2770, 1.442695
  %v2897 = vpow.pop %v2896
  %v2898 = vmul.f32 %v2771, 1.442695
  %v2899 = vpow.pop %v2898
  %v2900 = vsel %vm2515, %v2773, 0.0
  %2901 = vadd.xlane.f32.xlu0 %v2900
  %v2902 = vpop.xlane.xlu0 %2901
  %v2903 = vsel %vm2515, %v2775, 0.0
  %2904 = vadd.xlane.f32.xlu0 %v2903
  %v2905 = vpop.xlane.xlu0 %2904
  %v2906 = vsel %vm2515, %v2777, 0.0
  %2907 = vadd.xlane.f32.xlu0 %v2906
  %v2908 = vpop.xlane.xlu0 %2907
  %v2909 = vsel %vm2515, %v2779, 0.0
  %2910 = vadd.xlane.f32.xlu0 %v2909
  %v2911 = vpop.xlane.xlu0 %2910
  %v2912 = vsel %vm2515, %v2781, 0.0
  %2913 = vadd.xlane.f32.xlu0 %v2912
  %v2914 = vpop.xlane.xlu0 %2913
  %v2915 = vsel %vm2515, %v2783, 0.0
  %2916 = vadd.xlane.f32.xlu0 %v2915
  %v2917 = vpop.xlane.xlu0 %2916
  %v2918 = vsel %vm2515, %v2785, 0.0
  %2919 = vadd.xlane.f32.xlu0 %v2918
  %v2920 = vpop.xlane.xlu0 %2919
  %v2921 = vsel %vm2515, %v2787, 0.0
  %2922 = vadd.xlane.f32.xlu0 %v2921
  %v2923 = vpop.xlane.xlu0 %2922
  %v2924 = vsel %vm2515, %v2789, 0.0
  %2925 = vadd.xlane.f32.xlu0 %v2924
  %v2926 = vpop.xlane.xlu0 %2925
  %v2927 = vsel %vm2515, %v2791, 0.0
  %2928 = vadd.xlane.f32.xlu0 %v2927
  %v2929 = vpop.xlane.xlu0 %2928
  %v2930 = vsel %vm2515, %v2793, 0.0
  %2931 = vadd.xlane.f32.xlu0 %v2930
  %v2932 = vpop.xlane.xlu0 %2931
  %v2933 = vsel %vm2515, %v2795, 0.0
  %2934 = vadd.xlane.f32.xlu0 %v2933
  %v2935 = vpop.xlane.xlu0 %2934
  %v2936 = vsel %vm2515, %v2797, 0.0
  %2937 = vadd.xlane.f32.xlu0 %v2936
  %v2938 = vpop.xlane.xlu0 %2937
  %v2939 = vsel %vm2515, %v2799, 0.0
  %2940 = vadd.xlane.f32.xlu0 %v2939
  %v2941 = vpop.xlane.xlu0 %2940
  %v2942 = vsel %vm2515, %v2801, 0.0
  %2943 = vadd.xlane.f32.xlu0 %v2942
  %v2944 = vpop.xlane.xlu0 %2943
  %v2945 = vsel %vm2515, %v2803, 0.0
  %2946 = vadd.xlane.f32.xlu0 %v2945
  %v2947 = vpop.xlane.xlu0 %2946
  %v2948 = vsel %vm2515, %v2805, 0.0
  %2949 = vadd.xlane.f32.xlu0 %v2948
  %v2950 = vpop.xlane.xlu0 %2949
  %v2951 = vsel %vm2515, %v2807, 0.0
  %2952 = vadd.xlane.f32.xlu0 %v2951
  %v2953 = vpop.xlane.xlu0 %2952
  %v2954 = vsel %vm2515, %v2809, 0.0
  %2955 = vadd.xlane.f32.xlu0 %v2954
  %v2956 = vpop.xlane.xlu0 %2955
  %v2957 = vsel %vm2515, %v2811, 0.0
  %2958 = vadd.xlane.f32.xlu0 %v2957
  %v2959 = vpop.xlane.xlu0 %2958
  %v2960 = vsel %vm2515, %v2813, 0.0
  %2961 = vadd.xlane.f32.xlu0 %v2960
  %v2962 = vpop.xlane.xlu0 %2961
  %v2963 = vsel %vm2515, %v2815, 0.0
  %2964 = vadd.xlane.f32.xlu0 %v2963
  %v2965 = vpop.xlane.xlu0 %2964
  %v2966 = vsel %vm2515, %v2817, 0.0
  %2967 = vadd.xlane.f32.xlu0 %v2966
  %v2968 = vpop.xlane.xlu0 %2967
  %v2969 = vsel %vm2515, %v2819, 0.0
  %2970 = vadd.xlane.f32.xlu0 %v2969
  %v2971 = vpop.xlane.xlu0 %2970
  %v2972 = vsel %vm2515, %v2821, 0.0
  %2973 = vadd.xlane.f32.xlu0 %v2972
  %v2974 = vpop.xlane.xlu0 %2973
  %v2975 = vsel %vm2515, %v2823, 0.0
  %2976 = vadd.xlane.f32.xlu0 %v2975
  %v2977 = vpop.xlane.xlu0 %2976
  %v2978 = vsel %vm2515, %v2825, 0.0
  %2979 = vadd.xlane.f32.xlu0 %v2978
  %v2980 = vpop.xlane.xlu0 %2979
  %v2981 = vsel %vm2515, %v2827, 0.0
  %2982 = vadd.xlane.f32.xlu0 %v2981
  %v2983 = vpop.xlane.xlu0 %2982
  %v2984 = vsel %vm2515, %v2829, 0.0
  %2985 = vadd.xlane.f32.xlu0 %v2984
  %v2986 = vpop.xlane.xlu0 %2985
  %v2987 = vsel %vm2515, %v2831, 0.0
  %2988 = vadd.xlane.f32.xlu0 %v2987
  %v2989 = vpop.xlane.xlu0 %2988
  %v2990 = vsel %vm2515, %v2833, 0.0
  %2991 = vadd.xlane.f32.xlu0 %v2990
  %v2992 = vpop.xlane.xlu0 %2991
  %v2993 = vsel %vm2515, %v2835, 0.0
  %2994 = vadd.xlane.f32.xlu0 %v2993
  %v2995 = vpop.xlane.xlu0 %2994
  %v2996 = vsel %vm2515, %v2837, 0.0
  %2997 = vadd.xlane.f32.xlu0 %v2996
  %v2998 = vpop.xlane.xlu0 %2997
  %v2999 = vsel %vm2515, %v2839, 0.0
  %3000 = vadd.xlane.f32.xlu0 %v2999
  %v3001 = vpop.xlane.xlu0 %3000
  %v3002 = vsel %vm2515, %v2841, 0.0
  %3003 = vadd.xlane.f32.xlu0 %v3002
  %v3004 = vpop.xlane.xlu0 %3003
  %v3005 = vsel %vm2515, %v2843, 0.0
  %3006 = vadd.xlane.f32.xlu0 %v3005
  %v3007 = vpop.xlane.xlu0 %3006
  %v3008 = vsel %vm2515, %v2845, 0.0
  %3009 = vadd.xlane.f32.xlu0 %v3008
  %v3010 = vpop.xlane.xlu0 %3009
  %v3011 = vsel %vm2515, %v2847, 0.0
  %3012 = vadd.xlane.f32.xlu0 %v3011
  %v3013 = vpop.xlane.xlu0 %3012
  %v3014 = vsel %vm2515, %v2849, 0.0
  %3015 = vadd.xlane.f32.xlu0 %v3014
  %v3016 = vpop.xlane.xlu0 %3015
  %v3017 = vsel %vm2515, %v2851, 0.0
  %3018 = vadd.xlane.f32.xlu0 %v3017
  %v3019 = vpop.xlane.xlu0 %3018
  %v3020 = vsel %vm2515, %v2853, 0.0
  %3021 = vadd.xlane.f32.xlu0 %v3020
  %v3022 = vpop.xlane.xlu0 %3021
  %v3023 = vsel %vm2515, %v2855, 0.0
  %3024 = vadd.xlane.f32.xlu0 %v3023
  %v3025 = vpop.xlane.xlu0 %3024
  %v3026 = vsel %vm2515, %v2857, 0.0
  %3027 = vadd.xlane.f32.xlu0 %v3026
  %v3028 = vpop.xlane.xlu0 %3027
  %v3029 = vsel %vm2515, %v2859, 0.0
  %3030 = vadd.xlane.f32.xlu0 %v3029
  %v3031 = vpop.xlane.xlu0 %3030
  %v3032 = vsel %vm2515, %v2861, 0.0
  %3033 = vadd.xlane.f32.xlu0 %v3032
  %v3034 = vpop.xlane.xlu0 %3033
  %v3035 = vsel %vm2515, %v2863, 0.0
  %3036 = vadd.xlane.f32.xlu0 %v3035
  %v3037 = vpop.xlane.xlu0 %3036
  %v3038 = vsel %vm2515, %v2865, 0.0
  %3039 = vadd.xlane.f32.xlu0 %v3038
  %v3040 = vpop.xlane.xlu0 %3039
  %v3041 = vsel %vm2515, %v2867, 0.0
  %3042 = vadd.xlane.f32.xlu0 %v3041
  %v3043 = vpop.xlane.xlu0 %3042
  %v3044 = vsel %vm2515, %v2869, 0.0
  %3045 = vadd.xlane.f32.xlu0 %v3044
  %v3046 = vpop.xlane.xlu0 %3045
  %v3047 = vsel %vm2515, %v2871, 0.0
  %3048 = vadd.xlane.f32.xlu0 %v3047
  %v3049 = vpop.xlane.xlu0 %3048
  %v3050 = vsel %vm2515, %v2873, 0.0
  %3051 = vadd.xlane.f32.xlu0 %v3050
  %v3052 = vpop.xlane.xlu0 %3051
  %v3053 = vsel %vm2515, %v2875, 0.0
  %3054 = vadd.xlane.f32.xlu0 %v3053
  %v3055 = vpop.xlane.xlu0 %3054
  %v3056 = vsel %vm2515, %v2877, 0.0
  %3057 = vadd.xlane.f32.xlu0 %v3056
  %v3058 = vpop.xlane.xlu0 %3057
  %v3059 = vsel %vm2515, %v2879, 0.0
  %3060 = vadd.xlane.f32.xlu0 %v3059
  %v3061 = vpop.xlane.xlu0 %3060
  %v3062 = vsel %vm2515, %v2881, 0.0
  %3063 = vadd.xlane.f32.xlu0 %v3062
  %v3064 = vpop.xlane.xlu0 %3063
  %v3065 = vsel %vm2515, %v2883, 0.0
  %3066 = vadd.xlane.f32.xlu0 %v3065
  %v3067 = vpop.xlane.xlu0 %3066
  %v3068 = vsel %vm2515, %v2885, 0.0
  %3069 = vadd.xlane.f32.xlu0 %v3068
  %v3070 = vpop.xlane.xlu0 %3069
  %v3071 = vsel %vm2515, %v2887, 0.0
  %3072 = vadd.xlane.f32.xlu0 %v3071
  %v3073 = vpop.xlane.xlu0 %3072
  %v3074 = vsel %vm2515, %v2889, 0.0
  %3075 = vadd.xlane.f32.xlu0 %v3074
  %v3076 = vpop.xlane.xlu0 %3075
  %v3077 = vsel %vm2515, %v2891, 0.0
  %3078 = vadd.xlane.f32.xlu0 %v3077
  %v3079 = vpop.xlane.xlu0 %3078
  %v3080 = vsel %vm2515, %v2893, 0.0
  %3081 = vadd.xlane.f32.xlu0 %v3080
  %v3082 = vpop.xlane.xlu0 %3081
  %v3083 = vsel %vm2515, %v2895, 0.0
  %3084 = vadd.xlane.f32.xlu0 %v3083
  %v3085 = vpop.xlane.xlu0 %3084
  %v3086 = vsel %vm2515, %v2897, 0.0
  %3087 = vadd.xlane.f32.xlu0 %v3086
  %v3088 = vpop.xlane.xlu0 %3087
  %v3089 = vsel %vm2515, %v2899, 0.0
  %3090 = vadd.xlane.f32.xlu0 %v3089
  %v3091 = vpop.xlane.xlu0 %3090
  %v3092 = vrcp.pop %v2902
  %v3093 = vrcp.pop %v2905
  %v3094 = vrcp.pop %v2908
  %v3095 = vrcp.pop %v2911
  %v3096 = vrcp.pop %v2914
  %v3097 = vrcp.pop %v2917
  %v3098 = vrcp.pop %v2920
  %v3099 = vrcp.pop %v2923
  %v3100 = vrcp.pop %v2926
  %v3101 = vrcp.pop %v2929
  %v3102 = vrcp.pop %v2932
  %v3103 = vrcp.pop %v2935
  %v3104 = vrcp.pop %v2938
  %v3105 = vrcp.pop %v2941
  %v3106 = vrcp.pop %v2944
  %v3107 = vrcp.pop %v2947
  %v3108 = vrcp.pop %v2950
  %v3109 = vrcp.pop %v2953
  %v3110 = vrcp.pop %v2956
  %v3111 = vrcp.pop %v2959
  %v3112 = vrcp.pop %v2962
  %v3113 = vrcp.pop %v2965
  %v3114 = vrcp.pop %v2968
  %v3115 = vrcp.pop %v2971
  %v3116 = vrcp.pop %v2974
  %v3117 = vrcp.pop %v2977
  %v3118 = vrcp.pop %v2980
  %v3119 = vrcp.pop %v2983
  %v3120 = vrcp.pop %v2986
  %v3121 = vrcp.pop %v2989
  %v3122 = vrcp.pop %v2992
  %v3123 = vrcp.pop %v2995
  %v3124 = vrcp.pop %v2998
  %v3125 = vrcp.pop %v3001
  %v3126 = vrcp.pop %v3004
  %v3127 = vrcp.pop %v3007
  %v3128 = vrcp.pop %v3010
  %v3129 = vrcp.pop %v3013
  %v3130 = vrcp.pop %v3016
  %v3131 = vrcp.pop %v3019
  %v3132 = vrcp.pop %v3022
  %v3133 = vrcp.pop %v3025
  %v3134 = vrcp.pop %v3028
  %v3135 = vrcp.pop %v3031
  %v3136 = vrcp.pop %v3034
  %v3137 = vrcp.pop %v3037
  %v3138 = vrcp.pop %v3040
  %v3139 = vrcp.pop %v3043
  %v3140 = vrcp.pop %v3046
  %v3141 = vrcp.pop %v3049
  %v3142 = vrcp.pop %v3052
  %v3143 = vrcp.pop %v3055
  %v3144 = vrcp.pop %v3058
  %v3145 = vrcp.pop %v3061
  %v3146 = vrcp.pop %v3064
  %v3147 = vrcp.pop %v3067
  %v3148 = vrcp.pop %v3070
  %v3149 = vrcp.pop %v3073
  %v3150 = vrcp.pop %v3076
  %v3151 = vrcp.pop %v3079
  %v3152 = vrcp.pop %v3082
  %v3153 = vrcp.pop %v3085
  %v3154 = vrcp.pop %v3088
  %v3155 = vrcp.pop %v3091
  %v3156 = vmul.f32 %v2773, %v3092
  %v3157 = vmul.f32 %v2775, %v3093
  %v3158 = vmul.f32 %v2777, %v3094
  %v3159 = vmul.f32 %v2779, %v3095
  %v3160 = vmul.f32 %v2781, %v3096
  %v3161 = vmul.f32 %v2783, %v3097
  %v3162 = vmul.f32 %v2785, %v3098
  %v3163 = vmul.f32 %v2787, %v3099
  %v3164 = vmul.f32 %v2789, %v3100
  %v3165 = vmul.f32 %v2791, %v3101
  %v3166 = vmul.f32 %v2793, %v3102
  %v3167 = vmul.f32 %v2795, %v3103
  %v3168 = vmul.f32 %v2797, %v3104
  %v3169 = vmul.f32 %v2799, %v3105
  %v3170 = vmul.f32 %v2801, %v3106
  %v3171 = vmul.f32 %v2803, %v3107
  %v3172 = vmul.f32 %v2805, %v3108
  %v3173 = vmul.f32 %v2807, %v3109
  %v3174 = vmul.f32 %v2809, %v3110
  %v3175 = vmul.f32 %v2811, %v3111
  %v3176 = vmul.f32 %v2813, %v3112
  %v3177 = vmul.f32 %v2815, %v3113
  %v3178 = vmul.f32 %v2817, %v3114
  %v3179 = vmul.f32 %v2819, %v3115
  %v3180 = vmul.f32 %v2821, %v3116
  %v3181 = vmul.f32 %v2823, %v3117
  %v3182 = vmul.f32 %v2825, %v3118
  %v3183 = vmul.f32 %v2827, %v3119
  %v3184 = vmul.f32 %v2829, %v3120
  %v3185 = vmul.f32 %v2831, %v3121
  %v3186 = vmul.f32 %v2833, %v3122
  %v3187 = vmul.f32 %v2835, %v3123
  %v3188 = vmul.f32 %v2837, %v3124
  %v3189 = vmul.f32 %v2839, %v3125
  %v3190 = vmul.f32 %v2841, %v3126
  %v3191 = vmul.f32 %v2843, %v3127
  %v3192 = vmul.f32 %v2845, %v3128
  %v3193 = vmul.f32 %v2847, %v3129
  %v3194 = vmul.f32 %v2849, %v3130
  %v3195 = vmul.f32 %v2851, %v3131
  %v3196 = vmul.f32 %v2853, %v3132
  %v3197 = vmul.f32 %v2855, %v3133
  %v3198 = vmul.f32 %v2857, %v3134
  %v3199 = vmul.f32 %v2859, %v3135
  %v3200 = vmul.f32 %v2861, %v3136
  %v3201 = vmul.f32 %v2863, %v3137
  %v3202 = vmul.f32 %v2865, %v3138
  %v3203 = vmul.f32 %v2867, %v3139
  %v3204 = vmul.f32 %v2869, %v3140
  %v3205 = vmul.f32 %v2871, %v3141
  %v3206 = vmul.f32 %v2873, %v3142
  %v3207 = vmul.f32 %v2875, %v3143
  %v3208 = vmul.f32 %v2877, %v3144
  %v3209 = vmul.f32 %v2879, %v3145
  %v3210 = vmul.f32 %v2881, %v3146
  %v3211 = vmul.f32 %v2883, %v3147
  %v3212 = vmul.f32 %v2885, %v3148
  %v3213 = vmul.f32 %v2887, %v3149
  %v3214 = vmul.f32 %v2889, %v3150
  %v3215 = vmul.f32 %v2891, %v3151
  %v3216 = vmul.f32 %v2893, %v3152
  %v3217 = vmul.f32 %v2895, %v3153
  %v3218 = vmul.f32 %v2897, %v3154
  %v3219 = vmul.f32 %v2899, %v3155
  %v3220 = vpack.c.bf16 %v3157, %v3156
  %v3221 = vpack.c.bf16 %v3159, %v3158
  %v3222 = vpack.c.bf16 %v3161, %v3160
  %v3223 = vpack.c.bf16 %v3163, %v3162
  %v3224 = vpack.c.bf16 %v3165, %v3164
  %v3225 = vpack.c.bf16 %v3167, %v3166
  %v3226 = vpack.c.bf16 %v3169, %v3168
  %v3227 = vpack.c.bf16 %v3171, %v3170
  %v3228 = vpack.c.bf16 %v3173, %v3172
  %v3229 = vpack.c.bf16 %v3175, %v3174
  %v3230 = vpack.c.bf16 %v3177, %v3176
  %v3231 = vpack.c.bf16 %v3179, %v3178
  %v3232 = vpack.c.bf16 %v3181, %v3180
  %v3233 = vpack.c.bf16 %v3183, %v3182
  %v3234 = vpack.c.bf16 %v3185, %v3184
  %v3235 = vpack.c.bf16 %v3187, %v3186
  %v3236 = vpack.c.bf16 %v3189, %v3188
  %v3237 = vpack.c.bf16 %v3191, %v3190
  %v3238 = vpack.c.bf16 %v3193, %v3192
  %v3239 = vpack.c.bf16 %v3195, %v3194
  %v3240 = vpack.c.bf16 %v3197, %v3196
  %v3241 = vpack.c.bf16 %v3199, %v3198
  %v3242 = vpack.c.bf16 %v3201, %v3200
  %v3243 = vpack.c.bf16 %v3203, %v3202
  %v3244 = vpack.c.bf16 %v3205, %v3204
  %v3245 = vpack.c.bf16 %v3207, %v3206
  %v3246 = vpack.c.bf16 %v3209, %v3208
  %v3247 = vpack.c.bf16 %v3211, %v3210
  %v3248 = vpack.c.bf16 %v3213, %v3212
  %v3249 = vpack.c.bf16 %v3215, %v3214
  %v3250 = vpack.c.bf16 %v3217, %v3216
  %v3251 = vpack.c.bf16 %v3219, %v3218
  %3252 = vrot.lane.b32.xlu0 %v1510, 64
  %v3253 = vpop.permute.xlu0 %3252
  %3254 = vrot.lane.b32.xlu0 %v1511, 64
  %v3255 = vpop.permute.xlu0 %3254
  %3256 = vrot.lane.b32.xlu0 %v1512, 64
  %v3257 = vpop.permute.xlu0 %3256
  %3258 = vrot.lane.b32.xlu0 %v1513, 64
  %v3259 = vpop.permute.xlu0 %3258
  %v3265 = vsel %vm2515, %v3220, 0
  %v3268 = vsel %vm2515, %v3221, 0
  %v3271 = vsel %vm2515, %v3222, 0
  %v3274 = vsel %vm2515, %v3223, 0
  %3276 = vmatprep.subr.bf16.mxu0 0
  %3277 = vmatpush1.bf16.msra.mxu0 0
  %3278 = vmatprep.subr.bf16.mxu0 0
  %3279 = vmatpush1.bf16.msra.mxu0 0
  %3280 = vmatprep.subr.bf16.mxu0 0
  %3281 = vmatpush1.bf16.msra.mxu0 0
  %3282 = vmatprep.subr.bf16.mxu0 0
  %3283 = vmatpush1.bf16.msra.mxu0 0
  %3284 = vmatprep.subr.bf16.mxu0 0
  %3285 = vmatpush1.bf16.msra.mxu0 %v3259
  %3286 = vmatprep.subr.bf16.mxu0 0
  %3287 = vmatpush1.bf16.msra.mxu0 %v3257
  %3288 = vmatprep.subr.bf16.mxu0 0
  %3289 = vmatpush1.bf16.msra.mxu0 %v3255
  %3290 = vmatprep.subr.bf16.mxu0 0
  %3291 = vmatpush1.bf16.msra.mxu0 %v3253
  %3292 = vmatprep.subr.bf16.mxu0 0
  %3293 = vmatpush2.bf16.msra.mxu0 0
  %3294 = vmatprep.subr.bf16.mxu0 0
  %3295 = vmatpush2.bf16.msra.mxu0 0
  %3296 = vmatprep.subr.bf16.mxu0 0
  %3297 = vmatpush2.bf16.msra.mxu0 0
  %3298 = vmatprep.subr.bf16.mxu0 0
  %3299 = vmatpush2.bf16.msra.mxu0 0
  %3300 = vmatprep.subr.bf16.mxu0 0
  %3301 = vmatpush2.bf16.msra.mxu0 0
  %3302 = vmatprep.subr.bf16.mxu0 0
  %3303 = vmatpush2.bf16.msra.mxu0 0
  %3304 = vmatprep.subr.bf16.mxu0 0
  %3305 = vmatpush2.bf16.msra.mxu0 0
  %3306 = vmatprep.subr.bf16.mxu0 0
  %3307 = vmatpush2.bf16.msra.mxu0 0
  %3308 = vmatprep.mubr.bf16.mxu0 0
  %3309 = vmatmul.mubr.bf16.gmra.mxu0 %v3265
  %v3310 = vpop.f32.mrf.mxu0
  %v3311 = vadd.f32 0.0, %v3310
  %v3312 = vpop.f32.mrf.mxu0
  %v3313 = vpop.f32.mrf.mxu0
  %v3314 = vadd.f32 0.0, %v3313
  %v3315 = vpop.f32.mrf.mxu0
  %3316 = vmatprep.mubr.bf16.mxu0 0
  %3317 = vmatmul.mubr.bf16.gmra.mxu0 %v3268
  %v3318 = vpop.f32.mrf.mxu0
  %v3319 = vadd.f32 0.0, %v3318
  %v3320 = vpop.f32.mrf.mxu0
  %v3321 = vpop.f32.mrf.mxu0
  %v3322 = vadd.f32 0.0, %v3321
  %v3323 = vpop.f32.mrf.mxu0
  %3324 = vmatprep.mubr.bf16.mxu0 0
  %3325 = vmatmul.mubr.bf16.gmra.mxu0 %v3271
  %v3326 = vpop.f32.mrf.mxu0
  %v3327 = vadd.f32 0.0, %v3326
  %v3328 = vpop.f32.mrf.mxu0
  %v3329 = vpop.f32.mrf.mxu0
  %v3330 = vadd.f32 0.0, %v3329
  %v3331 = vpop.f32.mrf.mxu0
  %3332 = vmatprep.mubr.bf16.mxu0 0
  %3333 = vmatmul.mubr.bf16.gmra.mxu0 %v3274
  %v3334 = vpop.f32.mrf.mxu0
  %v3335 = vadd.f32 0.0, %v3334
  %v3336 = vpop.f32.mrf.mxu0
  %v3337 = vpop.f32.mrf.mxu0
  %v3338 = vadd.f32 0.0, %v3337
  %v3339 = vpop.f32.mrf.mxu0
  %3340 = vdwg.mxu0
  %3341 = vrot.lane.b32.xlu0 %v1514, 64
  %v3342 = vpop.permute.xlu0 %3341
  %3343 = vrot.lane.b32.xlu0 %v1515, 64
  %v3344 = vpop.permute.xlu0 %3343
  %3345 = vrot.lane.b32.xlu0 %v1516, 64
  %v3346 = vpop.permute.xlu0 %3345
  %3347 = vrot.lane.b32.xlu0 %v1517, 64
  %v3348 = vpop.permute.xlu0 %3347
  %v3354 = vsel %vm2515, %v3224, 0
  %v3357 = vsel %vm2515, %v3225, 0
  %v3360 = vsel %vm2515, %v3226, 0
  %v3363 = vsel %vm2515, %v3227, 0
  %3365 = vmatprep.subr.bf16.mxu0 0
  %3366 = vmatpush1.bf16.msra.mxu0 0
  %3367 = vmatprep.subr.bf16.mxu0 0
  %3368 = vmatpush1.bf16.msra.mxu0 0
  %3369 = vmatprep.subr.bf16.mxu0 0
  %3370 = vmatpush1.bf16.msra.mxu0 0
  %3371 = vmatprep.subr.bf16.mxu0 0
  %3372 = vmatpush1.bf16.msra.mxu0 0
  %3373 = vmatprep.subr.bf16.mxu0 0
  %3374 = vmatpush1.bf16.msra.mxu0 %v3348
  %3375 = vmatprep.subr.bf16.mxu0 0
  %3376 = vmatpush1.bf16.msra.mxu0 %v3346
  %3377 = vmatprep.subr.bf16.mxu0 0
  %3378 = vmatpush1.bf16.msra.mxu0 %v3344
  %3379 = vmatprep.subr.bf16.mxu0 0
  %3380 = vmatpush1.bf16.msra.mxu0 %v3342
  %3381 = vmatprep.subr.bf16.mxu0 0
  %3382 = vmatpush2.bf16.msra.mxu0 0
  %3383 = vmatprep.subr.bf16.mxu0 0
  %3384 = vmatpush2.bf16.msra.mxu0 0
  %3385 = vmatprep.subr.bf16.mxu0 0
  %3386 = vmatpush2.bf16.msra.mxu0 0
  %3387 = vmatprep.subr.bf16.mxu0 0
  %3388 = vmatpush2.bf16.msra.mxu0 0
  %3389 = vmatprep.subr.bf16.mxu0 0
  %3390 = vmatpush2.bf16.msra.mxu0 0
  %3391 = vmatprep.subr.bf16.mxu0 0
  %3392 = vmatpush2.bf16.msra.mxu0 0
  %3393 = vmatprep.subr.bf16.mxu0 0
  %3394 = vmatpush2.bf16.msra.mxu0 0
  %3395 = vmatprep.subr.bf16.mxu0 0
  %3396 = vmatpush2.bf16.msra.mxu0 0
  %3397 = vmatprep.mubr.bf16.mxu0 0
  %3398 = vmatmul.mubr.bf16.gmra.mxu0 %v3354
  %v3399 = vpop.f32.mrf.mxu0
  %v3400 = vadd.f32 0.0, %v3399
  %v3401 = vpop.f32.mrf.mxu0
  %v3402 = vpop.f32.mrf.mxu0
  %v3403 = vadd.f32 0.0, %v3402
  %v3404 = vpop.f32.mrf.mxu0
  %3405 = vmatprep.mubr.bf16.mxu0 0
  %3406 = vmatmul.mubr.bf16.gmra.mxu0 %v3357
  %v3407 = vpop.f32.mrf.mxu0
  %v3408 = vadd.f32 0.0, %v3407
  %v3409 = vpop.f32.mrf.mxu0
  %v3410 = vpop.f32.mrf.mxu0
  %v3411 = vadd.f32 0.0, %v3410
  %v3412 = vpop.f32.mrf.mxu0
  %3413 = vmatprep.mubr.bf16.mxu0 0
  %3414 = vmatmul.mubr.bf16.gmra.mxu0 %v3360
  %v3415 = vpop.f32.mrf.mxu0
  %v3416 = vadd.f32 0.0, %v3415
  %v3417 = vpop.f32.mrf.mxu0
  %v3418 = vpop.f32.mrf.mxu0
  %v3419 = vadd.f32 0.0, %v3418
  %v3420 = vpop.f32.mrf.mxu0
  %3421 = vmatprep.mubr.bf16.mxu0 0
  %3422 = vmatmul.mubr.bf16.gmra.mxu0 %v3363
  %v3423 = vpop.f32.mrf.mxu0
  %v3424 = vadd.f32 0.0, %v3423
  %v3425 = vpop.f32.mrf.mxu0
  %v3426 = vpop.f32.mrf.mxu0
  %v3427 = vadd.f32 0.0, %v3426
  %v3428 = vpop.f32.mrf.mxu0
  %3429 = vdwg.mxu0
  %3430 = vrot.lane.b32.xlu0 %v1518, 64
  %v3431 = vpop.permute.xlu0 %3430
  %3432 = vrot.lane.b32.xlu0 %v1519, 64
  %v3433 = vpop.permute.xlu0 %3432
  %3434 = vrot.lane.b32.xlu0 %v1520, 64
  %v3435 = vpop.permute.xlu0 %3434
  %3436 = vrot.lane.b32.xlu0 %v1521, 64
  %v3437 = vpop.permute.xlu0 %3436
  %v3443 = vsel %vm2515, %v3228, 0
  %v3446 = vsel %vm2515, %v3229, 0
  %v3449 = vsel %vm2515, %v3230, 0
  %v3452 = vsel %vm2515, %v3231, 0
  %3454 = vmatprep.subr.bf16.mxu0 0
  %3455 = vmatpush1.bf16.msra.mxu0 0
  %3456 = vmatprep.subr.bf16.mxu0 0
  %3457 = vmatpush1.bf16.msra.mxu0 0
  %3458 = vmatprep.subr.bf16.mxu0 0
  %3459 = vmatpush1.bf16.msra.mxu0 0
  %3460 = vmatprep.subr.bf16.mxu0 0
  %3461 = vmatpush1.bf16.msra.mxu0 0
  %3462 = vmatprep.subr.bf16.mxu0 0
  %3463 = vmatpush1.bf16.msra.mxu0 %v3437
  %3464 = vmatprep.subr.bf16.mxu0 0
  %3465 = vmatpush1.bf16.msra.mxu0 %v3435
  %3466 = vmatprep.subr.bf16.mxu0 0
  %3467 = vmatpush1.bf16.msra.mxu0 %v3433
  %3468 = vmatprep.subr.bf16.mxu0 0
  %3469 = vmatpush1.bf16.msra.mxu0 %v3431
  %3470 = vmatprep.subr.bf16.mxu0 0
  %3471 = vmatpush2.bf16.msra.mxu0 0
  %3472 = vmatprep.subr.bf16.mxu0 0
  %3473 = vmatpush2.bf16.msra.mxu0 0
  %3474 = vmatprep.subr.bf16.mxu0 0
  %3475 = vmatpush2.bf16.msra.mxu0 0
  %3476 = vmatprep.subr.bf16.mxu0 0
  %3477 = vmatpush2.bf16.msra.mxu0 0
  %3478 = vmatprep.subr.bf16.mxu0 0
  %3479 = vmatpush2.bf16.msra.mxu0 0
  %3480 = vmatprep.subr.bf16.mxu0 0
  %3481 = vmatpush2.bf16.msra.mxu0 0
  %3482 = vmatprep.subr.bf16.mxu0 0
  %3483 = vmatpush2.bf16.msra.mxu0 0
  %3484 = vmatprep.subr.bf16.mxu0 0
  %3485 = vmatpush2.bf16.msra.mxu0 0
  %3486 = vmatprep.mubr.bf16.mxu0 0
  %3487 = vmatmul.mubr.bf16.gmra.mxu0 %v3443
  %v3488 = vpop.f32.mrf.mxu0
  %v3489 = vadd.f32 0.0, %v3488
  %v3490 = vpop.f32.mrf.mxu0
  %v3491 = vpop.f32.mrf.mxu0
  %v3492 = vadd.f32 0.0, %v3491
  %v3493 = vpop.f32.mrf.mxu0
  %3494 = vmatprep.mubr.bf16.mxu0 0
  %3495 = vmatmul.mubr.bf16.gmra.mxu0 %v3446
  %v3496 = vpop.f32.mrf.mxu0
  %v3497 = vadd.f32 0.0, %v3496
  %v3498 = vpop.f32.mrf.mxu0
  %v3499 = vpop.f32.mrf.mxu0
  %v3500 = vadd.f32 0.0, %v3499
  %v3501 = vpop.f32.mrf.mxu0
  %3502 = vmatprep.mubr.bf16.mxu0 0
  %3503 = vmatmul.mubr.bf16.gmra.mxu0 %v3449
  %v3504 = vpop.f32.mrf.mxu0
  %v3505 = vadd.f32 0.0, %v3504
  %v3506 = vpop.f32.mrf.mxu0
  %v3507 = vpop.f32.mrf.mxu0
  %v3508 = vadd.f32 0.0, %v3507
  %v3509 = vpop.f32.mrf.mxu0
  %3510 = vmatprep.mubr.bf16.mxu0 0
  %3511 = vmatmul.mubr.bf16.gmra.mxu0 %v3452
  %v3512 = vpop.f32.mrf.mxu0
  %v3513 = vadd.f32 0.0, %v3512
  %v3514 = vpop.f32.mrf.mxu0
  %v3515 = vpop.f32.mrf.mxu0
  %v3516 = vadd.f32 0.0, %v3515
  %v3517 = vpop.f32.mrf.mxu0
  %3518 = vdwg.mxu0
  %3519 = vrot.lane.b32.xlu0 %v1522, 64
  %v3520 = vpop.permute.xlu0 %3519
  %3521 = vrot.lane.b32.xlu0 %v1523, 64
  %v3522 = vpop.permute.xlu0 %3521
  %3523 = vrot.lane.b32.xlu0 %v1524, 64
  %v3524 = vpop.permute.xlu0 %3523
  %3525 = vrot.lane.b32.xlu0 %v1525, 64
  %v3526 = vpop.permute.xlu0 %3525
  %v3532 = vsel %vm2515, %v3232, 0
  %v3535 = vsel %vm2515, %v3233, 0
  %v3538 = vsel %vm2515, %v3234, 0
  %v3541 = vsel %vm2515, %v3235, 0
  %3543 = vmatprep.subr.bf16.mxu0 0
  %3544 = vmatpush1.bf16.msra.mxu0 0
  %3545 = vmatprep.subr.bf16.mxu0 0
  %3546 = vmatpush1.bf16.msra.mxu0 0
  %3547 = vmatprep.subr.bf16.mxu0 0
  %3548 = vmatpush1.bf16.msra.mxu0 0
  %3549 = vmatprep.subr.bf16.mxu0 0
  %3550 = vmatpush1.bf16.msra.mxu0 0
  %3551 = vmatprep.subr.bf16.mxu0 0
  %3552 = vmatpush1.bf16.msra.mxu0 %v3526
  %3553 = vmatprep.subr.bf16.mxu0 0
  %3554 = vmatpush1.bf16.msra.mxu0 %v3524
  %3555 = vmatprep.subr.bf16.mxu0 0
  %3556 = vmatpush1.bf16.msra.mxu0 %v3522
  %3557 = vmatprep.subr.bf16.mxu0 0
  %3558 = vmatpush1.bf16.msra.mxu0 %v3520
  %3559 = vmatprep.subr.bf16.mxu0 0
  %3560 = vmatpush2.bf16.msra.mxu0 0
  %3561 = vmatprep.subr.bf16.mxu0 0
  %3562 = vmatpush2.bf16.msra.mxu0 0
  %3563 = vmatprep.subr.bf16.mxu0 0
  %3564 = vmatpush2.bf16.msra.mxu0 0
  %3565 = vmatprep.subr.bf16.mxu0 0
  %3566 = vmatpush2.bf16.msra.mxu0 0
  %3567 = vmatprep.subr.bf16.mxu0 0
  %3568 = vmatpush2.bf16.msra.mxu0 0
  %3569 = vmatprep.subr.bf16.mxu0 0
  %3570 = vmatpush2.bf16.msra.mxu0 0
  %3571 = vmatprep.subr.bf16.mxu0 0
  %3572 = vmatpush2.bf16.msra.mxu0 0
  %3573 = vmatprep.subr.bf16.mxu0 0
  %3574 = vmatpush2.bf16.msra.mxu0 0
  %3575 = vmatprep.mubr.bf16.mxu0 0
  %3576 = vmatmul.mubr.bf16.gmra.mxu0 %v3532
  %v3577 = vpop.f32.mrf.mxu0
  %v3578 = vadd.f32 0.0, %v3577
  %v3579 = vpop.f32.mrf.mxu0
  %v3580 = vpop.f32.mrf.mxu0
  %v3581 = vadd.f32 0.0, %v3580
  %v3582 = vpop.f32.mrf.mxu0
  %3583 = vmatprep.mubr.bf16.mxu0 0
  %3584 = vmatmul.mubr.bf16.gmra.mxu0 %v3535
  %v3585 = vpop.f32.mrf.mxu0
  %v3586 = vadd.f32 0.0, %v3585
  %v3587 = vpop.f32.mrf.mxu0
  %v3588 = vpop.f32.mrf.mxu0
  %v3589 = vadd.f32 0.0, %v3588
  %v3590 = vpop.f32.mrf.mxu0
  %3591 = vmatprep.mubr.bf16.mxu0 0
  %3592 = vmatmul.mubr.bf16.gmra.mxu0 %v3538
  %v3593 = vpop.f32.mrf.mxu0
  %v3594 = vadd.f32 0.0, %v3593
  %v3595 = vpop.f32.mrf.mxu0
  %v3596 = vpop.f32.mrf.mxu0
  %v3597 = vadd.f32 0.0, %v3596
  %v3598 = vpop.f32.mrf.mxu0
  %3599 = vmatprep.mubr.bf16.mxu0 0
  %3600 = vmatmul.mubr.bf16.gmra.mxu0 %v3541
  %v3601 = vpop.f32.mrf.mxu0
  %v3602 = vadd.f32 0.0, %v3601
  %v3603 = vpop.f32.mrf.mxu0
  %v3604 = vpop.f32.mrf.mxu0
  %v3605 = vadd.f32 0.0, %v3604
  %v3606 = vpop.f32.mrf.mxu0
  %3607 = vdwg.mxu0
  %3608 = vrot.lane.b32.xlu0 %v1526, 64
  %v3609 = vpop.permute.xlu0 %3608
  %3610 = vrot.lane.b32.xlu0 %v1527, 64
  %v3611 = vpop.permute.xlu0 %3610
  %3612 = vrot.lane.b32.xlu0 %v1528, 64
  %v3613 = vpop.permute.xlu0 %3612
  %3614 = vrot.lane.b32.xlu0 %v1529, 64
  %v3615 = vpop.permute.xlu0 %3614
  %v3621 = vsel %vm2515, %v3236, 0
  %v3624 = vsel %vm2515, %v3237, 0
  %v3627 = vsel %vm2515, %v3238, 0
  %v3630 = vsel %vm2515, %v3239, 0
  %3632 = vmatprep.subr.bf16.mxu0 0
  %3633 = vmatpush1.bf16.msra.mxu0 0
  %3634 = vmatprep.subr.bf16.mxu0 0
  %3635 = vmatpush1.bf16.msra.mxu0 0
  %3636 = vmatprep.subr.bf16.mxu0 0
  %3637 = vmatpush1.bf16.msra.mxu0 0
  %3638 = vmatprep.subr.bf16.mxu0 0
  %3639 = vmatpush1.bf16.msra.mxu0 0
  %3640 = vmatprep.subr.bf16.mxu0 0
  %3641 = vmatpush1.bf16.msra.mxu0 %v3615
  %3642 = vmatprep.subr.bf16.mxu0 0
  %3643 = vmatpush1.bf16.msra.mxu0 %v3613
  %3644 = vmatprep.subr.bf16.mxu0 0
  %3645 = vmatpush1.bf16.msra.mxu0 %v3611
  %3646 = vmatprep.subr.bf16.mxu0 0
  %3647 = vmatpush1.bf16.msra.mxu0 %v3609
  %3648 = vmatprep.subr.bf16.mxu0 0
  %3649 = vmatpush2.bf16.msra.mxu0 0
  %3650 = vmatprep.subr.bf16.mxu0 0
  %3651 = vmatpush2.bf16.msra.mxu0 0
  %3652 = vmatprep.subr.bf16.mxu0 0
  %3653 = vmatpush2.bf16.msra.mxu0 0
  %3654 = vmatprep.subr.bf16.mxu0 0
  %3655 = vmatpush2.bf16.msra.mxu0 0
  %3656 = vmatprep.subr.bf16.mxu0 0
  %3657 = vmatpush2.bf16.msra.mxu0 0
  %3658 = vmatprep.subr.bf16.mxu0 0
  %3659 = vmatpush2.bf16.msra.mxu0 0
  %3660 = vmatprep.subr.bf16.mxu0 0
  %3661 = vmatpush2.bf16.msra.mxu0 0
  %3662 = vmatprep.subr.bf16.mxu0 0
  %3663 = vmatpush2.bf16.msra.mxu0 0
  %3664 = vmatprep.mubr.bf16.mxu0 0
  %3665 = vmatmul.mubr.bf16.gmra.mxu0 %v3621
  %v3666 = vpop.f32.mrf.mxu0
  %v3667 = vadd.f32 0.0, %v3666
  %v3668 = vpop.f32.mrf.mxu0
  %v3669 = vpop.f32.mrf.mxu0
  %v3670 = vadd.f32 0.0, %v3669
  %v3671 = vpop.f32.mrf.mxu0
  %3672 = vmatprep.mubr.bf16.mxu0 0
  %3673 = vmatmul.mubr.bf16.gmra.mxu0 %v3624
  %v3674 = vpop.f32.mrf.mxu0
  %v3675 = vadd.f32 0.0, %v3674
  %v3676 = vpop.f32.mrf.mxu0
  %v3677 = vpop.f32.mrf.mxu0
  %v3678 = vadd.f32 0.0, %v3677
  %v3679 = vpop.f32.mrf.mxu0
  %3680 = vmatprep.mubr.bf16.mxu0 0
  %3681 = vmatmul.mubr.bf16.gmra.mxu0 %v3627
  %v3682 = vpop.f32.mrf.mxu0
  %v3683 = vadd.f32 0.0, %v3682
  %v3684 = vpop.f32.mrf.mxu0
  %v3685 = vpop.f32.mrf.mxu0
  %v3686 = vadd.f32 0.0, %v3685
  %v3687 = vpop.f32.mrf.mxu0
  %3688 = vmatprep.mubr.bf16.mxu0 0
  %3689 = vmatmul.mubr.bf16.gmra.mxu0 %v3630
  %v3690 = vpop.f32.mrf.mxu0
  %v3691 = vadd.f32 0.0, %v3690
  %v3692 = vpop.f32.mrf.mxu0
  %v3693 = vpop.f32.mrf.mxu0
  %v3694 = vadd.f32 0.0, %v3693
  %v3695 = vpop.f32.mrf.mxu0
  %3696 = vdwg.mxu0
  %3697 = vrot.lane.b32.xlu0 %v1530, 64
  %v3698 = vpop.permute.xlu0 %3697
  %3699 = vrot.lane.b32.xlu0 %v1531, 64
  %v3700 = vpop.permute.xlu0 %3699
  %3701 = vrot.lane.b32.xlu0 %v1532, 64
  %v3702 = vpop.permute.xlu0 %3701
  %3703 = vrot.lane.b32.xlu0 %v1533, 64
  %v3704 = vpop.permute.xlu0 %3703
  %v3710 = vsel %vm2515, %v3240, 0
  %v3713 = vsel %vm2515, %v3241, 0
  %v3716 = vsel %vm2515, %v3242, 0
  %v3719 = vsel %vm2515, %v3243, 0
  %3721 = vmatprep.subr.bf16.mxu0 0
  %3722 = vmatpush1.bf16.msra.mxu0 0
  %3723 = vmatprep.subr.bf16.mxu0 0
  %3724 = vmatpush1.bf16.msra.mxu0 0
  %3725 = vmatprep.subr.bf16.mxu0 0
  %3726 = vmatpush1.bf16.msra.mxu0 0
  %3727 = vmatprep.subr.bf16.mxu0 0
  %3728 = vmatpush1.bf16.msra.mxu0 0
  %3729 = vmatprep.subr.bf16.mxu0 0
  %3730 = vmatpush1.bf16.msra.mxu0 %v3704
  %3731 = vmatprep.subr.bf16.mxu0 0
  %3732 = vmatpush1.bf16.msra.mxu0 %v3702
  %3733 = vmatprep.subr.bf16.mxu0 0
  %3734 = vmatpush1.bf16.msra.mxu0 %v3700
  %3735 = vmatprep.subr.bf16.mxu0 0
  %3736 = vmatpush1.bf16.msra.mxu0 %v3698
  %3737 = vmatprep.subr.bf16.mxu0 0
  %3738 = vmatpush2.bf16.msra.mxu0 0
  %3739 = vmatprep.subr.bf16.mxu0 0
  %3740 = vmatpush2.bf16.msra.mxu0 0
  %3741 = vmatprep.subr.bf16.mxu0 0
  %3742 = vmatpush2.bf16.msra.mxu0 0
  %3743 = vmatprep.subr.bf16.mxu0 0
  %3744 = vmatpush2.bf16.msra.mxu0 0
  %3745 = vmatprep.subr.bf16.mxu0 0
  %3746 = vmatpush2.bf16.msra.mxu0 0
  %3747 = vmatprep.subr.bf16.mxu0 0
  %3748 = vmatpush2.bf16.msra.mxu0 0
  %3749 = vmatprep.subr.bf16.mxu0 0
  %3750 = vmatpush2.bf16.msra.mxu0 0
  %3751 = vmatprep.subr.bf16.mxu0 0
  %3752 = vmatpush2.bf16.msra.mxu0 0
  %3753 = vmatprep.mubr.bf16.mxu0 0
  %3754 = vmatmul.mubr.bf16.gmra.mxu0 %v3710
  %v3755 = vpop.f32.mrf.mxu0
  %v3756 = vadd.f32 0.0, %v3755
  %v3757 = vpop.f32.mrf.mxu0
  %v3758 = vpop.f32.mrf.mxu0
  %v3759 = vadd.f32 0.0, %v3758
  %v3760 = vpop.f32.mrf.mxu0
  %3761 = vmatprep.mubr.bf16.mxu0 0
  %3762 = vmatmul.mubr.bf16.gmra.mxu0 %v3713
  %v3763 = vpop.f32.mrf.mxu0
  %v3764 = vadd.f32 0.0, %v3763
  %v3765 = vpop.f32.mrf.mxu0
  %v3766 = vpop.f32.mrf.mxu0
  %v3767 = vadd.f32 0.0, %v3766
  %v3768 = vpop.f32.mrf.mxu0
  %3769 = vmatprep.mubr.bf16.mxu0 0
  %3770 = vmatmul.mubr.bf16.gmra.mxu0 %v3716
  %v3771 = vpop.f32.mrf.mxu0
  %v3772 = vadd.f32 0.0, %v3771
  %v3773 = vpop.f32.mrf.mxu0
  %v3774 = vpop.f32.mrf.mxu0
  %v3775 = vadd.f32 0.0, %v3774
  %v3776 = vpop.f32.mrf.mxu0
  %3777 = vmatprep.mubr.bf16.mxu0 0
  %3778 = vmatmul.mubr.bf16.gmra.mxu0 %v3719
  %v3779 = vpop.f32.mrf.mxu0
  %v3780 = vadd.f32 0.0, %v3779
  %v3781 = vpop.f32.mrf.mxu0
  %v3782 = vpop.f32.mrf.mxu0
  %v3783 = vadd.f32 0.0, %v3782
  %v3784 = vpop.f32.mrf.mxu0
  %3785 = vdwg.mxu0
  %3786 = vrot.lane.b32.xlu0 %v1534, 64
  %v3787 = vpop.permute.xlu0 %3786
  %3788 = vrot.lane.b32.xlu0 %v1535, 64
  %v3789 = vpop.permute.xlu0 %3788
  %3790 = vrot.lane.b32.xlu0 %v1536, 64
  %v3791 = vpop.permute.xlu0 %3790
  %3792 = vrot.lane.b32.xlu0 %v1537, 64
  %v3793 = vpop.permute.xlu0 %3792
  %v3799 = vsel %vm2515, %v3244, 0
  %v3802 = vsel %vm2515, %v3245, 0
  %v3805 = vsel %vm2515, %v3246, 0
  %v3808 = vsel %vm2515, %v3247, 0
  %3810 = vmatprep.subr.bf16.mxu0 0
  %3811 = vmatpush1.bf16.msra.mxu0 0
  %3812 = vmatprep.subr.bf16.mxu0 0
  %3813 = vmatpush1.bf16.msra.mxu0 0
  %3814 = vmatprep.subr.bf16.mxu0 0
  %3815 = vmatpush1.bf16.msra.mxu0 0
  %3816 = vmatprep.subr.bf16.mxu0 0
  %3817 = vmatpush1.bf16.msra.mxu0 0
  %3818 = vmatprep.subr.bf16.mxu0 0
  %3819 = vmatpush1.bf16.msra.mxu0 %v3793
  %3820 = vmatprep.subr.bf16.mxu0 0
  %3821 = vmatpush1.bf16.msra.mxu0 %v3791
  %3822 = vmatprep.subr.bf16.mxu0 0
  %3823 = vmatpush1.bf16.msra.mxu0 %v3789
  %3824 = vmatprep.subr.bf16.mxu0 0
  %3825 = vmatpush1.bf16.msra.mxu0 %v3787
  %3826 = vmatprep.subr.bf16.mxu0 0
  %3827 = vmatpush2.bf16.msra.mxu0 0
  %3828 = vmatprep.subr.bf16.mxu0 0
  %3829 = vmatpush2.bf16.msra.mxu0 0
  %3830 = vmatprep.subr.bf16.mxu0 0
  %3831 = vmatpush2.bf16.msra.mxu0 0
  %3832 = vmatprep.subr.bf16.mxu0 0
  %3833 = vmatpush2.bf16.msra.mxu0 0
  %3834 = vmatprep.subr.bf16.mxu0 0
  %3835 = vmatpush2.bf16.msra.mxu0 0
  %3836 = vmatprep.subr.bf16.mxu0 0
  %3837 = vmatpush2.bf16.msra.mxu0 0
  %3838 = vmatprep.subr.bf16.mxu0 0
  %3839 = vmatpush2.bf16.msra.mxu0 0
  %3840 = vmatprep.subr.bf16.mxu0 0
  %3841 = vmatpush2.bf16.msra.mxu0 0
  %3842 = vmatprep.mubr.bf16.mxu0 0
  %3843 = vmatmul.mubr.bf16.gmra.mxu0 %v3799
  %v3844 = vpop.f32.mrf.mxu0
  %v3845 = vadd.f32 0.0, %v3844
  %v3846 = vpop.f32.mrf.mxu0
  %v3847 = vpop.f32.mrf.mxu0
  %v3848 = vadd.f32 0.0, %v3847
  %v3849 = vpop.f32.mrf.mxu0
  %3850 = vmatprep.mubr.bf16.mxu0 0
  %3851 = vmatmul.mubr.bf16.gmra.mxu0 %v3802
  %v3852 = vpop.f32.mrf.mxu0
  %v3853 = vadd.f32 0.0, %v3852
  %v3854 = vpop.f32.mrf.mxu0
  %v3855 = vpop.f32.mrf.mxu0
  %v3856 = vadd.f32 0.0, %v3855
  %v3857 = vpop.f32.mrf.mxu0
  %3858 = vmatprep.mubr.bf16.mxu0 0
  %3859 = vmatmul.mubr.bf16.gmra.mxu0 %v3805
  %v3860 = vpop.f32.mrf.mxu0
  %v3861 = vadd.f32 0.0, %v3860
  %v3862 = vpop.f32.mrf.mxu0
  %v3863 = vpop.f32.mrf.mxu0
  %v3864 = vadd.f32 0.0, %v3863
  %v3865 = vpop.f32.mrf.mxu0
  %3866 = vmatprep.mubr.bf16.mxu0 0
  %3867 = vmatmul.mubr.bf16.gmra.mxu0 %v3808
  %v3868 = vpop.f32.mrf.mxu0
  %v3869 = vadd.f32 0.0, %v3868
  %v3870 = vpop.f32.mrf.mxu0
  %v3871 = vpop.f32.mrf.mxu0
  %v3872 = vadd.f32 0.0, %v3871
  %v3873 = vpop.f32.mrf.mxu0
  %3874 = vdwg.mxu0
  %3875 = vrot.lane.b32.xlu0 %v1538, 64
  %v3876 = vpop.permute.xlu0 %3875
  %3877 = vrot.lane.b32.xlu0 %v1539, 64
  %v3878 = vpop.permute.xlu0 %3877
  %3879 = vrot.lane.b32.xlu0 %v1540, 64
  %v3880 = vpop.permute.xlu0 %3879
  %3881 = vrot.lane.b32.xlu0 %v1541, 64
  %v3882 = vpop.permute.xlu0 %3881
  %v3888 = vsel %vm2515, %v3248, 0
  %v3891 = vsel %vm2515, %v3249, 0
  %v3894 = vsel %vm2515, %v3250, 0
  %v3897 = vsel %vm2515, %v3251, 0
  %3899 = vmatprep.subr.bf16.mxu0 0
  %3900 = vmatpush1.bf16.msra.mxu0 0
  %3901 = vmatprep.subr.bf16.mxu0 0
  %3902 = vmatpush1.bf16.msra.mxu0 0
  %3903 = vmatprep.subr.bf16.mxu0 0
  %3904 = vmatpush1.bf16.msra.mxu0 0
  %3905 = vmatprep.subr.bf16.mxu0 0
  %3906 = vmatpush1.bf16.msra.mxu0 0
  %3907 = vmatprep.subr.bf16.mxu0 0
  %3908 = vmatpush1.bf16.msra.mxu0 %v3882
  %3909 = vmatprep.subr.bf16.mxu0 0
  %3910 = vmatpush1.bf16.msra.mxu0 %v3880
  %3911 = vmatprep.subr.bf16.mxu0 0
  %3912 = vmatpush1.bf16.msra.mxu0 %v3878
  %3913 = vmatprep.subr.bf16.mxu0 0
  %3914 = vmatpush1.bf16.msra.mxu0 %v3876
  %3915 = vmatprep.subr.bf16.mxu0 0
  %3916 = vmatpush2.bf16.msra.mxu0 0
  %3917 = vmatprep.subr.bf16.mxu0 0
  %3918 = vmatpush2.bf16.msra.mxu0 0
  %3919 = vmatprep.subr.bf16.mxu0 0
  %3920 = vmatpush2.bf16.msra.mxu0 0
  %3921 = vmatprep.subr.bf16.mxu0 0
  %3922 = vmatpush2.bf16.msra.mxu0 0
  %3923 = vmatprep.subr.bf16.mxu0 0
  %3924 = vmatpush2.bf16.msra.mxu0 0
  %3925 = vmatprep.subr.bf16.mxu0 0
  %3926 = vmatpush2.bf16.msra.mxu0 0
  %3927 = vmatprep.subr.bf16.mxu0 0
  %3928 = vmatpush2.bf16.msra.mxu0 0
  %3929 = vmatprep.subr.bf16.mxu0 0
  %3930 = vmatpush2.bf16.msra.mxu0 0
  %3931 = vmatprep.mubr.bf16.mxu0 0
  %3932 = vmatmul.mubr.bf16.gmra.mxu0 %v3888
  %v3933 = vpop.f32.mrf.mxu0
  %v3934 = vadd.f32 0.0, %v3933
  %v3935 = vpop.f32.mrf.mxu0
  %v3936 = vpop.f32.mrf.mxu0
  %v3937 = vadd.f32 0.0, %v3936
  %v3938 = vpop.f32.mrf.mxu0
  %3939 = vmatprep.mubr.bf16.mxu0 0
  %3940 = vmatmul.mubr.bf16.gmra.mxu0 %v3891
  %v3941 = vpop.f32.mrf.mxu0
  %v3942 = vadd.f32 0.0, %v3941
  %v3943 = vpop.f32.mrf.mxu0
  %v3944 = vpop.f32.mrf.mxu0
  %v3945 = vadd.f32 0.0, %v3944
  %v3946 = vpop.f32.mrf.mxu0
  %3947 = vmatprep.mubr.bf16.mxu0 0
  %3948 = vmatmul.mubr.bf16.gmra.mxu0 %v3894
  %v3949 = vpop.f32.mrf.mxu0
  %v3950 = vadd.f32 0.0, %v3949
  %v3951 = vpop.f32.mrf.mxu0
  %v3952 = vpop.f32.mrf.mxu0
  %v3953 = vadd.f32 0.0, %v3952
  %v3954 = vpop.f32.mrf.mxu0
  %3955 = vmatprep.mubr.bf16.mxu0 0
  %3956 = vmatmul.mubr.bf16.gmra.mxu0 %v3897
  %v3957 = vpop.f32.mrf.mxu0
  %v3958 = vadd.f32 0.0, %v3957
  %v3959 = vpop.f32.mrf.mxu0
  %v3960 = vpop.f32.mrf.mxu0
  %v3961 = vadd.f32 0.0, %v3960
  %v3962 = vpop.f32.mrf.mxu0
  %3963 = vdwg.mxu0
  %v3964 = vpack.c.bf16 %v3314, %v3311
  %v3965 = vpack.c.bf16 %v3322, %v3319
  %v3966 = vpack.c.bf16 %v3330, %v3327
  %v3967 = vpack.c.bf16 %v3338, %v3335
  %v3968 = vpack.c.bf16 %v3403, %v3400
  %v3969 = vpack.c.bf16 %v3411, %v3408
  %v3970 = vpack.c.bf16 %v3419, %v3416
  %v3971 = vpack.c.bf16 %v3427, %v3424
  %v3972 = vpack.c.bf16 %v3492, %v3489
  %v3973 = vpack.c.bf16 %v3500, %v3497
  %v3974 = vpack.c.bf16 %v3508, %v3505
  %v3975 = vpack.c.bf16 %v3516, %v3513
  %v3976 = vpack.c.bf16 %v3581, %v3578
  %v3977 = vpack.c.bf16 %v3589, %v3586
  %v3978 = vpack.c.bf16 %v3597, %v3594
  %v3979 = vpack.c.bf16 %v3605, %v3602
  %v3980 = vpack.c.bf16 %v3670, %v3667
  %v3981 = vpack.c.bf16 %v3678, %v3675
  %v3982 = vpack.c.bf16 %v3686, %v3683
  %v3983 = vpack.c.bf16 %v3694, %v3691
  %v3984 = vpack.c.bf16 %v3759, %v3756
  %v3985 = vpack.c.bf16 %v3767, %v3764
  %v3986 = vpack.c.bf16 %v3775, %v3772
  %v3987 = vpack.c.bf16 %v3783, %v3780
  %v3988 = vpack.c.bf16 %v3848, %v3845
  %v3989 = vpack.c.bf16 %v3856, %v3853
  %v3990 = vpack.c.bf16 %v3864, %v3861
  %v3991 = vpack.c.bf16 %v3872, %v3869
  %v3992 = vpack.c.bf16 %v3937, %v3934
  %v3993 = vpack.c.bf16 %v3945, %v3942
  %v3994 = vpack.c.bf16 %v3953, %v3950
  %v3995 = vpack.c.bf16 %v3961, %v3958
  %3996 = vrot.lane.b32.xlu0 %v1510, 120
  %v3997 = vpop.permute.xlu0 %3996
  %3998 = vrot.lane.b32.xlu0 %v1511, 120
  %v3999 = vpop.permute.xlu0 %3998
  %4000 = vrot.lane.b32.xlu0 %v1512, 120
  %v4001 = vpop.permute.xlu0 %4000
  %4002 = vrot.lane.b32.xlu0 %v1513, 120
  %v4003 = vpop.permute.xlu0 %4002
  %4004 = vrot.lane.b32.xlu0 %v1510, 88
  %v4005 = vpop.permute.xlu0 %4004
  %4006 = vrot.lane.b32.xlu0 %v1511, 88
  %v4007 = vpop.permute.xlu0 %4006
  %4008 = vrot.lane.b32.xlu0 %v1512, 88
  %v4009 = vpop.permute.xlu0 %4008
  %4010 = vrot.lane.b32.xlu0 %v1513, 88
  %v4011 = vpop.permute.xlu0 %4010
  %v4013 = vsel %vm1590, %v3997, 0
  %v4016 = vsel %vm1590, %v3999, 0
  %v4019 = vsel %vm1590, %v4001, 0
  %v4022 = vsel %vm1590, %v4003, 0
  %v4025 = vsel %vm1590, %v4005, 0
  %v4028 = vsel %vm1590, %v4007, 0
  %v4031 = vsel %vm1590, %v4009, 0
  %v4034 = vsel %vm1590, %v4011, 0
  %4036 = vmatprep.subr.bf16.mxu0 0
  %4037 = vmatpush1.bf16.xpose.msra.mxu0 0
  %4038 = vmatprep.subr.bf16.mxu0 0
  %4039 = vmatpush1.bf16.xpose.msra.mxu0 0
  %4040 = vmatprep.subr.bf16.mxu0 0
  %4041 = vmatpush1.bf16.xpose.msra.mxu0 0
  %4042 = vmatprep.subr.bf16.mxu0 0
  %4043 = vmatpush1.bf16.xpose.msra.mxu0 0
  %4044 = vmatprep.subr.bf16.mxu0 0
  %4045 = vmatpush1.bf16.xpose.msra.mxu0 %v4034
  %4046 = vmatprep.subr.bf16.mxu0 0
  %4047 = vmatpush1.bf16.xpose.msra.mxu0 %v4031
  %4048 = vmatprep.subr.bf16.mxu0 0
  %4049 = vmatpush1.bf16.xpose.msra.mxu0 %v4028
  %4050 = vmatprep.subr.bf16.mxu0 0
  %4051 = vmatpush1.bf16.xpose.msra.mxu0 %v4025
  %4052 = vmatprep.subr.bf16.mxu0 0
  %4053 = vmatpush2.bf16.xpose.msra.mxu0 0
  %4054 = vmatprep.subr.bf16.mxu0 0
  %4055 = vmatpush2.bf16.xpose.msra.mxu0 0
  %4056 = vmatprep.subr.bf16.mxu0 0
  %4057 = vmatpush2.bf16.xpose.msra.mxu0 0
  %4058 = vmatprep.subr.bf16.mxu0 0
  %4059 = vmatpush2.bf16.xpose.msra.mxu0 0
  %4060 = vmatprep.subr.bf16.mxu0 0
  %4061 = vmatpush2.bf16.xpose.msra.mxu0 0
  %4062 = vmatprep.subr.bf16.mxu0 0
  %4063 = vmatpush2.bf16.xpose.msra.mxu0 0
  %4064 = vmatprep.subr.bf16.mxu0 0
  %4065 = vmatpush2.bf16.xpose.msra.mxu0 0
  %4066 = vmatprep.subr.bf16.mxu0 0
  %4067 = vmatpush2.bf16.xpose.msra.mxu0 0
  %4068 = vmatprep.mubr.bf16.mxu0 0
  %4069 = vmatmul.mubr.bf16.gmra.mxu0 %v4013
  %v4070 = vpop.f32.mrf.mxu0
  %v4071 = vadd.f32 0.0, %v4070
  %v4072 = vpop.f32.mrf.mxu0
  %v4073 = vpop.f32.mrf.mxu0
  %v4074 = vadd.f32 0.0, %v4073
  %v4075 = vpop.f32.mrf.mxu0
  %4076 = vmatprep.mubr.bf16.mxu0 0
  %4077 = vmatmul.mubr.bf16.gmra.mxu0 %v4016
  %v4078 = vpop.f32.mrf.mxu0
  %v4079 = vadd.f32 0.0, %v4078
  %v4080 = vpop.f32.mrf.mxu0
  %v4081 = vpop.f32.mrf.mxu0
  %v4082 = vadd.f32 0.0, %v4081
  %v4083 = vpop.f32.mrf.mxu0
  %4084 = vmatprep.mubr.bf16.mxu0 0
  %4085 = vmatmul.mubr.bf16.gmra.mxu0 %v4019
  %v4086 = vpop.f32.mrf.mxu0
  %v4087 = vadd.f32 0.0, %v4086
  %v4088 = vpop.f32.mrf.mxu0
  %v4089 = vpop.f32.mrf.mxu0
  %v4090 = vadd.f32 0.0, %v4089
  %v4091 = vpop.f32.mrf.mxu0
  %4092 = vmatprep.mubr.bf16.mxu0 0
  %4093 = vmatmul.mubr.bf16.gmra.mxu0 %v4022
  %v4094 = vpop.f32.mrf.mxu0
  %v4095 = vadd.f32 0.0, %v4094
  %v4096 = vpop.f32.mrf.mxu0
  %v4097 = vpop.f32.mrf.mxu0
  %v4098 = vadd.f32 0.0, %v4097
  %v4099 = vpop.f32.mrf.mxu0
  %4100 = vdwg.mxu0
  %4101 = vrot.lane.b32.xlu0 %v1514, 120
  %v4102 = vpop.permute.xlu0 %4101
  %4103 = vrot.lane.b32.xlu0 %v1515, 120
  %v4104 = vpop.permute.xlu0 %4103
  %4105 = vrot.lane.b32.xlu0 %v1516, 120
  %v4106 = vpop.permute.xlu0 %4105
  %4107 = vrot.lane.b32.xlu0 %v1517, 120
  %v4108 = vpop.permute.xlu0 %4107
  %4109 = vrot.lane.b32.xlu0 %v1514, 88
  %v4110 = vpop.permute.xlu0 %4109
  %4111 = vrot.lane.b32.xlu0 %v1515, 88
  %v4112 = vpop.permute.xlu0 %4111
  %4113 = vrot.lane.b32.xlu0 %v1516, 88
  %v4114 = vpop.permute.xlu0 %4113
  %4115 = vrot.lane.b32.xlu0 %v1517, 88
  %v4116 = vpop.permute.xlu0 %4115
  %v4118 = vsel %vm1590, %v4102, 0
  %v4121 = vsel %vm1590, %v4104, 0
  %v4124 = vsel %vm1590, %v4106, 0
  %v4127 = vsel %vm1590, %v4108, 0
  %v4130 = vsel %vm1590, %v4110, 0
  %v4133 = vsel %vm1590, %v4112, 0
  %v4136 = vsel %vm1590, %v4114, 0
  %v4139 = vsel %vm1590, %v4116, 0
  %4141 = vmatprep.subr.bf16.mxu0 0
  %4142 = vmatpush1.bf16.xpose.msra.mxu0 0
  %4143 = vmatprep.subr.bf16.mxu0 0
  %4144 = vmatpush1.bf16.xpose.msra.mxu0 0
  %4145 = vmatprep.subr.bf16.mxu0 0
  %4146 = vmatpush1.bf16.xpose.msra.mxu0 0
  %4147 = vmatprep.subr.bf16.mxu0 0
  %4148 = vmatpush1.bf16.xpose.msra.mxu0 0
  %4149 = vmatprep.subr.bf16.mxu0 0
  %4150 = vmatpush1.bf16.xpose.msra.mxu0 %v4139
  %4151 = vmatprep.subr.bf16.mxu0 0
  %4152 = vmatpush1.bf16.xpose.msra.mxu0 %v4136
  %4153 = vmatprep.subr.bf16.mxu0 0
  %4154 = vmatpush1.bf16.xpose.msra.mxu0 %v4133
  %4155 = vmatprep.subr.bf16.mxu0 0
  %4156 = vmatpush1.bf16.xpose.msra.mxu0 %v4130
  %4157 = vmatprep.subr.bf16.mxu0 0
  %4158 = vmatpush2.bf16.xpose.msra.mxu0 0
  %4159 = vmatprep.subr.bf16.mxu0 0
  %4160 = vmatpush2.bf16.xpose.msra.mxu0 0
  %4161 = vmatprep.subr.bf16.mxu0 0
  %4162 = vmatpush2.bf16.xpose.msra.mxu0 0
  %4163 = vmatprep.subr.bf16.mxu0 0
  %4164 = vmatpush2.bf16.xpose.msra.mxu0 0
  %4165 = vmatprep.subr.bf16.mxu0 0
  %4166 = vmatpush2.bf16.xpose.msra.mxu0 0
  %4167 = vmatprep.subr.bf16.mxu0 0
  %4168 = vmatpush2.bf16.xpose.msra.mxu0 0
  %4169 = vmatprep.subr.bf16.mxu0 0
  %4170 = vmatpush2.bf16.xpose.msra.mxu0 0
  %4171 = vmatprep.subr.bf16.mxu0 0
  %4172 = vmatpush2.bf16.xpose.msra.mxu0 0
  %4173 = vmatprep.mubr.bf16.mxu0 0
  %4174 = vmatmul.mubr.bf16.gmra.mxu0 %v4118
  %v4175 = vpop.f32.mrf.mxu0
  %v4176 = vadd.f32 0.0, %v4175
  %v4177 = vpop.f32.mrf.mxu0
  %v4178 = vpop.f32.mrf.mxu0
  %v4179 = vadd.f32 0.0, %v4178
  %v4180 = vpop.f32.mrf.mxu0
  %4181 = vmatprep.mubr.bf16.mxu0 0
  %4182 = vmatmul.mubr.bf16.gmra.mxu0 %v4121
  %v4183 = vpop.f32.mrf.mxu0
  %v4184 = vadd.f32 0.0, %v4183
  %v4185 = vpop.f32.mrf.mxu0
  %v4186 = vpop.f32.mrf.mxu0
  %v4187 = vadd.f32 0.0, %v4186
  %v4188 = vpop.f32.mrf.mxu0
  %4189 = vmatprep.mubr.bf16.mxu0 0
  %4190 = vmatmul.mubr.bf16.gmra.mxu0 %v4124
  %v4191 = vpop.f32.mrf.mxu0
  %v4192 = vadd.f32 0.0, %v4191
  %v4193 = vpop.f32.mrf.mxu0
  %v4194 = vpop.f32.mrf.mxu0
  %v4195 = vadd.f32 0.0, %v4194
  %v4196 = vpop.f32.mrf.mxu0
  %4197 = vmatprep.mubr.bf16.mxu0 0
  %4198 = vmatmul.mubr.bf16.gmra.mxu0 %v4127
  %v4199 = vpop.f32.mrf.mxu0
  %v4200 = vadd.f32 0.0, %v4199
  %v4201 = vpop.f32.mrf.mxu0
  %v4202 = vpop.f32.mrf.mxu0
  %v4203 = vadd.f32 0.0, %v4202
  %v4204 = vpop.f32.mrf.mxu0
  %4205 = vdwg.mxu0
  %4206 = vrot.lane.b32.xlu0 %v1518, 120
  %v4207 = vpop.permute.xlu0 %4206
  %4208 = vrot.lane.b32.xlu0 %v1519, 120
  %v4209 = vpop.permute.xlu0 %4208
  %4210 = vrot.lane.b32.xlu0 %v1520, 120
  %v4211 = vpop.permute.xlu0 %4210
  %4212 = vrot.lane.b32.xlu0 %v1521, 120
  %v4213 = vpop.permute.xlu0 %4212
  %4214 = vrot.lane.b32.xlu0 %v1518, 88
  %v4215 = vpop.permute.xlu0 %4214
  %4216 = vrot.lane.b32.xlu0 %v1519, 88
  %v4217 = vpop.permute.xlu0 %4216
  %4218 = vrot.lane.b32.xlu0 %v1520, 88
  %v4219 = vpop.permute.xlu0 %4218
  %4220 = vrot.lane.b32.xlu0 %v1521, 88
  %v4221 = vpop.permute.xlu0 %4220
  %v4223 = vsel %vm1590, %v4207, 0
  %v4226 = vsel %vm1590, %v4209, 0
  %v4229 = vsel %vm1590, %v4211, 0
  %v4232 = vsel %vm1590, %v4213, 0
  %v4235 = vsel %vm1590, %v4215, 0
  %v4238 = vsel %vm1590, %v4217, 0
  %v4241 = vsel %vm1590, %v4219, 0
  %v4244 = vsel %vm1590, %v4221, 0
  %4246 = vmatprep.subr.bf16.mxu0 0
  %4247 = vmatpush1.bf16.xpose.msra.mxu0 0
  %4248 = vmatprep.subr.bf16.mxu0 0
  %4249 = vmatpush1.bf16.xpose.msra.mxu0 0
  %4250 = vmatprep.subr.bf16.mxu0 0
  %4251 = vmatpush1.bf16.xpose.msra.mxu0 0
  %4252 = vmatprep.subr.bf16.mxu0 0
  %4253 = vmatpush1.bf16.xpose.msra.mxu0 0
  %4254 = vmatprep.subr.bf16.mxu0 0
  %4255 = vmatpush1.bf16.xpose.msra.mxu0 %v4244
  %4256 = vmatprep.subr.bf16.mxu0 0
  %4257 = vmatpush1.bf16.xpose.msra.mxu0 %v4241
  %4258 = vmatprep.subr.bf16.mxu0 0
  %4259 = vmatpush1.bf16.xpose.msra.mxu0 %v4238
  %4260 = vmatprep.subr.bf16.mxu0 0
  %4261 = vmatpush1.bf16.xpose.msra.mxu0 %v4235
  %4262 = vmatprep.subr.bf16.mxu0 0
  %4263 = vmatpush2.bf16.xpose.msra.mxu0 0
  %4264 = vmatprep.subr.bf16.mxu0 0
  %4265 = vmatpush2.bf16.xpose.msra.mxu0 0
  %4266 = vmatprep.subr.bf16.mxu0 0
  %4267 = vmatpush2.bf16.xpose.msra.mxu0 0
  %4268 = vmatprep.subr.bf16.mxu0 0
  %4269 = vmatpush2.bf16.xpose.msra.mxu0 0
  %4270 = vmatprep.subr.bf16.mxu0 0
  %4271 = vmatpush2.bf16.xpose.msra.mxu0 0
  %4272 = vmatprep.subr.bf16.mxu0 0
  %4273 = vmatpush2.bf16.xpose.msra.mxu0 0
  %4274 = vmatprep.subr.bf16.mxu0 0
  %4275 = vmatpush2.bf16.xpose.msra.mxu0 0
  %4276 = vmatprep.subr.bf16.mxu0 0
  %4277 = vmatpush2.bf16.xpose.msra.mxu0 0
  %4278 = vmatprep.mubr.bf16.mxu0 0
  %4279 = vmatmul.mubr.bf16.gmra.mxu0 %v4223
  %v4280 = vpop.f32.mrf.mxu0
  %v4281 = vadd.f32 0.0, %v4280
  %v4282 = vpop.f32.mrf.mxu0
  %v4283 = vpop.f32.mrf.mxu0
  %v4284 = vadd.f32 0.0, %v4283
  %v4285 = vpop.f32.mrf.mxu0
  %4286 = vmatprep.mubr.bf16.mxu0 0
  %4287 = vmatmul.mubr.bf16.gmra.mxu0 %v4226
  %v4288 = vpop.f32.mrf.mxu0
  %v4289 = vadd.f32 0.0, %v4288
  %v4290 = vpop.f32.mrf.mxu0
  %v4291 = vpop.f32.mrf.mxu0
  %v4292 = vadd.f32 0.0, %v4291
  %v4293 = vpop.f32.mrf.mxu0
  %4294 = vmatprep.mubr.bf16.mxu0 0
  %4295 = vmatmul.mubr.bf16.gmra.mxu0 %v4229
  %v4296 = vpop.f32.mrf.mxu0
  %v4297 = vadd.f32 0.0, %v4296
  %v4298 = vpop.f32.mrf.mxu0
  %v4299 = vpop.f32.mrf.mxu0
  %v4300 = vadd.f32 0.0, %v4299
  %v4301 = vpop.f32.mrf.mxu0
  %4302 = vmatprep.mubr.bf16.mxu0 0
  %4303 = vmatmul.mubr.bf16.gmra.mxu0 %v4232
  %v4304 = vpop.f32.mrf.mxu0
  %v4305 = vadd.f32 0.0, %v4304
  %v4306 = vpop.f32.mrf.mxu0
  %v4307 = vpop.f32.mrf.mxu0
  %v4308 = vadd.f32 0.0, %v4307
  %v4309 = vpop.f32.mrf.mxu0
  %4310 = vdwg.mxu0
  %4311 = vrot.lane.b32.xlu0 %v1522, 120
  %v4312 = vpop.permute.xlu0 %4311
  %4313 = vrot.lane.b32.xlu0 %v1523, 120
  %v4314 = vpop.permute.xlu0 %4313
  %4315 = vrot.lane.b32.xlu0 %v1524, 120
  %v4316 = vpop.permute.xlu0 %4315
  %4317 = vrot.lane.b32.xlu0 %v1525, 120
  %v4318 = vpop.permute.xlu0 %4317
  %4319 = vrot.lane.b32.xlu0 %v1522, 88
  %v4320 = vpop.permute.xlu0 %4319
  %4321 = vrot.lane.b32.xlu0 %v1523, 88
  %v4322 = vpop.permute.xlu0 %4321
  %4323 = vrot.lane.b32.xlu0 %v1524, 88
  %v4324 = vpop.permute.xlu0 %4323
  %4325 = vrot.lane.b32.xlu0 %v1525, 88
  %v4326 = vpop.permute.xlu0 %4325
  %v4328 = vsel %vm1590, %v4312, 0
  %v4331 = vsel %vm1590, %v4314, 0
  %v4334 = vsel %vm1590, %v4316, 0
  %v4337 = vsel %vm1590, %v4318, 0
  %v4340 = vsel %vm1590, %v4320, 0
  %v4343 = vsel %vm1590, %v4322, 0
  %v4346 = vsel %vm1590, %v4324, 0
  %v4349 = vsel %vm1590, %v4326, 0
  %4351 = vmatprep.subr.bf16.mxu0 0
  %4352 = vmatpush1.bf16.xpose.msra.mxu0 0
  %4353 = vmatprep.subr.bf16.mxu0 0
  %4354 = vmatpush1.bf16.xpose.msra.mxu0 0
  %4355 = vmatprep.subr.bf16.mxu0 0
  %4356 = vmatpush1.bf16.xpose.msra.mxu0 0
  %4357 = vmatprep.subr.bf16.mxu0 0
  %4358 = vmatpush1.bf16.xpose.msra.mxu0 0
  %4359 = vmatprep.subr.bf16.mxu0 0
  %4360 = vmatpush1.bf16.xpose.msra.mxu0 %v4349
  %4361 = vmatprep.subr.bf16.mxu0 0
  %4362 = vmatpush1.bf16.xpose.msra.mxu0 %v4346
  %4363 = vmatprep.subr.bf16.mxu0 0
  %4364 = vmatpush1.bf16.xpose.msra.mxu0 %v4343
  %4365 = vmatprep.subr.bf16.mxu0 0
  %4366 = vmatpush1.bf16.xpose.msra.mxu0 %v4340
  %4367 = vmatprep.subr.bf16.mxu0 0
  %4368 = vmatpush2.bf16.xpose.msra.mxu0 0
  %4369 = vmatprep.subr.bf16.mxu0 0
  %4370 = vmatpush2.bf16.xpose.msra.mxu0 0
  %4371 = vmatprep.subr.bf16.mxu0 0
  %4372 = vmatpush2.bf16.xpose.msra.mxu0 0
  %4373 = vmatprep.subr.bf16.mxu0 0
  %4374 = vmatpush2.bf16.xpose.msra.mxu0 0
  %4375 = vmatprep.subr.bf16.mxu0 0
  %4376 = vmatpush2.bf16.xpose.msra.mxu0 0
  %4377 = vmatprep.subr.bf16.mxu0 0
  %4378 = vmatpush2.bf16.xpose.msra.mxu0 0
  %4379 = vmatprep.subr.bf16.mxu0 0
  %4380 = vmatpush2.bf16.xpose.msra.mxu0 0
  %4381 = vmatprep.subr.bf16.mxu0 0
  %4382 = vmatpush2.bf16.xpose.msra.mxu0 0
  %4383 = vmatprep.mubr.bf16.mxu0 0
  %4384 = vmatmul.mubr.bf16.gmra.mxu0 %v4328
  %v4385 = vpop.f32.mrf.mxu0
  %v4386 = vadd.f32 0.0, %v4385
  %v4387 = vpop.f32.mrf.mxu0
  %v4388 = vpop.f32.mrf.mxu0
  %v4389 = vadd.f32 0.0, %v4388
  %v4390 = vpop.f32.mrf.mxu0
  %4391 = vmatprep.mubr.bf16.mxu0 0
  %4392 = vmatmul.mubr.bf16.gmra.mxu0 %v4331
  %v4393 = vpop.f32.mrf.mxu0
  %v4394 = vadd.f32 0.0, %v4393
  %v4395 = vpop.f32.mrf.mxu0
  %v4396 = vpop.f32.mrf.mxu0
  %v4397 = vadd.f32 0.0, %v4396
  %v4398 = vpop.f32.mrf.mxu0
  %4399 = vmatprep.mubr.bf16.mxu0 0
  %4400 = vmatmul.mubr.bf16.gmra.mxu0 %v4334
  %v4401 = vpop.f32.mrf.mxu0
  %v4402 = vadd.f32 0.0, %v4401
  %v4403 = vpop.f32.mrf.mxu0
  %v4404 = vpop.f32.mrf.mxu0
  %v4405 = vadd.f32 0.0, %v4404
  %v4406 = vpop.f32.mrf.mxu0
  %4407 = vmatprep.mubr.bf16.mxu0 0
  %4408 = vmatmul.mubr.bf16.gmra.mxu0 %v4337
  %v4409 = vpop.f32.mrf.mxu0
  %v4410 = vadd.f32 0.0, %v4409
  %v4411 = vpop.f32.mrf.mxu0
  %v4412 = vpop.f32.mrf.mxu0
  %v4413 = vadd.f32 0.0, %v4412
  %v4414 = vpop.f32.mrf.mxu0
  %4415 = vdwg.mxu0
  %4416 = vrot.lane.b32.xlu0 %v1526, 120
  %v4417 = vpop.permute.xlu0 %4416
  %4418 = vrot.lane.b32.xlu0 %v1527, 120
  %v4419 = vpop.permute.xlu0 %4418
  %4420 = vrot.lane.b32.xlu0 %v1528, 120
  %v4421 = vpop.permute.xlu0 %4420
  %4422 = vrot.lane.b32.xlu0 %v1529, 120
  %v4423 = vpop.permute.xlu0 %4422
  %4424 = vrot.lane.b32.xlu0 %v1526, 88
  %v4425 = vpop.permute.xlu0 %4424
  %4426 = vrot.lane.b32.xlu0 %v1527, 88
  %v4427 = vpop.permute.xlu0 %4426
  %4428 = vrot.lane.b32.xlu0 %v1528, 88
  %v4429 = vpop.permute.xlu0 %4428
  %4430 = vrot.lane.b32.xlu0 %v1529, 88
  %v4431 = vpop.permute.xlu0 %4430
  %v4433 = vsel %vm1590, %v4417, 0
  %v4436 = vsel %vm1590, %v4419, 0
  %v4439 = vsel %vm1590, %v4421, 0
  %v4442 = vsel %vm1590, %v4423, 0
  %v4445 = vsel %vm1590, %v4425, 0
  %v4448 = vsel %vm1590, %v4427, 0
  %v4451 = vsel %vm1590, %v4429, 0
  %v4454 = vsel %vm1590, %v4431, 0
  %4456 = vmatprep.subr.bf16.mxu0 0
  %4457 = vmatpush1.bf16.xpose.msra.mxu0 0
  %4458 = vmatprep.subr.bf16.mxu0 0
  %4459 = vmatpush1.bf16.xpose.msra.mxu0 0
  %4460 = vmatprep.subr.bf16.mxu0 0
  %4461 = vmatpush1.bf16.xpose.msra.mxu0 0
  %4462 = vmatprep.subr.bf16.mxu0 0
  %4463 = vmatpush1.bf16.xpose.msra.mxu0 0
  %4464 = vmatprep.subr.bf16.mxu0 0
  %4465 = vmatpush1.bf16.xpose.msra.mxu0 %v4454
  %4466 = vmatprep.subr.bf16.mxu0 0
  %4467 = vmatpush1.bf16.xpose.msra.mxu0 %v4451
  %4468 = vmatprep.subr.bf16.mxu0 0
  %4469 = vmatpush1.bf16.xpose.msra.mxu0 %v4448
  %4470 = vmatprep.subr.bf16.mxu0 0
  %4471 = vmatpush1.bf16.xpose.msra.mxu0 %v4445
  %4472 = vmatprep.subr.bf16.mxu0 0
  %4473 = vmatpush2.bf16.xpose.msra.mxu0 0
  %4474 = vmatprep.subr.bf16.mxu0 0
  %4475 = vmatpush2.bf16.xpose.msra.mxu0 0
  %4476 = vmatprep.subr.bf16.mxu0 0
  %4477 = vmatpush2.bf16.xpose.msra.mxu0 0
  %4478 = vmatprep.subr.bf16.mxu0 0
  %4479 = vmatpush2.bf16.xpose.msra.mxu0 0
  %4480 = vmatprep.subr.bf16.mxu0 0
  %4481 = vmatpush2.bf16.xpose.msra.mxu0 0
  %4482 = vmatprep.subr.bf16.mxu0 0
  %4483 = vmatpush2.bf16.xpose.msra.mxu0 0
  %4484 = vmatprep.subr.bf16.mxu0 0
  %4485 = vmatpush2.bf16.xpose.msra.mxu0 0
  %4486 = vmatprep.subr.bf16.mxu0 0
  %4487 = vmatpush2.bf16.xpose.msra.mxu0 0
  %4488 = vmatprep.mubr.bf16.mxu0 0
  %4489 = vmatmul.mubr.bf16.gmra.mxu0 %v4433
  %v4490 = vpop.f32.mrf.mxu0
  %v4491 = vadd.f32 0.0, %v4490
  %v4492 = vpop.f32.mrf.mxu0
  %v4493 = vpop.f32.mrf.mxu0
  %v4494 = vadd.f32 0.0, %v4493
  %v4495 = vpop.f32.mrf.mxu0
  %4496 = vmatprep.mubr.bf16.mxu0 0
  %4497 = vmatmul.mubr.bf16.gmra.mxu0 %v4436
  %v4498 = vpop.f32.mrf.mxu0
  %v4499 = vadd.f32 0.0, %v4498
  %v4500 = vpop.f32.mrf.mxu0
  %v4501 = vpop.f32.mrf.mxu0
  %v4502 = vadd.f32 0.0, %v4501
  %v4503 = vpop.f32.mrf.mxu0
  %4504 = vmatprep.mubr.bf16.mxu0 0
  %4505 = vmatmul.mubr.bf16.gmra.mxu0 %v4439
  %v4506 = vpop.f32.mrf.mxu0
  %v4507 = vadd.f32 0.0, %v4506
  %v4508 = vpop.f32.mrf.mxu0
  %v4509 = vpop.f32.mrf.mxu0
  %v4510 = vadd.f32 0.0, %v4509
  %v4511 = vpop.f32.mrf.mxu0
  %4512 = vmatprep.mubr.bf16.mxu0 0
  %4513 = vmatmul.mubr.bf16.gmra.mxu0 %v4442
  %v4514 = vpop.f32.mrf.mxu0
  %v4515 = vadd.f32 0.0, %v4514
  %v4516 = vpop.f32.mrf.mxu0
  %v4517 = vpop.f32.mrf.mxu0
  %v4518 = vadd.f32 0.0, %v4517
  %v4519 = vpop.f32.mrf.mxu0
  %4520 = vdwg.mxu0
  %4521 = vrot.lane.b32.xlu0 %v1530, 120
  %v4522 = vpop.permute.xlu0 %4521
  %4523 = vrot.lane.b32.xlu0 %v1531, 120
  %v4524 = vpop.permute.xlu0 %4523
  %4525 = vrot.lane.b32.xlu0 %v1532, 120
  %v4526 = vpop.permute.xlu0 %4525
  %4527 = vrot.lane.b32.xlu0 %v1533, 120
  %v4528 = vpop.permute.xlu0 %4527
  %4529 = vrot.lane.b32.xlu0 %v1530, 88
  %v4530 = vpop.permute.xlu0 %4529
  %4531 = vrot.lane.b32.xlu0 %v1531, 88
  %v4532 = vpop.permute.xlu0 %4531
  %4533 = vrot.lane.b32.xlu0 %v1532, 88
  %v4534 = vpop.permute.xlu0 %4533
  %4535 = vrot.lane.b32.xlu0 %v1533, 88
  %v4536 = vpop.permute.xlu0 %4535
  %v4538 = vsel %vm1590, %v4522, 0
  %v4541 = vsel %vm1590, %v4524, 0
  %v4544 = vsel %vm1590, %v4526, 0
  %v4547 = vsel %vm1590, %v4528, 0
  %v4550 = vsel %vm1590, %v4530, 0
  %v4553 = vsel %vm1590, %v4532, 0
  %v4556 = vsel %vm1590, %v4534, 0
  %v4559 = vsel %vm1590, %v4536, 0
  %4561 = vmatprep.subr.bf16.mxu0 0
  %4562 = vmatpush1.bf16.xpose.msra.mxu0 0
  %4563 = vmatprep.subr.bf16.mxu0 0
  %4564 = vmatpush1.bf16.xpose.msra.mxu0 0
  %4565 = vmatprep.subr.bf16.mxu0 0
  %4566 = vmatpush1.bf16.xpose.msra.mxu0 0
  %4567 = vmatprep.subr.bf16.mxu0 0
  %4568 = vmatpush1.bf16.xpose.msra.mxu0 0
  %4569 = vmatprep.subr.bf16.mxu0 0
  %4570 = vmatpush1.bf16.xpose.msra.mxu0 %v4559
  %4571 = vmatprep.subr.bf16.mxu0 0
  %4572 = vmatpush1.bf16.xpose.msra.mxu0 %v4556
  %4573 = vmatprep.subr.bf16.mxu0 0
  %4574 = vmatpush1.bf16.xpose.msra.mxu0 %v4553
  %4575 = vmatprep.subr.bf16.mxu0 0
  %4576 = vmatpush1.bf16.xpose.msra.mxu0 %v4550
  %4577 = vmatprep.subr.bf16.mxu0 0
  %4578 = vmatpush2.bf16.xpose.msra.mxu0 0
  %4579 = vmatprep.subr.bf16.mxu0 0
  %4580 = vmatpush2.bf16.xpose.msra.mxu0 0
  %4581 = vmatprep.subr.bf16.mxu0 0
  %4582 = vmatpush2.bf16.xpose.msra.mxu0 0
  %4583 = vmatprep.subr.bf16.mxu0 0
  %4584 = vmatpush2.bf16.xpose.msra.mxu0 0
  %4585 = vmatprep.subr.bf16.mxu0 0
  %4586 = vmatpush2.bf16.xpose.msra.mxu0 0
  %4587 = vmatprep.subr.bf16.mxu0 0
  %4588 = vmatpush2.bf16.xpose.msra.mxu0 0
  %4589 = vmatprep.subr.bf16.mxu0 0
  %4590 = vmatpush2.bf16.xpose.msra.mxu0 0
  %4591 = vmatprep.subr.bf16.mxu0 0
  %4592 = vmatpush2.bf16.xpose.msra.mxu0 0
  %4593 = vmatprep.mubr.bf16.mxu0 0
  %4594 = vmatmul.mubr.bf16.gmra.mxu0 %v4538
  %v4595 = vpop.f32.mrf.mxu0
  %v4596 = vadd.f32 0.0, %v4595
  %v4597 = vpop.f32.mrf.mxu0
  %v4598 = vpop.f32.mrf.mxu0
  %v4599 = vadd.f32 0.0, %v4598
  %v4600 = vpop.f32.mrf.mxu0
  %4601 = vmatprep.mubr.bf16.mxu0 0
  %4602 = vmatmul.mubr.bf16.gmra.mxu0 %v4541
  %v4603 = vpop.f32.mrf.mxu0
  %v4604 = vadd.f32 0.0, %v4603
  %v4605 = vpop.f32.mrf.mxu0
  %v4606 = vpop.f32.mrf.mxu0
  %v4607 = vadd.f32 0.0, %v4606
  %v4608 = vpop.f32.mrf.mxu0
  %4609 = vmatprep.mubr.bf16.mxu0 0
  %4610 = vmatmul.mubr.bf16.gmra.mxu0 %v4544
  %v4611 = vpop.f32.mrf.mxu0
  %v4612 = vadd.f32 0.0, %v4611
  %v4613 = vpop.f32.mrf.mxu0
  %v4614 = vpop.f32.mrf.mxu0
  %v4615 = vadd.f32 0.0, %v4614
  %v4616 = vpop.f32.mrf.mxu0
  %4617 = vmatprep.mubr.bf16.mxu0 0
  %4618 = vmatmul.mubr.bf16.gmra.mxu0 %v4547
  %v4619 = vpop.f32.mrf.mxu0
  %v4620 = vadd.f32 0.0, %v4619
  %v4621 = vpop.f32.mrf.mxu0
  %v4622 = vpop.f32.mrf.mxu0
  %v4623 = vadd.f32 0.0, %v4622
  %v4624 = vpop.f32.mrf.mxu0
  %4625 = vdwg.mxu0
  %4626 = vrot.lane.b32.xlu0 %v1534, 120
  %v4627 = vpop.permute.xlu0 %4626
  %4628 = vrot.lane.b32.xlu0 %v1535, 120
  %v4629 = vpop.permute.xlu0 %4628
  %4630 = vrot.lane.b32.xlu0 %v1536, 120
  %v4631 = vpop.permute.xlu0 %4630
  %4632 = vrot.lane.b32.xlu0 %v1537, 120
  %v4633 = vpop.permute.xlu0 %4632
  %4634 = vrot.lane.b32.xlu0 %v1534, 88
  %v4635 = vpop.permute.xlu0 %4634
  %4636 = vrot.lane.b32.xlu0 %v1535, 88
  %v4637 = vpop.permute.xlu0 %4636
  %4638 = vrot.lane.b32.xlu0 %v1536, 88
  %v4639 = vpop.permute.xlu0 %4638
  %4640 = vrot.lane.b32.xlu0 %v1537, 88
  %v4641 = vpop.permute.xlu0 %4640
  %v4643 = vsel %vm1590, %v4627, 0
  %v4646 = vsel %vm1590, %v4629, 0
  %v4649 = vsel %vm1590, %v4631, 0
  %v4652 = vsel %vm1590, %v4633, 0
  %v4655 = vsel %vm1590, %v4635, 0
  %v4658 = vsel %vm1590, %v4637, 0
  %v4661 = vsel %vm1590, %v4639, 0
  %v4664 = vsel %vm1590, %v4641, 0
  %4666 = vmatprep.subr.bf16.mxu0 0
  %4667 = vmatpush1.bf16.xpose.msra.mxu0 0
  %4668 = vmatprep.subr.bf16.mxu0 0
  %4669 = vmatpush1.bf16.xpose.msra.mxu0 0
  %4670 = vmatprep.subr.bf16.mxu0 0
  %4671 = vmatpush1.bf16.xpose.msra.mxu0 0
  %4672 = vmatprep.subr.bf16.mxu0 0
  %4673 = vmatpush1.bf16.xpose.msra.mxu0 0
  %4674 = vmatprep.subr.bf16.mxu0 0
  %4675 = vmatpush1.bf16.xpose.msra.mxu0 %v4664
  %4676 = vmatprep.subr.bf16.mxu0 0
  %4677 = vmatpush1.bf16.xpose.msra.mxu0 %v4661
  %4678 = vmatprep.subr.bf16.mxu0 0
  %4679 = vmatpush1.bf16.xpose.msra.mxu0 %v4658
  %4680 = vmatprep.subr.bf16.mxu0 0
  %4681 = vmatpush1.bf16.xpose.msra.mxu0 %v4655
  %4682 = vmatprep.subr.bf16.mxu0 0
  %4683 = vmatpush2.bf16.xpose.msra.mxu0 0
  %4684 = vmatprep.subr.bf16.mxu0 0
  %4685 = vmatpush2.bf16.xpose.msra.mxu0 0
  %4686 = vmatprep.subr.bf16.mxu0 0
  %4687 = vmatpush2.bf16.xpose.msra.mxu0 0
  %4688 = vmatprep.subr.bf16.mxu0 0
  %4689 = vmatpush2.bf16.xpose.msra.mxu0 0
  %4690 = vmatprep.subr.bf16.mxu0 0
  %4691 = vmatpush2.bf16.xpose.msra.mxu0 0
  %4692 = vmatprep.subr.bf16.mxu0 0
  %4693 = vmatpush2.bf16.xpose.msra.mxu0 0
  %4694 = vmatprep.subr.bf16.mxu0 0
  %4695 = vmatpush2.bf16.xpose.msra.mxu0 0
  %4696 = vmatprep.subr.bf16.mxu0 0
  %4697 = vmatpush2.bf16.xpose.msra.mxu0 0
  %4698 = vmatprep.mubr.bf16.mxu0 0
  %4699 = vmatmul.mubr.bf16.gmra.mxu0 %v4643
  %v4700 = vpop.f32.mrf.mxu0
  %v4701 = vadd.f32 0.0, %v4700
  %v4702 = vpop.f32.mrf.mxu0
  %v4703 = vpop.f32.mrf.mxu0
  %v4704 = vadd.f32 0.0, %v4703
  %v4705 = vpop.f32.mrf.mxu0
  %4706 = vmatprep.mubr.bf16.mxu0 0
  %4707 = vmatmul.mubr.bf16.gmra.mxu0 %v4646
  %v4708 = vpop.f32.mrf.mxu0
  %v4709 = vadd.f32 0.0, %v4708
  %v4710 = vpop.f32.mrf.mxu0
  %v4711 = vpop.f32.mrf.mxu0
  %v4712 = vadd.f32 0.0, %v4711
  %v4713 = vpop.f32.mrf.mxu0
  %4714 = vmatprep.mubr.bf16.mxu0 0
  %4715 = vmatmul.mubr.bf16.gmra.mxu0 %v4649
  %v4716 = vpop.f32.mrf.mxu0
  %v4717 = vadd.f32 0.0, %v4716
  %v4718 = vpop.f32.mrf.mxu0
  %v4719 = vpop.f32.mrf.mxu0
  %v4720 = vadd.f32 0.0, %v4719
  %v4721 = vpop.f32.mrf.mxu0
  %4722 = vmatprep.mubr.bf16.mxu0 0
  %4723 = vmatmul.mubr.bf16.gmra.mxu0 %v4652
  %v4724 = vpop.f32.mrf.mxu0
  %v4725 = vadd.f32 0.0, %v4724
  %v4726 = vpop.f32.mrf.mxu0
  %v4727 = vpop.f32.mrf.mxu0
  %v4728 = vadd.f32 0.0, %v4727
  %v4729 = vpop.f32.mrf.mxu0
  %4730 = vdwg.mxu0
  %4731 = vrot.lane.b32.xlu0 %v1538, 120
  %v4732 = vpop.permute.xlu0 %4731
  %4733 = vrot.lane.b32.xlu0 %v1539, 120
  %v4734 = vpop.permute.xlu0 %4733
  %4735 = vrot.lane.b32.xlu0 %v1540, 120
  %v4736 = vpop.permute.xlu0 %4735
  %4737 = vrot.lane.b32.xlu0 %v1541, 120
  %v4738 = vpop.permute.xlu0 %4737
  %4739 = vrot.lane.b32.xlu0 %v1538, 88
  %v4740 = vpop.permute.xlu0 %4739
  %4741 = vrot.lane.b32.xlu0 %v1539, 88
  %v4742 = vpop.permute.xlu0 %4741
  %4743 = vrot.lane.b32.xlu0 %v1540, 88
  %v4744 = vpop.permute.xlu0 %4743
  %4745 = vrot.lane.b32.xlu0 %v1541, 88
  %v4746 = vpop.permute.xlu0 %4745
  %v4748 = vsel %vm1590, %v4732, 0
  %v4751 = vsel %vm1590, %v4734, 0
  %v4754 = vsel %vm1590, %v4736, 0
  %v4757 = vsel %vm1590, %v4738, 0
  %v4760 = vsel %vm1590, %v4740, 0
  %v4763 = vsel %vm1590, %v4742, 0
  %v4766 = vsel %vm1590, %v4744, 0
  %v4769 = vsel %vm1590, %v4746, 0
  %4771 = vmatprep.subr.bf16.mxu0 0
  %4772 = vmatpush1.bf16.xpose.msra.mxu0 0
  %4773 = vmatprep.subr.bf16.mxu0 0
  %4774 = vmatpush1.bf16.xpose.msra.mxu0 0
  %4775 = vmatprep.subr.bf16.mxu0 0
  %4776 = vmatpush1.bf16.xpose.msra.mxu0 0
  %4777 = vmatprep.subr.bf16.mxu0 0
  %4778 = vmatpush1.bf16.xpose.msra.mxu0 0
  %4779 = vmatprep.subr.bf16.mxu0 0
  %4780 = vmatpush1.bf16.xpose.msra.mxu0 %v4769
  %4781 = vmatprep.subr.bf16.mxu0 0
  %4782 = vmatpush1.bf16.xpose.msra.mxu0 %v4766
  %4783 = vmatprep.subr.bf16.mxu0 0
  %4784 = vmatpush1.bf16.xpose.msra.mxu0 %v4763
  %4785 = vmatprep.subr.bf16.mxu0 0
  %4786 = vmatpush1.bf16.xpose.msra.mxu0 %v4760
  %4787 = vmatprep.subr.bf16.mxu0 0
  %4788 = vmatpush2.bf16.xpose.msra.mxu0 0
  %4789 = vmatprep.subr.bf16.mxu0 0
  %4790 = vmatpush2.bf16.xpose.msra.mxu0 0
  %4791 = vmatprep.subr.bf16.mxu0 0
  %4792 = vmatpush2.bf16.xpose.msra.mxu0 0
  %4793 = vmatprep.subr.bf16.mxu0 0
  %4794 = vmatpush2.bf16.xpose.msra.mxu0 0
  %4795 = vmatprep.subr.bf16.mxu0 0
  %4796 = vmatpush2.bf16.xpose.msra.mxu0 0
  %4797 = vmatprep.subr.bf16.mxu0 0
  %4798 = vmatpush2.bf16.xpose.msra.mxu0 0
  %4799 = vmatprep.subr.bf16.mxu0 0
  %4800 = vmatpush2.bf16.xpose.msra.mxu0 0
  %4801 = vmatprep.subr.bf16.mxu0 0
  %4802 = vmatpush2.bf16.xpose.msra.mxu0 0
  %4803 = vmatprep.mubr.bf16.mxu0 0
  %4804 = vmatmul.mubr.bf16.gmra.mxu0 %v4748
  %v4805 = vpop.f32.mrf.mxu0
  %v4806 = vadd.f32 0.0, %v4805
  %v4807 = vpop.f32.mrf.mxu0
  %v4808 = vpop.f32.mrf.mxu0
  %v4809 = vadd.f32 0.0, %v4808
  %v4810 = vpop.f32.mrf.mxu0
  %4811 = vmatprep.mubr.bf16.mxu0 0
  %4812 = vmatmul.mubr.bf16.gmra.mxu0 %v4751
  %v4813 = vpop.f32.mrf.mxu0
  %v4814 = vadd.f32 0.0, %v4813
  %v4815 = vpop.f32.mrf.mxu0
  %v4816 = vpop.f32.mrf.mxu0
  %v4817 = vadd.f32 0.0, %v4816
  %v4818 = vpop.f32.mrf.mxu0
  %4819 = vmatprep.mubr.bf16.mxu0 0
  %4820 = vmatmul.mubr.bf16.gmra.mxu0 %v4754
  %v4821 = vpop.f32.mrf.mxu0
  %v4822 = vadd.f32 0.0, %v4821
  %v4823 = vpop.f32.mrf.mxu0
  %v4824 = vpop.f32.mrf.mxu0
  %v4825 = vadd.f32 0.0, %v4824
  %v4826 = vpop.f32.mrf.mxu0
  %4827 = vmatprep.mubr.bf16.mxu0 0
  %4828 = vmatmul.mubr.bf16.gmra.mxu0 %v4757
  %v4829 = vpop.f32.mrf.mxu0
  %v4830 = vadd.f32 0.0, %v4829
  %v4831 = vpop.f32.mrf.mxu0
  %v4832 = vpop.f32.mrf.mxu0
  %v4833 = vadd.f32 0.0, %v4832
  %v4834 = vpop.f32.mrf.mxu0
  %4835 = vdwg.mxu0
  %v4836 = vmul.f32 %v4071, 0.35355338
  %v4837 = vmul.f32 %v4074, 0.35355338
  %v4838 = vmul.f32 %v4079, 0.35355338
  %v4839 = vmul.f32 %v4082, 0.35355338
  %v4840 = vmul.f32 %v4087, 0.35355338
  %v4841 = vmul.f32 %v4090, 0.35355338
  %v4842 = vmul.f32 %v4095, 0.35355338
  %v4843 = vmul.f32 %v4098, 0.35355338
  %v4844 = vmul.f32 %v4176, 0.35355338
  %v4845 = vmul.f32 %v4179, 0.35355338
  %v4846 = vmul.f32 %v4184, 0.35355338
  %v4847 = vmul.f32 %v4187, 0.35355338
  %v4848 = vmul.f32 %v4192, 0.35355338
  %v4849 = vmul.f32 %v4195, 0.35355338
  %v4850 = vmul.f32 %v4200, 0.35355338
  %v4851 = vmul.f32 %v4203, 0.35355338
  %v4852 = vmul.f32 %v4281, 0.35355338
  %v4853 = vmul.f32 %v4284, 0.35355338
  %v4854 = vmul.f32 %v4289, 0.35355338
  %v4855 = vmul.f32 %v4292, 0.35355338
  %v4856 = vmul.f32 %v4297, 0.35355338
  %v4857 = vmul.f32 %v4300, 0.35355338
  %v4858 = vmul.f32 %v4305, 0.35355338
  %v4859 = vmul.f32 %v4308, 0.35355338
  %v4860 = vmul.f32 %v4386, 0.35355338
  %v4861 = vmul.f32 %v4389, 0.35355338
  %v4862 = vmul.f32 %v4394, 0.35355338
  %v4863 = vmul.f32 %v4397, 0.35355338
  %v4864 = vmul.f32 %v4402, 0.35355338
  %v4865 = vmul.f32 %v4405, 0.35355338
  %v4866 = vmul.f32 %v4410, 0.35355338
  %v4867 = vmul.f32 %v4413, 0.35355338
  %v4868 = vmul.f32 %v4491, 0.35355338
  %v4869 = vmul.f32 %v4494, 0.35355338
  %v4870 = vmul.f32 %v4499, 0.35355338
  %v4871 = vmul.f32 %v4502, 0.35355338
  %v4872 = vmul.f32 %v4507, 0.35355338
  %v4873 = vmul.f32 %v4510, 0.35355338
  %v4874 = vmul.f32 %v4515, 0.35355338
  %v4875 = vmul.f32 %v4518, 0.35355338
  %v4876 = vmul.f32 %v4596, 0.35355338
  %v4877 = vmul.f32 %v4599, 0.35355338
  %v4878 = vmul.f32 %v4604, 0.35355338
  %v4879 = vmul.f32 %v4607, 0.35355338
  %v4880 = vmul.f32 %v4612, 0.35355338
  %v4881 = vmul.f32 %v4615, 0.35355338
  %v4882 = vmul.f32 %v4620, 0.35355338
  %v4883 = vmul.f32 %v4623, 0.35355338
  %v4884 = vmul.f32 %v4701, 0.35355338
  %v4885 = vmul.f32 %v4704, 0.35355338
  %v4886 = vmul.f32 %v4709, 0.35355338
  %v4887 = vmul.f32 %v4712, 0.35355338
  %v4888 = vmul.f32 %v4717, 0.35355338
  %v4889 = vmul.f32 %v4720, 0.35355338
  %v4890 = vmul.f32 %v4725, 0.35355338
  %v4891 = vmul.f32 %v4728, 0.35355338
  %v4892 = vmul.f32 %v4806, 0.35355338
  %v4893 = vmul.f32 %v4809, 0.35355338
  %v4894 = vmul.f32 %v4814, 0.35355338
  %v4895 = vmul.f32 %v4817, 0.35355338
  %v4896 = vmul.f32 %v4822, 0.35355338
  %v4897 = vmul.f32 %v4825, 0.35355338
  %v4898 = vmul.f32 %v4830, 0.35355338
  %v4899 = vmul.f32 %v4833, 0.35355338
  %v4900 = vadd.f32 %v4836, %v1554
  %v4901 = vadd.f32 %v4837, %v1555
  %v4902 = vadd.f32 %v4838, %v1556
  %v4903 = vadd.f32 %v4839, %v1557
  %v4904 = vadd.f32 %v4840, %v1558
  %v4905 = vadd.f32 %v4841, %v1559
  %v4906 = vadd.f32 %v4842, %v1560
  %v4907 = vadd.f32 %v4843, %v1561
  %v4908 = vadd.f32 %v4844, %v1554
  %v4909 = vadd.f32 %v4845, %v1555
  %v4910 = vadd.f32 %v4846, %v1556
  %v4911 = vadd.f32 %v4847, %v1557
  %v4912 = vadd.f32 %v4848, %v1558
  %v4913 = vadd.f32 %v4849, %v1559
  %v4914 = vadd.f32 %v4850, %v1560
  %v4915 = vadd.f32 %v4851, %v1561
  %v4916 = vadd.f32 %v4852, %v1554
  %v4917 = vadd.f32 %v4853, %v1555
  %v4918 = vadd.f32 %v4854, %v1556
  %v4919 = vadd.f32 %v4855, %v1557
  %v4920 = vadd.f32 %v4856, %v1558
  %v4921 = vadd.f32 %v4857, %v1559
  %v4922 = vadd.f32 %v4858, %v1560
  %v4923 = vadd.f32 %v4859, %v1561
  %v4924 = vadd.f32 %v4860, %v1554
  %v4925 = vadd.f32 %v4861, %v1555
  %v4926 = vadd.f32 %v4862, %v1556
  %v4927 = vadd.f32 %v4863, %v1557
  %v4928 = vadd.f32 %v4864, %v1558
  %v4929 = vadd.f32 %v4865, %v1559
  %v4930 = vadd.f32 %v4866, %v1560
  %v4931 = vadd.f32 %v4867, %v1561
  %v4932 = vadd.f32 %v4868, %v1554
  %v4933 = vadd.f32 %v4869, %v1555
  %v4934 = vadd.f32 %v4870, %v1556
  %v4935 = vadd.f32 %v4871, %v1557
  %v4936 = vadd.f32 %v4872, %v1558
  %v4937 = vadd.f32 %v4873, %v1559
  %v4938 = vadd.f32 %v4874, %v1560
  %v4939 = vadd.f32 %v4875, %v1561
  %v4940 = vadd.f32 %v4876, %v1554
  %v4941 = vadd.f32 %v4877, %v1555
  %v4942 = vadd.f32 %v4878, %v1556
  %v4943 = vadd.f32 %v4879, %v1557
  %v4944 = vadd.f32 %v4880, %v1558
  %v4945 = vadd.f32 %v4881, %v1559
  %v4946 = vadd.f32 %v4882, %v1560
  %v4947 = vadd.f32 %v4883, %v1561
  %v4948 = vadd.f32 %v4884, %v1554
  %v4949 = vadd.f32 %v4885, %v1555
  %v4950 = vadd.f32 %v4886, %v1556
  %v4951 = vadd.f32 %v4887, %v1557
  %v4952 = vadd.f32 %v4888, %v1558
  %v4953 = vadd.f32 %v4889, %v1559
  %v4954 = vadd.f32 %v4890, %v1560
  %v4955 = vadd.f32 %v4891, %v1561
  %v4956 = vadd.f32 %v4892, %v1554
  %v4957 = vadd.f32 %v4893, %v1555
  %v4958 = vadd.f32 %v4894, %v1556
  %v4959 = vadd.f32 %v4895, %v1557
  %v4960 = vadd.f32 %v4896, %v1558
  %v4961 = vadd.f32 %v4897, %v1559
  %v4962 = vadd.f32 %v4898, %v1560
  %v4963 = vadd.f32 %v4899, %v1561
  %v4964 = vsel %vm2515, %v4900, -inf
  %4965 = vmax.xlane.f32.xlu0 %v4964
  %v4966 = vpop.xlane.xlu0 %4965
  %v4967 = vsel %vm2515, %v4901, -inf
  %4968 = vmax.xlane.f32.xlu0 %v4967
  %v4969 = vpop.xlane.xlu0 %4968
  %v4970 = vsel %vm2515, %v4902, -inf
  %4971 = vmax.xlane.f32.xlu0 %v4970
  %v4972 = vpop.xlane.xlu0 %4971
  %v4973 = vsel %vm2515, %v4903, -inf
  %4974 = vmax.xlane.f32.xlu0 %v4973
  %v4975 = vpop.xlane.xlu0 %4974
  %v4976 = vsel %vm2515, %v4904, -inf
  %4977 = vmax.xlane.f32.xlu0 %v4976
  %v4978 = vpop.xlane.xlu0 %4977
  %v4979 = vsel %vm2515, %v4905, -inf
  %4980 = vmax.xlane.f32.xlu0 %v4979
  %v4981 = vpop.xlane.xlu0 %4980
  %v4982 = vsel %vm2515, %v4906, -inf
  %4983 = vmax.xlane.f32.xlu0 %v4982
  %v4984 = vpop.xlane.xlu0 %4983
  %v4985 = vsel %vm2515, %v4907, -inf
  %4986 = vmax.xlane.f32.xlu0 %v4985
  %v4987 = vpop.xlane.xlu0 %4986
  %v4988 = vsel %vm2515, %v4908, -inf
  %4989 = vmax.xlane.f32.xlu0 %v4988
  %v4990 = vpop.xlane.xlu0 %4989
  %v4991 = vsel %vm2515, %v4909, -inf
  %4992 = vmax.xlane.f32.xlu0 %v4991
  %v4993 = vpop.xlane.xlu0 %4992
  %v4994 = vsel %vm2515, %v4910, -inf
  %4995 = vmax.xlane.f32.xlu0 %v4994
  %v4996 = vpop.xlane.xlu0 %4995
  %v4997 = vsel %vm2515, %v4911, -inf
  %4998 = vmax.xlane.f32.xlu0 %v4997
  %v4999 = vpop.xlane.xlu0 %4998
  %v5000 = vsel %vm2515, %v4912, -inf
  %5001 = vmax.xlane.f32.xlu0 %v5000
  %v5002 = vpop.xlane.xlu0 %5001
  %v5003 = vsel %vm2515, %v4913, -inf
  %5004 = vmax.xlane.f32.xlu0 %v5003
  %v5005 = vpop.xlane.xlu0 %5004
  %v5006 = vsel %vm2515, %v4914, -inf
  %5007 = vmax.xlane.f32.xlu0 %v5006
  %v5008 = vpop.xlane.xlu0 %5007
  %v5009 = vsel %vm2515, %v4915, -inf
  %5010 = vmax.xlane.f32.xlu0 %v5009
  %v5011 = vpop.xlane.xlu0 %5010
  %v5012 = vsel %vm2515, %v4916, -inf
  %5013 = vmax.xlane.f32.xlu0 %v5012
  %v5014 = vpop.xlane.xlu0 %5013
  %v5015 = vsel %vm2515, %v4917, -inf
  %5016 = vmax.xlane.f32.xlu0 %v5015
  %v5017 = vpop.xlane.xlu0 %5016
  %v5018 = vsel %vm2515, %v4918, -inf
  %5019 = vmax.xlane.f32.xlu0 %v5018
  %v5020 = vpop.xlane.xlu0 %5019
  %v5021 = vsel %vm2515, %v4919, -inf
  %5022 = vmax.xlane.f32.xlu0 %v5021
  %v5023 = vpop.xlane.xlu0 %5022
  %v5024 = vsel %vm2515, %v4920, -inf
  %5025 = vmax.xlane.f32.xlu0 %v5024
  %v5026 = vpop.xlane.xlu0 %5025
  %v5027 = vsel %vm2515, %v4921, -inf
  %5028 = vmax.xlane.f32.xlu0 %v5027
  %v5029 = vpop.xlane.xlu0 %5028
  %v5030 = vsel %vm2515, %v4922, -inf
  %5031 = vmax.xlane.f32.xlu0 %v5030
  %v5032 = vpop.xlane.xlu0 %5031
  %v5033 = vsel %vm2515, %v4923, -inf
  %5034 = vmax.xlane.f32.xlu0 %v5033
  %v5035 = vpop.xlane.xlu0 %5034
  %v5036 = vsel %vm2515, %v4924, -inf
  %5037 = vmax.xlane.f32.xlu0 %v5036
  %v5038 = vpop.xlane.xlu0 %5037
  %v5039 = vsel %vm2515, %v4925, -inf
  %5040 = vmax.xlane.f32.xlu0 %v5039
  %v5041 = vpop.xlane.xlu0 %5040
  %v5042 = vsel %vm2515, %v4926, -inf
  %5043 = vmax.xlane.f32.xlu0 %v5042
  %v5044 = vpop.xlane.xlu0 %5043
  %v5045 = vsel %vm2515, %v4927, -inf
  %5046 = vmax.xlane.f32.xlu0 %v5045
  %v5047 = vpop.xlane.xlu0 %5046
  %v5048 = vsel %vm2515, %v4928, -inf
  %5049 = vmax.xlane.f32.xlu0 %v5048
  %v5050 = vpop.xlane.xlu0 %5049
  %v5051 = vsel %vm2515, %v4929, -inf
  %5052 = vmax.xlane.f32.xlu0 %v5051
  %v5053 = vpop.xlane.xlu0 %5052
  %v5054 = vsel %vm2515, %v4930, -inf
  %5055 = vmax.xlane.f32.xlu0 %v5054
  %v5056 = vpop.xlane.xlu0 %5055
  %v5057 = vsel %vm2515, %v4931, -inf
  %5058 = vmax.xlane.f32.xlu0 %v5057
  %v5059 = vpop.xlane.xlu0 %5058
  %v5060 = vsel %vm2515, %v4932, -inf
  %5061 = vmax.xlane.f32.xlu0 %v5060
  %v5062 = vpop.xlane.xlu0 %5061
  %v5063 = vsel %vm2515, %v4933, -inf
  %5064 = vmax.xlane.f32.xlu0 %v5063
  %v5065 = vpop.xlane.xlu0 %5064
  %v5066 = vsel %vm2515, %v4934, -inf
  %5067 = vmax.xlane.f32.xlu0 %v5066
  %v5068 = vpop.xlane.xlu0 %5067
  %v5069 = vsel %vm2515, %v4935, -inf
  %5070 = vmax.xlane.f32.xlu0 %v5069
  %v5071 = vpop.xlane.xlu0 %5070
  %v5072 = vsel %vm2515, %v4936, -inf
  %5073 = vmax.xlane.f32.xlu0 %v5072
  %v5074 = vpop.xlane.xlu0 %5073
  %v5075 = vsel %vm2515, %v4937, -inf
  %5076 = vmax.xlane.f32.xlu0 %v5075
  %v5077 = vpop.xlane.xlu0 %5076
  %v5078 = vsel %vm2515, %v4938, -inf
  %5079 = vmax.xlane.f32.xlu0 %v5078
  %v5080 = vpop.xlane.xlu0 %5079
  %v5081 = vsel %vm2515, %v4939, -inf
  %5082 = vmax.xlane.f32.xlu0 %v5081
  %v5083 = vpop.xlane.xlu0 %5082
  %v5084 = vsel %vm2515, %v4940, -inf
  %5085 = vmax.xlane.f32.xlu0 %v5084
  %v5086 = vpop.xlane.xlu0 %5085
  %v5087 = vsel %vm2515, %v4941, -inf
  %5088 = vmax.xlane.f32.xlu0 %v5087
  %v5089 = vpop.xlane.xlu0 %5088
  %v5090 = vsel %vm2515, %v4942, -inf
  %5091 = vmax.xlane.f32.xlu0 %v5090
  %v5092 = vpop.xlane.xlu0 %5091
  %v5093 = vsel %vm2515, %v4943, -inf
  %5094 = vmax.xlane.f32.xlu0 %v5093
  %v5095 = vpop.xlane.xlu0 %5094
  %v5096 = vsel %vm2515, %v4944, -inf
  %5097 = vmax.xlane.f32.xlu0 %v5096
  %v5098 = vpop.xlane.xlu0 %5097
  %v5099 = vsel %vm2515, %v4945, -inf
  %5100 = vmax.xlane.f32.xlu0 %v5099
  %v5101 = vpop.xlane.xlu0 %5100
  %v5102 = vsel %vm2515, %v4946, -inf
  %5103 = vmax.xlane.f32.xlu0 %v5102
  %v5104 = vpop.xlane.xlu0 %5103
  %v5105 = vsel %vm2515, %v4947, -inf
  %5106 = vmax.xlane.f32.xlu0 %v5105
  %v5107 = vpop.xlane.xlu0 %5106
  %v5108 = vsel %vm2515, %v4948, -inf
  %5109 = vmax.xlane.f32.xlu0 %v5108
  %v5110 = vpop.xlane.xlu0 %5109
  %v5111 = vsel %vm2515, %v4949, -inf
  %5112 = vmax.xlane.f32.xlu0 %v5111
  %v5113 = vpop.xlane.xlu0 %5112
  %v5114 = vsel %vm2515, %v4950, -inf
  %5115 = vmax.xlane.f32.xlu0 %v5114
  %v5116 = vpop.xlane.xlu0 %5115
  %v5117 = vsel %vm2515, %v4951, -inf
  %5118 = vmax.xlane.f32.xlu0 %v5117
  %v5119 = vpop.xlane.xlu0 %5118
  %v5120 = vsel %vm2515, %v4952, -inf
  %5121 = vmax.xlane.f32.xlu0 %v5120
  %v5122 = vpop.xlane.xlu0 %5121
  %v5123 = vsel %vm2515, %v4953, -inf
  %5124 = vmax.xlane.f32.xlu0 %v5123
  %v5125 = vpop.xlane.xlu0 %5124
  %v5126 = vsel %vm2515, %v4954, -inf
  %5127 = vmax.xlane.f32.xlu0 %v5126
  %v5128 = vpop.xlane.xlu0 %5127
  %v5129 = vsel %vm2515, %v4955, -inf
  %5130 = vmax.xlane.f32.xlu0 %v5129
  %v5131 = vpop.xlane.xlu0 %5130
  %v5132 = vsel %vm2515, %v4956, -inf
  %5133 = vmax.xlane.f32.xlu0 %v5132
  %v5134 = vpop.xlane.xlu0 %5133
  %v5135 = vsel %vm2515, %v4957, -inf
  %5136 = vmax.xlane.f32.xlu0 %v5135
  %v5137 = vpop.xlane.xlu0 %5136
  %v5138 = vsel %vm2515, %v4958, -inf
  %5139 = vmax.xlane.f32.xlu0 %v5138
  %v5140 = vpop.xlane.xlu0 %5139
  %v5141 = vsel %vm2515, %v4959, -inf
  %5142 = vmax.xlane.f32.xlu0 %v5141
  %v5143 = vpop.xlane.xlu0 %5142
  %v5144 = vsel %vm2515, %v4960, -inf
  %5145 = vmax.xlane.f32.xlu0 %v5144
  %v5146 = vpop.xlane.xlu0 %5145
  %v5147 = vsel %vm2515, %v4961, -inf
  %5148 = vmax.xlane.f32.xlu0 %v5147
  %v5149 = vpop.xlane.xlu0 %5148
  %v5150 = vsel %vm2515, %v4962, -inf
  %5151 = vmax.xlane.f32.xlu0 %v5150
  %v5152 = vpop.xlane.xlu0 %5151
  %v5153 = vsel %vm2515, %v4963, -inf
  %5154 = vmax.xlane.f32.xlu0 %v5153
  %v5155 = vpop.xlane.xlu0 %5154
  %v5156 = vsub.f32 %v4900, %v4966
  %v5157 = vsub.f32 %v4901, %v4969
  %v5158 = vsub.f32 %v4902, %v4972
  %v5159 = vsub.f32 %v4903, %v4975
  %v5160 = vsub.f32 %v4904, %v4978
  %v5161 = vsub.f32 %v4905, %v4981
  %v5162 = vsub.f32 %v4906, %v4984
  %v5163 = vsub.f32 %v4907, %v4987
  %v5164 = vsub.f32 %v4908, %v4990
  %v5165 = vsub.f32 %v4909, %v4993
  %v5166 = vsub.f32 %v4910, %v4996
  %v5167 = vsub.f32 %v4911, %v4999
  %v5168 = vsub.f32 %v4912, %v5002
  %v5169 = vsub.f32 %v4913, %v5005
  %v5170 = vsub.f32 %v4914, %v5008
  %v5171 = vsub.f32 %v4915, %v5011
  %v5172 = vsub.f32 %v4916, %v5014
  %v5173 = vsub.f32 %v4917, %v5017
  %v5174 = vsub.f32 %v4918, %v5020
  %v5175 = vsub.f32 %v4919, %v5023
  %v5176 = vsub.f32 %v4920, %v5026
  %v5177 = vsub.f32 %v4921, %v5029
  %v5178 = vsub.f32 %v4922, %v5032
  %v5179 = vsub.f32 %v4923, %v5035
  %v5180 = vsub.f32 %v4924, %v5038
  %v5181 = vsub.f32 %v4925, %v5041
  %v5182 = vsub.f32 %v4926, %v5044
  %v5183 = vsub.f32 %v4927, %v5047
  %v5184 = vsub.f32 %v4928, %v5050
  %v5185 = vsub.f32 %v4929, %v5053
  %v5186 = vsub.f32 %v4930, %v5056
  %v5187 = vsub.f32 %v4931, %v5059
  %v5188 = vsub.f32 %v4932, %v5062
  %v5189 = vsub.f32 %v4933, %v5065
  %v5190 = vsub.f32 %v4934, %v5068
  %v5191 = vsub.f32 %v4935, %v5071
  %v5192 = vsub.f32 %v4936, %v5074
  %v5193 = vsub.f32 %v4937, %v5077
  %v5194 = vsub.f32 %v4938, %v5080
  %v5195 = vsub.f32 %v4939, %v5083
  %v5196 = vsub.f32 %v4940, %v5086
  %v5197 = vsub.f32 %v4941, %v5089
  %v5198 = vsub.f32 %v4942, %v5092
  %v5199 = vsub.f32 %v4943, %v5095
  %v5200 = vsub.f32 %v4944, %v5098
  %v5201 = vsub.f32 %v4945, %v5101
  %v5202 = vsub.f32 %v4946, %v5104
  %v5203 = vsub.f32 %v4947, %v5107
  %v5204 = vsub.f32 %v4948, %v5110
  %v5205 = vsub.f32 %v4949, %v5113
  %v5206 = vsub.f32 %v4950, %v5116
  %v5207 = vsub.f32 %v4951, %v5119
  %v5208 = vsub.f32 %v4952, %v5122
  %v5209 = vsub.f32 %v4953, %v5125
  %v5210 = vsub.f32 %v4954, %v5128
  %v5211 = vsub.f32 %v4955, %v5131
  %v5212 = vsub.f32 %v4956, %v5134
  %v5213 = vsub.f32 %v4957, %v5137
  %v5214 = vsub.f32 %v4958, %v5140
  %v5215 = vsub.f32 %v4959, %v5143
  %v5216 = vsub.f32 %v4960, %v5146
  %v5217 = vsub.f32 %v4961, %v5149
  %v5218 = vsub.f32 %v4962, %v5152
  %v5219 = vsub.f32 %v4963, %v5155
  %v5220 = vmul.f32 %v5156, 1.442695
  %v5221 = vpow.pop %v5220
  %v5222 = vmul.f32 %v5157, 1.442695
  %v5223 = vpow.pop %v5222
  %v5224 = vmul.f32 %v5158, 1.442695
  %v5225 = vpow.pop %v5224
  %v5226 = vmul.f32 %v5159, 1.442695
  %v5227 = vpow.pop %v5226
  %v5228 = vmul.f32 %v5160, 1.442695
  %v5229 = vpow.pop %v5228
  %v5230 = vmul.f32 %v5161, 1.442695
  %v5231 = vpow.pop %v5230
  %v5232 = vmul.f32 %v5162, 1.442695
  %v5233 = vpow.pop %v5232
  %v5234 = vmul.f32 %v5163, 1.442695
  %v5235 = vpow.pop %v5234
  %v5236 = vmul.f32 %v5164, 1.442695
  %v5237 = vpow.pop %v5236
  %v5238 = vmul.f32 %v5165, 1.442695
  %v5239 = vpow.pop %v5238
  %v5240 = vmul.f32 %v5166, 1.442695
  %v5241 = vpow.pop %v5240
  %v5242 = vmul.f32 %v5167, 1.442695
  %v5243 = vpow.pop %v5242
  %v5244 = vmul.f32 %v5168, 1.442695
  %v5245 = vpow.pop %v5244
  %v5246 = vmul.f32 %v5169, 1.442695
  %v5247 = vpow.pop %v5246
  %v5248 = vmul.f32 %v5170, 1.442695
  %v5249 = vpow.pop %v5248
  %v5250 = vmul.f32 %v5171, 1.442695
  %v5251 = vpow.pop %v5250
  %v5252 = vmul.f32 %v5172, 1.442695
  %v5253 = vpow.pop %v5252
  %v5254 = vmul.f32 %v5173, 1.442695
  %v5255 = vpow.pop %v5254
  %v5256 = vmul.f32 %v5174, 1.442695
  %v5257 = vpow.pop %v5256
  %v5258 = vmul.f32 %v5175, 1.442695
  %v5259 = vpow.pop %v5258
  %v5260 = vmul.f32 %v5176, 1.442695
  %v5261 = vpow.pop %v5260
  %v5262 = vmul.f32 %v5177, 1.442695
  %v5263 = vpow.pop %v5262
  %v5264 = vmul.f32 %v5178, 1.442695
  %v5265 = vpow.pop %v5264
  %v5266 = vmul.f32 %v5179, 1.442695
  %v5267 = vpow.pop %v5266
  %v5268 = vmul.f32 %v5180, 1.442695
  %v5269 = vpow.pop %v5268
  %v5270 = vmul.f32 %v5181, 1.442695
  %v5271 = vpow.pop %v5270
  %v5272 = vmul.f32 %v5182, 1.442695
  %v5273 = vpow.pop %v5272
  %v5274 = vmul.f32 %v5183, 1.442695
  %v5275 = vpow.pop %v5274
  %v5276 = vmul.f32 %v5184, 1.442695
  %v5277 = vpow.pop %v5276
  %v5278 = vmul.f32 %v5185, 1.442695
  %v5279 = vpow.pop %v5278
  %v5280 = vmul.f32 %v5186, 1.442695
  %v5281 = vpow.pop %v5280
  %v5282 = vmul.f32 %v5187, 1.442695
  %v5283 = vpow.pop %v5282
  %v5284 = vmul.f32 %v5188, 1.442695
  %v5285 = vpow.pop %v5284
  %v5286 = vmul.f32 %v5189, 1.442695
  %v5287 = vpow.pop %v5286
  %v5288 = vmul.f32 %v5190, 1.442695
  %v5289 = vpow.pop %v5288
  %v5290 = vmul.f32 %v5191, 1.442695
  %v5291 = vpow.pop %v5290
  %v5292 = vmul.f32 %v5192, 1.442695
  %v5293 = vpow.pop %v5292
  %v5294 = vmul.f32 %v5193, 1.442695
  %v5295 = vpow.pop %v5294
  %v5296 = vmul.f32 %v5194, 1.442695
  %v5297 = vpow.pop %v5296
  %v5298 = vmul.f32 %v5195, 1.442695
  %v5299 = vpow.pop %v5298
  %v5300 = vmul.f32 %v5196, 1.442695
  %v5301 = vpow.pop %v5300
  %v5302 = vmul.f32 %v5197, 1.442695
  %v5303 = vpow.pop %v5302
  %v5304 = vmul.f32 %v5198, 1.442695
  %v5305 = vpow.pop %v5304
  %v5306 = vmul.f32 %v5199, 1.442695
  %v5307 = vpow.pop %v5306
  %v5308 = vmul.f32 %v5200, 1.442695
  %v5309 = vpow.pop %v5308
  %v5310 = vmul.f32 %v5201, 1.442695
  %v5311 = vpow.pop %v5310
  %v5312 = vmul.f32 %v5202, 1.442695
  %v5313 = vpow.pop %v5312
  %v5314 = vmul.f32 %v5203, 1.442695
  %v5315 = vpow.pop %v5314
  %v5316 = vmul.f32 %v5204, 1.442695
  %v5317 = vpow.pop %v5316
  %v5318 = vmul.f32 %v5205, 1.442695
  %v5319 = vpow.pop %v5318
  %v5320 = vmul.f32 %v5206, 1.442695
  %v5321 = vpow.pop %v5320
  %v5322 = vmul.f32 %v5207, 1.442695
  %v5323 = vpow.pop %v5322
  %v5324 = vmul.f32 %v5208, 1.442695
  %v5325 = vpow.pop %v5324
  %v5326 = vmul.f32 %v5209, 1.442695
  %v5327 = vpow.pop %v5326
  %v5328 = vmul.f32 %v5210, 1.442695
  %v5329 = vpow.pop %v5328
  %v5330 = vmul.f32 %v5211, 1.442695
  %v5331 = vpow.pop %v5330
  %v5332 = vmul.f32 %v5212, 1.442695
  %v5333 = vpow.pop %v5332
  %v5334 = vmul.f32 %v5213, 1.442695
  %v5335 = vpow.pop %v5334
  %v5336 = vmul.f32 %v5214, 1.442695
  %v5337 = vpow.pop %v5336
  %v5338 = vmul.f32 %v5215, 1.442695
  %v5339 = vpow.pop %v5338
  %v5340 = vmul.f32 %v5216, 1.442695
  %v5341 = vpow.pop %v5340
  %v5342 = vmul.f32 %v5217, 1.442695
  %v5343 = vpow.pop %v5342
  %v5344 = vmul.f32 %v5218, 1.442695
  %v5345 = vpow.pop %v5344
  %v5346 = vmul.f32 %v5219, 1.442695
  %v5347 = vpow.pop %v5346
  %v5348 = vsel %vm2515, %v5221, 0.0
  %5349 = vadd.xlane.f32.xlu0 %v5348
  %v5350 = vpop.xlane.xlu0 %5349
  %v5351 = vsel %vm2515, %v5223, 0.0
  %5352 = vadd.xlane.f32.xlu0 %v5351
  %v5353 = vpop.xlane.xlu0 %5352
  %v5354 = vsel %vm2515, %v5225, 0.0
  %5355 = vadd.xlane.f32.xlu0 %v5354
  %v5356 = vpop.xlane.xlu0 %5355
  %v5357 = vsel %vm2515, %v5227, 0.0
  %5358 = vadd.xlane.f32.xlu0 %v5357
  %v5359 = vpop.xlane.xlu0 %5358
  %v5360 = vsel %vm2515, %v5229, 0.0
  %5361 = vadd.xlane.f32.xlu0 %v5360
  %v5362 = vpop.xlane.xlu0 %5361
  %v5363 = vsel %vm2515, %v5231, 0.0
  %5364 = vadd.xlane.f32.xlu0 %v5363
  %v5365 = vpop.xlane.xlu0 %5364
  %v5366 = vsel %vm2515, %v5233, 0.0
  %5367 = vadd.xlane.f32.xlu0 %v5366
  %v5368 = vpop.xlane.xlu0 %5367
  %v5369 = vsel %vm2515, %v5235, 0.0
  %5370 = vadd.xlane.f32.xlu0 %v5369
  %v5371 = vpop.xlane.xlu0 %5370
  %v5372 = vsel %vm2515, %v5237, 0.0
  %5373 = vadd.xlane.f32.xlu0 %v5372
  %v5374 = vpop.xlane.xlu0 %5373
  %v5375 = vsel %vm2515, %v5239, 0.0
  %5376 = vadd.xlane.f32.xlu0 %v5375
  %v5377 = vpop.xlane.xlu0 %5376
  %v5378 = vsel %vm2515, %v5241, 0.0
  %5379 = vadd.xlane.f32.xlu0 %v5378
  %v5380 = vpop.xlane.xlu0 %5379
  %v5381 = vsel %vm2515, %v5243, 0.0
  %5382 = vadd.xlane.f32.xlu0 %v5381
  %v5383 = vpop.xlane.xlu0 %5382
  %v5384 = vsel %vm2515, %v5245, 0.0
  %5385 = vadd.xlane.f32.xlu0 %v5384
  %v5386 = vpop.xlane.xlu0 %5385
  %v5387 = vsel %vm2515, %v5247, 0.0
  %5388 = vadd.xlane.f32.xlu0 %v5387
  %v5389 = vpop.xlane.xlu0 %5388
  %v5390 = vsel %vm2515, %v5249, 0.0
  %5391 = vadd.xlane.f32.xlu0 %v5390
  %v5392 = vpop.xlane.xlu0 %5391
  %v5393 = vsel %vm2515, %v5251, 0.0
  %5394 = vadd.xlane.f32.xlu0 %v5393
  %v5395 = vpop.xlane.xlu0 %5394
  %v5396 = vsel %vm2515, %v5253, 0.0
  %5397 = vadd.xlane.f32.xlu0 %v5396
  %v5398 = vpop.xlane.xlu0 %5397
  %v5399 = vsel %vm2515, %v5255, 0.0
  %5400 = vadd.xlane.f32.xlu0 %v5399
  %v5401 = vpop.xlane.xlu0 %5400
  %v5402 = vsel %vm2515, %v5257, 0.0
  %5403 = vadd.xlane.f32.xlu0 %v5402
  %v5404 = vpop.xlane.xlu0 %5403
  %v5405 = vsel %vm2515, %v5259, 0.0
  %5406 = vadd.xlane.f32.xlu0 %v5405
  %v5407 = vpop.xlane.xlu0 %5406
  %v5408 = vsel %vm2515, %v5261, 0.0
  %5409 = vadd.xlane.f32.xlu0 %v5408
  %v5410 = vpop.xlane.xlu0 %5409
  %v5411 = vsel %vm2515, %v5263, 0.0
  %5412 = vadd.xlane.f32.xlu0 %v5411
  %v5413 = vpop.xlane.xlu0 %5412
  %v5414 = vsel %vm2515, %v5265, 0.0
  %5415 = vadd.xlane.f32.xlu0 %v5414
  %v5416 = vpop.xlane.xlu0 %5415
  %v5417 = vsel %vm2515, %v5267, 0.0
  %5418 = vadd.xlane.f32.xlu0 %v5417
  %v5419 = vpop.xlane.xlu0 %5418
  %v5420 = vsel %vm2515, %v5269, 0.0
  %5421 = vadd.xlane.f32.xlu0 %v5420
  %v5422 = vpop.xlane.xlu0 %5421
  %v5423 = vsel %vm2515, %v5271, 0.0
  %5424 = vadd.xlane.f32.xlu0 %v5423
  %v5425 = vpop.xlane.xlu0 %5424
  %v5426 = vsel %vm2515, %v5273, 0.0
  %5427 = vadd.xlane.f32.xlu0 %v5426
  %v5428 = vpop.xlane.xlu0 %5427
  %v5429 = vsel %vm2515, %v5275, 0.0
  %5430 = vadd.xlane.f32.xlu0 %v5429
  %v5431 = vpop.xlane.xlu0 %5430
  %v5432 = vsel %vm2515, %v5277, 0.0
  %5433 = vadd.xlane.f32.xlu0 %v5432
  %v5434 = vpop.xlane.xlu0 %5433
  %v5435 = vsel %vm2515, %v5279, 0.0
  %5436 = vadd.xlane.f32.xlu0 %v5435
  %v5437 = vpop.xlane.xlu0 %5436
  %v5438 = vsel %vm2515, %v5281, 0.0
  %5439 = vadd.xlane.f32.xlu0 %v5438
  %v5440 = vpop.xlane.xlu0 %5439
  %v5441 = vsel %vm2515, %v5283, 0.0
  %5442 = vadd.xlane.f32.xlu0 %v5441
  %v5443 = vpop.xlane.xlu0 %5442
  %v5444 = vsel %vm2515, %v5285, 0.0
  %5445 = vadd.xlane.f32.xlu0 %v5444
  %v5446 = vpop.xlane.xlu0 %5445
  %v5447 = vsel %vm2515, %v5287, 0.0
  %5448 = vadd.xlane.f32.xlu0 %v5447
  %v5449 = vpop.xlane.xlu0 %5448
  %v5450 = vsel %vm2515, %v5289, 0.0
  %5451 = vadd.xlane.f32.xlu0 %v5450
  %v5452 = vpop.xlane.xlu0 %5451
  %v5453 = vsel %vm2515, %v5291, 0.0
  %5454 = vadd.xlane.f32.xlu0 %v5453
  %v5455 = vpop.xlane.xlu0 %5454
  %v5456 = vsel %vm2515, %v5293, 0.0
  %5457 = vadd.xlane.f32.xlu0 %v5456
  %v5458 = vpop.xlane.xlu0 %5457
  %v5459 = vsel %vm2515, %v5295, 0.0
  %5460 = vadd.xlane.f32.xlu0 %v5459
  %v5461 = vpop.xlane.xlu0 %5460
  %v5462 = vsel %vm2515, %v5297, 0.0
  %5463 = vadd.xlane.f32.xlu0 %v5462
  %v5464 = vpop.xlane.xlu0 %5463
  %v5465 = vsel %vm2515, %v5299, 0.0
  %5466 = vadd.xlane.f32.xlu0 %v5465
  %v5467 = vpop.xlane.xlu0 %5466
  %v5468 = vsel %vm2515, %v5301, 0.0
  %5469 = vadd.xlane.f32.xlu0 %v5468
  %v5470 = vpop.xlane.xlu0 %5469
  %v5471 = vsel %vm2515, %v5303, 0.0
  %5472 = vadd.xlane.f32.xlu0 %v5471
  %v5473 = vpop.xlane.xlu0 %5472
  %v5474 = vsel %vm2515, %v5305, 0.0
  %5475 = vadd.xlane.f32.xlu0 %v5474
  %v5476 = vpop.xlane.xlu0 %5475
  %v5477 = vsel %vm2515, %v5307, 0.0
  %5478 = vadd.xlane.f32.xlu0 %v5477
  %v5479 = vpop.xlane.xlu0 %5478
  %v5480 = vsel %vm2515, %v5309, 0.0
  %5481 = vadd.xlane.f32.xlu0 %v5480
  %v5482 = vpop.xlane.xlu0 %5481
  %v5483 = vsel %vm2515, %v5311, 0.0
  %5484 = vadd.xlane.f32.xlu0 %v5483
  %v5485 = vpop.xlane.xlu0 %5484
  %v5486 = vsel %vm2515, %v5313, 0.0
  %5487 = vadd.xlane.f32.xlu0 %v5486
  %v5488 = vpop.xlane.xlu0 %5487
  %v5489 = vsel %vm2515, %v5315, 0.0
  %5490 = vadd.xlane.f32.xlu0 %v5489
  %v5491 = vpop.xlane.xlu0 %5490
  %v5492 = vsel %vm2515, %v5317, 0.0
  %5493 = vadd.xlane.f32.xlu0 %v5492
  %v5494 = vpop.xlane.xlu0 %5493
  %v5495 = vsel %vm2515, %v5319, 0.0
  %5496 = vadd.xlane.f32.xlu0 %v5495
  %v5497 = vpop.xlane.xlu0 %5496
  %v5498 = vsel %vm2515, %v5321, 0.0
  %5499 = vadd.xlane.f32.xlu0 %v5498
  %v5500 = vpop.xlane.xlu0 %5499
  %v5501 = vsel %vm2515, %v5323, 0.0
  %5502 = vadd.xlane.f32.xlu0 %v5501
  %v5503 = vpop.xlane.xlu0 %5502
  %v5504 = vsel %vm2515, %v5325, 0.0
  %5505 = vadd.xlane.f32.xlu0 %v5504
  %v5506 = vpop.xlane.xlu0 %5505
  %v5507 = vsel %vm2515, %v5327, 0.0
  %5508 = vadd.xlane.f32.xlu0 %v5507
  %v5509 = vpop.xlane.xlu0 %5508
  %v5510 = vsel %vm2515, %v5329, 0.0
  %5511 = vadd.xlane.f32.xlu0 %v5510
  %v5512 = vpop.xlane.xlu0 %5511
  %v5513 = vsel %vm2515, %v5331, 0.0
  %5514 = vadd.xlane.f32.xlu0 %v5513
  %v5515 = vpop.xlane.xlu0 %5514
  %v5516 = vsel %vm2515, %v5333, 0.0
  %5517 = vadd.xlane.f32.xlu0 %v5516
  %v5518 = vpop.xlane.xlu0 %5517
  %v5519 = vsel %vm2515, %v5335, 0.0
  %5520 = vadd.xlane.f32.xlu0 %v5519
  %v5521 = vpop.xlane.xlu0 %5520
  %v5522 = vsel %vm2515, %v5337, 0.0
  %5523 = vadd.xlane.f32.xlu0 %v5522
  %v5524 = vpop.xlane.xlu0 %5523
  %v5525 = vsel %vm2515, %v5339, 0.0
  %5526 = vadd.xlane.f32.xlu0 %v5525
  %v5527 = vpop.xlane.xlu0 %5526
  %v5528 = vsel %vm2515, %v5341, 0.0
  %5529 = vadd.xlane.f32.xlu0 %v5528
  %v5530 = vpop.xlane.xlu0 %5529
  %v5531 = vsel %vm2515, %v5343, 0.0
  %5532 = vadd.xlane.f32.xlu0 %v5531
  %v5533 = vpop.xlane.xlu0 %5532
  %v5534 = vsel %vm2515, %v5345, 0.0
  %5535 = vadd.xlane.f32.xlu0 %v5534
  %v5536 = vpop.xlane.xlu0 %5535
  %v5537 = vsel %vm2515, %v5347, 0.0
  %5538 = vadd.xlane.f32.xlu0 %v5537
  %v5539 = vpop.xlane.xlu0 %5538
  %v5540 = vrcp.pop %v5350
  %v5541 = vrcp.pop %v5353
  %v5542 = vrcp.pop %v5356
  %v5543 = vrcp.pop %v5359
  %v5544 = vrcp.pop %v5362
  %v5545 = vrcp.pop %v5365
  %v5546 = vrcp.pop %v5368
  %v5547 = vrcp.pop %v5371
  %v5548 = vrcp.pop %v5374
  %v5549 = vrcp.pop %v5377
  %v5550 = vrcp.pop %v5380
  %v5551 = vrcp.pop %v5383
  %v5552 = vrcp.pop %v5386
  %v5553 = vrcp.pop %v5389
  %v5554 = vrcp.pop %v5392
  %v5555 = vrcp.pop %v5395
  %v5556 = vrcp.pop %v5398
  %v5557 = vrcp.pop %v5401
  %v5558 = vrcp.pop %v5404
  %v5559 = vrcp.pop %v5407
  %v5560 = vrcp.pop %v5410
  %v5561 = vrcp.pop %v5413
  %v5562 = vrcp.pop %v5416
  %v5563 = vrcp.pop %v5419
  %v5564 = vrcp.pop %v5422
  %v5565 = vrcp.pop %v5425
  %v5566 = vrcp.pop %v5428
  %v5567 = vrcp.pop %v5431
  %v5568 = vrcp.pop %v5434
  %v5569 = vrcp.pop %v5437
  %v5570 = vrcp.pop %v5440
  %v5571 = vrcp.pop %v5443
  %v5572 = vrcp.pop %v5446
  %v5573 = vrcp.pop %v5449
  %v5574 = vrcp.pop %v5452
  %v5575 = vrcp.pop %v5455
  %v5576 = vrcp.pop %v5458
  %v5577 = vrcp.pop %v5461
  %v5578 = vrcp.pop %v5464
  %v5579 = vrcp.pop %v5467
  %v5580 = vrcp.pop %v5470
  %v5581 = vrcp.pop %v5473
  %v5582 = vrcp.pop %v5476
  %v5583 = vrcp.pop %v5479
  %v5584 = vrcp.pop %v5482
  %v5585 = vrcp.pop %v5485
  %v5586 = vrcp.pop %v5488
  %v5587 = vrcp.pop %v5491
  %v5588 = vrcp.pop %v5494
  %v5589 = vrcp.pop %v5497
  %v5590 = vrcp.pop %v5500
  %v5591 = vrcp.pop %v5503
  %v5592 = vrcp.pop %v5506
  %v5593 = vrcp.pop %v5509
  %v5594 = vrcp.pop %v5512
  %v5595 = vrcp.pop %v5515
  %v5596 = vrcp.pop %v5518
  %v5597 = vrcp.pop %v5521
  %v5598 = vrcp.pop %v5524
  %v5599 = vrcp.pop %v5527
  %v5600 = vrcp.pop %v5530
  %v5601 = vrcp.pop %v5533
  %v5602 = vrcp.pop %v5536
  %v5603 = vrcp.pop %v5539
  %v5604 = vmul.f32 %v5221, %v5540
  %v5605 = vmul.f32 %v5223, %v5541
  %v5606 = vmul.f32 %v5225, %v5542
  %v5607 = vmul.f32 %v5227, %v5543
  %v5608 = vmul.f32 %v5229, %v5544
  %v5609 = vmul.f32 %v5231, %v5545
  %v5610 = vmul.f32 %v5233, %v5546
  %v5611 = vmul.f32 %v5235, %v5547
  %v5612 = vmul.f32 %v5237, %v5548
  %v5613 = vmul.f32 %v5239, %v5549
  %v5614 = vmul.f32 %v5241, %v5550
  %v5615 = vmul.f32 %v5243, %v5551
  %v5616 = vmul.f32 %v5245, %v5552
  %v5617 = vmul.f32 %v5247, %v5553
  %v5618 = vmul.f32 %v5249, %v5554
  %v5619 = vmul.f32 %v5251, %v5555
  %v5620 = vmul.f32 %v5253, %v5556
  %v5621 = vmul.f32 %v5255, %v5557
  %v5622 = vmul.f32 %v5257, %v5558
  %v5623 = vmul.f32 %v5259, %v5559
  %v5624 = vmul.f32 %v5261, %v5560
  %v5625 = vmul.f32 %v5263, %v5561
  %v5626 = vmul.f32 %v5265, %v5562
  %v5627 = vmul.f32 %v5267, %v5563
  %v5628 = vmul.f32 %v5269, %v5564
  %v5629 = vmul.f32 %v5271, %v5565
  %v5630 = vmul.f32 %v5273, %v5566
  %v5631 = vmul.f32 %v5275, %v5567
  %v5632 = vmul.f32 %v5277, %v5568
  %v5633 = vmul.f32 %v5279, %v5569
  %v5634 = vmul.f32 %v5281, %v5570
  %v5635 = vmul.f32 %v5283, %v5571
  %v5636 = vmul.f32 %v5285, %v5572
  %v5637 = vmul.f32 %v5287, %v5573
  %v5638 = vmul.f32 %v5289, %v5574
  %v5639 = vmul.f32 %v5291, %v5575
  %v5640 = vmul.f32 %v5293, %v5576
  %v5641 = vmul.f32 %v5295, %v5577
  %v5642 = vmul.f32 %v5297, %v5578
  %v5643 = vmul.f32 %v5299, %v5579
  %v5644 = vmul.f32 %v5301, %v5580
  %v5645 = vmul.f32 %v5303, %v5581
  %v5646 = vmul.f32 %v5305, %v5582
  %v5647 = vmul.f32 %v5307, %v5583
  %v5648 = vmul.f32 %v5309, %v5584
  %v5649 = vmul.f32 %v5311, %v5585
  %v5650 = vmul.f32 %v5313, %v5586
  %v5651 = vmul.f32 %v5315, %v5587
  %v5652 = vmul.f32 %v5317, %v5588
  %v5653 = vmul.f32 %v5319, %v5589
  %v5654 = vmul.f32 %v5321, %v5590
  %v5655 = vmul.f32 %v5323, %v5591
  %v5656 = vmul.f32 %v5325, %v5592
  %v5657 = vmul.f32 %v5327, %v5593
  %v5658 = vmul.f32 %v5329, %v5594
  %v5659 = vmul.f32 %v5331, %v5595
  %v5660 = vmul.f32 %v5333, %v5596
  %v5661 = vmul.f32 %v5335, %v5597
  %v5662 = vmul.f32 %v5337, %v5598
  %v5663 = vmul.f32 %v5339, %v5599
  %v5664 = vmul.f32 %v5341, %v5600
  %v5665 = vmul.f32 %v5343, %v5601
  %v5666 = vmul.f32 %v5345, %v5602
  %v5667 = vmul.f32 %v5347, %v5603
  %v5668 = vpack.c.bf16 %v5605, %v5604
  %v5669 = vpack.c.bf16 %v5607, %v5606
  %v5670 = vpack.c.bf16 %v5609, %v5608
  %v5671 = vpack.c.bf16 %v5611, %v5610
  %v5672 = vpack.c.bf16 %v5613, %v5612
  %v5673 = vpack.c.bf16 %v5615, %v5614
  %v5674 = vpack.c.bf16 %v5617, %v5616
  %v5675 = vpack.c.bf16 %v5619, %v5618
  %v5676 = vpack.c.bf16 %v5621, %v5620
  %v5677 = vpack.c.bf16 %v5623, %v5622
  %v5678 = vpack.c.bf16 %v5625, %v5624
  %v5679 = vpack.c.bf16 %v5627, %v5626
  %v5680 = vpack.c.bf16 %v5629, %v5628
  %v5681 = vpack.c.bf16 %v5631, %v5630
  %v5682 = vpack.c.bf16 %v5633, %v5632
  %v5683 = vpack.c.bf16 %v5635, %v5634
  %v5684 = vpack.c.bf16 %v5637, %v5636
  %v5685 = vpack.c.bf16 %v5639, %v5638
  %v5686 = vpack.c.bf16 %v5641, %v5640
  %v5687 = vpack.c.bf16 %v5643, %v5642
  %v5688 = vpack.c.bf16 %v5645, %v5644
  %v5689 = vpack.c.bf16 %v5647, %v5646
  %v5690 = vpack.c.bf16 %v5649, %v5648
  %v5691 = vpack.c.bf16 %v5651, %v5650
  %v5692 = vpack.c.bf16 %v5653, %v5652
  %v5693 = vpack.c.bf16 %v5655, %v5654
  %v5694 = vpack.c.bf16 %v5657, %v5656
  %v5695 = vpack.c.bf16 %v5659, %v5658
  %v5696 = vpack.c.bf16 %v5661, %v5660
  %v5697 = vpack.c.bf16 %v5663, %v5662
  %v5698 = vpack.c.bf16 %v5665, %v5664
  %v5699 = vpack.c.bf16 %v5667, %v5666
  %5700 = vrot.lane.b32.xlu0 %v1510, 56
  %v5701 = vpop.permute.xlu0 %5700
  %5702 = vrot.lane.b32.xlu0 %v1511, 56
  %v5703 = vpop.permute.xlu0 %5702
  %5704 = vrot.lane.b32.xlu0 %v1512, 56
  %v5705 = vpop.permute.xlu0 %5704
  %5706 = vrot.lane.b32.xlu0 %v1513, 56
  %v5707 = vpop.permute.xlu0 %5706
  %v5713 = vsel %vm2515, %v5668, 0
  %v5716 = vsel %vm2515, %v5669, 0
  %v5719 = vsel %vm2515, %v5670, 0
  %v5722 = vsel %vm2515, %v5671, 0
  %5724 = vmatprep.subr.bf16.mxu0 0
  %5725 = vmatpush1.bf16.msra.mxu0 0
  %5726 = vmatprep.subr.bf16.mxu0 0
  %5727 = vmatpush1.bf16.msra.mxu0 0
  %5728 = vmatprep.subr.bf16.mxu0 0
  %5729 = vmatpush1.bf16.msra.mxu0 0
  %5730 = vmatprep.subr.bf16.mxu0 0
  %5731 = vmatpush1.bf16.msra.mxu0 0
  %5732 = vmatprep.subr.bf16.mxu0 0
  %5733 = vmatpush1.bf16.msra.mxu0 %v5707
  %5734 = vmatprep.subr.bf16.mxu0 0
  %5735 = vmatpush1.bf16.msra.mxu0 %v5705
  %5736 = vmatprep.subr.bf16.mxu0 0
  %5737 = vmatpush1.bf16.msra.mxu0 %v5703
  %5738 = vmatprep.subr.bf16.mxu0 0
  %5739 = vmatpush1.bf16.msra.mxu0 %v5701
  %5740 = vmatprep.subr.bf16.mxu0 0
  %5741 = vmatpush2.bf16.msra.mxu0 0
  %5742 = vmatprep.subr.bf16.mxu0 0
  %5743 = vmatpush2.bf16.msra.mxu0 0
  %5744 = vmatprep.subr.bf16.mxu0 0
  %5745 = vmatpush2.bf16.msra.mxu0 0
  %5746 = vmatprep.subr.bf16.mxu0 0
  %5747 = vmatpush2.bf16.msra.mxu0 0
  %5748 = vmatprep.subr.bf16.mxu0 0
  %5749 = vmatpush2.bf16.msra.mxu0 0
  %5750 = vmatprep.subr.bf16.mxu0 0
  %5751 = vmatpush2.bf16.msra.mxu0 0
  %5752 = vmatprep.subr.bf16.mxu0 0
  %5753 = vmatpush2.bf16.msra.mxu0 0
  %5754 = vmatprep.subr.bf16.mxu0 0
  %5755 = vmatpush2.bf16.msra.mxu0 0
  %5756 = vmatprep.mubr.bf16.mxu0 0
  %5757 = vmatmul.mubr.bf16.gmra.mxu0 %v5713
  %v5758 = vpop.f32.mrf.mxu0
  %v5759 = vadd.f32 0.0, %v5758
  %v5760 = vpop.f32.mrf.mxu0
  %v5761 = vpop.f32.mrf.mxu0
  %v5762 = vadd.f32 0.0, %v5761
  %v5763 = vpop.f32.mrf.mxu0
  %5764 = vmatprep.mubr.bf16.mxu0 0
  %5765 = vmatmul.mubr.bf16.gmra.mxu0 %v5716
  %v5766 = vpop.f32.mrf.mxu0
  %v5767 = vadd.f32 0.0, %v5766
  %v5768 = vpop.f32.mrf.mxu0
  %v5769 = vpop.f32.mrf.mxu0
  %v5770 = vadd.f32 0.0, %v5769
  %v5771 = vpop.f32.mrf.mxu0
  %5772 = vmatprep.mubr.bf16.mxu0 0
  %5773 = vmatmul.mubr.bf16.gmra.mxu0 %v5719
  %v5774 = vpop.f32.mrf.mxu0
  %v5775 = vadd.f32 0.0, %v5774
  %v5776 = vpop.f32.mrf.mxu0
  %v5777 = vpop.f32.mrf.mxu0
  %v5778 = vadd.f32 0.0, %v5777
  %v5779 = vpop.f32.mrf.mxu0
  %5780 = vmatprep.mubr.bf16.mxu0 0
  %5781 = vmatmul.mubr.bf16.gmra.mxu0 %v5722
  %v5782 = vpop.f32.mrf.mxu0
  %v5783 = vadd.f32 0.0, %v5782
  %v5784 = vpop.f32.mrf.mxu0
  %v5785 = vpop.f32.mrf.mxu0
  %v5786 = vadd.f32 0.0, %v5785
  %v5787 = vpop.f32.mrf.mxu0
  %5788 = vdwg.mxu0
  %5789 = vrot.lane.b32.xlu0 %v1514, 56
  %v5790 = vpop.permute.xlu0 %5789
  %5791 = vrot.lane.b32.xlu0 %v1515, 56
  %v5792 = vpop.permute.xlu0 %5791
  %5793 = vrot.lane.b32.xlu0 %v1516, 56
  %v5794 = vpop.permute.xlu0 %5793
  %5795 = vrot.lane.b32.xlu0 %v1517, 56
  %v5796 = vpop.permute.xlu0 %5795
  %v5802 = vsel %vm2515, %v5672, 0
  %v5805 = vsel %vm2515, %v5673, 0
  %v5808 = vsel %vm2515, %v5674, 0
  %v5811 = vsel %vm2515, %v5675, 0
  %5813 = vmatprep.subr.bf16.mxu0 0
  %5814 = vmatpush1.bf16.msra.mxu0 0
  %5815 = vmatprep.subr.bf16.mxu0 0
  %5816 = vmatpush1.bf16.msra.mxu0 0
  %5817 = vmatprep.subr.bf16.mxu0 0
  %5818 = vmatpush1.bf16.msra.mxu0 0
  %5819 = vmatprep.subr.bf16.mxu0 0
  %5820 = vmatpush1.bf16.msra.mxu0 0
  %5821 = vmatprep.subr.bf16.mxu0 0
  %5822 = vmatpush1.bf16.msra.mxu0 %v5796
  %5823 = vmatprep.subr.bf16.mxu0 0
  %5824 = vmatpush1.bf16.msra.mxu0 %v5794
  %5825 = vmatprep.subr.bf16.mxu0 0
  %5826 = vmatpush1.bf16.msra.mxu0 %v5792
  %5827 = vmatprep.subr.bf16.mxu0 0
  %5828 = vmatpush1.bf16.msra.mxu0 %v5790
  %5829 = vmatprep.subr.bf16.mxu0 0
  %5830 = vmatpush2.bf16.msra.mxu0 0
  %5831 = vmatprep.subr.bf16.mxu0 0
  %5832 = vmatpush2.bf16.msra.mxu0 0
  %5833 = vmatprep.subr.bf16.mxu0 0
  %5834 = vmatpush2.bf16.msra.mxu0 0
  %5835 = vmatprep.subr.bf16.mxu0 0
  %5836 = vmatpush2.bf16.msra.mxu0 0
  %5837 = vmatprep.subr.bf16.mxu0 0
  %5838 = vmatpush2.bf16.msra.mxu0 0
  %5839 = vmatprep.subr.bf16.mxu0 0
  %5840 = vmatpush2.bf16.msra.mxu0 0
  %5841 = vmatprep.subr.bf16.mxu0 0
  %5842 = vmatpush2.bf16.msra.mxu0 0
  %5843 = vmatprep.subr.bf16.mxu0 0
  %5844 = vmatpush2.bf16.msra.mxu0 0
  %5845 = vmatprep.mubr.bf16.mxu0 0
  %5846 = vmatmul.mubr.bf16.gmra.mxu0 %v5802
  %v5847 = vpop.f32.mrf.mxu0
  %v5848 = vadd.f32 0.0, %v5847
  %v5849 = vpop.f32.mrf.mxu0
  %v5850 = vpop.f32.mrf.mxu0
  %v5851 = vadd.f32 0.0, %v5850
  %v5852 = vpop.f32.mrf.mxu0
  %5853 = vmatprep.mubr.bf16.mxu0 0
  %5854 = vmatmul.mubr.bf16.gmra.mxu0 %v5805
  %v5855 = vpop.f32.mrf.mxu0
  %v5856 = vadd.f32 0.0, %v5855
  %v5857 = vpop.f32.mrf.mxu0
  %v5858 = vpop.f32.mrf.mxu0
  %v5859 = vadd.f32 0.0, %v5858
  %v5860 = vpop.f32.mrf.mxu0
  %5861 = vmatprep.mubr.bf16.mxu0 0
  %5862 = vmatmul.mubr.bf16.gmra.mxu0 %v5808
  %v5863 = vpop.f32.mrf.mxu0
  %v5864 = vadd.f32 0.0, %v5863
  %v5865 = vpop.f32.mrf.mxu0
  %v5866 = vpop.f32.mrf.mxu0
  %v5867 = vadd.f32 0.0, %v5866
  %v5868 = vpop.f32.mrf.mxu0
  %5869 = vmatprep.mubr.bf16.mxu0 0
  %5870 = vmatmul.mubr.bf16.gmra.mxu0 %v5811
  %v5871 = vpop.f32.mrf.mxu0
  %v5872 = vadd.f32 0.0, %v5871
  %v5873 = vpop.f32.mrf.mxu0
  %v5874 = vpop.f32.mrf.mxu0
  %v5875 = vadd.f32 0.0, %v5874
  %v5876 = vpop.f32.mrf.mxu0
  %5877 = vdwg.mxu0
  %5878 = vrot.lane.b32.xlu0 %v1518, 56
  %v5879 = vpop.permute.xlu0 %5878
  %5880 = vrot.lane.b32.xlu0 %v1519, 56
  %v5881 = vpop.permute.xlu0 %5880
  %5882 = vrot.lane.b32.xlu0 %v1520, 56
  %v5883 = vpop.permute.xlu0 %5882
  %5884 = vrot.lane.b32.xlu0 %v1521, 56
  %v5885 = vpop.permute.xlu0 %5884
  %v5891 = vsel %vm2515, %v5676, 0
  %v5894 = vsel %vm2515, %v5677, 0
  %v5897 = vsel %vm2515, %v5678, 0
  %v5900 = vsel %vm2515, %v5679, 0
  %5902 = vmatprep.subr.bf16.mxu0 0
  %5903 = vmatpush1.bf16.msra.mxu0 0
  %5904 = vmatprep.subr.bf16.mxu0 0
  %5905 = vmatpush1.bf16.msra.mxu0 0
  %5906 = vmatprep.subr.bf16.mxu0 0
  %5907 = vmatpush1.bf16.msra.mxu0 0
  %5908 = vmatprep.subr.bf16.mxu0 0
  %5909 = vmatpush1.bf16.msra.mxu0 0
  %5910 = vmatprep.subr.bf16.mxu0 0
  %5911 = vmatpush1.bf16.msra.mxu0 %v5885
  %5912 = vmatprep.subr.bf16.mxu0 0
  %5913 = vmatpush1.bf16.msra.mxu0 %v5883
  %5914 = vmatprep.subr.bf16.mxu0 0
  %5915 = vmatpush1.bf16.msra.mxu0 %v5881
  %5916 = vmatprep.subr.bf16.mxu0 0
  %5917 = vmatpush1.bf16.msra.mxu0 %v5879
  %5918 = vmatprep.subr.bf16.mxu0 0
  %5919 = vmatpush2.bf16.msra.mxu0 0
  %5920 = vmatprep.subr.bf16.mxu0 0
  %5921 = vmatpush2.bf16.msra.mxu0 0
  %5922 = vmatprep.subr.bf16.mxu0 0
  %5923 = vmatpush2.bf16.msra.mxu0 0
  %5924 = vmatprep.subr.bf16.mxu0 0
  %5925 = vmatpush2.bf16.msra.mxu0 0
  %5926 = vmatprep.subr.bf16.mxu0 0
  %5927 = vmatpush2.bf16.msra.mxu0 0
  %5928 = vmatprep.subr.bf16.mxu0 0
  %5929 = vmatpush2.bf16.msra.mxu0 0
  %5930 = vmatprep.subr.bf16.mxu0 0
  %5931 = vmatpush2.bf16.msra.mxu0 0
  %5932 = vmatprep.subr.bf16.mxu0 0
  %5933 = vmatpush2.bf16.msra.mxu0 0
  %5934 = vmatprep.mubr.bf16.mxu0 0
  %5935 = vmatmul.mubr.bf16.gmra.mxu0 %v5891
  %v5936 = vpop.f32.mrf.mxu0
  %v5937 = vadd.f32 0.0, %v5936
  %v5938 = vpop.f32.mrf.mxu0
  %v5939 = vpop.f32.mrf.mxu0
  %v5940 = vadd.f32 0.0, %v5939
  %v5941 = vpop.f32.mrf.mxu0
  %5942 = vmatprep.mubr.bf16.mxu0 0
  %5943 = vmatmul.mubr.bf16.gmra.mxu0 %v5894
  %v5944 = vpop.f32.mrf.mxu0
  %v5945 = vadd.f32 0.0, %v5944
  %v5946 = vpop.f32.mrf.mxu0
  %v5947 = vpop.f32.mrf.mxu0
  %v5948 = vadd.f32 0.0, %v5947
  %v5949 = vpop.f32.mrf.mxu0
  %5950 = vmatprep.mubr.bf16.mxu0 0
  %5951 = vmatmul.mubr.bf16.gmra.mxu0 %v5897
  %v5952 = vpop.f32.mrf.mxu0
  %v5953 = vadd.f32 0.0, %v5952
  %v5954 = vpop.f32.mrf.mxu0
  %v5955 = vpop.f32.mrf.mxu0
  %v5956 = vadd.f32 0.0, %v5955
  %v5957 = vpop.f32.mrf.mxu0
  %5958 = vmatprep.mubr.bf16.mxu0 0
  %5959 = vmatmul.mubr.bf16.gmra.mxu0 %v5900
  %v5960 = vpop.f32.mrf.mxu0
  %v5961 = vadd.f32 0.0, %v5960
  %v5962 = vpop.f32.mrf.mxu0
  %v5963 = vpop.f32.mrf.mxu0
  %v5964 = vadd.f32 0.0, %v5963
  %v5965 = vpop.f32.mrf.mxu0
  %5966 = vdwg.mxu0
  %5967 = vrot.lane.b32.xlu0 %v1522, 56
  %v5968 = vpop.permute.xlu0 %5967
  %5969 = vrot.lane.b32.xlu0 %v1523, 56
  %v5970 = vpop.permute.xlu0 %5969
  %5971 = vrot.lane.b32.xlu0 %v1524, 56
  %v5972 = vpop.permute.xlu0 %5971
  %5973 = vrot.lane.b32.xlu0 %v1525, 56
  %v5974 = vpop.permute.xlu0 %5973
  %v5980 = vsel %vm2515, %v5680, 0
  %v5983 = vsel %vm2515, %v5681, 0
  %v5986 = vsel %vm2515, %v5682, 0
  %v5989 = vsel %vm2515, %v5683, 0
  %5991 = vmatprep.subr.bf16.mxu0 0
  %5992 = vmatpush1.bf16.msra.mxu0 0
  %5993 = vmatprep.subr.bf16.mxu0 0
  %5994 = vmatpush1.bf16.msra.mxu0 0
  %5995 = vmatprep.subr.bf16.mxu0 0
  %5996 = vmatpush1.bf16.msra.mxu0 0
  %5997 = vmatprep.subr.bf16.mxu0 0
  %5998 = vmatpush1.bf16.msra.mxu0 0
  %5999 = vmatprep.subr.bf16.mxu0 0
  %6000 = vmatpush1.bf16.msra.mxu0 %v5974
  %6001 = vmatprep.subr.bf16.mxu0 0
  %6002 = vmatpush1.bf16.msra.mxu0 %v5972
  %6003 = vmatprep.subr.bf16.mxu0 0
  %6004 = vmatpush1.bf16.msra.mxu0 %v5970
  %6005 = vmatprep.subr.bf16.mxu0 0
  %6006 = vmatpush1.bf16.msra.mxu0 %v5968
  %6007 = vmatprep.subr.bf16.mxu0 0
  %6008 = vmatpush2.bf16.msra.mxu0 0
  %6009 = vmatprep.subr.bf16.mxu0 0
  %6010 = vmatpush2.bf16.msra.mxu0 0
  %6011 = vmatprep.subr.bf16.mxu0 0
  %6012 = vmatpush2.bf16.msra.mxu0 0
  %6013 = vmatprep.subr.bf16.mxu0 0
  %6014 = vmatpush2.bf16.msra.mxu0 0
  %6015 = vmatprep.subr.bf16.mxu0 0
  %6016 = vmatpush2.bf16.msra.mxu0 0
  %6017 = vmatprep.subr.bf16.mxu0 0
  %6018 = vmatpush2.bf16.msra.mxu0 0
  %6019 = vmatprep.subr.bf16.mxu0 0
  %6020 = vmatpush2.bf16.msra.mxu0 0
  %6021 = vmatprep.subr.bf16.mxu0 0
  %6022 = vmatpush2.bf16.msra.mxu0 0
  %6023 = vmatprep.mubr.bf16.mxu0 0
  %6024 = vmatmul.mubr.bf16.gmra.mxu0 %v5980
  %v6025 = vpop.f32.mrf.mxu0
  %v6026 = vadd.f32 0.0, %v6025
  %v6027 = vpop.f32.mrf.mxu0
  %v6028 = vpop.f32.mrf.mxu0
  %v6029 = vadd.f32 0.0, %v6028
  %v6030 = vpop.f32.mrf.mxu0
  %6031 = vmatprep.mubr.bf16.mxu0 0
  %6032 = vmatmul.mubr.bf16.gmra.mxu0 %v5983
  %v6033 = vpop.f32.mrf.mxu0
  %v6034 = vadd.f32 0.0, %v6033
  %v6035 = vpop.f32.mrf.mxu0
  %v6036 = vpop.f32.mrf.mxu0
  %v6037 = vadd.f32 0.0, %v6036
  %v6038 = vpop.f32.mrf.mxu0
  %6039 = vmatprep.mubr.bf16.mxu0 0
  %6040 = vmatmul.mubr.bf16.gmra.mxu0 %v5986
  %v6041 = vpop.f32.mrf.mxu0
  %v6042 = vadd.f32 0.0, %v6041
  %v6043 = vpop.f32.mrf.mxu0
  %v6044 = vpop.f32.mrf.mxu0
  %v6045 = vadd.f32 0.0, %v6044
  %v6046 = vpop.f32.mrf.mxu0
  %6047 = vmatprep.mubr.bf16.mxu0 0
  %6048 = vmatmul.mubr.bf16.gmra.mxu0 %v5989
  %v6049 = vpop.f32.mrf.mxu0
  %v6050 = vadd.f32 0.0, %v6049
  %v6051 = vpop.f32.mrf.mxu0
  %v6052 = vpop.f32.mrf.mxu0
  %v6053 = vadd.f32 0.0, %v6052
  %v6054 = vpop.f32.mrf.mxu0
  %6055 = vdwg.mxu0
  %6056 = vrot.lane.b32.xlu0 %v1526, 56
  %v6057 = vpop.permute.xlu0 %6056
  %6058 = vrot.lane.b32.xlu0 %v1527, 56
  %v6059 = vpop.permute.xlu0 %6058
  %6060 = vrot.lane.b32.xlu0 %v1528, 56
  %v6061 = vpop.permute.xlu0 %6060
  %6062 = vrot.lane.b32.xlu0 %v1529, 56
  %v6063 = vpop.permute.xlu0 %6062
  %v6069 = vsel %vm2515, %v5684, 0
  %v6072 = vsel %vm2515, %v5685, 0
  %v6075 = vsel %vm2515, %v5686, 0
  %v6078 = vsel %vm2515, %v5687, 0
  %6080 = vmatprep.subr.bf16.mxu0 0
  %6081 = vmatpush1.bf16.msra.mxu0 0
  %6082 = vmatprep.subr.bf16.mxu0 0
  %6083 = vmatpush1.bf16.msra.mxu0 0
  %6084 = vmatprep.subr.bf16.mxu0 0
  %6085 = vmatpush1.bf16.msra.mxu0 0
  %6086 = vmatprep.subr.bf16.mxu0 0
  %6087 = vmatpush1.bf16.msra.mxu0 0
  %6088 = vmatprep.subr.bf16.mxu0 0
  %6089 = vmatpush1.bf16.msra.mxu0 %v6063
  %6090 = vmatprep.subr.bf16.mxu0 0
  %6091 = vmatpush1.bf16.msra.mxu0 %v6061
  %6092 = vmatprep.subr.bf16.mxu0 0
  %6093 = vmatpush1.bf16.msra.mxu0 %v6059
  %6094 = vmatprep.subr.bf16.mxu0 0
  %6095 = vmatpush1.bf16.msra.mxu0 %v6057
  %6096 = vmatprep.subr.bf16.mxu0 0
  %6097 = vmatpush2.bf16.msra.mxu0 0
  %6098 = vmatprep.subr.bf16.mxu0 0
  %6099 = vmatpush2.bf16.msra.mxu0 0
  %6100 = vmatprep.subr.bf16.mxu0 0
  %6101 = vmatpush2.bf16.msra.mxu0 0
  %6102 = vmatprep.subr.bf16.mxu0 0
  %6103 = vmatpush2.bf16.msra.mxu0 0
  %6104 = vmatprep.subr.bf16.mxu0 0
  %6105 = vmatpush2.bf16.msra.mxu0 0
  %6106 = vmatprep.subr.bf16.mxu0 0
  %6107 = vmatpush2.bf16.msra.mxu0 0
  %6108 = vmatprep.subr.bf16.mxu0 0
  %6109 = vmatpush2.bf16.msra.mxu0 0
  %6110 = vmatprep.subr.bf16.mxu0 0
  %6111 = vmatpush2.bf16.msra.mxu0 0
  %6112 = vmatprep.mubr.bf16.mxu0 0
  %6113 = vmatmul.mubr.bf16.gmra.mxu0 %v6069
  %v6114 = vpop.f32.mrf.mxu0
  %v6115 = vadd.f32 0.0, %v6114
  %v6116 = vpop.f32.mrf.mxu0
  %v6117 = vpop.f32.mrf.mxu0
  %v6118 = vadd.f32 0.0, %v6117
  %v6119 = vpop.f32.mrf.mxu0
  %6120 = vmatprep.mubr.bf16.mxu0 0
  %6121 = vmatmul.mubr.bf16.gmra.mxu0 %v6072
  %v6122 = vpop.f32.mrf.mxu0
  %v6123 = vadd.f32 0.0, %v6122
  %v6124 = vpop.f32.mrf.mxu0
  %v6125 = vpop.f32.mrf.mxu0
  %v6126 = vadd.f32 0.0, %v6125
  %v6127 = vpop.f32.mrf.mxu0
  %6128 = vmatprep.mubr.bf16.mxu0 0
  %6129 = vmatmul.mubr.bf16.gmra.mxu0 %v6075
  %v6130 = vpop.f32.mrf.mxu0
  %v6131 = vadd.f32 0.0, %v6130
  %v6132 = vpop.f32.mrf.mxu0
  %v6133 = vpop.f32.mrf.mxu0
  %v6134 = vadd.f32 0.0, %v6133
  %v6135 = vpop.f32.mrf.mxu0
  %6136 = vmatprep.mubr.bf16.mxu0 0
  %6137 = vmatmul.mubr.bf16.gmra.mxu0 %v6078
  %v6138 = vpop.f32.mrf.mxu0
  %v6139 = vadd.f32 0.0, %v6138
  %v6140 = vpop.f32.mrf.mxu0
  %v6141 = vpop.f32.mrf.mxu0
  %v6142 = vadd.f32 0.0, %v6141
  %v6143 = vpop.f32.mrf.mxu0
  %6144 = vdwg.mxu0
  %6145 = vrot.lane.b32.xlu0 %v1530, 56
  %v6146 = vpop.permute.xlu0 %6145
  %6147 = vrot.lane.b32.xlu0 %v1531, 56
  %v6148 = vpop.permute.xlu0 %6147
  %6149 = vrot.lane.b32.xlu0 %v1532, 56
  %v6150 = vpop.permute.xlu0 %6149
  %6151 = vrot.lane.b32.xlu0 %v1533, 56
  %v6152 = vpop.permute.xlu0 %6151
  %v6158 = vsel %vm2515, %v5688, 0
  %v6161 = vsel %vm2515, %v5689, 0
  %v6164 = vsel %vm2515, %v5690, 0
  %v6167 = vsel %vm2515, %v5691, 0
  %6169 = vmatprep.subr.bf16.mxu0 0
  %6170 = vmatpush1.bf16.msra.mxu0 0
  %6171 = vmatprep.subr.bf16.mxu0 0
  %6172 = vmatpush1.bf16.msra.mxu0 0
  %6173 = vmatprep.subr.bf16.mxu0 0
  %6174 = vmatpush1.bf16.msra.mxu0 0
  %6175 = vmatprep.subr.bf16.mxu0 0
  %6176 = vmatpush1.bf16.msra.mxu0 0
  %6177 = vmatprep.subr.bf16.mxu0 0
  %6178 = vmatpush1.bf16.msra.mxu0 %v6152
  %6179 = vmatprep.subr.bf16.mxu0 0
  %6180 = vmatpush1.bf16.msra.mxu0 %v6150
  %6181 = vmatprep.subr.bf16.mxu0 0
  %6182 = vmatpush1.bf16.msra.mxu0 %v6148
  %6183 = vmatprep.subr.bf16.mxu0 0
  %6184 = vmatpush1.bf16.msra.mxu0 %v6146
  %6185 = vmatprep.subr.bf16.mxu0 0
  %6186 = vmatpush2.bf16.msra.mxu0 0
  %6187 = vmatprep.subr.bf16.mxu0 0
  %6188 = vmatpush2.bf16.msra.mxu0 0
  %6189 = vmatprep.subr.bf16.mxu0 0
  %6190 = vmatpush2.bf16.msra.mxu0 0
  %6191 = vmatprep.subr.bf16.mxu0 0
  %6192 = vmatpush2.bf16.msra.mxu0 0
  %6193 = vmatprep.subr.bf16.mxu0 0
  %6194 = vmatpush2.bf16.msra.mxu0 0
  %6195 = vmatprep.subr.bf16.mxu0 0
  %6196 = vmatpush2.bf16.msra.mxu0 0
  %6197 = vmatprep.subr.bf16.mxu0 0
  %6198 = vmatpush2.bf16.msra.mxu0 0
  %6199 = vmatprep.subr.bf16.mxu0 0
  %6200 = vmatpush2.bf16.msra.mxu0 0
  %6201 = vmatprep.mubr.bf16.mxu0 0
  %6202 = vmatmul.mubr.bf16.gmra.mxu0 %v6158
  %v6203 = vpop.f32.mrf.mxu0
  %v6204 = vadd.f32 0.0, %v6203
  %v6205 = vpop.f32.mrf.mxu0
  %v6206 = vpop.f32.mrf.mxu0
  %v6207 = vadd.f32 0.0, %v6206
  %v6208 = vpop.f32.mrf.mxu0
  %6209 = vmatprep.mubr.bf16.mxu0 0
  %6210 = vmatmul.mubr.bf16.gmra.mxu0 %v6161
  %v6211 = vpop.f32.mrf.mxu0
  %v6212 = vadd.f32 0.0, %v6211
  %v6213 = vpop.f32.mrf.mxu0
  %v6214 = vpop.f32.mrf.mxu0
  %v6215 = vadd.f32 0.0, %v6214
  %v6216 = vpop.f32.mrf.mxu0
  %6217 = vmatprep.mubr.bf16.mxu0 0
  %6218 = vmatmul.mubr.bf16.gmra.mxu0 %v6164
  %v6219 = vpop.f32.mrf.mxu0
  %v6220 = vadd.f32 0.0, %v6219
  %v6221 = vpop.f32.mrf.mxu0
  %v6222 = vpop.f32.mrf.mxu0
  %v6223 = vadd.f32 0.0, %v6222
  %v6224 = vpop.f32.mrf.mxu0
  %6225 = vmatprep.mubr.bf16.mxu0 0
  %6226 = vmatmul.mubr.bf16.gmra.mxu0 %v6167
  %v6227 = vpop.f32.mrf.mxu0
  %v6228 = vadd.f32 0.0, %v6227
  %v6229 = vpop.f32.mrf.mxu0
  %v6230 = vpop.f32.mrf.mxu0
  %v6231 = vadd.f32 0.0, %v6230
  %v6232 = vpop.f32.mrf.mxu0
  %6233 = vdwg.mxu0
  %6234 = vrot.lane.b32.xlu0 %v1534, 56
  %v6235 = vpop.permute.xlu0 %6234
  %6236 = vrot.lane.b32.xlu0 %v1535, 56
  %v6237 = vpop.permute.xlu0 %6236
  %6238 = vrot.lane.b32.xlu0 %v1536, 56
  %v6239 = vpop.permute.xlu0 %6238
  %6240 = vrot.lane.b32.xlu0 %v1537, 56
  %v6241 = vpop.permute.xlu0 %6240
  %v6247 = vsel %vm2515, %v5692, 0
  %v6250 = vsel %vm2515, %v5693, 0
  %v6253 = vsel %vm2515, %v5694, 0
  %v6256 = vsel %vm2515, %v5695, 0
  %6258 = vmatprep.subr.bf16.mxu0 0
  %6259 = vmatpush1.bf16.msra.mxu0 0
  %6260 = vmatprep.subr.bf16.mxu0 0
  %6261 = vmatpush1.bf16.msra.mxu0 0
  %6262 = vmatprep.subr.bf16.mxu0 0
  %6263 = vmatpush1.bf16.msra.mxu0 0
  %6264 = vmatprep.subr.bf16.mxu0 0
  %6265 = vmatpush1.bf16.msra.mxu0 0
  %6266 = vmatprep.subr.bf16.mxu0 0
  %6267 = vmatpush1.bf16.msra.mxu0 %v6241
  %6268 = vmatprep.subr.bf16.mxu0 0
  %6269 = vmatpush1.bf16.msra.mxu0 %v6239
  %6270 = vmatprep.subr.bf16.mxu0 0
  %6271 = vmatpush1.bf16.msra.mxu0 %v6237
  %6272 = vmatprep.subr.bf16.mxu0 0
  %6273 = vmatpush1.bf16.msra.mxu0 %v6235
  %6274 = vmatprep.subr.bf16.mxu0 0
  %6275 = vmatpush2.bf16.msra.mxu0 0
  %6276 = vmatprep.subr.bf16.mxu0 0
  %6277 = vmatpush2.bf16.msra.mxu0 0
  %6278 = vmatprep.subr.bf16.mxu0 0
  %6279 = vmatpush2.bf16.msra.mxu0 0
  %6280 = vmatprep.subr.bf16.mxu0 0
  %6281 = vmatpush2.bf16.msra.mxu0 0
  %6282 = vmatprep.subr.bf16.mxu0 0
  %6283 = vmatpush2.bf16.msra.mxu0 0
  %6284 = vmatprep.subr.bf16.mxu0 0
  %6285 = vmatpush2.bf16.msra.mxu0 0
  %6286 = vmatprep.subr.bf16.mxu0 0
  %6287 = vmatpush2.bf16.msra.mxu0 0
  %6288 = vmatprep.subr.bf16.mxu0 0
  %6289 = vmatpush2.bf16.msra.mxu0 0
  %6290 = vmatprep.mubr.bf16.mxu0 0
  %6291 = vmatmul.mubr.bf16.gmra.mxu0 %v6247
  %v6292 = vpop.f32.mrf.mxu0
  %v6293 = vadd.f32 0.0, %v6292
  %v6294 = vpop.f32.mrf.mxu0
  %v6295 = vpop.f32.mrf.mxu0
  %v6296 = vadd.f32 0.0, %v6295
  %v6297 = vpop.f32.mrf.mxu0
  %6298 = vmatprep.mubr.bf16.mxu0 0
  %6299 = vmatmul.mubr.bf16.gmra.mxu0 %v6250
  %v6300 = vpop.f32.mrf.mxu0
  %v6301 = vadd.f32 0.0, %v6300
  %v6302 = vpop.f32.mrf.mxu0
  %v6303 = vpop.f32.mrf.mxu0
  %v6304 = vadd.f32 0.0, %v6303
  %v6305 = vpop.f32.mrf.mxu0
  %6306 = vmatprep.mubr.bf16.mxu0 0
  %6307 = vmatmul.mubr.bf16.gmra.mxu0 %v6253
  %v6308 = vpop.f32.mrf.mxu0
  %v6309 = vadd.f32 0.0, %v6308
  %v6310 = vpop.f32.mrf.mxu0
  %v6311 = vpop.f32.mrf.mxu0
  %v6312 = vadd.f32 0.0, %v6311
  %v6313 = vpop.f32.mrf.mxu0
  %6314 = vmatprep.mubr.bf16.mxu0 0
  %6315 = vmatmul.mubr.bf16.gmra.mxu0 %v6256
  %v6316 = vpop.f32.mrf.mxu0
  %v6317 = vadd.f32 0.0, %v6316
  %v6318 = vpop.f32.mrf.mxu0
  %v6319 = vpop.f32.mrf.mxu0
  %v6320 = vadd.f32 0.0, %v6319
  %v6321 = vpop.f32.mrf.mxu0
  %6322 = vdwg.mxu0
  %6323 = vrot.lane.b32.xlu0 %v1538, 56
  %v6324 = vpop.permute.xlu0 %6323
  %6325 = vrot.lane.b32.xlu0 %v1539, 56
  %v6326 = vpop.permute.xlu0 %6325
  %6327 = vrot.lane.b32.xlu0 %v1540, 56
  %v6328 = vpop.permute.xlu0 %6327
  %6329 = vrot.lane.b32.xlu0 %v1541, 56
  %v6330 = vpop.permute.xlu0 %6329
  %v6336 = vsel %vm2515, %v5696, 0
  %v6339 = vsel %vm2515, %v5697, 0
  %v6342 = vsel %vm2515, %v5698, 0
  %v6345 = vsel %vm2515, %v5699, 0
  %6347 = vmatprep.subr.bf16.mxu0 0
  %6348 = vmatpush1.bf16.msra.mxu0 0
  %6349 = vmatprep.subr.bf16.mxu0 0
  %6350 = vmatpush1.bf16.msra.mxu0 0
  %6351 = vmatprep.subr.bf16.mxu0 0
  %6352 = vmatpush1.bf16.msra.mxu0 0
  %6353 = vmatprep.subr.bf16.mxu0 0
  %6354 = vmatpush1.bf16.msra.mxu0 0
  %6355 = vmatprep.subr.bf16.mxu0 0
  %6356 = vmatpush1.bf16.msra.mxu0 %v6330
  %6357 = vmatprep.subr.bf16.mxu0 0
  %6358 = vmatpush1.bf16.msra.mxu0 %v6328
  %6359 = vmatprep.subr.bf16.mxu0 0
  %6360 = vmatpush1.bf16.msra.mxu0 %v6326
  %6361 = vmatprep.subr.bf16.mxu0 0
  %6362 = vmatpush1.bf16.msra.mxu0 %v6324
  %6363 = vmatprep.subr.bf16.mxu0 0
  %6364 = vmatpush2.bf16.msra.mxu0 0
  %6365 = vmatprep.subr.bf16.mxu0 0
  %6366 = vmatpush2.bf16.msra.mxu0 0
  %6367 = vmatprep.subr.bf16.mxu0 0
  %6368 = vmatpush2.bf16.msra.mxu0 0
  %6369 = vmatprep.subr.bf16.mxu0 0
  %6370 = vmatpush2.bf16.msra.mxu0 0
  %6371 = vmatprep.subr.bf16.mxu0 0
  %6372 = vmatpush2.bf16.msra.mxu0 0
  %6373 = vmatprep.subr.bf16.mxu0 0
  %6374 = vmatpush2.bf16.msra.mxu0 0
  %6375 = vmatprep.subr.bf16.mxu0 0
  %6376 = vmatpush2.bf16.msra.mxu0 0
  %6377 = vmatprep.subr.bf16.mxu0 0
  %6378 = vmatpush2.bf16.msra.mxu0 0
  %6379 = vmatprep.mubr.bf16.mxu0 0
  %6380 = vmatmul.mubr.bf16.gmra.mxu0 %v6336
  %v6381 = vpop.f32.mrf.mxu0
  %v6382 = vadd.f32 0.0, %v6381
  %v6383 = vpop.f32.mrf.mxu0
  %v6384 = vpop.f32.mrf.mxu0
  %v6385 = vadd.f32 0.0, %v6384
  %v6386 = vpop.f32.mrf.mxu0
  %6387 = vmatprep.mubr.bf16.mxu0 0
  %6388 = vmatmul.mubr.bf16.gmra.mxu0 %v6339
  %v6389 = vpop.f32.mrf.mxu0
  %v6390 = vadd.f32 0.0, %v6389
  %v6391 = vpop.f32.mrf.mxu0
  %v6392 = vpop.f32.mrf.mxu0
  %v6393 = vadd.f32 0.0, %v6392
  %v6394 = vpop.f32.mrf.mxu0
  %6395 = vmatprep.mubr.bf16.mxu0 0
  %6396 = vmatmul.mubr.bf16.gmra.mxu0 %v6342
  %v6397 = vpop.f32.mrf.mxu0
  %v6398 = vadd.f32 0.0, %v6397
  %v6399 = vpop.f32.mrf.mxu0
  %v6400 = vpop.f32.mrf.mxu0
  %v6401 = vadd.f32 0.0, %v6400
  %v6402 = vpop.f32.mrf.mxu0
  %6403 = vmatprep.mubr.bf16.mxu0 0
  %6404 = vmatmul.mubr.bf16.gmra.mxu0 %v6345
  %v6405 = vpop.f32.mrf.mxu0
  %v6406 = vadd.f32 0.0, %v6405
  %v6407 = vpop.f32.mrf.mxu0
  %v6408 = vpop.f32.mrf.mxu0
  %v6409 = vadd.f32 0.0, %v6408
  %v6410 = vpop.f32.mrf.mxu0
  %6411 = vdwg.mxu0
  %v6412 = vpack.c.bf16 %v5762, %v5759
  %v6413 = vpack.c.bf16 %v5770, %v5767
  %v6414 = vpack.c.bf16 %v5778, %v5775
  %v6415 = vpack.c.bf16 %v5786, %v5783
  %v6416 = vpack.c.bf16 %v5851, %v5848
  %v6417 = vpack.c.bf16 %v5859, %v5856
  %v6418 = vpack.c.bf16 %v5867, %v5864
  %v6419 = vpack.c.bf16 %v5875, %v5872
  %v6420 = vpack.c.bf16 %v5940, %v5937
  %v6421 = vpack.c.bf16 %v5948, %v5945
  %v6422 = vpack.c.bf16 %v5956, %v5953
  %v6423 = vpack.c.bf16 %v5964, %v5961
  %v6424 = vpack.c.bf16 %v6029, %v6026
  %v6425 = vpack.c.bf16 %v6037, %v6034
  %v6426 = vpack.c.bf16 %v6045, %v6042
  %v6427 = vpack.c.bf16 %v6053, %v6050
  %v6428 = vpack.c.bf16 %v6118, %v6115
  %v6429 = vpack.c.bf16 %v6126, %v6123
  %v6430 = vpack.c.bf16 %v6134, %v6131
  %v6431 = vpack.c.bf16 %v6142, %v6139
  %v6432 = vpack.c.bf16 %v6207, %v6204
  %v6433 = vpack.c.bf16 %v6215, %v6212
  %v6434 = vpack.c.bf16 %v6223, %v6220
  %v6435 = vpack.c.bf16 %v6231, %v6228
  %v6436 = vpack.c.bf16 %v6296, %v6293
  %v6437 = vpack.c.bf16 %v6304, %v6301
  %v6438 = vpack.c.bf16 %v6312, %v6309
  %v6439 = vpack.c.bf16 %v6320, %v6317
  %v6440 = vpack.c.bf16 %v6385, %v6382
  %v6441 = vpack.c.bf16 %v6393, %v6390
  %v6442 = vpack.c.bf16 %v6401, %v6398
  %v6443 = vpack.c.bf16 %v6409, %v6406
  %v6445 = vsel %vm1590, %v6412, 0
  %v6448 = vsel %vm1590, %v6413, 0
  %v6451 = vsel %vm1590, %v6414, 0
  %v6454 = vsel %vm1590, %v6415, 0
  %v6457 = vsel %vm1590, %v6416, 0
  %v6460 = vsel %vm1590, %v6417, 0
  %v6463 = vsel %vm1590, %v6418, 0
  %v6466 = vsel %vm1590, %v6419, 0
  %v6469 = vsel %vm1590, %v6420, 0
  %v6472 = vsel %vm1590, %v6421, 0
  %v6475 = vsel %vm1590, %v6422, 0
  %v6478 = vsel %vm1590, %v6423, 0
  %v6481 = vsel %vm1590, %v6424, 0
  %v6484 = vsel %vm1590, %v6425, 0
  %v6487 = vsel %vm1590, %v6426, 0
  %v6490 = vsel %vm1590, %v6427, 0
  %v6493 = vsel %vm1590, %v6428, 0
  %v6496 = vsel %vm1590, %v6429, 0
  %v6499 = vsel %vm1590, %v6430, 0
  %v6502 = vsel %vm1590, %v6431, 0
  %v6505 = vsel %vm1590, %v6432, 0
  %v6508 = vsel %vm1590, %v6433, 0
  %v6511 = vsel %vm1590, %v6434, 0
  %v6514 = vsel %vm1590, %v6435, 0
  %v6517 = vsel %vm1590, %v6436, 0
  %v6520 = vsel %vm1590, %v6437, 0
  %v6523 = vsel %vm1590, %v6438, 0
  %v6526 = vsel %vm1590, %v6439, 0
  %v6529 = vsel %vm1590, %v6440, 0
  %v6532 = vsel %vm1590, %v6441, 0
  %v6535 = vsel %vm1590, %v6442, 0
  %v6538 = vsel %vm1590, %v6443, 0
  %vm6540 = vcmask 1043456
  %v6542 = vsel %vm6540, %v1543, 0
  %6544 = vmatprep.subr.bf16.mxu0 0
  %6545 = vmatpush1.bf16.msra.mxu0 0
  %6546 = vmatprep.subr.bf16.mxu0 0
  %6547 = vmatpush1.bf16.msra.mxu0 0
  %6548 = vmatprep.subr.bf16.mxu0 0
  %6549 = vmatpush1.bf16.msra.mxu0 0
  %6550 = vmatprep.subr.bf16.mxu0 0
  %6551 = vmatpush1.bf16.msra.mxu0 0
  %6552 = vmatprep.subr.bf16.mxu0 0
  %6553 = vmatpush1.bf16.msra.mxu0 0
  %6554 = vmatprep.subr.bf16.mxu0 0
  %6555 = vmatpush1.bf16.msra.mxu0 0
  %6556 = vmatprep.subr.bf16.mxu0 0
  %6557 = vmatpush1.bf16.msra.mxu0 0
  %6558 = vmatprep.subr.bf16.mxu0 0
  %6559 = vmatpush1.bf16.msra.mxu0 %v6542
  %6560 = vmatprep.subr.bf16.mxu0 0
  %6561 = vmatpush2.bf16.msra.mxu0 0
  %6562 = vmatprep.subr.bf16.mxu0 0
  %6563 = vmatpush2.bf16.msra.mxu0 0
  %6564 = vmatprep.subr.bf16.mxu0 0
  %6565 = vmatpush2.bf16.msra.mxu0 0
  %6566 = vmatprep.subr.bf16.mxu0 0
  %6567 = vmatpush2.bf16.msra.mxu0 0
  %6568 = vmatprep.subr.bf16.mxu0 0
  %6569 = vmatpush2.bf16.msra.mxu0 0
  %6570 = vmatprep.subr.bf16.mxu0 0
  %6571 = vmatpush2.bf16.msra.mxu0 0
  %6572 = vmatprep.subr.bf16.mxu0 0
  %6573 = vmatpush2.bf16.msra.mxu0 0
  %6574 = vmatprep.subr.bf16.mxu0 0
  %6575 = vmatpush2.bf16.msra.mxu0 0
  %6576 = vmatprep.mubr.bf16.mxu0 0
  %6577 = vmatmul.mubr.bf16.gmra.mxu0 %v6445
  %v6578 = vpop.f32.mrf.mxu0
  %v6579 = vadd.f32 0.0, %v6578
  %v6580 = vpop.f32.mrf.mxu0
  %v6581 = vpop.f32.mrf.mxu0
  %v6582 = vadd.f32 0.0, %v6581
  %v6583 = vpop.f32.mrf.mxu0
  %6584 = vmatprep.mubr.bf16.mxu0 0
  %6585 = vmatmul.mubr.bf16.gmra.mxu0 %v6448
  %v6586 = vpop.f32.mrf.mxu0
  %v6587 = vadd.f32 0.0, %v6586
  %v6588 = vpop.f32.mrf.mxu0
  %v6589 = vpop.f32.mrf.mxu0
  %v6590 = vadd.f32 0.0, %v6589
  %v6591 = vpop.f32.mrf.mxu0
  %6592 = vmatprep.mubr.bf16.mxu0 0
  %6593 = vmatmul.mubr.bf16.gmra.mxu0 %v6451
  %v6594 = vpop.f32.mrf.mxu0
  %v6595 = vadd.f32 0.0, %v6594
  %v6596 = vpop.f32.mrf.mxu0
  %v6597 = vpop.f32.mrf.mxu0
  %v6598 = vadd.f32 0.0, %v6597
  %v6599 = vpop.f32.mrf.mxu0
  %6600 = vmatprep.mubr.bf16.mxu0 0
  %6601 = vmatmul.mubr.bf16.gmra.mxu0 %v6454
  %v6602 = vpop.f32.mrf.mxu0
  %v6603 = vadd.f32 0.0, %v6602
  %v6604 = vpop.f32.mrf.mxu0
  %v6605 = vpop.f32.mrf.mxu0
  %v6606 = vadd.f32 0.0, %v6605
  %v6607 = vpop.f32.mrf.mxu0
  %6608 = vmatprep.mubr.bf16.mxu0 0
  %6609 = vmatmul.mubr.bf16.gmra.mxu0 %v6457
  %v6610 = vpop.f32.mrf.mxu0
  %v6611 = vadd.f32 0.0, %v6610
  %v6612 = vpop.f32.mrf.mxu0
  %v6613 = vpop.f32.mrf.mxu0
  %v6614 = vadd.f32 0.0, %v6613
  %v6615 = vpop.f32.mrf.mxu0
  %6616 = vmatprep.mubr.bf16.mxu0 0
  %6617 = vmatmul.mubr.bf16.gmra.mxu0 %v6460
  %v6618 = vpop.f32.mrf.mxu0
  %v6619 = vadd.f32 0.0, %v6618
  %v6620 = vpop.f32.mrf.mxu0
  %v6621 = vpop.f32.mrf.mxu0
  %v6622 = vadd.f32 0.0, %v6621
  %v6623 = vpop.f32.mrf.mxu0
  %6624 = vmatprep.mubr.bf16.mxu0 0
  %6625 = vmatmul.mubr.bf16.gmra.mxu0 %v6463
  %v6626 = vpop.f32.mrf.mxu0
  %v6627 = vadd.f32 0.0, %v6626
  %v6628 = vpop.f32.mrf.mxu0
  %v6629 = vpop.f32.mrf.mxu0
  %v6630 = vadd.f32 0.0, %v6629
  %v6631 = vpop.f32.mrf.mxu0
  %6632 = vmatprep.mubr.bf16.mxu0 0
  %6633 = vmatmul.mubr.bf16.gmra.mxu0 %v6466
  %v6634 = vpop.f32.mrf.mxu0
  %v6635 = vadd.f32 0.0, %v6634
  %v6636 = vpop.f32.mrf.mxu0
  %v6637 = vpop.f32.mrf.mxu0
  %v6638 = vadd.f32 0.0, %v6637
  %v6639 = vpop.f32.mrf.mxu0
  %6640 = vmatprep.mubr.bf16.mxu0 0
  %6641 = vmatmul.mubr.bf16.gmra.mxu0 %v6469
  %v6642 = vpop.f32.mrf.mxu0
  %v6643 = vadd.f32 0.0, %v6642
  %v6644 = vpop.f32.mrf.mxu0
  %v6645 = vpop.f32.mrf.mxu0
  %v6646 = vadd.f32 0.0, %v6645
  %v6647 = vpop.f32.mrf.mxu0
  %6648 = vmatprep.mubr.bf16.mxu0 0
  %6649 = vmatmul.mubr.bf16.gmra.mxu0 %v6472
  %v6650 = vpop.f32.mrf.mxu0
  %v6651 = vadd.f32 0.0, %v6650
  %v6652 = vpop.f32.mrf.mxu0
  %v6653 = vpop.f32.mrf.mxu0
  %v6654 = vadd.f32 0.0, %v6653
  %v6655 = vpop.f32.mrf.mxu0
  %6656 = vmatprep.mubr.bf16.mxu0 0
  %6657 = vmatmul.mubr.bf16.gmra.mxu0 %v6475
  %v6658 = vpop.f32.mrf.mxu0
  %v6659 = vadd.f32 0.0, %v6658
  %v6660 = vpop.f32.mrf.mxu0
  %v6661 = vpop.f32.mrf.mxu0
  %v6662 = vadd.f32 0.0, %v6661
  %v6663 = vpop.f32.mrf.mxu0
  %6664 = vmatprep.mubr.bf16.mxu0 0
  %6665 = vmatmul.mubr.bf16.gmra.mxu0 %v6478
  %v6666 = vpop.f32.mrf.mxu0
  %v6667 = vadd.f32 0.0, %v6666
  %v6668 = vpop.f32.mrf.mxu0
  %v6669 = vpop.f32.mrf.mxu0
  %v6670 = vadd.f32 0.0, %v6669
  %v6671 = vpop.f32.mrf.mxu0
  %6672 = vmatprep.mubr.bf16.mxu0 0
  %6673 = vmatmul.mubr.bf16.gmra.mxu0 %v6481
  %v6674 = vpop.f32.mrf.mxu0
  %v6675 = vadd.f32 0.0, %v6674
  %v6676 = vpop.f32.mrf.mxu0
  %v6677 = vpop.f32.mrf.mxu0
  %v6678 = vadd.f32 0.0, %v6677
  %v6679 = vpop.f32.mrf.mxu0
  %6680 = vmatprep.mubr.bf16.mxu0 0
  %6681 = vmatmul.mubr.bf16.gmra.mxu0 %v6484
  %v6682 = vpop.f32.mrf.mxu0
  %v6683 = vadd.f32 0.0, %v6682
  %v6684 = vpop.f32.mrf.mxu0
  %v6685 = vpop.f32.mrf.mxu0
  %v6686 = vadd.f32 0.0, %v6685
  %v6687 = vpop.f32.mrf.mxu0
  %6688 = vmatprep.mubr.bf16.mxu0 0
  %6689 = vmatmul.mubr.bf16.gmra.mxu0 %v6487
  %v6690 = vpop.f32.mrf.mxu0
  %v6691 = vadd.f32 0.0, %v6690
  %v6692 = vpop.f32.mrf.mxu0
  %v6693 = vpop.f32.mrf.mxu0
  %v6694 = vadd.f32 0.0, %v6693
  %v6695 = vpop.f32.mrf.mxu0
  %6696 = vmatprep.mubr.bf16.mxu0 0
  %6697 = vmatmul.mubr.bf16.gmra.mxu0 %v6490
  %v6698 = vpop.f32.mrf.mxu0
  %v6699 = vadd.f32 0.0, %v6698
  %v6700 = vpop.f32.mrf.mxu0
  %v6701 = vpop.f32.mrf.mxu0
  %v6702 = vadd.f32 0.0, %v6701
  %v6703 = vpop.f32.mrf.mxu0
  %6704 = vmatprep.mubr.bf16.mxu0 0
  %6705 = vmatmul.mubr.bf16.gmra.mxu0 %v6493
  %v6706 = vpop.f32.mrf.mxu0
  %v6707 = vadd.f32 0.0, %v6706
  %v6708 = vpop.f32.mrf.mxu0
  %v6709 = vpop.f32.mrf.mxu0
  %v6710 = vadd.f32 0.0, %v6709
  %v6711 = vpop.f32.mrf.mxu0
  %6712 = vmatprep.mubr.bf16.mxu0 0
  %6713 = vmatmul.mubr.bf16.gmra.mxu0 %v6496
  %v6714 = vpop.f32.mrf.mxu0
  %v6715 = vadd.f32 0.0, %v6714
  %v6716 = vpop.f32.mrf.mxu0
  %v6717 = vpop.f32.mrf.mxu0
  %v6718 = vadd.f32 0.0, %v6717
  %v6719 = vpop.f32.mrf.mxu0
  %6720 = vmatprep.mubr.bf16.mxu0 0
  %6721 = vmatmul.mubr.bf16.gmra.mxu0 %v6499
  %v6722 = vpop.f32.mrf.mxu0
  %v6723 = vadd.f32 0.0, %v6722
  %v6724 = vpop.f32.mrf.mxu0
  %v6725 = vpop.f32.mrf.mxu0
  %v6726 = vadd.f32 0.0, %v6725
  %v6727 = vpop.f32.mrf.mxu0
  %6728 = vmatprep.mubr.bf16.mxu0 0
  %6729 = vmatmul.mubr.bf16.gmra.mxu0 %v6502
  %v6730 = vpop.f32.mrf.mxu0
  %v6731 = vadd.f32 0.0, %v6730
  %v6732 = vpop.f32.mrf.mxu0
  %v6733 = vpop.f32.mrf.mxu0
  %v6734 = vadd.f32 0.0, %v6733
  %v6735 = vpop.f32.mrf.mxu0
  %6736 = vmatprep.mubr.bf16.mxu0 0
  %6737 = vmatmul.mubr.bf16.gmra.mxu0 %v6505
  %v6738 = vpop.f32.mrf.mxu0
  %v6739 = vadd.f32 0.0, %v6738
  %v6740 = vpop.f32.mrf.mxu0
  %v6741 = vpop.f32.mrf.mxu0
  %v6742 = vadd.f32 0.0, %v6741
  %v6743 = vpop.f32.mrf.mxu0
  %6744 = vmatprep.mubr.bf16.mxu0 0
  %6745 = vmatmul.mubr.bf16.gmra.mxu0 %v6508
  %v6746 = vpop.f32.mrf.mxu0
  %v6747 = vadd.f32 0.0, %v6746
  %v6748 = vpop.f32.mrf.mxu0
  %v6749 = vpop.f32.mrf.mxu0
  %v6750 = vadd.f32 0.0, %v6749
  %v6751 = vpop.f32.mrf.mxu0
  %6752 = vmatprep.mubr.bf16.mxu0 0
  %6753 = vmatmul.mubr.bf16.gmra.mxu0 %v6511
  %v6754 = vpop.f32.mrf.mxu0
  %v6755 = vadd.f32 0.0, %v6754
  %v6756 = vpop.f32.mrf.mxu0
  %v6757 = vpop.f32.mrf.mxu0
  %v6758 = vadd.f32 0.0, %v6757
  %v6759 = vpop.f32.mrf.mxu0
  %6760 = vmatprep.mubr.bf16.mxu0 0
  %6761 = vmatmul.mubr.bf16.gmra.mxu0 %v6514
  %v6762 = vpop.f32.mrf.mxu0
  %v6763 = vadd.f32 0.0, %v6762
  %v6764 = vpop.f32.mrf.mxu0
  %v6765 = vpop.f32.mrf.mxu0
  %v6766 = vadd.f32 0.0, %v6765
  %v6767 = vpop.f32.mrf.mxu0
  %6768 = vmatprep.mubr.bf16.mxu0 0
  %6769 = vmatmul.mubr.bf16.gmra.mxu0 %v6517
  %v6770 = vpop.f32.mrf.mxu0
  %v6771 = vadd.f32 0.0, %v6770
  %v6772 = vpop.f32.mrf.mxu0
  %v6773 = vpop.f32.mrf.mxu0
  %v6774 = vadd.f32 0.0, %v6773
  %v6775 = vpop.f32.mrf.mxu0
  %6776 = vmatprep.mubr.bf16.mxu0 0
  %6777 = vmatmul.mubr.bf16.gmra.mxu0 %v6520
  %v6778 = vpop.f32.mrf.mxu0
  %v6779 = vadd.f32 0.0, %v6778
  %v6780 = vpop.f32.mrf.mxu0
  %v6781 = vpop.f32.mrf.mxu0
  %v6782 = vadd.f32 0.0, %v6781
  %v6783 = vpop.f32.mrf.mxu0
  %6784 = vmatprep.mubr.bf16.mxu0 0
  %6785 = vmatmul.mubr.bf16.gmra.mxu0 %v6523
  %v6786 = vpop.f32.mrf.mxu0
  %v6787 = vadd.f32 0.0, %v6786
  %v6788 = vpop.f32.mrf.mxu0
  %v6789 = vpop.f32.mrf.mxu0
  %v6790 = vadd.f32 0.0, %v6789
  %v6791 = vpop.f32.mrf.mxu0
  %6792 = vmatprep.mubr.bf16.mxu0 0
  %6793 = vmatmul.mubr.bf16.gmra.mxu0 %v6526
  %v6794 = vpop.f32.mrf.mxu0
  %v6795 = vadd.f32 0.0, %v6794
  %v6796 = vpop.f32.mrf.mxu0
  %v6797 = vpop.f32.mrf.mxu0
  %v6798 = vadd.f32 0.0, %v6797
  %v6799 = vpop.f32.mrf.mxu0
  %6800 = vmatprep.mubr.bf16.mxu0 0
  %6801 = vmatmul.mubr.bf16.gmra.mxu0 %v6529
  %v6802 = vpop.f32.mrf.mxu0
  %v6803 = vadd.f32 0.0, %v6802
  %v6804 = vpop.f32.mrf.mxu0
  %v6805 = vpop.f32.mrf.mxu0
  %v6806 = vadd.f32 0.0, %v6805
  %v6807 = vpop.f32.mrf.mxu0
  %6808 = vmatprep.mubr.bf16.mxu0 0
  %6809 = vmatmul.mubr.bf16.gmra.mxu0 %v6532
  %v6810 = vpop.f32.mrf.mxu0
  %v6811 = vadd.f32 0.0, %v6810
  %v6812 = vpop.f32.mrf.mxu0
  %v6813 = vpop.f32.mrf.mxu0
  %v6814 = vadd.f32 0.0, %v6813
  %v6815 = vpop.f32.mrf.mxu0
  %6816 = vmatprep.mubr.bf16.mxu0 0
  %6817 = vmatmul.mubr.bf16.gmra.mxu0 %v6535
  %v6818 = vpop.f32.mrf.mxu0
  %v6819 = vadd.f32 0.0, %v6818
  %v6820 = vpop.f32.mrf.mxu0
  %v6821 = vpop.f32.mrf.mxu0
  %v6822 = vadd.f32 0.0, %v6821
  %v6823 = vpop.f32.mrf.mxu0
  %6824 = vmatprep.mubr.bf16.mxu0 0
  %6825 = vmatmul.mubr.bf16.gmra.mxu0 %v6538
  %v6826 = vpop.f32.mrf.mxu0
  %v6827 = vadd.f32 0.0, %v6826
  %v6828 = vpop.f32.mrf.mxu0
  %v6829 = vpop.f32.mrf.mxu0
  %v6830 = vadd.f32 0.0, %v6829
  %v6831 = vpop.f32.mrf.mxu0
  %6832 = vdwg.mxu0
  %v6834 = vsel %vm1590, %v3964, 0
  %v6837 = vsel %vm1590, %v3965, 0
  %v6840 = vsel %vm1590, %v3966, 0
  %v6843 = vsel %vm1590, %v3967, 0
  %v6846 = vsel %vm1590, %v3968, 0
  %v6849 = vsel %vm1590, %v3969, 0
  %v6852 = vsel %vm1590, %v3970, 0
  %v6855 = vsel %vm1590, %v3971, 0
  %v6858 = vsel %vm1590, %v3972, 0
  %v6861 = vsel %vm1590, %v3973, 0
  %v6864 = vsel %vm1590, %v3974, 0
  %v6867 = vsel %vm1590, %v3975, 0
  %v6870 = vsel %vm1590, %v3976, 0
  %v6873 = vsel %vm1590, %v3977, 0
  %v6876 = vsel %vm1590, %v3978, 0
  %v6879 = vsel %vm1590, %v3979, 0
  %v6882 = vsel %vm1590, %v3980, 0
  %v6885 = vsel %vm1590, %v3981, 0
  %v6888 = vsel %vm1590, %v3982, 0
  %v6891 = vsel %vm1590, %v3983, 0
  %v6894 = vsel %vm1590, %v3984, 0
  %v6897 = vsel %vm1590, %v3985, 0
  %v6900 = vsel %vm1590, %v3986, 0
  %v6903 = vsel %vm1590, %v3987, 0
  %v6906 = vsel %vm1590, %v3988, 0
  %v6909 = vsel %vm1590, %v3989, 0
  %v6912 = vsel %vm1590, %v3990, 0
  %v6915 = vsel %vm1590, %v3991, 0
  %v6918 = vsel %vm1590, %v3992, 0
  %v6921 = vsel %vm1590, %v3993, 0
  %v6924 = vsel %vm1590, %v3994, 0
  %v6927 = vsel %vm1590, %v3995, 0
  %v6930 = vsel %vm6540, %v1542, 0
  %6932 = vmatprep.subr.bf16.mxu0 0
  %6933 = vmatpush1.bf16.msra.mxu0 0
  %6934 = vmatprep.subr.bf16.mxu0 0
  %6935 = vmatpush1.bf16.msra.mxu0 0
  %6936 = vmatprep.subr.bf16.mxu0 0
  %6937 = vmatpush1.bf16.msra.mxu0 0
  %6938 = vmatprep.subr.bf16.mxu0 0
  %6939 = vmatpush1.bf16.msra.mxu0 0
  %6940 = vmatprep.subr.bf16.mxu0 0
  %6941 = vmatpush1.bf16.msra.mxu0 0
  %6942 = vmatprep.subr.bf16.mxu0 0
  %6943 = vmatpush1.bf16.msra.mxu0 0
  %6944 = vmatprep.subr.bf16.mxu0 0
  %6945 = vmatpush1.bf16.msra.mxu0 0
  %6946 = vmatprep.subr.bf16.mxu0 0
  %6947 = vmatpush1.bf16.msra.mxu0 %v6930
  %6948 = vmatprep.subr.bf16.mxu0 0
  %6949 = vmatpush2.bf16.msra.mxu0 0
  %6950 = vmatprep.subr.bf16.mxu0 0
  %6951 = vmatpush2.bf16.msra.mxu0 0
  %6952 = vmatprep.subr.bf16.mxu0 0
  %6953 = vmatpush2.bf16.msra.mxu0 0
  %6954 = vmatprep.subr.bf16.mxu0 0
  %6955 = vmatpush2.bf16.msra.mxu0 0
  %6956 = vmatprep.subr.bf16.mxu0 0
  %6957 = vmatpush2.bf16.msra.mxu0 0
  %6958 = vmatprep.subr.bf16.mxu0 0
  %6959 = vmatpush2.bf16.msra.mxu0 0
  %6960 = vmatprep.subr.bf16.mxu0 0
  %6961 = vmatpush2.bf16.msra.mxu0 0
  %6962 = vmatprep.subr.bf16.mxu0 0
  %6963 = vmatpush2.bf16.msra.mxu0 0
  %6964 = vmatprep.mubr.bf16.mxu0 0
  %6965 = vmatmul.mubr.bf16.gmra.mxu0 %v6834
  %v6966 = vpop.f32.mrf.mxu0
  %v6967 = vadd.f32 %v6579, %v6966
  %v6968 = vpop.f32.mrf.mxu0
  %v6969 = vpop.f32.mrf.mxu0
  %v6970 = vadd.f32 %v6582, %v6969
  %v6971 = vpop.f32.mrf.mxu0
  %6972 = vmatprep.mubr.bf16.mxu0 0
  %6973 = vmatmul.mubr.bf16.gmra.mxu0 %v6837
  %v6974 = vpop.f32.mrf.mxu0
  %v6975 = vadd.f32 %v6587, %v6974
  %v6976 = vpop.f32.mrf.mxu0
  %v6977 = vpop.f32.mrf.mxu0
  %v6978 = vadd.f32 %v6590, %v6977
  %v6979 = vpop.f32.mrf.mxu0
  %6980 = vmatprep.mubr.bf16.mxu0 0
  %6981 = vmatmul.mubr.bf16.gmra.mxu0 %v6840
  %v6982 = vpop.f32.mrf.mxu0
  %v6983 = vadd.f32 %v6595, %v6982
  %v6984 = vpop.f32.mrf.mxu0
  %v6985 = vpop.f32.mrf.mxu0
  %v6986 = vadd.f32 %v6598, %v6985
  %v6987 = vpop.f32.mrf.mxu0
  %6988 = vmatprep.mubr.bf16.mxu0 0
  %6989 = vmatmul.mubr.bf16.gmra.mxu0 %v6843
  %v6990 = vpop.f32.mrf.mxu0
  %v6991 = vadd.f32 %v6603, %v6990
  %v6992 = vpop.f32.mrf.mxu0
  %v6993 = vpop.f32.mrf.mxu0
  %v6994 = vadd.f32 %v6606, %v6993
  %v6995 = vpop.f32.mrf.mxu0
  %6996 = vmatprep.mubr.bf16.mxu0 0
  %6997 = vmatmul.mubr.bf16.gmra.mxu0 %v6846
  %v6998 = vpop.f32.mrf.mxu0
  %v6999 = vadd.f32 %v6611, %v6998
  %v7000 = vpop.f32.mrf.mxu0
  %v7001 = vpop.f32.mrf.mxu0
  %v7002 = vadd.f32 %v6614, %v7001
  %v7003 = vpop.f32.mrf.mxu0
  %7004 = vmatprep.mubr.bf16.mxu0 0
  %7005 = vmatmul.mubr.bf16.gmra.mxu0 %v6849
  %v7006 = vpop.f32.mrf.mxu0
  %v7007 = vadd.f32 %v6619, %v7006
  %v7008 = vpop.f32.mrf.mxu0
  %v7009 = vpop.f32.mrf.mxu0
  %v7010 = vadd.f32 %v6622, %v7009
  %v7011 = vpop.f32.mrf.mxu0
  %7012 = vmatprep.mubr.bf16.mxu0 0
  %7013 = vmatmul.mubr.bf16.gmra.mxu0 %v6852
  %v7014 = vpop.f32.mrf.mxu0
  %v7015 = vadd.f32 %v6627, %v7014
  %v7016 = vpop.f32.mrf.mxu0
  %v7017 = vpop.f32.mrf.mxu0
  %v7018 = vadd.f32 %v6630, %v7017
  %v7019 = vpop.f32.mrf.mxu0
  %7020 = vmatprep.mubr.bf16.mxu0 0
  %7021 = vmatmul.mubr.bf16.gmra.mxu0 %v6855
  %v7022 = vpop.f32.mrf.mxu0
  %v7023 = vadd.f32 %v6635, %v7022
  %v7024 = vpop.f32.mrf.mxu0
  %v7025 = vpop.f32.mrf.mxu0
  %v7026 = vadd.f32 %v6638, %v7025
  %v7027 = vpop.f32.mrf.mxu0
  %7028 = vmatprep.mubr.bf16.mxu0 0
  %7029 = vmatmul.mubr.bf16.gmra.mxu0 %v6858
  %v7030 = vpop.f32.mrf.mxu0
  %v7031 = vadd.f32 %v6643, %v7030
  %v7032 = vpop.f32.mrf.mxu0
  %v7033 = vpop.f32.mrf.mxu0
  %v7034 = vadd.f32 %v6646, %v7033
  %v7035 = vpop.f32.mrf.mxu0
  %7036 = vmatprep.mubr.bf16.mxu0 0
  %7037 = vmatmul.mubr.bf16.gmra.mxu0 %v6861
  %v7038 = vpop.f32.mrf.mxu0
  %v7039 = vadd.f32 %v6651, %v7038
  %v7040 = vpop.f32.mrf.mxu0
  %v7041 = vpop.f32.mrf.mxu0
  %v7042 = vadd.f32 %v6654, %v7041
  %v7043 = vpop.f32.mrf.mxu0
  %7044 = vmatprep.mubr.bf16.mxu0 0
  %7045 = vmatmul.mubr.bf16.gmra.mxu0 %v6864
  %v7046 = vpop.f32.mrf.mxu0
  %v7047 = vadd.f32 %v6659, %v7046
  %v7048 = vpop.f32.mrf.mxu0
  %v7049 = vpop.f32.mrf.mxu0
  %v7050 = vadd.f32 %v6662, %v7049
  %v7051 = vpop.f32.mrf.mxu0
  %7052 = vmatprep.mubr.bf16.mxu0 0
  %7053 = vmatmul.mubr.bf16.gmra.mxu0 %v6867
  %v7054 = vpop.f32.mrf.mxu0
  %v7055 = vadd.f32 %v6667, %v7054
  %v7056 = vpop.f32.mrf.mxu0
  %v7057 = vpop.f32.mrf.mxu0
  %v7058 = vadd.f32 %v6670, %v7057
  %v7059 = vpop.f32.mrf.mxu0
  %7060 = vmatprep.mubr.bf16.mxu0 0
  %7061 = vmatmul.mubr.bf16.gmra.mxu0 %v6870
  %v7062 = vpop.f32.mrf.mxu0
  %v7063 = vadd.f32 %v6675, %v7062
  %v7064 = vpop.f32.mrf.mxu0
  %v7065 = vpop.f32.mrf.mxu0
  %v7066 = vadd.f32 %v6678, %v7065
  %v7067 = vpop.f32.mrf.mxu0
  %7068 = vmatprep.mubr.bf16.mxu0 0
  %7069 = vmatmul.mubr.bf16.gmra.mxu0 %v6873
  %v7070 = vpop.f32.mrf.mxu0
  %v7071 = vadd.f32 %v6683, %v7070
  %v7072 = vpop.f32.mrf.mxu0
  %v7073 = vpop.f32.mrf.mxu0
  %v7074 = vadd.f32 %v6686, %v7073
  %v7075 = vpop.f32.mrf.mxu0
  %7076 = vmatprep.mubr.bf16.mxu0 0
  %7077 = vmatmul.mubr.bf16.gmra.mxu0 %v6876
  %v7078 = vpop.f32.mrf.mxu0
  %v7079 = vadd.f32 %v6691, %v7078
  %v7080 = vpop.f32.mrf.mxu0
  %v7081 = vpop.f32.mrf.mxu0
  %v7082 = vadd.f32 %v6694, %v7081
  %v7083 = vpop.f32.mrf.mxu0
  %7084 = vmatprep.mubr.bf16.mxu0 0
  %7085 = vmatmul.mubr.bf16.gmra.mxu0 %v6879
  %v7086 = vpop.f32.mrf.mxu0
  %v7087 = vadd.f32 %v6699, %v7086
  %v7088 = vpop.f32.mrf.mxu0
  %v7089 = vpop.f32.mrf.mxu0
  %v7090 = vadd.f32 %v6702, %v7089
  %v7091 = vpop.f32.mrf.mxu0
  %7092 = vmatprep.mubr.bf16.mxu0 0
  %7093 = vmatmul.mubr.bf16.gmra.mxu0 %v6882
  %v7094 = vpop.f32.mrf.mxu0
  %v7095 = vadd.f32 %v6707, %v7094
  %v7096 = vpop.f32.mrf.mxu0
  %v7097 = vpop.f32.mrf.mxu0
  %v7098 = vadd.f32 %v6710, %v7097
  %v7099 = vpop.f32.mrf.mxu0
  %7100 = vmatprep.mubr.bf16.mxu0 0
  %7101 = vmatmul.mubr.bf16.gmra.mxu0 %v6885
  %v7102 = vpop.f32.mrf.mxu0
  %v7103 = vadd.f32 %v6715, %v7102
  %v7104 = vpop.f32.mrf.mxu0
  %v7105 = vpop.f32.mrf.mxu0
  %v7106 = vadd.f32 %v6718, %v7105
  %v7107 = vpop.f32.mrf.mxu0
  %7108 = vmatprep.mubr.bf16.mxu0 0
  %7109 = vmatmul.mubr.bf16.gmra.mxu0 %v6888
  %v7110 = vpop.f32.mrf.mxu0
  %v7111 = vadd.f32 %v6723, %v7110
  %v7112 = vpop.f32.mrf.mxu0
  %v7113 = vpop.f32.mrf.mxu0
  %v7114 = vadd.f32 %v6726, %v7113
  %v7115 = vpop.f32.mrf.mxu0
  %7116 = vmatprep.mubr.bf16.mxu0 0
  %7117 = vmatmul.mubr.bf16.gmra.mxu0 %v6891
  %v7118 = vpop.f32.mrf.mxu0
  %v7119 = vadd.f32 %v6731, %v7118
  %v7120 = vpop.f32.mrf.mxu0
  %v7121 = vpop.f32.mrf.mxu0
  %v7122 = vadd.f32 %v6734, %v7121
  %v7123 = vpop.f32.mrf.mxu0
  %7124 = vmatprep.mubr.bf16.mxu0 0
  %7125 = vmatmul.mubr.bf16.gmra.mxu0 %v6894
  %v7126 = vpop.f32.mrf.mxu0
  %v7127 = vadd.f32 %v6739, %v7126
  %v7128 = vpop.f32.mrf.mxu0
  %v7129 = vpop.f32.mrf.mxu0
  %v7130 = vadd.f32 %v6742, %v7129
  %v7131 = vpop.f32.mrf.mxu0
  %7132 = vmatprep.mubr.bf16.mxu0 0
  %7133 = vmatmul.mubr.bf16.gmra.mxu0 %v6897
  %v7134 = vpop.f32.mrf.mxu0
  %v7135 = vadd.f32 %v6747, %v7134
  %v7136 = vpop.f32.mrf.mxu0
  %v7137 = vpop.f32.mrf.mxu0
  %v7138 = vadd.f32 %v6750, %v7137
  %v7139 = vpop.f32.mrf.mxu0
  %7140 = vmatprep.mubr.bf16.mxu0 0
  %7141 = vmatmul.mubr.bf16.gmra.mxu0 %v6900
  %v7142 = vpop.f32.mrf.mxu0
  %v7143 = vadd.f32 %v6755, %v7142
  %v7144 = vpop.f32.mrf.mxu0
  %v7145 = vpop.f32.mrf.mxu0
  %v7146 = vadd.f32 %v6758, %v7145
  %v7147 = vpop.f32.mrf.mxu0
  %7148 = vmatprep.mubr.bf16.mxu0 0
  %7149 = vmatmul.mubr.bf16.gmra.mxu0 %v6903
  %v7150 = vpop.f32.mrf.mxu0
  %v7151 = vadd.f32 %v6763, %v7150
  %v7152 = vpop.f32.mrf.mxu0
  %v7153 = vpop.f32.mrf.mxu0
  %v7154 = vadd.f32 %v6766, %v7153
  %v7155 = vpop.f32.mrf.mxu0
  %7156 = vmatprep.mubr.bf16.mxu0 0
  %7157 = vmatmul.mubr.bf16.gmra.mxu0 %v6906
  %v7158 = vpop.f32.mrf.mxu0
  %v7159 = vadd.f32 %v6771, %v7158
  %v7160 = vpop.f32.mrf.mxu0
  %v7161 = vpop.f32.mrf.mxu0
  %v7162 = vadd.f32 %v6774, %v7161
  %v7163 = vpop.f32.mrf.mxu0
  %7164 = vmatprep.mubr.bf16.mxu0 0
  %7165 = vmatmul.mubr.bf16.gmra.mxu0 %v6909
  %v7166 = vpop.f32.mrf.mxu0
  %v7167 = vadd.f32 %v6779, %v7166
  %v7168 = vpop.f32.mrf.mxu0
  %v7169 = vpop.f32.mrf.mxu0
  %v7170 = vadd.f32 %v6782, %v7169
  %v7171 = vpop.f32.mrf.mxu0
  %7172 = vmatprep.mubr.bf16.mxu0 0
  %7173 = vmatmul.mubr.bf16.gmra.mxu0 %v6912
  %v7174 = vpop.f32.mrf.mxu0
  %v7175 = vadd.f32 %v6787, %v7174
  %v7176 = vpop.f32.mrf.mxu0
  %v7177 = vpop.f32.mrf.mxu0
  %v7178 = vadd.f32 %v6790, %v7177
  %v7179 = vpop.f32.mrf.mxu0
  %7180 = vmatprep.mubr.bf16.mxu0 0
  %7181 = vmatmul.mubr.bf16.gmra.mxu0 %v6915
  %v7182 = vpop.f32.mrf.mxu0
  %v7183 = vadd.f32 %v6795, %v7182
  %v7184 = vpop.f32.mrf.mxu0
  %v7185 = vpop.f32.mrf.mxu0
  %v7186 = vadd.f32 %v6798, %v7185
  %v7187 = vpop.f32.mrf.mxu0
  %7188 = vmatprep.mubr.bf16.mxu0 0
  %7189 = vmatmul.mubr.bf16.gmra.mxu0 %v6918
  %v7190 = vpop.f32.mrf.mxu0
  %v7191 = vadd.f32 %v6803, %v7190
  %v7192 = vpop.f32.mrf.mxu0
  %v7193 = vpop.f32.mrf.mxu0
  %v7194 = vadd.f32 %v6806, %v7193
  %v7195 = vpop.f32.mrf.mxu0
  %7196 = vmatprep.mubr.bf16.mxu0 0
  %7197 = vmatmul.mubr.bf16.gmra.mxu0 %v6921
  %v7198 = vpop.f32.mrf.mxu0
  %v7199 = vadd.f32 %v6811, %v7198
  %v7200 = vpop.f32.mrf.mxu0
  %v7201 = vpop.f32.mrf.mxu0
  %v7202 = vadd.f32 %v6814, %v7201
  %v7203 = vpop.f32.mrf.mxu0
  %7204 = vmatprep.mubr.bf16.mxu0 0
  %7205 = vmatmul.mubr.bf16.gmra.mxu0 %v6924
  %v7206 = vpop.f32.mrf.mxu0
  %v7207 = vadd.f32 %v6819, %v7206
  %v7208 = vpop.f32.mrf.mxu0
  %v7209 = vpop.f32.mrf.mxu0
  %v7210 = vadd.f32 %v6822, %v7209
  %v7211 = vpop.f32.mrf.mxu0
  %7212 = vmatprep.mubr.bf16.mxu0 0
  %7213 = vmatmul.mubr.bf16.gmra.mxu0 %v6927
  %v7214 = vpop.f32.mrf.mxu0
  %v7215 = vadd.f32 %v6827, %v7214
  %v7216 = vpop.f32.mrf.mxu0
  %v7217 = vpop.f32.mrf.mxu0
  %v7218 = vadd.f32 %v6830, %v7217
  %v7219 = vpop.f32.mrf.mxu0
  %7220 = vdwg.mxu0
  %7221 = vrot.lane.b32.xlu0 %v1510, 112
  %v7222 = vpop.permute.xlu0 %7221
  %7223 = vrot.lane.b32.xlu0 %v1511, 112
  %v7224 = vpop.permute.xlu0 %7223
  %7225 = vrot.lane.b32.xlu0 %v1512, 112
  %v7226 = vpop.permute.xlu0 %7225
  %7227 = vrot.lane.b32.xlu0 %v1513, 112
  %v7228 = vpop.permute.xlu0 %7227
  %7229 = vrot.lane.b32.xlu0 %v1510, 80
  %v7230 = vpop.permute.xlu0 %7229
  %7231 = vrot.lane.b32.xlu0 %v1511, 80
  %v7232 = vpop.permute.xlu0 %7231
  %7233 = vrot.lane.b32.xlu0 %v1512, 80
  %v7234 = vpop.permute.xlu0 %7233
  %7235 = vrot.lane.b32.xlu0 %v1513, 80
  %v7236 = vpop.permute.xlu0 %7235
  %v7238 = vsel %vm1590, %v7222, 0
  %v7241 = vsel %vm1590, %v7224, 0
  %v7244 = vsel %vm1590, %v7226, 0
  %v7247 = vsel %vm1590, %v7228, 0
  %v7250 = vsel %vm1590, %v7230, 0
  %v7253 = vsel %vm1590, %v7232, 0
  %v7256 = vsel %vm1590, %v7234, 0
  %v7259 = vsel %vm1590, %v7236, 0
  %7261 = vmatprep.subr.bf16.mxu0 0
  %7262 = vmatpush1.bf16.xpose.msra.mxu0 0
  %7263 = vmatprep.subr.bf16.mxu0 0
  %7264 = vmatpush1.bf16.xpose.msra.mxu0 0
  %7265 = vmatprep.subr.bf16.mxu0 0
  %7266 = vmatpush1.bf16.xpose.msra.mxu0 0
  %7267 = vmatprep.subr.bf16.mxu0 0
  %7268 = vmatpush1.bf16.xpose.msra.mxu0 0
  %7269 = vmatprep.subr.bf16.mxu0 0
  %7270 = vmatpush1.bf16.xpose.msra.mxu0 %v7259
  %7271 = vmatprep.subr.bf16.mxu0 0
  %7272 = vmatpush1.bf16.xpose.msra.mxu0 %v7256
  %7273 = vmatprep.subr.bf16.mxu0 0
  %7274 = vmatpush1.bf16.xpose.msra.mxu0 %v7253
  %7275 = vmatprep.subr.bf16.mxu0 0
  %7276 = vmatpush1.bf16.xpose.msra.mxu0 %v7250
  %7277 = vmatprep.subr.bf16.mxu0 0
  %7278 = vmatpush2.bf16.xpose.msra.mxu0 0
  %7279 = vmatprep.subr.bf16.mxu0 0
  %7280 = vmatpush2.bf16.xpose.msra.mxu0 0
  %7281 = vmatprep.subr.bf16.mxu0 0
  %7282 = vmatpush2.bf16.xpose.msra.mxu0 0
  %7283 = vmatprep.subr.bf16.mxu0 0
  %7284 = vmatpush2.bf16.xpose.msra.mxu0 0
  %7285 = vmatprep.subr.bf16.mxu0 0
  %7286 = vmatpush2.bf16.xpose.msra.mxu0 0
  %7287 = vmatprep.subr.bf16.mxu0 0
  %7288 = vmatpush2.bf16.xpose.msra.mxu0 0
  %7289 = vmatprep.subr.bf16.mxu0 0
  %7290 = vmatpush2.bf16.xpose.msra.mxu0 0
  %7291 = vmatprep.subr.bf16.mxu0 0
  %7292 = vmatpush2.bf16.xpose.msra.mxu0 0
  %7293 = vmatprep.mubr.bf16.mxu0 0
  %7294 = vmatmul.mubr.bf16.gmra.mxu0 %v7238
  %v7295 = vpop.f32.mrf.mxu0
  %v7296 = vadd.f32 0.0, %v7295
  %v7297 = vpop.f32.mrf.mxu0
  %v7298 = vpop.f32.mrf.mxu0
  %v7299 = vadd.f32 0.0, %v7298
  %v7300 = vpop.f32.mrf.mxu0
  %7301 = vmatprep.mubr.bf16.mxu0 0
  %7302 = vmatmul.mubr.bf16.gmra.mxu0 %v7241
  %v7303 = vpop.f32.mrf.mxu0
  %v7304 = vadd.f32 0.0, %v7303
  %v7305 = vpop.f32.mrf.mxu0
  %v7306 = vpop.f32.mrf.mxu0
  %v7307 = vadd.f32 0.0, %v7306
  %v7308 = vpop.f32.mrf.mxu0
  %7309 = vmatprep.mubr.bf16.mxu0 0
  %7310 = vmatmul.mubr.bf16.gmra.mxu0 %v7244
  %v7311 = vpop.f32.mrf.mxu0
  %v7312 = vadd.f32 0.0, %v7311
  %v7313 = vpop.f32.mrf.mxu0
  %v7314 = vpop.f32.mrf.mxu0
  %v7315 = vadd.f32 0.0, %v7314
  %v7316 = vpop.f32.mrf.mxu0
  %7317 = vmatprep.mubr.bf16.mxu0 0
  %7318 = vmatmul.mubr.bf16.gmra.mxu0 %v7247
  %v7319 = vpop.f32.mrf.mxu0
  %v7320 = vadd.f32 0.0, %v7319
  %v7321 = vpop.f32.mrf.mxu0
  %v7322 = vpop.f32.mrf.mxu0
  %v7323 = vadd.f32 0.0, %v7322
  %v7324 = vpop.f32.mrf.mxu0
  %7325 = vdwg.mxu0
  %7326 = vrot.lane.b32.xlu0 %v1514, 112
  %v7327 = vpop.permute.xlu0 %7326
  %7328 = vrot.lane.b32.xlu0 %v1515, 112
  %v7329 = vpop.permute.xlu0 %7328
  %7330 = vrot.lane.b32.xlu0 %v1516, 112
  %v7331 = vpop.permute.xlu0 %7330
  %7332 = vrot.lane.b32.xlu0 %v1517, 112
  %v7333 = vpop.permute.xlu0 %7332
  %7334 = vrot.lane.b32.xlu0 %v1514, 80
  %v7335 = vpop.permute.xlu0 %7334
  %7336 = vrot.lane.b32.xlu0 %v1515, 80
  %v7337 = vpop.permute.xlu0 %7336
  %7338 = vrot.lane.b32.xlu0 %v1516, 80
  %v7339 = vpop.permute.xlu0 %7338
  %7340 = vrot.lane.b32.xlu0 %v1517, 80
  %v7341 = vpop.permute.xlu0 %7340
  %v7343 = vsel %vm1590, %v7327, 0
  %v7346 = vsel %vm1590, %v7329, 0
  %v7349 = vsel %vm1590, %v7331, 0
  %v7352 = vsel %vm1590, %v7333, 0
  %v7355 = vsel %vm1590, %v7335, 0
  %v7358 = vsel %vm1590, %v7337, 0
  %v7361 = vsel %vm1590, %v7339, 0
  %v7364 = vsel %vm1590, %v7341, 0
  %7366 = vmatprep.subr.bf16.mxu0 0
  %7367 = vmatpush1.bf16.xpose.msra.mxu0 0
  %7368 = vmatprep.subr.bf16.mxu0 0
  %7369 = vmatpush1.bf16.xpose.msra.mxu0 0
  %7370 = vmatprep.subr.bf16.mxu0 0
  %7371 = vmatpush1.bf16.xpose.msra.mxu0 0
  %7372 = vmatprep.subr.bf16.mxu0 0
  %7373 = vmatpush1.bf16.xpose.msra.mxu0 0
  %7374 = vmatprep.subr.bf16.mxu0 0
  %7375 = vmatpush1.bf16.xpose.msra.mxu0 %v7364
  %7376 = vmatprep.subr.bf16.mxu0 0
  %7377 = vmatpush1.bf16.xpose.msra.mxu0 %v7361
  %7378 = vmatprep.subr.bf16.mxu0 0
  %7379 = vmatpush1.bf16.xpose.msra.mxu0 %v7358
  %7380 = vmatprep.subr.bf16.mxu0 0
  %7381 = vmatpush1.bf16.xpose.msra.mxu0 %v7355
  %7382 = vmatprep.subr.bf16.mxu0 0
  %7383 = vmatpush2.bf16.xpose.msra.mxu0 0
  %7384 = vmatprep.subr.bf16.mxu0 0
  %7385 = vmatpush2.bf16.xpose.msra.mxu0 0
  %7386 = vmatprep.subr.bf16.mxu0 0
  %7387 = vmatpush2.bf16.xpose.msra.mxu0 0
  %7388 = vmatprep.subr.bf16.mxu0 0
  %7389 = vmatpush2.bf16.xpose.msra.mxu0 0
  %7390 = vmatprep.subr.bf16.mxu0 0
  %7391 = vmatpush2.bf16.xpose.msra.mxu0 0
  %7392 = vmatprep.subr.bf16.mxu0 0
  %7393 = vmatpush2.bf16.xpose.msra.mxu0 0
  %7394 = vmatprep.subr.bf16.mxu0 0
  %7395 = vmatpush2.bf16.xpose.msra.mxu0 0
  %7396 = vmatprep.subr.bf16.mxu0 0
  %7397 = vmatpush2.bf16.xpose.msra.mxu0 0
  %7398 = vmatprep.mubr.bf16.mxu0 0
  %7399 = vmatmul.mubr.bf16.gmra.mxu0 %v7343
  %v7400 = vpop.f32.mrf.mxu0
  %v7401 = vadd.f32 0.0, %v7400
  %v7402 = vpop.f32.mrf.mxu0
  %v7403 = vpop.f32.mrf.mxu0
  %v7404 = vadd.f32 0.0, %v7403
  %v7405 = vpop.f32.mrf.mxu0
  %7406 = vmatprep.mubr.bf16.mxu0 0
  %7407 = vmatmul.mubr.bf16.gmra.mxu0 %v7346
  %v7408 = vpop.f32.mrf.mxu0
  %v7409 = vadd.f32 0.0, %v7408
  %v7410 = vpop.f32.mrf.mxu0
  %v7411 = vpop.f32.mrf.mxu0
  %v7412 = vadd.f32 0.0, %v7411
  %v7413 = vpop.f32.mrf.mxu0
  %7414 = vmatprep.mubr.bf16.mxu0 0
  %7415 = vmatmul.mubr.bf16.gmra.mxu0 %v7349
  %v7416 = vpop.f32.mrf.mxu0
  %v7417 = vadd.f32 0.0, %v7416
  %v7418 = vpop.f32.mrf.mxu0
  %v7419 = vpop.f32.mrf.mxu0
  %v7420 = vadd.f32 0.0, %v7419
  %v7421 = vpop.f32.mrf.mxu0
  %7422 = vmatprep.mubr.bf16.mxu0 0
  %7423 = vmatmul.mubr.bf16.gmra.mxu0 %v7352
  %v7424 = vpop.f32.mrf.mxu0
  %v7425 = vadd.f32 0.0, %v7424
  %v7426 = vpop.f32.mrf.mxu0
  %v7427 = vpop.f32.mrf.mxu0
  %v7428 = vadd.f32 0.0, %v7427
  %v7429 = vpop.f32.mrf.mxu0
  %7430 = vdwg.mxu0
  %7431 = vrot.lane.b32.xlu0 %v1518, 112
  %v7432 = vpop.permute.xlu0 %7431
  %7433 = vrot.lane.b32.xlu0 %v1519, 112
  %v7434 = vpop.permute.xlu0 %7433
  %7435 = vrot.lane.b32.xlu0 %v1520, 112
  %v7436 = vpop.permute.xlu0 %7435
  %7437 = vrot.lane.b32.xlu0 %v1521, 112
  %v7438 = vpop.permute.xlu0 %7437
  %7439 = vrot.lane.b32.xlu0 %v1518, 80
  %v7440 = vpop.permute.xlu0 %7439
  %7441 = vrot.lane.b32.xlu0 %v1519, 80
  %v7442 = vpop.permute.xlu0 %7441
  %7443 = vrot.lane.b32.xlu0 %v1520, 80
  %v7444 = vpop.permute.xlu0 %7443
  %7445 = vrot.lane.b32.xlu0 %v1521, 80
  %v7446 = vpop.permute.xlu0 %7445
  %v7448 = vsel %vm1590, %v7432, 0
  %v7451 = vsel %vm1590, %v7434, 0
  %v7454 = vsel %vm1590, %v7436, 0
  %v7457 = vsel %vm1590, %v7438, 0
  %v7460 = vsel %vm1590, %v7440, 0
  %v7463 = vsel %vm1590, %v7442, 0
  %v7466 = vsel %vm1590, %v7444, 0
  %v7469 = vsel %vm1590, %v7446, 0
  %7471 = vmatprep.subr.bf16.mxu0 0
  %7472 = vmatpush1.bf16.xpose.msra.mxu0 0
  %7473 = vmatprep.subr.bf16.mxu0 0
  %7474 = vmatpush1.bf16.xpose.msra.mxu0 0
  %7475 = vmatprep.subr.bf16.mxu0 0
  %7476 = vmatpush1.bf16.xpose.msra.mxu0 0
  %7477 = vmatprep.subr.bf16.mxu0 0
  %7478 = vmatpush1.bf16.xpose.msra.mxu0 0
  %7479 = vmatprep.subr.bf16.mxu0 0
  %7480 = vmatpush1.bf16.xpose.msra.mxu0 %v7469
  %7481 = vmatprep.subr.bf16.mxu0 0
  %7482 = vmatpush1.bf16.xpose.msra.mxu0 %v7466
  %7483 = vmatprep.subr.bf16.mxu0 0
  %7484 = vmatpush1.bf16.xpose.msra.mxu0 %v7463
  %7485 = vmatprep.subr.bf16.mxu0 0
  %7486 = vmatpush1.bf16.xpose.msra.mxu0 %v7460
  %7487 = vmatprep.subr.bf16.mxu0 0
  %7488 = vmatpush2.bf16.xpose.msra.mxu0 0
  %7489 = vmatprep.subr.bf16.mxu0 0
  %7490 = vmatpush2.bf16.xpose.msra.mxu0 0
  %7491 = vmatprep.subr.bf16.mxu0 0
  %7492 = vmatpush2.bf16.xpose.msra.mxu0 0
  %7493 = vmatprep.subr.bf16.mxu0 0
  %7494 = vmatpush2.bf16.xpose.msra.mxu0 0
  %7495 = vmatprep.subr.bf16.mxu0 0
  %7496 = vmatpush2.bf16.xpose.msra.mxu0 0
  %7497 = vmatprep.subr.bf16.mxu0 0
  %7498 = vmatpush2.bf16.xpose.msra.mxu0 0
  %7499 = vmatprep.subr.bf16.mxu0 0
  %7500 = vmatpush2.bf16.xpose.msra.mxu0 0
  %7501 = vmatprep.subr.bf16.mxu0 0
  %7502 = vmatpush2.bf16.xpose.msra.mxu0 0
  %7503 = vmatprep.mubr.bf16.mxu0 0
  %7504 = vmatmul.mubr.bf16.gmra.mxu0 %v7448
  %v7505 = vpop.f32.mrf.mxu0
  %v7506 = vadd.f32 0.0, %v7505
  %v7507 = vpop.f32.mrf.mxu0
  %v7508 = vpop.f32.mrf.mxu0
  %v7509 = vadd.f32 0.0, %v7508
  %v7510 = vpop.f32.mrf.mxu0
  %7511 = vmatprep.mubr.bf16.mxu0 0
  %7512 = vmatmul.mubr.bf16.gmra.mxu0 %v7451
  %v7513 = vpop.f32.mrf.mxu0
  %v7514 = vadd.f32 0.0, %v7513
  %v7515 = vpop.f32.mrf.mxu0
  %v7516 = vpop.f32.mrf.mxu0
  %v7517 = vadd.f32 0.0, %v7516
  %v7518 = vpop.f32.mrf.mxu0
  %7519 = vmatprep.mubr.bf16.mxu0 0
  %7520 = vmatmul.mubr.bf16.gmra.mxu0 %v7454
  %v7521 = vpop.f32.mrf.mxu0
  %v7522 = vadd.f32 0.0, %v7521
  %v7523 = vpop.f32.mrf.mxu0
  %v7524 = vpop.f32.mrf.mxu0
  %v7525 = vadd.f32 0.0, %v7524
  %v7526 = vpop.f32.mrf.mxu0
  %7527 = vmatprep.mubr.bf16.mxu0 0
  %7528 = vmatmul.mubr.bf16.gmra.mxu0 %v7457
  %v7529 = vpop.f32.mrf.mxu0
  %v7530 = vadd.f32 0.0, %v7529
  %v7531 = vpop.f32.mrf.mxu0
  %v7532 = vpop.f32.mrf.mxu0
  %v7533 = vadd.f32 0.0, %v7532
  %v7534 = vpop.f32.mrf.mxu0
  %7535 = vdwg.mxu0
  %7536 = vrot.lane.b32.xlu0 %v1522, 112
  %v7537 = vpop.permute.xlu0 %7536
  %7538 = vrot.lane.b32.xlu0 %v1523, 112
  %v7539 = vpop.permute.xlu0 %7538
  %7540 = vrot.lane.b32.xlu0 %v1524, 112
  %v7541 = vpop.permute.xlu0 %7540
  %7542 = vrot.lane.b32.xlu0 %v1525, 112
  %v7543 = vpop.permute.xlu0 %7542
  %7544 = vrot.lane.b32.xlu0 %v1522, 80
  %v7545 = vpop.permute.xlu0 %7544
  %7546 = vrot.lane.b32.xlu0 %v1523, 80
  %v7547 = vpop.permute.xlu0 %7546
  %7548 = vrot.lane.b32.xlu0 %v1524, 80
  %v7549 = vpop.permute.xlu0 %7548
  %7550 = vrot.lane.b32.xlu0 %v1525, 80
  %v7551 = vpop.permute.xlu0 %7550
  %v7553 = vsel %vm1590, %v7537, 0
  %v7556 = vsel %vm1590, %v7539, 0
  %v7559 = vsel %vm1590, %v7541, 0
  %v7562 = vsel %vm1590, %v7543, 0
  %v7565 = vsel %vm1590, %v7545, 0
  %v7568 = vsel %vm1590, %v7547, 0
  %v7571 = vsel %vm1590, %v7549, 0
  %v7574 = vsel %vm1590, %v7551, 0
  %7576 = vmatprep.subr.bf16.mxu0 0
  %7577 = vmatpush1.bf16.xpose.msra.mxu0 0
  %7578 = vmatprep.subr.bf16.mxu0 0
  %7579 = vmatpush1.bf16.xpose.msra.mxu0 0
  %7580 = vmatprep.subr.bf16.mxu0 0
  %7581 = vmatpush1.bf16.xpose.msra.mxu0 0
  %7582 = vmatprep.subr.bf16.mxu0 0
  %7583 = vmatpush1.bf16.xpose.msra.mxu0 0
  %7584 = vmatprep.subr.bf16.mxu0 0
  %7585 = vmatpush1.bf16.xpose.msra.mxu0 %v7574
  %7586 = vmatprep.subr.bf16.mxu0 0
  %7587 = vmatpush1.bf16.xpose.msra.mxu0 %v7571
  %7588 = vmatprep.subr.bf16.mxu0 0
  %7589 = vmatpush1.bf16.xpose.msra.mxu0 %v7568
  %7590 = vmatprep.subr.bf16.mxu0 0
  %7591 = vmatpush1.bf16.xpose.msra.mxu0 %v7565
  %7592 = vmatprep.subr.bf16.mxu0 0
  %7593 = vmatpush2.bf16.xpose.msra.mxu0 0
  %7594 = vmatprep.subr.bf16.mxu0 0
  %7595 = vmatpush2.bf16.xpose.msra.mxu0 0
  %7596 = vmatprep.subr.bf16.mxu0 0
  %7597 = vmatpush2.bf16.xpose.msra.mxu0 0
  %7598 = vmatprep.subr.bf16.mxu0 0
  %7599 = vmatpush2.bf16.xpose.msra.mxu0 0
  %7600 = vmatprep.subr.bf16.mxu0 0
  %7601 = vmatpush2.bf16.xpose.msra.mxu0 0
  %7602 = vmatprep.subr.bf16.mxu0 0
  %7603 = vmatpush2.bf16.xpose.msra.mxu0 0
  %7604 = vmatprep.subr.bf16.mxu0 0
  %7605 = vmatpush2.bf16.xpose.msra.mxu0 0
  %7606 = vmatprep.subr.bf16.mxu0 0
  %7607 = vmatpush2.bf16.xpose.msra.mxu0 0
  %7608 = vmatprep.mubr.bf16.mxu0 0
  %7609 = vmatmul.mubr.bf16.gmra.mxu0 %v7553
  %v7610 = vpop.f32.mrf.mxu0
  %v7611 = vadd.f32 0.0, %v7610
  %v7612 = vpop.f32.mrf.mxu0
  %v7613 = vpop.f32.mrf.mxu0
  %v7614 = vadd.f32 0.0, %v7613
  %v7615 = vpop.f32.mrf.mxu0
  %7616 = vmatprep.mubr.bf16.mxu0 0
  %7617 = vmatmul.mubr.bf16.gmra.mxu0 %v7556
  %v7618 = vpop.f32.mrf.mxu0
  %v7619 = vadd.f32 0.0, %v7618
  %v7620 = vpop.f32.mrf.mxu0
  %v7621 = vpop.f32.mrf.mxu0
  %v7622 = vadd.f32 0.0, %v7621
  %v7623 = vpop.f32.mrf.mxu0
  %7624 = vmatprep.mubr.bf16.mxu0 0
  %7625 = vmatmul.mubr.bf16.gmra.mxu0 %v7559
  %v7626 = vpop.f32.mrf.mxu0
  %v7627 = vadd.f32 0.0, %v7626
  %v7628 = vpop.f32.mrf.mxu0
  %v7629 = vpop.f32.mrf.mxu0
  %v7630 = vadd.f32 0.0, %v7629
  %v7631 = vpop.f32.mrf.mxu0
  %7632 = vmatprep.mubr.bf16.mxu0 0
  %7633 = vmatmul.mubr.bf16.gmra.mxu0 %v7562
  %v7634 = vpop.f32.mrf.mxu0
  %v7635 = vadd.f32 0.0, %v7634
  %v7636 = vpop.f32.mrf.mxu0
  %v7637 = vpop.f32.mrf.mxu0
  %v7638 = vadd.f32 0.0, %v7637
  %v7639 = vpop.f32.mrf.mxu0
  %7640 = vdwg.mxu0
  %7641 = vrot.lane.b32.xlu0 %v1526, 112
  %v7642 = vpop.permute.xlu0 %7641
  %7643 = vrot.lane.b32.xlu0 %v1527, 112
  %v7644 = vpop.permute.xlu0 %7643
  %7645 = vrot.lane.b32.xlu0 %v1528, 112
  %v7646 = vpop.permute.xlu0 %7645
  %7647 = vrot.lane.b32.xlu0 %v1529, 112
  %v7648 = vpop.permute.xlu0 %7647
  %7649 = vrot.lane.b32.xlu0 %v1526, 80
  %v7650 = vpop.permute.xlu0 %7649
  %7651 = vrot.lane.b32.xlu0 %v1527, 80
  %v7652 = vpop.permute.xlu0 %7651
  %7653 = vrot.lane.b32.xlu0 %v1528, 80
  %v7654 = vpop.permute.xlu0 %7653
  %7655 = vrot.lane.b32.xlu0 %v1529, 80
  %v7656 = vpop.permute.xlu0 %7655
  %v7658 = vsel %vm1590, %v7642, 0
  %v7661 = vsel %vm1590, %v7644, 0
  %v7664 = vsel %vm1590, %v7646, 0
  %v7667 = vsel %vm1590, %v7648, 0
  %v7670 = vsel %vm1590, %v7650, 0
  %v7673 = vsel %vm1590, %v7652, 0
  %v7676 = vsel %vm1590, %v7654, 0
  %v7679 = vsel %vm1590, %v7656, 0
  %7681 = vmatprep.subr.bf16.mxu0 0
  %7682 = vmatpush1.bf16.xpose.msra.mxu0 0
  %7683 = vmatprep.subr.bf16.mxu0 0
  %7684 = vmatpush1.bf16.xpose.msra.mxu0 0
  %7685 = vmatprep.subr.bf16.mxu0 0
  %7686 = vmatpush1.bf16.xpose.msra.mxu0 0
  %7687 = vmatprep.subr.bf16.mxu0 0
  %7688 = vmatpush1.bf16.xpose.msra.mxu0 0
  %7689 = vmatprep.subr.bf16.mxu0 0
  %7690 = vmatpush1.bf16.xpose.msra.mxu0 %v7679
  %7691 = vmatprep.subr.bf16.mxu0 0
  %7692 = vmatpush1.bf16.xpose.msra.mxu0 %v7676
  %7693 = vmatprep.subr.bf16.mxu0 0
  %7694 = vmatpush1.bf16.xpose.msra.mxu0 %v7673
  %7695 = vmatprep.subr.bf16.mxu0 0
  %7696 = vmatpush1.bf16.xpose.msra.mxu0 %v7670
  %7697 = vmatprep.subr.bf16.mxu0 0
  %7698 = vmatpush2.bf16.xpose.msra.mxu0 0
  %7699 = vmatprep.subr.bf16.mxu0 0
  %7700 = vmatpush2.bf16.xpose.msra.mxu0 0
  %7701 = vmatprep.subr.bf16.mxu0 0
  %7702 = vmatpush2.bf16.xpose.msra.mxu0 0
  %7703 = vmatprep.subr.bf16.mxu0 0
  %7704 = vmatpush2.bf16.xpose.msra.mxu0 0
  %7705 = vmatprep.subr.bf16.mxu0 0
  %7706 = vmatpush2.bf16.xpose.msra.mxu0 0
  %7707 = vmatprep.subr.bf16.mxu0 0
  %7708 = vmatpush2.bf16.xpose.msra.mxu0 0
  %7709 = vmatprep.subr.bf16.mxu0 0
  %7710 = vmatpush2.bf16.xpose.msra.mxu0 0
  %7711 = vmatprep.subr.bf16.mxu0 0
  %7712 = vmatpush2.bf16.xpose.msra.mxu0 0
  %7713 = vmatprep.mubr.bf16.mxu0 0
  %7714 = vmatmul.mubr.bf16.gmra.mxu0 %v7658
  %v7715 = vpop.f32.mrf.mxu0
  %v7716 = vadd.f32 0.0, %v7715
  %v7717 = vpop.f32.mrf.mxu0
  %v7718 = vpop.f32.mrf.mxu0
  %v7719 = vadd.f32 0.0, %v7718
  %v7720 = vpop.f32.mrf.mxu0
  %7721 = vmatprep.mubr.bf16.mxu0 0
  %7722 = vmatmul.mubr.bf16.gmra.mxu0 %v7661
  %v7723 = vpop.f32.mrf.mxu0
  %v7724 = vadd.f32 0.0, %v7723
  %v7725 = vpop.f32.mrf.mxu0
  %v7726 = vpop.f32.mrf.mxu0
  %v7727 = vadd.f32 0.0, %v7726
  %v7728 = vpop.f32.mrf.mxu0
  %7729 = vmatprep.mubr.bf16.mxu0 0
  %7730 = vmatmul.mubr.bf16.gmra.mxu0 %v7664
  %v7731 = vpop.f32.mrf.mxu0
  %v7732 = vadd.f32 0.0, %v7731
  %v7733 = vpop.f32.mrf.mxu0
  %v7734 = vpop.f32.mrf.mxu0
  %v7735 = vadd.f32 0.0, %v7734
  %v7736 = vpop.f32.mrf.mxu0
  %7737 = vmatprep.mubr.bf16.mxu0 0
  %7738 = vmatmul.mubr.bf16.gmra.mxu0 %v7667
  %v7739 = vpop.f32.mrf.mxu0
  %v7740 = vadd.f32 0.0, %v7739
  %v7741 = vpop.f32.mrf.mxu0
  %v7742 = vpop.f32.mrf.mxu0
  %v7743 = vadd.f32 0.0, %v7742
  %v7744 = vpop.f32.mrf.mxu0
  %7745 = vdwg.mxu0
  %7746 = vrot.lane.b32.xlu0 %v1530, 112
  %v7747 = vpop.permute.xlu0 %7746
  %7748 = vrot.lane.b32.xlu0 %v1531, 112
  %v7749 = vpop.permute.xlu0 %7748
  %7750 = vrot.lane.b32.xlu0 %v1532, 112
  %v7751 = vpop.permute.xlu0 %7750
  %7752 = vrot.lane.b32.xlu0 %v1533, 112
  %v7753 = vpop.permute.xlu0 %7752
  %7754 = vrot.lane.b32.xlu0 %v1530, 80
  %v7755 = vpop.permute.xlu0 %7754
  %7756 = vrot.lane.b32.xlu0 %v1531, 80
  %v7757 = vpop.permute.xlu0 %7756
  %7758 = vrot.lane.b32.xlu0 %v1532, 80
  %v7759 = vpop.permute.xlu0 %7758
  %7760 = vrot.lane.b32.xlu0 %v1533, 80
  %v7761 = vpop.permute.xlu0 %7760
  %v7763 = vsel %vm1590, %v7747, 0
  %v7766 = vsel %vm1590, %v7749, 0
  %v7769 = vsel %vm1590, %v7751, 0
  %v7772 = vsel %vm1590, %v7753, 0
  %v7775 = vsel %vm1590, %v7755, 0
  %v7778 = vsel %vm1590, %v7757, 0
  %v7781 = vsel %vm1590, %v7759, 0
  %v7784 = vsel %vm1590, %v7761, 0
  %7786 = vmatprep.subr.bf16.mxu0 0
  %7787 = vmatpush1.bf16.xpose.msra.mxu0 0
  %7788 = vmatprep.subr.bf16.mxu0 0
  %7789 = vmatpush1.bf16.xpose.msra.mxu0 0
  %7790 = vmatprep.subr.bf16.mxu0 0
  %7791 = vmatpush1.bf16.xpose.msra.mxu0 0
  %7792 = vmatprep.subr.bf16.mxu0 0
  %7793 = vmatpush1.bf16.xpose.msra.mxu0 0
  %7794 = vmatprep.subr.bf16.mxu0 0
  %7795 = vmatpush1.bf16.xpose.msra.mxu0 %v7784
  %7796 = vmatprep.subr.bf16.mxu0 0
  %7797 = vmatpush1.bf16.xpose.msra.mxu0 %v7781
  %7798 = vmatprep.subr.bf16.mxu0 0
  %7799 = vmatpush1.bf16.xpose.msra.mxu0 %v7778
  %7800 = vmatprep.subr.bf16.mxu0 0
  %7801 = vmatpush1.bf16.xpose.msra.mxu0 %v7775
  %7802 = vmatprep.subr.bf16.mxu0 0
  %7803 = vmatpush2.bf16.xpose.msra.mxu0 0
  %7804 = vmatprep.subr.bf16.mxu0 0
  %7805 = vmatpush2.bf16.xpose.msra.mxu0 0
  %7806 = vmatprep.subr.bf16.mxu0 0
  %7807 = vmatpush2.bf16.xpose.msra.mxu0 0
  %7808 = vmatprep.subr.bf16.mxu0 0
  %7809 = vmatpush2.bf16.xpose.msra.mxu0 0
  %7810 = vmatprep.subr.bf16.mxu0 0
  %7811 = vmatpush2.bf16.xpose.msra.mxu0 0
  %7812 = vmatprep.subr.bf16.mxu0 0
  %7813 = vmatpush2.bf16.xpose.msra.mxu0 0
  %7814 = vmatprep.subr.bf16.mxu0 0
  %7815 = vmatpush2.bf16.xpose.msra.mxu0 0
  %7816 = vmatprep.subr.bf16.mxu0 0
  %7817 = vmatpush2.bf16.xpose.msra.mxu0 0
  %7818 = vmatprep.mubr.bf16.mxu0 0
  %7819 = vmatmul.mubr.bf16.gmra.mxu0 %v7763
  %v7820 = vpop.f32.mrf.mxu0
  %v7821 = vadd.f32 0.0, %v7820
  %v7822 = vpop.f32.mrf.mxu0
  %v7823 = vpop.f32.mrf.mxu0
  %v7824 = vadd.f32 0.0, %v7823
  %v7825 = vpop.f32.mrf.mxu0
  %7826 = vmatprep.mubr.bf16.mxu0 0
  %7827 = vmatmul.mubr.bf16.gmra.mxu0 %v7766
  %v7828 = vpop.f32.mrf.mxu0
  %v7829 = vadd.f32 0.0, %v7828
  %v7830 = vpop.f32.mrf.mxu0
  %v7831 = vpop.f32.mrf.mxu0
  %v7832 = vadd.f32 0.0, %v7831
  %v7833 = vpop.f32.mrf.mxu0
  %7834 = vmatprep.mubr.bf16.mxu0 0
  %7835 = vmatmul.mubr.bf16.gmra.mxu0 %v7769
  %v7836 = vpop.f32.mrf.mxu0
  %v7837 = vadd.f32 0.0, %v7836
  %v7838 = vpop.f32.mrf.mxu0
  %v7839 = vpop.f32.mrf.mxu0
  %v7840 = vadd.f32 0.0, %v7839
  %v7841 = vpop.f32.mrf.mxu0
  %7842 = vmatprep.mubr.bf16.mxu0 0
  %7843 = vmatmul.mubr.bf16.gmra.mxu0 %v7772
  %v7844 = vpop.f32.mrf.mxu0
  %v7845 = vadd.f32 0.0, %v7844
  %v7846 = vpop.f32.mrf.mxu0
  %v7847 = vpop.f32.mrf.mxu0
  %v7848 = vadd.f32 0.0, %v7847
  %v7849 = vpop.f32.mrf.mxu0
  %7850 = vdwg.mxu0
  %7851 = vrot.lane.b32.xlu0 %v1534, 112
  %v7852 = vpop.permute.xlu0 %7851
  %7853 = vrot.lane.b32.xlu0 %v1535, 112
  %v7854 = vpop.permute.xlu0 %7853
  %7855 = vrot.lane.b32.xlu0 %v1536, 112
  %v7856 = vpop.permute.xlu0 %7855
  %7857 = vrot.lane.b32.xlu0 %v1537, 112
  %v7858 = vpop.permute.xlu0 %7857
  %7859 = vrot.lane.b32.xlu0 %v1534, 80
  %v7860 = vpop.permute.xlu0 %7859
  %7861 = vrot.lane.b32.xlu0 %v1535, 80
  %v7862 = vpop.permute.xlu0 %7861
  %7863 = vrot.lane.b32.xlu0 %v1536, 80
  %v7864 = vpop.permute.xlu0 %7863
  %7865 = vrot.lane.b32.xlu0 %v1537, 80
  %v7866 = vpop.permute.xlu0 %7865
  %v7868 = vsel %vm1590, %v7852, 0
  %v7871 = vsel %vm1590, %v7854, 0
  %v7874 = vsel %vm1590, %v7856, 0
  %v7877 = vsel %vm1590, %v7858, 0
  %v7880 = vsel %vm1590, %v7860, 0
  %v7883 = vsel %vm1590, %v7862, 0
  %v7886 = vsel %vm1590, %v7864, 0
  %v7889 = vsel %vm1590, %v7866, 0
  %7891 = vmatprep.subr.bf16.mxu0 0
  %7892 = vmatpush1.bf16.xpose.msra.mxu0 0
  %7893 = vmatprep.subr.bf16.mxu0 0
  %7894 = vmatpush1.bf16.xpose.msra.mxu0 0
  %7895 = vmatprep.subr.bf16.mxu0 0
  %7896 = vmatpush1.bf16.xpose.msra.mxu0 0
  %7897 = vmatprep.subr.bf16.mxu0 0
  %7898 = vmatpush1.bf16.xpose.msra.mxu0 0
  %7899 = vmatprep.subr.bf16.mxu0 0
  %7900 = vmatpush1.bf16.xpose.msra.mxu0 %v7889
  %7901 = vmatprep.subr.bf16.mxu0 0
  %7902 = vmatpush1.bf16.xpose.msra.mxu0 %v7886
  %7903 = vmatprep.subr.bf16.mxu0 0
  %7904 = vmatpush1.bf16.xpose.msra.mxu0 %v7883
  %7905 = vmatprep.subr.bf16.mxu0 0
  %7906 = vmatpush1.bf16.xpose.msra.mxu0 %v7880
  %7907 = vmatprep.subr.bf16.mxu0 0
  %7908 = vmatpush2.bf16.xpose.msra.mxu0 0
  %7909 = vmatprep.subr.bf16.mxu0 0
  %7910 = vmatpush2.bf16.xpose.msra.mxu0 0
  %7911 = vmatprep.subr.bf16.mxu0 0
  %7912 = vmatpush2.bf16.xpose.msra.mxu0 0
  %7913 = vmatprep.subr.bf16.mxu0 0
  %7914 = vmatpush2.bf16.xpose.msra.mxu0 0
  %7915 = vmatprep.subr.bf16.mxu0 0
  %7916 = vmatpush2.bf16.xpose.msra.mxu0 0
  %7917 = vmatprep.subr.bf16.mxu0 0
  %7918 = vmatpush2.bf16.xpose.msra.mxu0 0
  %7919 = vmatprep.subr.bf16.mxu0 0
  %7920 = vmatpush2.bf16.xpose.msra.mxu0 0
  %7921 = vmatprep.subr.bf16.mxu0 0
  %7922 = vmatpush2.bf16.xpose.msra.mxu0 0
  %7923 = vmatprep.mubr.bf16.mxu0 0
  %7924 = vmatmul.mubr.bf16.gmra.mxu0 %v7868
  %v7925 = vpop.f32.mrf.mxu0
  %v7926 = vadd.f32 0.0, %v7925
  %v7927 = vpop.f32.mrf.mxu0
  %v7928 = vpop.f32.mrf.mxu0
  %v7929 = vadd.f32 0.0, %v7928
  %v7930 = vpop.f32.mrf.mxu0
  %7931 = vmatprep.mubr.bf16.mxu0 0
  %7932 = vmatmul.mubr.bf16.gmra.mxu0 %v7871
  %v7933 = vpop.f32.mrf.mxu0
  %v7934 = vadd.f32 0.0, %v7933
  %v7935 = vpop.f32.mrf.mxu0
  %v7936 = vpop.f32.mrf.mxu0
  %v7937 = vadd.f32 0.0, %v7936
  %v7938 = vpop.f32.mrf.mxu0
  %7939 = vmatprep.mubr.bf16.mxu0 0
  %7940 = vmatmul.mubr.bf16.gmra.mxu0 %v7874
  %v7941 = vpop.f32.mrf.mxu0
  %v7942 = vadd.f32 0.0, %v7941
  %v7943 = vpop.f32.mrf.mxu0
  %v7944 = vpop.f32.mrf.mxu0
  %v7945 = vadd.f32 0.0, %v7944
  %v7946 = vpop.f32.mrf.mxu0
  %7947 = vmatprep.mubr.bf16.mxu0 0
  %7948 = vmatmul.mubr.bf16.gmra.mxu0 %v7877
  %v7949 = vpop.f32.mrf.mxu0
  %v7950 = vadd.f32 0.0, %v7949
  %v7951 = vpop.f32.mrf.mxu0
  %v7952 = vpop.f32.mrf.mxu0
  %v7953 = vadd.f32 0.0, %v7952
  %v7954 = vpop.f32.mrf.mxu0
  %7955 = vdwg.mxu0
  %7956 = vrot.lane.b32.xlu0 %v1538, 112
  %v7957 = vpop.permute.xlu0 %7956
  %7958 = vrot.lane.b32.xlu0 %v1539, 112
  %v7959 = vpop.permute.xlu0 %7958
  %7960 = vrot.lane.b32.xlu0 %v1540, 112
  %v7961 = vpop.permute.xlu0 %7960
  %7962 = vrot.lane.b32.xlu0 %v1541, 112
  %v7963 = vpop.permute.xlu0 %7962
  %7964 = vrot.lane.b32.xlu0 %v1538, 80
  %v7965 = vpop.permute.xlu0 %7964
  %7966 = vrot.lane.b32.xlu0 %v1539, 80
  %v7967 = vpop.permute.xlu0 %7966
  %7968 = vrot.lane.b32.xlu0 %v1540, 80
  %v7969 = vpop.permute.xlu0 %7968
  %7970 = vrot.lane.b32.xlu0 %v1541, 80
  %v7971 = vpop.permute.xlu0 %7970
  %v7973 = vsel %vm1590, %v7957, 0
  %v7976 = vsel %vm1590, %v7959, 0
  %v7979 = vsel %vm1590, %v7961, 0
  %v7982 = vsel %vm1590, %v7963, 0
  %v7985 = vsel %vm1590, %v7965, 0
  %v7988 = vsel %vm1590, %v7967, 0
  %v7991 = vsel %vm1590, %v7969, 0
  %v7994 = vsel %vm1590, %v7971, 0
  %7996 = vmatprep.subr.bf16.mxu0 0
  %7997 = vmatpush1.bf16.xpose.msra.mxu0 0
  %7998 = vmatprep.subr.bf16.mxu0 0
  %7999 = vmatpush1.bf16.xpose.msra.mxu0 0
  %8000 = vmatprep.subr.bf16.mxu0 0
  %8001 = vmatpush1.bf16.xpose.msra.mxu0 0
  %8002 = vmatprep.subr.bf16.mxu0 0
  %8003 = vmatpush1.bf16.xpose.msra.mxu0 0
  %8004 = vmatprep.subr.bf16.mxu0 0
  %8005 = vmatpush1.bf16.xpose.msra.mxu0 %v7994
  %8006 = vmatprep.subr.bf16.mxu0 0
  %8007 = vmatpush1.bf16.xpose.msra.mxu0 %v7991
  %8008 = vmatprep.subr.bf16.mxu0 0
  %8009 = vmatpush1.bf16.xpose.msra.mxu0 %v7988
  %8010 = vmatprep.subr.bf16.mxu0 0
  %8011 = vmatpush1.bf16.xpose.msra.mxu0 %v7985
  %8012 = vmatprep.subr.bf16.mxu0 0
  %8013 = vmatpush2.bf16.xpose.msra.mxu0 0
  %8014 = vmatprep.subr.bf16.mxu0 0
  %8015 = vmatpush2.bf16.xpose.msra.mxu0 0
  %8016 = vmatprep.subr.bf16.mxu0 0
  %8017 = vmatpush2.bf16.xpose.msra.mxu0 0
  %8018 = vmatprep.subr.bf16.mxu0 0
  %8019 = vmatpush2.bf16.xpose.msra.mxu0 0
  %8020 = vmatprep.subr.bf16.mxu0 0
  %8021 = vmatpush2.bf16.xpose.msra.mxu0 0
  %8022 = vmatprep.subr.bf16.mxu0 0
  %8023 = vmatpush2.bf16.xpose.msra.mxu0 0
  %8024 = vmatprep.subr.bf16.mxu0 0
  %8025 = vmatpush2.bf16.xpose.msra.mxu0 0
  %8026 = vmatprep.subr.bf16.mxu0 0
  %8027 = vmatpush2.bf16.xpose.msra.mxu0 0
  %8028 = vmatprep.mubr.bf16.mxu0 0
  %8029 = vmatmul.mubr.bf16.gmra.mxu0 %v7973
  %v8030 = vpop.f32.mrf.mxu0
  %v8031 = vadd.f32 0.0, %v8030
  %v8032 = vpop.f32.mrf.mxu0
  %v8033 = vpop.f32.mrf.mxu0
  %v8034 = vadd.f32 0.0, %v8033
  %v8035 = vpop.f32.mrf.mxu0
  %8036 = vmatprep.mubr.bf16.mxu0 0
  %8037 = vmatmul.mubr.bf16.gmra.mxu0 %v7976
  %v8038 = vpop.f32.mrf.mxu0
  %v8039 = vadd.f32 0.0, %v8038
  %v8040 = vpop.f32.mrf.mxu0
  %v8041 = vpop.f32.mrf.mxu0
  %v8042 = vadd.f32 0.0, %v8041
  %v8043 = vpop.f32.mrf.mxu0
  %8044 = vmatprep.mubr.bf16.mxu0 0
  %8045 = vmatmul.mubr.bf16.gmra.mxu0 %v7979
  %v8046 = vpop.f32.mrf.mxu0
  %v8047 = vadd.f32 0.0, %v8046
  %v8048 = vpop.f32.mrf.mxu0
  %v8049 = vpop.f32.mrf.mxu0
  %v8050 = vadd.f32 0.0, %v8049
  %v8051 = vpop.f32.mrf.mxu0
  %8052 = vmatprep.mubr.bf16.mxu0 0
  %8053 = vmatmul.mubr.bf16.gmra.mxu0 %v7982
  %v8054 = vpop.f32.mrf.mxu0
  %v8055 = vadd.f32 0.0, %v8054
  %v8056 = vpop.f32.mrf.mxu0
  %v8057 = vpop.f32.mrf.mxu0
  %v8058 = vadd.f32 0.0, %v8057
  %v8059 = vpop.f32.mrf.mxu0
  %8060 = vdwg.mxu0
  %v8061 = vmul.f32 %v7296, 0.35355338
  %v8062 = vmul.f32 %v7299, 0.35355338
  %v8063 = vmul.f32 %v7304, 0.35355338
  %v8064 = vmul.f32 %v7307, 0.35355338
  %v8065 = vmul.f32 %v7312, 0.35355338
  %v8066 = vmul.f32 %v7315, 0.35355338
  %v8067 = vmul.f32 %v7320, 0.35355338
  %v8068 = vmul.f32 %v7323, 0.35355338
  %v8069 = vmul.f32 %v7401, 0.35355338
  %v8070 = vmul.f32 %v7404, 0.35355338
  %v8071 = vmul.f32 %v7409, 0.35355338
  %v8072 = vmul.f32 %v7412, 0.35355338
  %v8073 = vmul.f32 %v7417, 0.35355338
  %v8074 = vmul.f32 %v7420, 0.35355338
  %v8075 = vmul.f32 %v7425, 0.35355338
  %v8076 = vmul.f32 %v7428, 0.35355338
  %v8077 = vmul.f32 %v7506, 0.35355338
  %v8078 = vmul.f32 %v7509, 0.35355338
  %v8079 = vmul.f32 %v7514, 0.35355338
  %v8080 = vmul.f32 %v7517, 0.35355338
  %v8081 = vmul.f32 %v7522, 0.35355338
  %v8082 = vmul.f32 %v7525, 0.35355338
  %v8083 = vmul.f32 %v7530, 0.35355338
  %v8084 = vmul.f32 %v7533, 0.35355338
  %v8085 = vmul.f32 %v7611, 0.35355338
  %v8086 = vmul.f32 %v7614, 0.35355338
  %v8087 = vmul.f32 %v7619, 0.35355338
  %v8088 = vmul.f32 %v7622, 0.35355338
  %v8089 = vmul.f32 %v7627, 0.35355338
  %v8090 = vmul.f32 %v7630, 0.35355338
  %v8091 = vmul.f32 %v7635, 0.35355338
  %v8092 = vmul.f32 %v7638, 0.35355338
  %v8093 = vmul.f32 %v7716, 0.35355338
  %v8094 = vmul.f32 %v7719, 0.35355338
  %v8095 = vmul.f32 %v7724, 0.35355338
  %v8096 = vmul.f32 %v7727, 0.35355338
  %v8097 = vmul.f32 %v7732, 0.35355338
  %v8098 = vmul.f32 %v7735, 0.35355338
  %v8099 = vmul.f32 %v7740, 0.35355338
  %v8100 = vmul.f32 %v7743, 0.35355338
  %v8101 = vmul.f32 %v7821, 0.35355338
  %v8102 = vmul.f32 %v7824, 0.35355338
  %v8103 = vmul.f32 %v7829, 0.35355338
  %v8104 = vmul.f32 %v7832, 0.35355338
  %v8105 = vmul.f32 %v7837, 0.35355338
  %v8106 = vmul.f32 %v7840, 0.35355338
  %v8107 = vmul.f32 %v7845, 0.35355338
  %v8108 = vmul.f32 %v7848, 0.35355338
  %v8109 = vmul.f32 %v7926, 0.35355338
  %v8110 = vmul.f32 %v7929, 0.35355338
  %v8111 = vmul.f32 %v7934, 0.35355338
  %v8112 = vmul.f32 %v7937, 0.35355338
  %v8113 = vmul.f32 %v7942, 0.35355338
  %v8114 = vmul.f32 %v7945, 0.35355338
  %v8115 = vmul.f32 %v7950, 0.35355338
  %v8116 = vmul.f32 %v7953, 0.35355338
  %v8117 = vmul.f32 %v8031, 0.35355338
  %v8118 = vmul.f32 %v8034, 0.35355338
  %v8119 = vmul.f32 %v8039, 0.35355338
  %v8120 = vmul.f32 %v8042, 0.35355338
  %v8121 = vmul.f32 %v8047, 0.35355338
  %v8122 = vmul.f32 %v8050, 0.35355338
  %v8123 = vmul.f32 %v8055, 0.35355338
  %v8124 = vmul.f32 %v8058, 0.35355338
  %v8125 = vadd.f32 %v8061, %v1562
  %v8126 = vadd.f32 %v8062, %v1563
  %v8127 = vadd.f32 %v8063, %v1564
  %v8128 = vadd.f32 %v8064, %v1565
  %v8129 = vadd.f32 %v8065, %v1566
  %v8130 = vadd.f32 %v8066, %v1567
  %v8131 = vadd.f32 %v8067, %v1568
  %v8132 = vadd.f32 %v8068, %v1569
  %v8133 = vadd.f32 %v8069, %v1562
  %v8134 = vadd.f32 %v8070, %v1563
  %v8135 = vadd.f32 %v8071, %v1564
  %v8136 = vadd.f32 %v8072, %v1565
  %v8137 = vadd.f32 %v8073, %v1566
  %v8138 = vadd.f32 %v8074, %v1567
  %v8139 = vadd.f32 %v8075, %v1568
  %v8140 = vadd.f32 %v8076, %v1569
  %v8141 = vadd.f32 %v8077, %v1562
  %v8142 = vadd.f32 %v8078, %v1563
  %v8143 = vadd.f32 %v8079, %v1564
  %v8144 = vadd.f32 %v8080, %v1565
  %v8145 = vadd.f32 %v8081, %v1566
  %v8146 = vadd.f32 %v8082, %v1567
  %v8147 = vadd.f32 %v8083, %v1568
  %v8148 = vadd.f32 %v8084, %v1569
  %v8149 = vadd.f32 %v8085, %v1562
  %v8150 = vadd.f32 %v8086, %v1563
  %v8151 = vadd.f32 %v8087, %v1564
  %v8152 = vadd.f32 %v8088, %v1565
  %v8153 = vadd.f32 %v8089, %v1566
  %v8154 = vadd.f32 %v8090, %v1567
  %v8155 = vadd.f32 %v8091, %v1568
  %v8156 = vadd.f32 %v8092, %v1569
  %v8157 = vadd.f32 %v8093, %v1562
  %v8158 = vadd.f32 %v8094, %v1563
  %v8159 = vadd.f32 %v8095, %v1564
  %v8160 = vadd.f32 %v8096, %v1565
  %v8161 = vadd.f32 %v8097, %v1566
  %v8162 = vadd.f32 %v8098, %v1567
  %v8163 = vadd.f32 %v8099, %v1568
  %v8164 = vadd.f32 %v8100, %v1569
  %v8165 = vadd.f32 %v8101, %v1562
  %v8166 = vadd.f32 %v8102, %v1563
  %v8167 = vadd.f32 %v8103, %v1564
  %v8168 = vadd.f32 %v8104, %v1565
  %v8169 = vadd.f32 %v8105, %v1566
  %v8170 = vadd.f32 %v8106, %v1567
  %v8171 = vadd.f32 %v8107, %v1568
  %v8172 = vadd.f32 %v8108, %v1569
  %v8173 = vadd.f32 %v8109, %v1562
  %v8174 = vadd.f32 %v8110, %v1563
  %v8175 = vadd.f32 %v8111, %v1564
  %v8176 = vadd.f32 %v8112, %v1565
  %v8177 = vadd.f32 %v8113, %v1566
  %v8178 = vadd.f32 %v8114, %v1567
  %v8179 = vadd.f32 %v8115, %v1568
  %v8180 = vadd.f32 %v8116, %v1569
  %v8181 = vadd.f32 %v8117, %v1562
  %v8182 = vadd.f32 %v8118, %v1563
  %v8183 = vadd.f32 %v8119, %v1564
  %v8184 = vadd.f32 %v8120, %v1565
  %v8185 = vadd.f32 %v8121, %v1566
  %v8186 = vadd.f32 %v8122, %v1567
  %v8187 = vadd.f32 %v8123, %v1568
  %v8188 = vadd.f32 %v8124, %v1569
  %v8189 = vsel %vm2515, %v8125, -inf
  %8190 = vmax.xlane.f32.xlu0 %v8189
  %v8191 = vpop.xlane.xlu0 %8190
  %v8192 = vsel %vm2515, %v8126, -inf
  %8193 = vmax.xlane.f32.xlu0 %v8192
  %v8194 = vpop.xlane.xlu0 %8193
  %v8195 = vsel %vm2515, %v8127, -inf
  %8196 = vmax.xlane.f32.xlu0 %v8195
  %v8197 = vpop.xlane.xlu0 %8196
  %v8198 = vsel %vm2515, %v8128, -inf
  %8199 = vmax.xlane.f32.xlu0 %v8198
  %v8200 = vpop.xlane.xlu0 %8199
  %v8201 = vsel %vm2515, %v8129, -inf
  %8202 = vmax.xlane.f32.xlu0 %v8201
  %v8203 = vpop.xlane.xlu0 %8202
  %v8204 = vsel %vm2515, %v8130, -inf
  %8205 = vmax.xlane.f32.xlu0 %v8204
  %v8206 = vpop.xlane.xlu0 %8205
  %v8207 = vsel %vm2515, %v8131, -inf
  %8208 = vmax.xlane.f32.xlu0 %v8207
  %v8209 = vpop.xlane.xlu0 %8208
  %v8210 = vsel %vm2515, %v8132, -inf
  %8211 = vmax.xlane.f32.xlu0 %v8210
  %v8212 = vpop.xlane.xlu0 %8211
  %v8213 = vsel %vm2515, %v8133, -inf
  %8214 = vmax.xlane.f32.xlu0 %v8213
  %v8215 = vpop.xlane.xlu0 %8214
  %v8216 = vsel %vm2515, %v8134, -inf
  %8217 = vmax.xlane.f32.xlu0 %v8216
  %v8218 = vpop.xlane.xlu0 %8217
  %v8219 = vsel %vm2515, %v8135, -inf
  %8220 = vmax.xlane.f32.xlu0 %v8219
  %v8221 = vpop.xlane.xlu0 %8220
  %v8222 = vsel %vm2515, %v8136, -inf
  %8223 = vmax.xlane.f32.xlu0 %v8222
  %v8224 = vpop.xlane.xlu0 %8223
  %v8225 = vsel %vm2515, %v8137, -inf
  %8226 = vmax.xlane.f32.xlu0 %v8225
  %v8227 = vpop.xlane.xlu0 %8226
  %v8228 = vsel %vm2515, %v8138, -inf
  %8229 = vmax.xlane.f32.xlu0 %v8228
  %v8230 = vpop.xlane.xlu0 %8229
  %v8231 = vsel %vm2515, %v8139, -inf
  %8232 = vmax.xlane.f32.xlu0 %v8231
  %v8233 = vpop.xlane.xlu0 %8232
  %v8234 = vsel %vm2515, %v8140, -inf
  %8235 = vmax.xlane.f32.xlu0 %v8234
  %v8236 = vpop.xlane.xlu0 %8235
  %v8237 = vsel %vm2515, %v8141, -inf
  %8238 = vmax.xlane.f32.xlu0 %v8237
  %v8239 = vpop.xlane.xlu0 %8238
  %v8240 = vsel %vm2515, %v8142, -inf
  %8241 = vmax.xlane.f32.xlu0 %v8240
  %v8242 = vpop.xlane.xlu0 %8241
  %v8243 = vsel %vm2515, %v8143, -inf
  %8244 = vmax.xlane.f32.xlu0 %v8243
  %v8245 = vpop.xlane.xlu0 %8244
  %v8246 = vsel %vm2515, %v8144, -inf
  %8247 = vmax.xlane.f32.xlu0 %v8246
  %v8248 = vpop.xlane.xlu0 %8247
  %v8249 = vsel %vm2515, %v8145, -inf
  %8250 = vmax.xlane.f32.xlu0 %v8249
  %v8251 = vpop.xlane.xlu0 %8250
  %v8252 = vsel %vm2515, %v8146, -inf
  %8253 = vmax.xlane.f32.xlu0 %v8252
  %v8254 = vpop.xlane.xlu0 %8253
  %v8255 = vsel %vm2515, %v8147, -inf
  %8256 = vmax.xlane.f32.xlu0 %v8255
  %v8257 = vpop.xlane.xlu0 %8256
  %v8258 = vsel %vm2515, %v8148, -inf
  %8259 = vmax.xlane.f32.xlu0 %v8258
  %v8260 = vpop.xlane.xlu0 %8259
  %v8261 = vsel %vm2515, %v8149, -inf
  %8262 = vmax.xlane.f32.xlu0 %v8261
  %v8263 = vpop.xlane.xlu0 %8262
  %v8264 = vsel %vm2515, %v8150, -inf
  %8265 = vmax.xlane.f32.xlu0 %v8264
  %v8266 = vpop.xlane.xlu0 %8265
  %v8267 = vsel %vm2515, %v8151, -inf
  %8268 = vmax.xlane.f32.xlu0 %v8267
  %v8269 = vpop.xlane.xlu0 %8268
  %v8270 = vsel %vm2515, %v8152, -inf
  %8271 = vmax.xlane.f32.xlu0 %v8270
  %v8272 = vpop.xlane.xlu0 %8271
  %v8273 = vsel %vm2515, %v8153, -inf
  %8274 = vmax.xlane.f32.xlu0 %v8273
  %v8275 = vpop.xlane.xlu0 %8274
  %v8276 = vsel %vm2515, %v8154, -inf
  %8277 = vmax.xlane.f32.xlu0 %v8276
  %v8278 = vpop.xlane.xlu0 %8277
  %v8279 = vsel %vm2515, %v8155, -inf
  %8280 = vmax.xlane.f32.xlu0 %v8279
  %v8281 = vpop.xlane.xlu0 %8280
  %v8282 = vsel %vm2515, %v8156, -inf
  %8283 = vmax.xlane.f32.xlu0 %v8282
  %v8284 = vpop.xlane.xlu0 %8283
  %v8285 = vsel %vm2515, %v8157, -inf
  %8286 = vmax.xlane.f32.xlu0 %v8285
  %v8287 = vpop.xlane.xlu0 %8286
  %v8288 = vsel %vm2515, %v8158, -inf
  %8289 = vmax.xlane.f32.xlu0 %v8288
  %v8290 = vpop.xlane.xlu0 %8289
  %v8291 = vsel %vm2515, %v8159, -inf
  %8292 = vmax.xlane.f32.xlu0 %v8291
  %v8293 = vpop.xlane.xlu0 %8292
  %v8294 = vsel %vm2515, %v8160, -inf
  %8295 = vmax.xlane.f32.xlu0 %v8294
  %v8296 = vpop.xlane.xlu0 %8295
  %v8297 = vsel %vm2515, %v8161, -inf
  %8298 = vmax.xlane.f32.xlu0 %v8297
  %v8299 = vpop.xlane.xlu0 %8298
  %v8300 = vsel %vm2515, %v8162, -inf
  %8301 = vmax.xlane.f32.xlu0 %v8300
  %v8302 = vpop.xlane.xlu0 %8301
  %v8303 = vsel %vm2515, %v8163, -inf
  %8304 = vmax.xlane.f32.xlu0 %v8303
  %v8305 = vpop.xlane.xlu0 %8304
  %v8306 = vsel %vm2515, %v8164, -inf
  %8307 = vmax.xlane.f32.xlu0 %v8306
  %v8308 = vpop.xlane.xlu0 %8307
  %v8309 = vsel %vm2515, %v8165, -inf
  %8310 = vmax.xlane.f32.xlu0 %v8309
  %v8311 = vpop.xlane.xlu0 %8310
  %v8312 = vsel %vm2515, %v8166, -inf
  %8313 = vmax.xlane.f32.xlu0 %v8312
  %v8314 = vpop.xlane.xlu0 %8313
  %v8315 = vsel %vm2515, %v8167, -inf
  %8316 = vmax.xlane.f32.xlu0 %v8315
  %v8317 = vpop.xlane.xlu0 %8316
  %v8318 = vsel %vm2515, %v8168, -inf
  %8319 = vmax.xlane.f32.xlu0 %v8318
  %v8320 = vpop.xlane.xlu0 %8319
  %v8321 = vsel %vm2515, %v8169, -inf
  %8322 = vmax.xlane.f32.xlu0 %v8321
  %v8323 = vpop.xlane.xlu0 %8322
  %v8324 = vsel %vm2515, %v8170, -inf
  %8325 = vmax.xlane.f32.xlu0 %v8324
  %v8326 = vpop.xlane.xlu0 %8325
  %v8327 = vsel %vm2515, %v8171, -inf
  %8328 = vmax.xlane.f32.xlu0 %v8327
  %v8329 = vpop.xlane.xlu0 %8328
  %v8330 = vsel %vm2515, %v8172, -inf
  %8331 = vmax.xlane.f32.xlu0 %v8330
  %v8332 = vpop.xlane.xlu0 %8331
  %v8333 = vsel %vm2515, %v8173, -inf
  %8334 = vmax.xlane.f32.xlu0 %v8333
  %v8335 = vpop.xlane.xlu0 %8334
  %v8336 = vsel %vm2515, %v8174, -inf
  %8337 = vmax.xlane.f32.xlu0 %v8336
  %v8338 = vpop.xlane.xlu0 %8337
  %v8339 = vsel %vm2515, %v8175, -inf
  %8340 = vmax.xlane.f32.xlu0 %v8339
  %v8341 = vpop.xlane.xlu0 %8340
  %v8342 = vsel %vm2515, %v8176, -inf
  %8343 = vmax.xlane.f32.xlu0 %v8342
  %v8344 = vpop.xlane.xlu0 %8343
  %v8345 = vsel %vm2515, %v8177, -inf
  %8346 = vmax.xlane.f32.xlu0 %v8345
  %v8347 = vpop.xlane.xlu0 %8346
  %v8348 = vsel %vm2515, %v8178, -inf
  %8349 = vmax.xlane.f32.xlu0 %v8348
  %v8350 = vpop.xlane.xlu0 %8349
  %v8351 = vsel %vm2515, %v8179, -inf
  %8352 = vmax.xlane.f32.xlu0 %v8351
  %v8353 = vpop.xlane.xlu0 %8352
  %v8354 = vsel %vm2515, %v8180, -inf
  %8355 = vmax.xlane.f32.xlu0 %v8354
  %v8356 = vpop.xlane.xlu0 %8355
  %v8357 = vsel %vm2515, %v8181, -inf
  %8358 = vmax.xlane.f32.xlu0 %v8357
  %v8359 = vpop.xlane.xlu0 %8358
  %v8360 = vsel %vm2515, %v8182, -inf
  %8361 = vmax.xlane.f32.xlu0 %v8360
  %v8362 = vpop.xlane.xlu0 %8361
  %v8363 = vsel %vm2515, %v8183, -inf
  %8364 = vmax.xlane.f32.xlu0 %v8363
  %v8365 = vpop.xlane.xlu0 %8364
  %v8366 = vsel %vm2515, %v8184, -inf
  %8367 = vmax.xlane.f32.xlu0 %v8366
  %v8368 = vpop.xlane.xlu0 %8367
  %v8369 = vsel %vm2515, %v8185, -inf
  %8370 = vmax.xlane.f32.xlu0 %v8369
  %v8371 = vpop.xlane.xlu0 %8370
  %v8372 = vsel %vm2515, %v8186, -inf
  %8373 = vmax.xlane.f32.xlu0 %v8372
  %v8374 = vpop.xlane.xlu0 %8373
  %v8375 = vsel %vm2515, %v8187, -inf
  %8376 = vmax.xlane.f32.xlu0 %v8375
  %v8377 = vpop.xlane.xlu0 %8376
  %v8378 = vsel %vm2515, %v8188, -inf
  %8379 = vmax.xlane.f32.xlu0 %v8378
  %v8380 = vpop.xlane.xlu0 %8379
  %v8381 = vsub.f32 %v8125, %v8191
  %v8382 = vsub.f32 %v8126, %v8194
  %v8383 = vsub.f32 %v8127, %v8197
  %v8384 = vsub.f32 %v8128, %v8200
  %v8385 = vsub.f32 %v8129, %v8203
  %v8386 = vsub.f32 %v8130, %v8206
  %v8387 = vsub.f32 %v8131, %v8209
  %v8388 = vsub.f32 %v8132, %v8212
  %v8389 = vsub.f32 %v8133, %v8215
  %v8390 = vsub.f32 %v8134, %v8218
  %v8391 = vsub.f32 %v8135, %v8221
  %v8392 = vsub.f32 %v8136, %v8224
  %v8393 = vsub.f32 %v8137, %v8227
  %v8394 = vsub.f32 %v8138, %v8230
  %v8395 = vsub.f32 %v8139, %v8233
  %v8396 = vsub.f32 %v8140, %v8236
  %v8397 = vsub.f32 %v8141, %v8239
  %v8398 = vsub.f32 %v8142, %v8242
  %v8399 = vsub.f32 %v8143, %v8245
  %v8400 = vsub.f32 %v8144, %v8248
  %v8401 = vsub.f32 %v8145, %v8251
  %v8402 = vsub.f32 %v8146, %v8254
  %v8403 = vsub.f32 %v8147, %v8257
  %v8404 = vsub.f32 %v8148, %v8260
  %v8405 = vsub.f32 %v8149, %v8263
  %v8406 = vsub.f32 %v8150, %v8266
  %v8407 = vsub.f32 %v8151, %v8269
  %v8408 = vsub.f32 %v8152, %v8272
  %v8409 = vsub.f32 %v8153, %v8275
  %v8410 = vsub.f32 %v8154, %v8278
  %v8411 = vsub.f32 %v8155, %v8281
  %v8412 = vsub.f32 %v8156, %v8284
  %v8413 = vsub.f32 %v8157, %v8287
  %v8414 = vsub.f32 %v8158, %v8290
  %v8415 = vsub.f32 %v8159, %v8293
  %v8416 = vsub.f32 %v8160, %v8296
  %v8417 = vsub.f32 %v8161, %v8299
  %v8418 = vsub.f32 %v8162, %v8302
  %v8419 = vsub.f32 %v8163, %v8305
  %v8420 = vsub.f32 %v8164, %v8308
  %v8421 = vsub.f32 %v8165, %v8311
  %v8422 = vsub.f32 %v8166, %v8314
  %v8423 = vsub.f32 %v8167, %v8317
  %v8424 = vsub.f32 %v8168, %v8320
  %v8425 = vsub.f32 %v8169, %v8323
  %v8426 = vsub.f32 %v8170, %v8326
  %v8427 = vsub.f32 %v8171, %v8329
  %v8428 = vsub.f32 %v8172, %v8332
  %v8429 = vsub.f32 %v8173, %v8335
  %v8430 = vsub.f32 %v8174, %v8338
  %v8431 = vsub.f32 %v8175, %v8341
  %v8432 = vsub.f32 %v8176, %v8344
  %v8433 = vsub.f32 %v8177, %v8347
  %v8434 = vsub.f32 %v8178, %v8350
  %v8435 = vsub.f32 %v8179, %v8353
  %v8436 = vsub.f32 %v8180, %v8356
  %v8437 = vsub.f32 %v8181, %v8359
  %v8438 = vsub.f32 %v8182, %v8362
  %v8439 = vsub.f32 %v8183, %v8365
  %v8440 = vsub.f32 %v8184, %v8368
  %v8441 = vsub.f32 %v8185, %v8371
  %v8442 = vsub.f32 %v8186, %v8374
  %v8443 = vsub.f32 %v8187, %v8377
  %v8444 = vsub.f32 %v8188, %v8380
  %v8445 = vmul.f32 %v8381, 1.442695
  %v8446 = vpow.pop %v8445
  %v8447 = vmul.f32 %v8382, 1.442695
  %v8448 = vpow.pop %v8447
  %v8449 = vmul.f32 %v8383, 1.442695
  %v8450 = vpow.pop %v8449
  %v8451 = vmul.f32 %v8384, 1.442695
  %v8452 = vpow.pop %v8451
  %v8453 = vmul.f32 %v8385, 1.442695
  %v8454 = vpow.pop %v8453
  %v8455 = vmul.f32 %v8386, 1.442695
  %v8456 = vpow.pop %v8455
  %v8457 = vmul.f32 %v8387, 1.442695
  %v8458 = vpow.pop %v8457
  %v8459 = vmul.f32 %v8388, 1.442695
  %v8460 = vpow.pop %v8459
  %v8461 = vmul.f32 %v8389, 1.442695
  %v8462 = vpow.pop %v8461
  %v8463 = vmul.f32 %v8390, 1.442695
  %v8464 = vpow.pop %v8463
  %v8465 = vmul.f32 %v8391, 1.442695
  %v8466 = vpow.pop %v8465
  %v8467 = vmul.f32 %v8392, 1.442695
  %v8468 = vpow.pop %v8467
  %v8469 = vmul.f32 %v8393, 1.442695
  %v8470 = vpow.pop %v8469
  %v8471 = vmul.f32 %v8394, 1.442695
  %v8472 = vpow.pop %v8471
  %v8473 = vmul.f32 %v8395, 1.442695
  %v8474 = vpow.pop %v8473
  %v8475 = vmul.f32 %v8396, 1.442695
  %v8476 = vpow.pop %v8475
  %v8477 = vmul.f32 %v8397, 1.442695
  %v8478 = vpow.pop %v8477
  %v8479 = vmul.f32 %v8398, 1.442695
  %v8480 = vpow.pop %v8479
  %v8481 = vmul.f32 %v8399, 1.442695
  %v8482 = vpow.pop %v8481
  %v8483 = vmul.f32 %v8400, 1.442695
  %v8484 = vpow.pop %v8483
  %v8485 = vmul.f32 %v8401, 1.442695
  %v8486 = vpow.pop %v8485
  %v8487 = vmul.f32 %v8402, 1.442695
  %v8488 = vpow.pop %v8487
  %v8489 = vmul.f32 %v8403, 1.442695
  %v8490 = vpow.pop %v8489
  %v8491 = vmul.f32 %v8404, 1.442695
  %v8492 = vpow.pop %v8491
  %v8493 = vmul.f32 %v8405, 1.442695
  %v8494 = vpow.pop %v8493
  %v8495 = vmul.f32 %v8406, 1.442695
  %v8496 = vpow.pop %v8495
  %v8497 = vmul.f32 %v8407, 1.442695
  %v8498 = vpow.pop %v8497
  %v8499 = vmul.f32 %v8408, 1.442695
  %v8500 = vpow.pop %v8499
  %v8501 = vmul.f32 %v8409, 1.442695
  %v8502 = vpow.pop %v8501
  %v8503 = vmul.f32 %v8410, 1.442695
  %v8504 = vpow.pop %v8503
  %v8505 = vmul.f32 %v8411, 1.442695
  %v8506 = vpow.pop %v8505
  %v8507 = vmul.f32 %v8412, 1.442695
  %v8508 = vpow.pop %v8507
  %v8509 = vmul.f32 %v8413, 1.442695
  %v8510 = vpow.pop %v8509
  %v8511 = vmul.f32 %v8414, 1.442695
  %v8512 = vpow.pop %v8511
  %v8513 = vmul.f32 %v8415, 1.442695
  %v8514 = vpow.pop %v8513
  %v8515 = vmul.f32 %v8416, 1.442695
  %v8516 = vpow.pop %v8515
  %v8517 = vmul.f32 %v8417, 1.442695
  %v8518 = vpow.pop %v8517
  %v8519 = vmul.f32 %v8418, 1.442695
  %v8520 = vpow.pop %v8519
  %v8521 = vmul.f32 %v8419, 1.442695
  %v8522 = vpow.pop %v8521
  %v8523 = vmul.f32 %v8420, 1.442695
  %v8524 = vpow.pop %v8523
  %v8525 = vmul.f32 %v8421, 1.442695
  %v8526 = vpow.pop %v8525
  %v8527 = vmul.f32 %v8422, 1.442695
  %v8528 = vpow.pop %v8527
  %v8529 = vmul.f32 %v8423, 1.442695
  %v8530 = vpow.pop %v8529
  %v8531 = vmul.f32 %v8424, 1.442695
  %v8532 = vpow.pop %v8531
  %v8533 = vmul.f32 %v8425, 1.442695
  %v8534 = vpow.pop %v8533
  %v8535 = vmul.f32 %v8426, 1.442695
  %v8536 = vpow.pop %v8535
  %v8537 = vmul.f32 %v8427, 1.442695
  %v8538 = vpow.pop %v8537
  %v8539 = vmul.f32 %v8428, 1.442695
  %v8540 = vpow.pop %v8539
  %v8541 = vmul.f32 %v8429, 1.442695
  %v8542 = vpow.pop %v8541
  %v8543 = vmul.f32 %v8430, 1.442695
  %v8544 = vpow.pop %v8543
  %v8545 = vmul.f32 %v8431, 1.442695
  %v8546 = vpow.pop %v8545
  %v8547 = vmul.f32 %v8432, 1.442695
  %v8548 = vpow.pop %v8547
  %v8549 = vmul.f32 %v8433, 1.442695
  %v8550 = vpow.pop %v8549
  %v8551 = vmul.f32 %v8434, 1.442695
  %v8552 = vpow.pop %v8551
  %v8553 = vmul.f32 %v8435, 1.442695
  %v8554 = vpow.pop %v8553
  %v8555 = vmul.f32 %v8436, 1.442695
  %v8556 = vpow.pop %v8555
  %v8557 = vmul.f32 %v8437, 1.442695
  %v8558 = vpow.pop %v8557
  %v8559 = vmul.f32 %v8438, 1.442695
  %v8560 = vpow.pop %v8559
  %v8561 = vmul.f32 %v8439, 1.442695
  %v8562 = vpow.pop %v8561
  %v8563 = vmul.f32 %v8440, 1.442695
  %v8564 = vpow.pop %v8563
  %v8565 = vmul.f32 %v8441, 1.442695
  %v8566 = vpow.pop %v8565
  %v8567 = vmul.f32 %v8442, 1.442695
  %v8568 = vpow.pop %v8567
  %v8569 = vmul.f32 %v8443, 1.442695
  %v8570 = vpow.pop %v8569
  %v8571 = vmul.f32 %v8444, 1.442695
  %v8572 = vpow.pop %v8571
  %v8573 = vsel %vm2515, %v8446, 0.0
  %8574 = vadd.xlane.f32.xlu0 %v8573
  %v8575 = vpop.xlane.xlu0 %8574
  %v8576 = vsel %vm2515, %v8448, 0.0
  %8577 = vadd.xlane.f32.xlu0 %v8576
  %v8578 = vpop.xlane.xlu0 %8577
  %v8579 = vsel %vm2515, %v8450, 0.0
  %8580 = vadd.xlane.f32.xlu0 %v8579
  %v8581 = vpop.xlane.xlu0 %8580
  %v8582 = vsel %vm2515, %v8452, 0.0
  %8583 = vadd.xlane.f32.xlu0 %v8582
  %v8584 = vpop.xlane.xlu0 %8583
  %v8585 = vsel %vm2515, %v8454, 0.0
  %8586 = vadd.xlane.f32.xlu0 %v8585
  %v8587 = vpop.xlane.xlu0 %8586
  %v8588 = vsel %vm2515, %v8456, 0.0
  %8589 = vadd.xlane.f32.xlu0 %v8588
  %v8590 = vpop.xlane.xlu0 %8589
  %v8591 = vsel %vm2515, %v8458, 0.0
  %8592 = vadd.xlane.f32.xlu0 %v8591
  %v8593 = vpop.xlane.xlu0 %8592
  %v8594 = vsel %vm2515, %v8460, 0.0
  %8595 = vadd.xlane.f32.xlu0 %v8594
  %v8596 = vpop.xlane.xlu0 %8595
  %v8597 = vsel %vm2515, %v8462, 0.0
  %8598 = vadd.xlane.f32.xlu0 %v8597
  %v8599 = vpop.xlane.xlu0 %8598
  %v8600 = vsel %vm2515, %v8464, 0.0
  %8601 = vadd.xlane.f32.xlu0 %v8600
  %v8602 = vpop.xlane.xlu0 %8601
  %v8603 = vsel %vm2515, %v8466, 0.0
  %8604 = vadd.xlane.f32.xlu0 %v8603
  %v8605 = vpop.xlane.xlu0 %8604
  %v8606 = vsel %vm2515, %v8468, 0.0
  %8607 = vadd.xlane.f32.xlu0 %v8606
  %v8608 = vpop.xlane.xlu0 %8607
  %v8609 = vsel %vm2515, %v8470, 0.0
  %8610 = vadd.xlane.f32.xlu0 %v8609
  %v8611 = vpop.xlane.xlu0 %8610
  %v8612 = vsel %vm2515, %v8472, 0.0
  %8613 = vadd.xlane.f32.xlu0 %v8612
  %v8614 = vpop.xlane.xlu0 %8613
  %v8615 = vsel %vm2515, %v8474, 0.0
  %8616 = vadd.xlane.f32.xlu0 %v8615
  %v8617 = vpop.xlane.xlu0 %8616
  %v8618 = vsel %vm2515, %v8476, 0.0
  %8619 = vadd.xlane.f32.xlu0 %v8618
  %v8620 = vpop.xlane.xlu0 %8619
  %v8621 = vsel %vm2515, %v8478, 0.0
  %8622 = vadd.xlane.f32.xlu0 %v8621
  %v8623 = vpop.xlane.xlu0 %8622
  %v8624 = vsel %vm2515, %v8480, 0.0
  %8625 = vadd.xlane.f32.xlu0 %v8624
  %v8626 = vpop.xlane.xlu0 %8625
  %v8627 = vsel %vm2515, %v8482, 0.0
  %8628 = vadd.xlane.f32.xlu0 %v8627
  %v8629 = vpop.xlane.xlu0 %8628
  %v8630 = vsel %vm2515, %v8484, 0.0
  %8631 = vadd.xlane.f32.xlu0 %v8630
  %v8632 = vpop.xlane.xlu0 %8631
  %v8633 = vsel %vm2515, %v8486, 0.0
  %8634 = vadd.xlane.f32.xlu0 %v8633
  %v8635 = vpop.xlane.xlu0 %8634
  %v8636 = vsel %vm2515, %v8488, 0.0
  %8637 = vadd.xlane.f32.xlu0 %v8636
  %v8638 = vpop.xlane.xlu0 %8637
  %v8639 = vsel %vm2515, %v8490, 0.0
  %8640 = vadd.xlane.f32.xlu0 %v8639
  %v8641 = vpop.xlane.xlu0 %8640
  %v8642 = vsel %vm2515, %v8492, 0.0
  %8643 = vadd.xlane.f32.xlu0 %v8642
  %v8644 = vpop.xlane.xlu0 %8643
  %v8645 = vsel %vm2515, %v8494, 0.0
  %8646 = vadd.xlane.f32.xlu0 %v8645
  %v8647 = vpop.xlane.xlu0 %8646
  %v8648 = vsel %vm2515, %v8496, 0.0
  %8649 = vadd.xlane.f32.xlu0 %v8648
  %v8650 = vpop.xlane.xlu0 %8649
  %v8651 = vsel %vm2515, %v8498, 0.0
  %8652 = vadd.xlane.f32.xlu0 %v8651
  %v8653 = vpop.xlane.xlu0 %8652
  %v8654 = vsel %vm2515, %v8500, 0.0
  %8655 = vadd.xlane.f32.xlu0 %v8654
  %v8656 = vpop.xlane.xlu0 %8655
  %v8657 = vsel %vm2515, %v8502, 0.0
  %8658 = vadd.xlane.f32.xlu0 %v8657
  %v8659 = vpop.xlane.xlu0 %8658
  %v8660 = vsel %vm2515, %v8504, 0.0
  %8661 = vadd.xlane.f32.xlu0 %v8660
  %v8662 = vpop.xlane.xlu0 %8661
  %v8663 = vsel %vm2515, %v8506, 0.0
  %8664 = vadd.xlane.f32.xlu0 %v8663
  %v8665 = vpop.xlane.xlu0 %8664
  %v8666 = vsel %vm2515, %v8508, 0.0
  %8667 = vadd.xlane.f32.xlu0 %v8666
  %v8668 = vpop.xlane.xlu0 %8667
  %v8669 = vsel %vm2515, %v8510, 0.0
  %8670 = vadd.xlane.f32.xlu0 %v8669
  %v8671 = vpop.xlane.xlu0 %8670
  %v8672 = vsel %vm2515, %v8512, 0.0
  %8673 = vadd.xlane.f32.xlu0 %v8672
  %v8674 = vpop.xlane.xlu0 %8673
  %v8675 = vsel %vm2515, %v8514, 0.0
  %8676 = vadd.xlane.f32.xlu0 %v8675
  %v8677 = vpop.xlane.xlu0 %8676
  %v8678 = vsel %vm2515, %v8516, 0.0
  %8679 = vadd.xlane.f32.xlu0 %v8678
  %v8680 = vpop.xlane.xlu0 %8679
  %v8681 = vsel %vm2515, %v8518, 0.0
  %8682 = vadd.xlane.f32.xlu0 %v8681
  %v8683 = vpop.xlane.xlu0 %8682
  %v8684 = vsel %vm2515, %v8520, 0.0
  %8685 = vadd.xlane.f32.xlu0 %v8684
  %v8686 = vpop.xlane.xlu0 %8685
  %v8687 = vsel %vm2515, %v8522, 0.0
  %8688 = vadd.xlane.f32.xlu0 %v8687
  %v8689 = vpop.xlane.xlu0 %8688
  %v8690 = vsel %vm2515, %v8524, 0.0
  %8691 = vadd.xlane.f32.xlu0 %v8690
  %v8692 = vpop.xlane.xlu0 %8691
  %v8693 = vsel %vm2515, %v8526, 0.0
  %8694 = vadd.xlane.f32.xlu0 %v8693
  %v8695 = vpop.xlane.xlu0 %8694
  %v8696 = vsel %vm2515, %v8528, 0.0
  %8697 = vadd.xlane.f32.xlu0 %v8696
  %v8698 = vpop.xlane.xlu0 %8697
  %v8699 = vsel %vm2515, %v8530, 0.0
  %8700 = vadd.xlane.f32.xlu0 %v8699
  %v8701 = vpop.xlane.xlu0 %8700
  %v8702 = vsel %vm2515, %v8532, 0.0
  %8703 = vadd.xlane.f32.xlu0 %v8702
  %v8704 = vpop.xlane.xlu0 %8703
  %v8705 = vsel %vm2515, %v8534, 0.0
  %8706 = vadd.xlane.f32.xlu0 %v8705
  %v8707 = vpop.xlane.xlu0 %8706
  %v8708 = vsel %vm2515, %v8536, 0.0
  %8709 = vadd.xlane.f32.xlu0 %v8708
  %v8710 = vpop.xlane.xlu0 %8709
  %v8711 = vsel %vm2515, %v8538, 0.0
  %8712 = vadd.xlane.f32.xlu0 %v8711
  %v8713 = vpop.xlane.xlu0 %8712
  %v8714 = vsel %vm2515, %v8540, 0.0
  %8715 = vadd.xlane.f32.xlu0 %v8714
  %v8716 = vpop.xlane.xlu0 %8715
  %v8717 = vsel %vm2515, %v8542, 0.0
  %8718 = vadd.xlane.f32.xlu0 %v8717
  %v8719 = vpop.xlane.xlu0 %8718
  %v8720 = vsel %vm2515, %v8544, 0.0
  %8721 = vadd.xlane.f32.xlu0 %v8720
  %v8722 = vpop.xlane.xlu0 %8721
  %v8723 = vsel %vm2515, %v8546, 0.0
  %8724 = vadd.xlane.f32.xlu0 %v8723
  %v8725 = vpop.xlane.xlu0 %8724
  %v8726 = vsel %vm2515, %v8548, 0.0
  %8727 = vadd.xlane.f32.xlu0 %v8726
  %v8728 = vpop.xlane.xlu0 %8727
  %v8729 = vsel %vm2515, %v8550, 0.0
  %8730 = vadd.xlane.f32.xlu0 %v8729
  %v8731 = vpop.xlane.xlu0 %8730
  %v8732 = vsel %vm2515, %v8552, 0.0
  %8733 = vadd.xlane.f32.xlu0 %v8732
  %v8734 = vpop.xlane.xlu0 %8733
  %v8735 = vsel %vm2515, %v8554, 0.0
  %8736 = vadd.xlane.f32.xlu0 %v8735
  %v8737 = vpop.xlane.xlu0 %8736
  %v8738 = vsel %vm2515, %v8556, 0.0
  %8739 = vadd.xlane.f32.xlu0 %v8738
  %v8740 = vpop.xlane.xlu0 %8739
  %v8741 = vsel %vm2515, %v8558, 0.0
  %8742 = vadd.xlane.f32.xlu0 %v8741
  %v8743 = vpop.xlane.xlu0 %8742
  %v8744 = vsel %vm2515, %v8560, 0.0
  %8745 = vadd.xlane.f32.xlu0 %v8744
  %v8746 = vpop.xlane.xlu0 %8745
  %v8747 = vsel %vm2515, %v8562, 0.0
  %8748 = vadd.xlane.f32.xlu0 %v8747
  %v8749 = vpop.xlane.xlu0 %8748
  %v8750 = vsel %vm2515, %v8564, 0.0
  %8751 = vadd.xlane.f32.xlu0 %v8750
  %v8752 = vpop.xlane.xlu0 %8751
  %v8753 = vsel %vm2515, %v8566, 0.0
  %8754 = vadd.xlane.f32.xlu0 %v8753
  %v8755 = vpop.xlane.xlu0 %8754
  %v8756 = vsel %vm2515, %v8568, 0.0
  %8757 = vadd.xlane.f32.xlu0 %v8756
  %v8758 = vpop.xlane.xlu0 %8757
  %v8759 = vsel %vm2515, %v8570, 0.0
  %8760 = vadd.xlane.f32.xlu0 %v8759
  %v8761 = vpop.xlane.xlu0 %8760
  %v8762 = vsel %vm2515, %v8572, 0.0
  %8763 = vadd.xlane.f32.xlu0 %v8762
  %v8764 = vpop.xlane.xlu0 %8763
  %v8765 = vrcp.pop %v8575
  %v8766 = vrcp.pop %v8578
  %v8767 = vrcp.pop %v8581
  %v8768 = vrcp.pop %v8584
  %v8769 = vrcp.pop %v8587
  %v8770 = vrcp.pop %v8590
  %v8771 = vrcp.pop %v8593
  %v8772 = vrcp.pop %v8596
  %v8773 = vrcp.pop %v8599
  %v8774 = vrcp.pop %v8602
  %v8775 = vrcp.pop %v8605
  %v8776 = vrcp.pop %v8608
  %v8777 = vrcp.pop %v8611
  %v8778 = vrcp.pop %v8614
  %v8779 = vrcp.pop %v8617
  %v8780 = vrcp.pop %v8620
  %v8781 = vrcp.pop %v8623
  %v8782 = vrcp.pop %v8626
  %v8783 = vrcp.pop %v8629
  %v8784 = vrcp.pop %v8632
  %v8785 = vrcp.pop %v8635
  %v8786 = vrcp.pop %v8638
  %v8787 = vrcp.pop %v8641
  %v8788 = vrcp.pop %v8644
  %v8789 = vrcp.pop %v8647
  %v8790 = vrcp.pop %v8650
  %v8791 = vrcp.pop %v8653
  %v8792 = vrcp.pop %v8656
  %v8793 = vrcp.pop %v8659
  %v8794 = vrcp.pop %v8662
  %v8795 = vrcp.pop %v8665
  %v8796 = vrcp.pop %v8668
  %v8797 = vrcp.pop %v8671
  %v8798 = vrcp.pop %v8674
  %v8799 = vrcp.pop %v8677
  %v8800 = vrcp.pop %v8680
  %v8801 = vrcp.pop %v8683
  %v8802 = vrcp.pop %v8686
  %v8803 = vrcp.pop %v8689
  %v8804 = vrcp.pop %v8692
  %v8805 = vrcp.pop %v8695
  %v8806 = vrcp.pop %v8698
  %v8807 = vrcp.pop %v8701
  %v8808 = vrcp.pop %v8704
  %v8809 = vrcp.pop %v8707
  %v8810 = vrcp.pop %v8710
  %v8811 = vrcp.pop %v8713
  %v8812 = vrcp.pop %v8716
  %v8813 = vrcp.pop %v8719
  %v8814 = vrcp.pop %v8722
  %v8815 = vrcp.pop %v8725
  %v8816 = vrcp.pop %v8728
  %v8817 = vrcp.pop %v8731
  %v8818 = vrcp.pop %v8734
  %v8819 = vrcp.pop %v8737
  %v8820 = vrcp.pop %v8740
  %v8821 = vrcp.pop %v8743
  %v8822 = vrcp.pop %v8746
  %v8823 = vrcp.pop %v8749
  %v8824 = vrcp.pop %v8752
  %v8825 = vrcp.pop %v8755
  %v8826 = vrcp.pop %v8758
  %v8827 = vrcp.pop %v8761
  %v8828 = vrcp.pop %v8764
  %v8829 = vmul.f32 %v8446, %v8765
  %v8830 = vmul.f32 %v8448, %v8766
  %v8831 = vmul.f32 %v8450, %v8767
  %v8832 = vmul.f32 %v8452, %v8768
  %v8833 = vmul.f32 %v8454, %v8769
  %v8834 = vmul.f32 %v8456, %v8770
  %v8835 = vmul.f32 %v8458, %v8771
  %v8836 = vmul.f32 %v8460, %v8772
  %v8837 = vmul.f32 %v8462, %v8773
  %v8838 = vmul.f32 %v8464, %v8774
  %v8839 = vmul.f32 %v8466, %v8775
  %v8840 = vmul.f32 %v8468, %v8776
  %v8841 = vmul.f32 %v8470, %v8777
  %v8842 = vmul.f32 %v8472, %v8778
  %v8843 = vmul.f32 %v8474, %v8779
  %v8844 = vmul.f32 %v8476, %v8780
  %v8845 = vmul.f32 %v8478, %v8781
  %v8846 = vmul.f32 %v8480, %v8782
  %v8847 = vmul.f32 %v8482, %v8783
  %v8848 = vmul.f32 %v8484, %v8784
  %v8849 = vmul.f32 %v8486, %v8785
  %v8850 = vmul.f32 %v8488, %v8786
  %v8851 = vmul.f32 %v8490, %v8787
  %v8852 = vmul.f32 %v8492, %v8788
  %v8853 = vmul.f32 %v8494, %v8789
  %v8854 = vmul.f32 %v8496, %v8790
  %v8855 = vmul.f32 %v8498, %v8791
  %v8856 = vmul.f32 %v8500, %v8792
  %v8857 = vmul.f32 %v8502, %v8793
  %v8858 = vmul.f32 %v8504, %v8794
  %v8859 = vmul.f32 %v8506, %v8795
  %v8860 = vmul.f32 %v8508, %v8796
  %v8861 = vmul.f32 %v8510, %v8797
  %v8862 = vmul.f32 %v8512, %v8798
  %v8863 = vmul.f32 %v8514, %v8799
  %v8864 = vmul.f32 %v8516, %v8800
  %v8865 = vmul.f32 %v8518, %v8801
  %v8866 = vmul.f32 %v8520, %v8802
  %v8867 = vmul.f32 %v8522, %v8803
  %v8868 = vmul.f32 %v8524, %v8804
  %v8869 = vmul.f32 %v8526, %v8805
  %v8870 = vmul.f32 %v8528, %v8806
  %v8871 = vmul.f32 %v8530, %v8807
  %v8872 = vmul.f32 %v8532, %v8808
  %v8873 = vmul.f32 %v8534, %v8809
  %v8874 = vmul.f32 %v8536, %v8810
  %v8875 = vmul.f32 %v8538, %v8811
  %v8876 = vmul.f32 %v8540, %v8812
  %v8877 = vmul.f32 %v8542, %v8813
  %v8878 = vmul.f32 %v8544, %v8814
  %v8879 = vmul.f32 %v8546, %v8815
  %v8880 = vmul.f32 %v8548, %v8816
  %v8881 = vmul.f32 %v8550, %v8817
  %v8882 = vmul.f32 %v8552, %v8818
  %v8883 = vmul.f32 %v8554, %v8819
  %v8884 = vmul.f32 %v8556, %v8820
  %v8885 = vmul.f32 %v8558, %v8821
  %v8886 = vmul.f32 %v8560, %v8822
  %v8887 = vmul.f32 %v8562, %v8823
  %v8888 = vmul.f32 %v8564, %v8824
  %v8889 = vmul.f32 %v8566, %v8825
  %v8890 = vmul.f32 %v8568, %v8826
  %v8891 = vmul.f32 %v8570, %v8827
  %v8892 = vmul.f32 %v8572, %v8828
  %v8893 = vpack.c.bf16 %v8830, %v8829
  %v8894 = vpack.c.bf16 %v8832, %v8831
  %v8895 = vpack.c.bf16 %v8834, %v8833
  %v8896 = vpack.c.bf16 %v8836, %v8835
  %v8897 = vpack.c.bf16 %v8838, %v8837
  %v8898 = vpack.c.bf16 %v8840, %v8839
  %v8899 = vpack.c.bf16 %v8842, %v8841
  %v8900 = vpack.c.bf16 %v8844, %v8843
  %v8901 = vpack.c.bf16 %v8846, %v8845
  %v8902 = vpack.c.bf16 %v8848, %v8847
  %v8903 = vpack.c.bf16 %v8850, %v8849
  %v8904 = vpack.c.bf16 %v8852, %v8851
  %v8905 = vpack.c.bf16 %v8854, %v8853
  %v8906 = vpack.c.bf16 %v8856, %v8855
  %v8907 = vpack.c.bf16 %v8858, %v8857
  %v8908 = vpack.c.bf16 %v8860, %v8859
  %v8909 = vpack.c.bf16 %v8862, %v8861
  %v8910 = vpack.c.bf16 %v8864, %v8863
  %v8911 = vpack.c.bf16 %v8866, %v8865
  %v8912 = vpack.c.bf16 %v8868, %v8867
  %v8913 = vpack.c.bf16 %v8870, %v8869
  %v8914 = vpack.c.bf16 %v8872, %v8871
  %v8915 = vpack.c.bf16 %v8874, %v8873
  %v8916 = vpack.c.bf16 %v8876, %v8875
  %v8917 = vpack.c.bf16 %v8878, %v8877
  %v8918 = vpack.c.bf16 %v8880, %v8879
  %v8919 = vpack.c.bf16 %v8882, %v8881
  %v8920 = vpack.c.bf16 %v8884, %v8883
  %v8921 = vpack.c.bf16 %v8886, %v8885
  %v8922 = vpack.c.bf16 %v8888, %v8887
  %v8923 = vpack.c.bf16 %v8890, %v8889
  %v8924 = vpack.c.bf16 %v8892, %v8891
  %8925 = vrot.lane.b32.xlu0 %v1510, 48
  %v8926 = vpop.permute.xlu0 %8925
  %8927 = vrot.lane.b32.xlu0 %v1511, 48
  %v8928 = vpop.permute.xlu0 %8927
  %8929 = vrot.lane.b32.xlu0 %v1512, 48
  %v8930 = vpop.permute.xlu0 %8929
  %8931 = vrot.lane.b32.xlu0 %v1513, 48
  %v8932 = vpop.permute.xlu0 %8931
  %v8938 = vsel %vm2515, %v8893, 0
  %v8941 = vsel %vm2515, %v8894, 0
  %v8944 = vsel %vm2515, %v8895, 0
  %v8947 = vsel %vm2515, %v8896, 0
  %8949 = vmatprep.subr.bf16.mxu0 0
  %8950 = vmatpush1.bf16.msra.mxu0 0
  %8951 = vmatprep.subr.bf16.mxu0 0
  %8952 = vmatpush1.bf16.msra.mxu0 0
  %8953 = vmatprep.subr.bf16.mxu0 0
  %8954 = vmatpush1.bf16.msra.mxu0 0
  %8955 = vmatprep.subr.bf16.mxu0 0
  %8956 = vmatpush1.bf16.msra.mxu0 0
  %8957 = vmatprep.subr.bf16.mxu0 0
  %8958 = vmatpush1.bf16.msra.mxu0 %v8932
  %8959 = vmatprep.subr.bf16.mxu0 0
  %8960 = vmatpush1.bf16.msra.mxu0 %v8930
  %8961 = vmatprep.subr.bf16.mxu0 0
  %8962 = vmatpush1.bf16.msra.mxu0 %v8928
  %8963 = vmatprep.subr.bf16.mxu0 0
  %8964 = vmatpush1.bf16.msra.mxu0 %v8926
  %8965 = vmatprep.subr.bf16.mxu0 0
  %8966 = vmatpush2.bf16.msra.mxu0 0
  %8967 = vmatprep.subr.bf16.mxu0 0
  %8968 = vmatpush2.bf16.msra.mxu0 0
  %8969 = vmatprep.subr.bf16.mxu0 0
  %8970 = vmatpush2.bf16.msra.mxu0 0
  %8971 = vmatprep.subr.bf16.mxu0 0
  %8972 = vmatpush2.bf16.msra.mxu0 0
  %8973 = vmatprep.subr.bf16.mxu0 0
  %8974 = vmatpush2.bf16.msra.mxu0 0
  %8975 = vmatprep.subr.bf16.mxu0 0
  %8976 = vmatpush2.bf16.msra.mxu0 0
  %8977 = vmatprep.subr.bf16.mxu0 0
  %8978 = vmatpush2.bf16.msra.mxu0 0
  %8979 = vmatprep.subr.bf16.mxu0 0
  %8980 = vmatpush2.bf16.msra.mxu0 0
  %8981 = vmatprep.mubr.bf16.mxu0 0
  %8982 = vmatmul.mubr.bf16.gmra.mxu0 %v8938
  %v8983 = vpop.f32.mrf.mxu0
  %v8984 = vadd.f32 0.0, %v8983
  %v8985 = vpop.f32.mrf.mxu0
  %v8986 = vpop.f32.mrf.mxu0
  %v8987 = vadd.f32 0.0, %v8986
  %v8988 = vpop.f32.mrf.mxu0
  %8989 = vmatprep.mubr.bf16.mxu0 0
  %8990 = vmatmul.mubr.bf16.gmra.mxu0 %v8941
  %v8991 = vpop.f32.mrf.mxu0
  %v8992 = vadd.f32 0.0, %v8991
  %v8993 = vpop.f32.mrf.mxu0
  %v8994 = vpop.f32.mrf.mxu0
  %v8995 = vadd.f32 0.0, %v8994
  %v8996 = vpop.f32.mrf.mxu0
  %8997 = vmatprep.mubr.bf16.mxu0 0
  %8998 = vmatmul.mubr.bf16.gmra.mxu0 %v8944
  %v8999 = vpop.f32.mrf.mxu0
  %v9000 = vadd.f32 0.0, %v8999
  %v9001 = vpop.f32.mrf.mxu0
  %v9002 = vpop.f32.mrf.mxu0
  %v9003 = vadd.f32 0.0, %v9002
  %v9004 = vpop.f32.mrf.mxu0
  %9005 = vmatprep.mubr.bf16.mxu0 0
  %9006 = vmatmul.mubr.bf16.gmra.mxu0 %v8947
  %v9007 = vpop.f32.mrf.mxu0
  %v9008 = vadd.f32 0.0, %v9007
  %v9009 = vpop.f32.mrf.mxu0
  %v9010 = vpop.f32.mrf.mxu0
  %v9011 = vadd.f32 0.0, %v9010
  %v9012 = vpop.f32.mrf.mxu0
  %9013 = vdwg.mxu0
  %9014 = vrot.lane.b32.xlu0 %v1514, 48
  %v9015 = vpop.permute.xlu0 %9014
  %9016 = vrot.lane.b32.xlu0 %v1515, 48
  %v9017 = vpop.permute.xlu0 %9016
  %9018 = vrot.lane.b32.xlu0 %v1516, 48
  %v9019 = vpop.permute.xlu0 %9018
  %9020 = vrot.lane.b32.xlu0 %v1517, 48
  %v9021 = vpop.permute.xlu0 %9020
  %v9027 = vsel %vm2515, %v8897, 0
  %v9030 = vsel %vm2515, %v8898, 0
  %v9033 = vsel %vm2515, %v8899, 0
  %v9036 = vsel %vm2515, %v8900, 0
  %9038 = vmatprep.subr.bf16.mxu0 0
  %9039 = vmatpush1.bf16.msra.mxu0 0
  %9040 = vmatprep.subr.bf16.mxu0 0
  %9041 = vmatpush1.bf16.msra.mxu0 0
  %9042 = vmatprep.subr.bf16.mxu0 0
  %9043 = vmatpush1.bf16.msra.mxu0 0
  %9044 = vmatprep.subr.bf16.mxu0 0
  %9045 = vmatpush1.bf16.msra.mxu0 0
  %9046 = vmatprep.subr.bf16.mxu0 0
  %9047 = vmatpush1.bf16.msra.mxu0 %v9021
  %9048 = vmatprep.subr.bf16.mxu0 0
  %9049 = vmatpush1.bf16.msra.mxu0 %v9019
  %9050 = vmatprep.subr.bf16.mxu0 0
  %9051 = vmatpush1.bf16.msra.mxu0 %v9017
  %9052 = vmatprep.subr.bf16.mxu0 0
  %9053 = vmatpush1.bf16.msra.mxu0 %v9015
  %9054 = vmatprep.subr.bf16.mxu0 0
  %9055 = vmatpush2.bf16.msra.mxu0 0
  %9056 = vmatprep.subr.bf16.mxu0 0
  %9057 = vmatpush2.bf16.msra.mxu0 0
  %9058 = vmatprep.subr.bf16.mxu0 0
  %9059 = vmatpush2.bf16.msra.mxu0 0
  %9060 = vmatprep.subr.bf16.mxu0 0
  %9061 = vmatpush2.bf16.msra.mxu0 0
  %9062 = vmatprep.subr.bf16.mxu0 0
  %9063 = vmatpush2.bf16.msra.mxu0 0
  %9064 = vmatprep.subr.bf16.mxu0 0
  %9065 = vmatpush2.bf16.msra.mxu0 0
  %9066 = vmatprep.subr.bf16.mxu0 0
  %9067 = vmatpush2.bf16.msra.mxu0 0
  %9068 = vmatprep.subr.bf16.mxu0 0
  %9069 = vmatpush2.bf16.msra.mxu0 0
  %9070 = vmatprep.mubr.bf16.mxu0 0
  %9071 = vmatmul.mubr.bf16.gmra.mxu0 %v9027
  %v9072 = vpop.f32.mrf.mxu0
  %v9073 = vadd.f32 0.0, %v9072
  %v9074 = vpop.f32.mrf.mxu0
  %v9075 = vpop.f32.mrf.mxu0
  %v9076 = vadd.f32 0.0, %v9075
  %v9077 = vpop.f32.mrf.mxu0
  %9078 = vmatprep.mubr.bf16.mxu0 0
  %9079 = vmatmul.mubr.bf16.gmra.mxu0 %v9030
  %v9080 = vpop.f32.mrf.mxu0
  %v9081 = vadd.f32 0.0, %v9080
  %v9082 = vpop.f32.mrf.mxu0
  %v9083 = vpop.f32.mrf.mxu0
  %v9084 = vadd.f32 0.0, %v9083
  %v9085 = vpop.f32.mrf.mxu0
  %9086 = vmatprep.mubr.bf16.mxu0 0
  %9087 = vmatmul.mubr.bf16.gmra.mxu0 %v9033
  %v9088 = vpop.f32.mrf.mxu0
  %v9089 = vadd.f32 0.0, %v9088
  %v9090 = vpop.f32.mrf.mxu0
  %v9091 = vpop.f32.mrf.mxu0
  %v9092 = vadd.f32 0.0, %v9091
  %v9093 = vpop.f32.mrf.mxu0
  %9094 = vmatprep.mubr.bf16.mxu0 0
  %9095 = vmatmul.mubr.bf16.gmra.mxu0 %v9036
  %v9096 = vpop.f32.mrf.mxu0
  %v9097 = vadd.f32 0.0, %v9096
  %v9098 = vpop.f32.mrf.mxu0
  %v9099 = vpop.f32.mrf.mxu0
  %v9100 = vadd.f32 0.0, %v9099
  %v9101 = vpop.f32.mrf.mxu0
  %9102 = vdwg.mxu0
  %9103 = vrot.lane.b32.xlu0 %v1518, 48
  %v9104 = vpop.permute.xlu0 %9103
  %9105 = vrot.lane.b32.xlu0 %v1519, 48
  %v9106 = vpop.permute.xlu0 %9105
  %9107 = vrot.lane.b32.xlu0 %v1520, 48
  %v9108 = vpop.permute.xlu0 %9107
  %9109 = vrot.lane.b32.xlu0 %v1521, 48
  %v9110 = vpop.permute.xlu0 %9109
  %v9116 = vsel %vm2515, %v8901, 0
  %v9119 = vsel %vm2515, %v8902, 0
  %v9122 = vsel %vm2515, %v8903, 0
  %v9125 = vsel %vm2515, %v8904, 0
  %9127 = vmatprep.subr.bf16.mxu0 0
  %9128 = vmatpush1.bf16.msra.mxu0 0
  %9129 = vmatprep.subr.bf16.mxu0 0
  %9130 = vmatpush1.bf16.msra.mxu0 0
  %9131 = vmatprep.subr.bf16.mxu0 0
  %9132 = vmatpush1.bf16.msra.mxu0 0
  %9133 = vmatprep.subr.bf16.mxu0 0
  %9134 = vmatpush1.bf16.msra.mxu0 0
  %9135 = vmatprep.subr.bf16.mxu0 0
  %9136 = vmatpush1.bf16.msra.mxu0 %v9110
  %9137 = vmatprep.subr.bf16.mxu0 0
  %9138 = vmatpush1.bf16.msra.mxu0 %v9108
  %9139 = vmatprep.subr.bf16.mxu0 0
  %9140 = vmatpush1.bf16.msra.mxu0 %v9106
  %9141 = vmatprep.subr.bf16.mxu0 0
  %9142 = vmatpush1.bf16.msra.mxu0 %v9104
  %9143 = vmatprep.subr.bf16.mxu0 0
  %9144 = vmatpush2.bf16.msra.mxu0 0
  %9145 = vmatprep.subr.bf16.mxu0 0
  %9146 = vmatpush2.bf16.msra.mxu0 0
  %9147 = vmatprep.subr.bf16.mxu0 0
  %9148 = vmatpush2.bf16.msra.mxu0 0
  %9149 = vmatprep.subr.bf16.mxu0 0
  %9150 = vmatpush2.bf16.msra.mxu0 0
  %9151 = vmatprep.subr.bf16.mxu0 0
  %9152 = vmatpush2.bf16.msra.mxu0 0
  %9153 = vmatprep.subr.bf16.mxu0 0
  %9154 = vmatpush2.bf16.msra.mxu0 0
  %9155 = vmatprep.subr.bf16.mxu0 0
  %9156 = vmatpush2.bf16.msra.mxu0 0
  %9157 = vmatprep.subr.bf16.mxu0 0
  %9158 = vmatpush2.bf16.msra.mxu0 0
  %9159 = vmatprep.mubr.bf16.mxu0 0
  %9160 = vmatmul.mubr.bf16.gmra.mxu0 %v9116
  %v9161 = vpop.f32.mrf.mxu0
  %v9162 = vadd.f32 0.0, %v9161
  %v9163 = vpop.f32.mrf.mxu0
  %v9164 = vpop.f32.mrf.mxu0
  %v9165 = vadd.f32 0.0, %v9164
  %v9166 = vpop.f32.mrf.mxu0
  %9167 = vmatprep.mubr.bf16.mxu0 0
  %9168 = vmatmul.mubr.bf16.gmra.mxu0 %v9119
  %v9169 = vpop.f32.mrf.mxu0
  %v9170 = vadd.f32 0.0, %v9169
  %v9171 = vpop.f32.mrf.mxu0
  %v9172 = vpop.f32.mrf.mxu0
  %v9173 = vadd.f32 0.0, %v9172
  %v9174 = vpop.f32.mrf.mxu0
  %9175 = vmatprep.mubr.bf16.mxu0 0
  %9176 = vmatmul.mubr.bf16.gmra.mxu0 %v9122
  %v9177 = vpop.f32.mrf.mxu0
  %v9178 = vadd.f32 0.0, %v9177
  %v9179 = vpop.f32.mrf.mxu0
  %v9180 = vpop.f32.mrf.mxu0
  %v9181 = vadd.f32 0.0, %v9180
  %v9182 = vpop.f32.mrf.mxu0
  %9183 = vmatprep.mubr.bf16.mxu0 0
  %9184 = vmatmul.mubr.bf16.gmra.mxu0 %v9125
  %v9185 = vpop.f32.mrf.mxu0
  %v9186 = vadd.f32 0.0, %v9185
  %v9187 = vpop.f32.mrf.mxu0
  %v9188 = vpop.f32.mrf.mxu0
  %v9189 = vadd.f32 0.0, %v9188
  %v9190 = vpop.f32.mrf.mxu0
  %9191 = vdwg.mxu0
  %9192 = vrot.lane.b32.xlu0 %v1522, 48
  %v9193 = vpop.permute.xlu0 %9192
  %9194 = vrot.lane.b32.xlu0 %v1523, 48
  %v9195 = vpop.permute.xlu0 %9194
  %9196 = vrot.lane.b32.xlu0 %v1524, 48
  %v9197 = vpop.permute.xlu0 %9196
  %9198 = vrot.lane.b32.xlu0 %v1525, 48
  %v9199 = vpop.permute.xlu0 %9198
  %v9205 = vsel %vm2515, %v8905, 0
  %v9208 = vsel %vm2515, %v8906, 0
  %v9211 = vsel %vm2515, %v8907, 0
  %v9214 = vsel %vm2515, %v8908, 0
  %9216 = vmatprep.subr.bf16.mxu0 0
  %9217 = vmatpush1.bf16.msra.mxu0 0
  %9218 = vmatprep.subr.bf16.mxu0 0
  %9219 = vmatpush1.bf16.msra.mxu0 0
  %9220 = vmatprep.subr.bf16.mxu0 0
  %9221 = vmatpush1.bf16.msra.mxu0 0
  %9222 = vmatprep.subr.bf16.mxu0 0
  %9223 = vmatpush1.bf16.msra.mxu0 0
  %9224 = vmatprep.subr.bf16.mxu0 0
  %9225 = vmatpush1.bf16.msra.mxu0 %v9199
  %9226 = vmatprep.subr.bf16.mxu0 0
  %9227 = vmatpush1.bf16.msra.mxu0 %v9197
  %9228 = vmatprep.subr.bf16.mxu0 0
  %9229 = vmatpush1.bf16.msra.mxu0 %v9195
  %9230 = vmatprep.subr.bf16.mxu0 0
  %9231 = vmatpush1.bf16.msra.mxu0 %v9193
  %9232 = vmatprep.subr.bf16.mxu0 0
  %9233 = vmatpush2.bf16.msra.mxu0 0
  %9234 = vmatprep.subr.bf16.mxu0 0
  %9235 = vmatpush2.bf16.msra.mxu0 0
  %9236 = vmatprep.subr.bf16.mxu0 0
  %9237 = vmatpush2.bf16.msra.mxu0 0
  %9238 = vmatprep.subr.bf16.mxu0 0
  %9239 = vmatpush2.bf16.msra.mxu0 0
  %9240 = vmatprep.subr.bf16.mxu0 0
  %9241 = vmatpush2.bf16.msra.mxu0 0
  %9242 = vmatprep.subr.bf16.mxu0 0
  %9243 = vmatpush2.bf16.msra.mxu0 0
  %9244 = vmatprep.subr.bf16.mxu0 0
  %9245 = vmatpush2.bf16.msra.mxu0 0
  %9246 = vmatprep.subr.bf16.mxu0 0
  %9247 = vmatpush2.bf16.msra.mxu0 0
  %9248 = vmatprep.mubr.bf16.mxu0 0
  %9249 = vmatmul.mubr.bf16.gmra.mxu0 %v9205
  %v9250 = vpop.f32.mrf.mxu0
  %v9251 = vadd.f32 0.0, %v9250
  %v9252 = vpop.f32.mrf.mxu0
  %v9253 = vpop.f32.mrf.mxu0
  %v9254 = vadd.f32 0.0, %v9253
  %v9255 = vpop.f32.mrf.mxu0
  %9256 = vmatprep.mubr.bf16.mxu0 0
  %9257 = vmatmul.mubr.bf16.gmra.mxu0 %v9208
  %v9258 = vpop.f32.mrf.mxu0
  %v9259 = vadd.f32 0.0, %v9258
  %v9260 = vpop.f32.mrf.mxu0
  %v9261 = vpop.f32.mrf.mxu0
  %v9262 = vadd.f32 0.0, %v9261
  %v9263 = vpop.f32.mrf.mxu0
  %9264 = vmatprep.mubr.bf16.mxu0 0
  %9265 = vmatmul.mubr.bf16.gmra.mxu0 %v9211
  %v9266 = vpop.f32.mrf.mxu0
  %v9267 = vadd.f32 0.0, %v9266
  %v9268 = vpop.f32.mrf.mxu0
  %v9269 = vpop.f32.mrf.mxu0
  %v9270 = vadd.f32 0.0, %v9269
  %v9271 = vpop.f32.mrf.mxu0
  %9272 = vmatprep.mubr.bf16.mxu0 0
  %9273 = vmatmul.mubr.bf16.gmra.mxu0 %v9214
  %v9274 = vpop.f32.mrf.mxu0
  %v9275 = vadd.f32 0.0, %v9274
  %v9276 = vpop.f32.mrf.mxu0
  %v9277 = vpop.f32.mrf.mxu0
  %v9278 = vadd.f32 0.0, %v9277
  %v9279 = vpop.f32.mrf.mxu0
  %9280 = vdwg.mxu0
  %9281 = vrot.lane.b32.xlu0 %v1526, 48
  %v9282 = vpop.permute.xlu0 %9281
  %9283 = vrot.lane.b32.xlu0 %v1527, 48
  %v9284 = vpop.permute.xlu0 %9283
  %9285 = vrot.lane.b32.xlu0 %v1528, 48
  %v9286 = vpop.permute.xlu0 %9285
  %9287 = vrot.lane.b32.xlu0 %v1529, 48
  %v9288 = vpop.permute.xlu0 %9287
  %v9294 = vsel %vm2515, %v8909, 0
  %v9297 = vsel %vm2515, %v8910, 0
  %v9300 = vsel %vm2515, %v8911, 0
  %v9303 = vsel %vm2515, %v8912, 0
  %9305 = vmatprep.subr.bf16.mxu0 0
  %9306 = vmatpush1.bf16.msra.mxu0 0
  %9307 = vmatprep.subr.bf16.mxu0 0
  %9308 = vmatpush1.bf16.msra.mxu0 0
  %9309 = vmatprep.subr.bf16.mxu0 0
  %9310 = vmatpush1.bf16.msra.mxu0 0
  %9311 = vmatprep.subr.bf16.mxu0 0
  %9312 = vmatpush1.bf16.msra.mxu0 0
  %9313 = vmatprep.subr.bf16.mxu0 0
  %9314 = vmatpush1.bf16.msra.mxu0 %v9288
  %9315 = vmatprep.subr.bf16.mxu0 0
  %9316 = vmatpush1.bf16.msra.mxu0 %v9286
  %9317 = vmatprep.subr.bf16.mxu0 0
  %9318 = vmatpush1.bf16.msra.mxu0 %v9284
  %9319 = vmatprep.subr.bf16.mxu0 0
  %9320 = vmatpush1.bf16.msra.mxu0 %v9282
  %9321 = vmatprep.subr.bf16.mxu0 0
  %9322 = vmatpush2.bf16.msra.mxu0 0
  %9323 = vmatprep.subr.bf16.mxu0 0
  %9324 = vmatpush2.bf16.msra.mxu0 0
  %9325 = vmatprep.subr.bf16.mxu0 0
  %9326 = vmatpush2.bf16.msra.mxu0 0
  %9327 = vmatprep.subr.bf16.mxu0 0
  %9328 = vmatpush2.bf16.msra.mxu0 0
  %9329 = vmatprep.subr.bf16.mxu0 0
  %9330 = vmatpush2.bf16.msra.mxu0 0
  %9331 = vmatprep.subr.bf16.mxu0 0
  %9332 = vmatpush2.bf16.msra.mxu0 0
  %9333 = vmatprep.subr.bf16.mxu0 0
  %9334 = vmatpush2.bf16.msra.mxu0 0
  %9335 = vmatprep.subr.bf16.mxu0 0
  %9336 = vmatpush2.bf16.msra.mxu0 0
  %9337 = vmatprep.mubr.bf16.mxu0 0
  %9338 = vmatmul.mubr.bf16.gmra.mxu0 %v9294
  %v9339 = vpop.f32.mrf.mxu0
  %v9340 = vadd.f32 0.0, %v9339
  %v9341 = vpop.f32.mrf.mxu0
  %v9342 = vpop.f32.mrf.mxu0
  %v9343 = vadd.f32 0.0, %v9342
  %v9344 = vpop.f32.mrf.mxu0
  %9345 = vmatprep.mubr.bf16.mxu0 0
  %9346 = vmatmul.mubr.bf16.gmra.mxu0 %v9297
  %v9347 = vpop.f32.mrf.mxu0
  %v9348 = vadd.f32 0.0, %v9347
  %v9349 = vpop.f32.mrf.mxu0
  %v9350 = vpop.f32.mrf.mxu0
  %v9351 = vadd.f32 0.0, %v9350
  %v9352 = vpop.f32.mrf.mxu0
  %9353 = vmatprep.mubr.bf16.mxu0 0
  %9354 = vmatmul.mubr.bf16.gmra.mxu0 %v9300
  %v9355 = vpop.f32.mrf.mxu0
  %v9356 = vadd.f32 0.0, %v9355
  %v9357 = vpop.f32.mrf.mxu0
  %v9358 = vpop.f32.mrf.mxu0
  %v9359 = vadd.f32 0.0, %v9358
  %v9360 = vpop.f32.mrf.mxu0
  %9361 = vmatprep.mubr.bf16.mxu0 0
  %9362 = vmatmul.mubr.bf16.gmra.mxu0 %v9303
  %v9363 = vpop.f32.mrf.mxu0
  %v9364 = vadd.f32 0.0, %v9363
  %v9365 = vpop.f32.mrf.mxu0
  %v9366 = vpop.f32.mrf.mxu0
  %v9367 = vadd.f32 0.0, %v9366
  %v9368 = vpop.f32.mrf.mxu0
  %9369 = vdwg.mxu0
  %9370 = vrot.lane.b32.xlu0 %v1530, 48
  %v9371 = vpop.permute.xlu0 %9370
  %9372 = vrot.lane.b32.xlu0 %v1531, 48
  %v9373 = vpop.permute.xlu0 %9372
  %9374 = vrot.lane.b32.xlu0 %v1532, 48
  %v9375 = vpop.permute.xlu0 %9374
  %9376 = vrot.lane.b32.xlu0 %v1533, 48
  %v9377 = vpop.permute.xlu0 %9376
  %v9383 = vsel %vm2515, %v8913, 0
  %v9386 = vsel %vm2515, %v8914, 0
  %v9389 = vsel %vm2515, %v8915, 0
  %v9392 = vsel %vm2515, %v8916, 0
  %9394 = vmatprep.subr.bf16.mxu0 0
  %9395 = vmatpush1.bf16.msra.mxu0 0
  %9396 = vmatprep.subr.bf16.mxu0 0
  %9397 = vmatpush1.bf16.msra.mxu0 0
  %9398 = vmatprep.subr.bf16.mxu0 0
  %9399 = vmatpush1.bf16.msra.mxu0 0
  %9400 = vmatprep.subr.bf16.mxu0 0
  %9401 = vmatpush1.bf16.msra.mxu0 0
  %9402 = vmatprep.subr.bf16.mxu0 0
  %9403 = vmatpush1.bf16.msra.mxu0 %v9377
  %9404 = vmatprep.subr.bf16.mxu0 0
  %9405 = vmatpush1.bf16.msra.mxu0 %v9375
  %9406 = vmatprep.subr.bf16.mxu0 0
  %9407 = vmatpush1.bf16.msra.mxu0 %v9373
  %9408 = vmatprep.subr.bf16.mxu0 0
  %9409 = vmatpush1.bf16.msra.mxu0 %v9371
  %9410 = vmatprep.subr.bf16.mxu0 0
  %9411 = vmatpush2.bf16.msra.mxu0 0
  %9412 = vmatprep.subr.bf16.mxu0 0
  %9413 = vmatpush2.bf16.msra.mxu0 0
  %9414 = vmatprep.subr.bf16.mxu0 0
  %9415 = vmatpush2.bf16.msra.mxu0 0
  %9416 = vmatprep.subr.bf16.mxu0 0
  %9417 = vmatpush2.bf16.msra.mxu0 0
  %9418 = vmatprep.subr.bf16.mxu0 0
  %9419 = vmatpush2.bf16.msra.mxu0 0
  %9420 = vmatprep.subr.bf16.mxu0 0
  %9421 = vmatpush2.bf16.msra.mxu0 0
  %9422 = vmatprep.subr.bf16.mxu0 0
  %9423 = vmatpush2.bf16.msra.mxu0 0
  %9424 = vmatprep.subr.bf16.mxu0 0
  %9425 = vmatpush2.bf16.msra.mxu0 0
  %9426 = vmatprep.mubr.bf16.mxu0 0
  %9427 = vmatmul.mubr.bf16.gmra.mxu0 %v9383
  %v9428 = vpop.f32.mrf.mxu0
  %v9429 = vadd.f32 0.0, %v9428
  %v9430 = vpop.f32.mrf.mxu0
  %v9431 = vpop.f32.mrf.mxu0
  %v9432 = vadd.f32 0.0, %v9431
  %v9433 = vpop.f32.mrf.mxu0
  %9434 = vmatprep.mubr.bf16.mxu0 0
  %9435 = vmatmul.mubr.bf16.gmra.mxu0 %v9386
  %v9436 = vpop.f32.mrf.mxu0
  %v9437 = vadd.f32 0.0, %v9436
  %v9438 = vpop.f32.mrf.mxu0
  %v9439 = vpop.f32.mrf.mxu0
  %v9440 = vadd.f32 0.0, %v9439
  %v9441 = vpop.f32.mrf.mxu0
  %9442 = vmatprep.mubr.bf16.mxu0 0
  %9443 = vmatmul.mubr.bf16.gmra.mxu0 %v9389
  %v9444 = vpop.f32.mrf.mxu0
  %v9445 = vadd.f32 0.0, %v9444
  %v9446 = vpop.f32.mrf.mxu0
  %v9447 = vpop.f32.mrf.mxu0
  %v9448 = vadd.f32 0.0, %v9447
  %v9449 = vpop.f32.mrf.mxu0
  %9450 = vmatprep.mubr.bf16.mxu0 0
  %9451 = vmatmul.mubr.bf16.gmra.mxu0 %v9392
  %v9452 = vpop.f32.mrf.mxu0
  %v9453 = vadd.f32 0.0, %v9452
  %v9454 = vpop.f32.mrf.mxu0
  %v9455 = vpop.f32.mrf.mxu0
  %v9456 = vadd.f32 0.0, %v9455
  %v9457 = vpop.f32.mrf.mxu0
  %9458 = vdwg.mxu0
  %9459 = vrot.lane.b32.xlu0 %v1534, 48
  %v9460 = vpop.permute.xlu0 %9459
  %9461 = vrot.lane.b32.xlu0 %v1535, 48
  %v9462 = vpop.permute.xlu0 %9461
  %9463 = vrot.lane.b32.xlu0 %v1536, 48
  %v9464 = vpop.permute.xlu0 %9463
  %9465 = vrot.lane.b32.xlu0 %v1537, 48
  %v9466 = vpop.permute.xlu0 %9465
  %v9472 = vsel %vm2515, %v8917, 0
  %v9475 = vsel %vm2515, %v8918, 0
  %v9478 = vsel %vm2515, %v8919, 0
  %v9481 = vsel %vm2515, %v8920, 0
  %9483 = vmatprep.subr.bf16.mxu0 0
  %9484 = vmatpush1.bf16.msra.mxu0 0
  %9485 = vmatprep.subr.bf16.mxu0 0
  %9486 = vmatpush1.bf16.msra.mxu0 0
  %9487 = vmatprep.subr.bf16.mxu0 0
  %9488 = vmatpush1.bf16.msra.mxu0 0
  %9489 = vmatprep.subr.bf16.mxu0 0
  %9490 = vmatpush1.bf16.msra.mxu0 0
  %9491 = vmatprep.subr.bf16.mxu0 0
  %9492 = vmatpush1.bf16.msra.mxu0 %v9466
  %9493 = vmatprep.subr.bf16.mxu0 0
  %9494 = vmatpush1.bf16.msra.mxu0 %v9464
  %9495 = vmatprep.subr.bf16.mxu0 0
  %9496 = vmatpush1.bf16.msra.mxu0 %v9462
  %9497 = vmatprep.subr.bf16.mxu0 0
  %9498 = vmatpush1.bf16.msra.mxu0 %v9460
  %9499 = vmatprep.subr.bf16.mxu0 0
  %9500 = vmatpush2.bf16.msra.mxu0 0
  %9501 = vmatprep.subr.bf16.mxu0 0
  %9502 = vmatpush2.bf16.msra.mxu0 0
  %9503 = vmatprep.subr.bf16.mxu0 0
  %9504 = vmatpush2.bf16.msra.mxu0 0
  %9505 = vmatprep.subr.bf16.mxu0 0
  %9506 = vmatpush2.bf16.msra.mxu0 0
  %9507 = vmatprep.subr.bf16.mxu0 0
  %9508 = vmatpush2.bf16.msra.mxu0 0
  %9509 = vmatprep.subr.bf16.mxu0 0
  %9510 = vmatpush2.bf16.msra.mxu0 0
  %9511 = vmatprep.subr.bf16.mxu0 0
  %9512 = vmatpush2.bf16.msra.mxu0 0
  %9513 = vmatprep.subr.bf16.mxu0 0
  %9514 = vmatpush2.bf16.msra.mxu0 0
  %9515 = vmatprep.mubr.bf16.mxu0 0
  %9516 = vmatmul.mubr.bf16.gmra.mxu0 %v9472
  %v9517 = vpop.f32.mrf.mxu0
  %v9518 = vadd.f32 0.0, %v9517
  %v9519 = vpop.f32.mrf.mxu0
  %v9520 = vpop.f32.mrf.mxu0
  %v9521 = vadd.f32 0.0, %v9520
  %v9522 = vpop.f32.mrf.mxu0
  %9523 = vmatprep.mubr.bf16.mxu0 0
  %9524 = vmatmul.mubr.bf16.gmra.mxu0 %v9475
  %v9525 = vpop.f32.mrf.mxu0
  %v9526 = vadd.f32 0.0, %v9525
  %v9527 = vpop.f32.mrf.mxu0
  %v9528 = vpop.f32.mrf.mxu0
  %v9529 = vadd.f32 0.0, %v9528
  %v9530 = vpop.f32.mrf.mxu0
  %9531 = vmatprep.mubr.bf16.mxu0 0
  %9532 = vmatmul.mubr.bf16.gmra.mxu0 %v9478
  %v9533 = vpop.f32.mrf.mxu0
  %v9534 = vadd.f32 0.0, %v9533
  %v9535 = vpop.f32.mrf.mxu0
  %v9536 = vpop.f32.mrf.mxu0
  %v9537 = vadd.f32 0.0, %v9536
  %v9538 = vpop.f32.mrf.mxu0
  %9539 = vmatprep.mubr.bf16.mxu0 0
  %9540 = vmatmul.mubr.bf16.gmra.mxu0 %v9481
  %v9541 = vpop.f32.mrf.mxu0
  %v9542 = vadd.f32 0.0, %v9541
  %v9543 = vpop.f32.mrf.mxu0
  %v9544 = vpop.f32.mrf.mxu0
  %v9545 = vadd.f32 0.0, %v9544
  %v9546 = vpop.f32.mrf.mxu0
  %9547 = vdwg.mxu0
  %9548 = vrot.lane.b32.xlu0 %v1538, 48
  %v9549 = vpop.permute.xlu0 %9548
  %9550 = vrot.lane.b32.xlu0 %v1539, 48
  %v9551 = vpop.permute.xlu0 %9550
  %9552 = vrot.lane.b32.xlu0 %v1540, 48
  %v9553 = vpop.permute.xlu0 %9552
  %9554 = vrot.lane.b32.xlu0 %v1541, 48
  %v9555 = vpop.permute.xlu0 %9554
  %v9561 = vsel %vm2515, %v8921, 0
  %v9564 = vsel %vm2515, %v8922, 0
  %v9567 = vsel %vm2515, %v8923, 0
  %v9570 = vsel %vm2515, %v8924, 0
  %9572 = vmatprep.subr.bf16.mxu0 0
  %9573 = vmatpush1.bf16.msra.mxu0 0
  %9574 = vmatprep.subr.bf16.mxu0 0
  %9575 = vmatpush1.bf16.msra.mxu0 0
  %9576 = vmatprep.subr.bf16.mxu0 0
  %9577 = vmatpush1.bf16.msra.mxu0 0
  %9578 = vmatprep.subr.bf16.mxu0 0
  %9579 = vmatpush1.bf16.msra.mxu0 0
  %9580 = vmatprep.subr.bf16.mxu0 0
  %9581 = vmatpush1.bf16.msra.mxu0 %v9555
  %9582 = vmatprep.subr.bf16.mxu0 0
  %9583 = vmatpush1.bf16.msra.mxu0 %v9553
  %9584 = vmatprep.subr.bf16.mxu0 0
  %9585 = vmatpush1.bf16.msra.mxu0 %v9551
  %9586 = vmatprep.subr.bf16.mxu0 0
  %9587 = vmatpush1.bf16.msra.mxu0 %v9549
  %9588 = vmatprep.subr.bf16.mxu0 0
  %9589 = vmatpush2.bf16.msra.mxu0 0
  %9590 = vmatprep.subr.bf16.mxu0 0
  %9591 = vmatpush2.bf16.msra.mxu0 0
  %9592 = vmatprep.subr.bf16.mxu0 0
  %9593 = vmatpush2.bf16.msra.mxu0 0
  %9594 = vmatprep.subr.bf16.mxu0 0
  %9595 = vmatpush2.bf16.msra.mxu0 0
  %9596 = vmatprep.subr.bf16.mxu0 0
  %9597 = vmatpush2.bf16.msra.mxu0 0
  %9598 = vmatprep.subr.bf16.mxu0 0
  %9599 = vmatpush2.bf16.msra.mxu0 0
  %9600 = vmatprep.subr.bf16.mxu0 0
  %9601 = vmatpush2.bf16.msra.mxu0 0
  %9602 = vmatprep.subr.bf16.mxu0 0
  %9603 = vmatpush2.bf16.msra.mxu0 0
  %9604 = vmatprep.mubr.bf16.mxu0 0
  %9605 = vmatmul.mubr.bf16.gmra.mxu0 %v9561
  %v9606 = vpop.f32.mrf.mxu0
  %v9607 = vadd.f32 0.0, %v9606
  %v9608 = vpop.f32.mrf.mxu0
  %v9609 = vpop.f32.mrf.mxu0
  %v9610 = vadd.f32 0.0, %v9609
  %v9611 = vpop.f32.mrf.mxu0
  %9612 = vmatprep.mubr.bf16.mxu0 0
  %9613 = vmatmul.mubr.bf16.gmra.mxu0 %v9564
  %v9614 = vpop.f32.mrf.mxu0
  %v9615 = vadd.f32 0.0, %v9614
  %v9616 = vpop.f32.mrf.mxu0
  %v9617 = vpop.f32.mrf.mxu0
  %v9618 = vadd.f32 0.0, %v9617
  %v9619 = vpop.f32.mrf.mxu0
  %9620 = vmatprep.mubr.bf16.mxu0 0
  %9621 = vmatmul.mubr.bf16.gmra.mxu0 %v9567
  %v9622 = vpop.f32.mrf.mxu0
  %v9623 = vadd.f32 0.0, %v9622
  %v9624 = vpop.f32.mrf.mxu0
  %v9625 = vpop.f32.mrf.mxu0
  %v9626 = vadd.f32 0.0, %v9625
  %v9627 = vpop.f32.mrf.mxu0
  %9628 = vmatprep.mubr.bf16.mxu0 0
  %9629 = vmatmul.mubr.bf16.gmra.mxu0 %v9570
  %v9630 = vpop.f32.mrf.mxu0
  %v9631 = vadd.f32 0.0, %v9630
  %v9632 = vpop.f32.mrf.mxu0
  %v9633 = vpop.f32.mrf.mxu0
  %v9634 = vadd.f32 0.0, %v9633
  %v9635 = vpop.f32.mrf.mxu0
  %9636 = vdwg.mxu0
  %v9637 = vpack.c.bf16 %v8987, %v8984
  %v9638 = vpack.c.bf16 %v8995, %v8992
  %v9639 = vpack.c.bf16 %v9003, %v9000
  %v9640 = vpack.c.bf16 %v9011, %v9008
  %v9641 = vpack.c.bf16 %v9076, %v9073
  %v9642 = vpack.c.bf16 %v9084, %v9081
  %v9643 = vpack.c.bf16 %v9092, %v9089
  %v9644 = vpack.c.bf16 %v9100, %v9097
  %v9645 = vpack.c.bf16 %v9165, %v9162
  %v9646 = vpack.c.bf16 %v9173, %v9170
  %v9647 = vpack.c.bf16 %v9181, %v9178
  %v9648 = vpack.c.bf16 %v9189, %v9186
  %v9649 = vpack.c.bf16 %v9254, %v9251
  %v9650 = vpack.c.bf16 %v9262, %v9259
  %v9651 = vpack.c.bf16 %v9270, %v9267
  %v9652 = vpack.c.bf16 %v9278, %v9275
  %v9653 = vpack.c.bf16 %v9343, %v9340
  %v9654 = vpack.c.bf16 %v9351, %v9348
  %v9655 = vpack.c.bf16 %v9359, %v9356
  %v9656 = vpack.c.bf16 %v9367, %v9364
  %v9657 = vpack.c.bf16 %v9432, %v9429
  %v9658 = vpack.c.bf16 %v9440, %v9437
  %v9659 = vpack.c.bf16 %v9448, %v9445
  %v9660 = vpack.c.bf16 %v9456, %v9453
  %v9661 = vpack.c.bf16 %v9521, %v9518
  %v9662 = vpack.c.bf16 %v9529, %v9526
  %v9663 = vpack.c.bf16 %v9537, %v9534
  %v9664 = vpack.c.bf16 %v9545, %v9542
  %v9665 = vpack.c.bf16 %v9610, %v9607
  %v9666 = vpack.c.bf16 %v9618, %v9615
  %v9667 = vpack.c.bf16 %v9626, %v9623
  %v9668 = vpack.c.bf16 %v9634, %v9631
  %v9670 = vsel %vm1590, %v9637, 0
  %v9673 = vsel %vm1590, %v9638, 0
  %v9676 = vsel %vm1590, %v9639, 0
  %v9679 = vsel %vm1590, %v9640, 0
  %v9682 = vsel %vm1590, %v9641, 0
  %v9685 = vsel %vm1590, %v9642, 0
  %v9688 = vsel %vm1590, %v9643, 0
  %v9691 = vsel %vm1590, %v9644, 0
  %v9694 = vsel %vm1590, %v9645, 0
  %v9697 = vsel %vm1590, %v9646, 0
  %v9700 = vsel %vm1590, %v9647, 0
  %v9703 = vsel %vm1590, %v9648, 0
  %v9706 = vsel %vm1590, %v9649, 0
  %v9709 = vsel %vm1590, %v9650, 0
  %v9712 = vsel %vm1590, %v9651, 0
  %v9715 = vsel %vm1590, %v9652, 0
  %v9718 = vsel %vm1590, %v9653, 0
  %v9721 = vsel %vm1590, %v9654, 0
  %v9724 = vsel %vm1590, %v9655, 0
  %v9727 = vsel %vm1590, %v9656, 0
  %v9730 = vsel %vm1590, %v9657, 0
  %v9733 = vsel %vm1590, %v9658, 0
  %v9736 = vsel %vm1590, %v9659, 0
  %v9739 = vsel %vm1590, %v9660, 0
  %v9742 = vsel %vm1590, %v9661, 0
  %v9745 = vsel %vm1590, %v9662, 0
  %v9748 = vsel %vm1590, %v9663, 0
  %v9751 = vsel %vm1590, %v9664, 0
  %v9754 = vsel %vm1590, %v9665, 0
  %v9757 = vsel %vm1590, %v9666, 0
  %v9760 = vsel %vm1590, %v9667, 0
  %v9763 = vsel %vm1590, %v9668, 0
  %v9766 = vsel %vm6540, %v1544, 0
  %9768 = vmatprep.subr.bf16.mxu0 0
  %9769 = vmatpush1.bf16.msra.mxu0 0
  %9770 = vmatprep.subr.bf16.mxu0 0
  %9771 = vmatpush1.bf16.msra.mxu0 0
  %9772 = vmatprep.subr.bf16.mxu0 0
  %9773 = vmatpush1.bf16.msra.mxu0 0
  %9774 = vmatprep.subr.bf16.mxu0 0
  %9775 = vmatpush1.bf16.msra.mxu0 0
  %9776 = vmatprep.subr.bf16.mxu0 0
  %9777 = vmatpush1.bf16.msra.mxu0 0
  %9778 = vmatprep.subr.bf16.mxu0 0
  %9779 = vmatpush1.bf16.msra.mxu0 0
  %9780 = vmatprep.subr.bf16.mxu0 0
  %9781 = vmatpush1.bf16.msra.mxu0 0
  %9782 = vmatprep.subr.bf16.mxu0 0
  %9783 = vmatpush1.bf16.msra.mxu0 %v9766
  %9784 = vmatprep.subr.bf16.mxu0 0
  %9785 = vmatpush2.bf16.msra.mxu0 0
  %9786 = vmatprep.subr.bf16.mxu0 0
  %9787 = vmatpush2.bf16.msra.mxu0 0
  %9788 = vmatprep.subr.bf16.mxu0 0
  %9789 = vmatpush2.bf16.msra.mxu0 0
  %9790 = vmatprep.subr.bf16.mxu0 0
  %9791 = vmatpush2.bf16.msra.mxu0 0
  %9792 = vmatprep.subr.bf16.mxu0 0
  %9793 = vmatpush2.bf16.msra.mxu0 0
  %9794 = vmatprep.subr.bf16.mxu0 0
  %9795 = vmatpush2.bf16.msra.mxu0 0
  %9796 = vmatprep.subr.bf16.mxu0 0
  %9797 = vmatpush2.bf16.msra.mxu0 0
  %9798 = vmatprep.subr.bf16.mxu0 0
  %9799 = vmatpush2.bf16.msra.mxu0 0
  %9800 = vmatprep.mubr.bf16.mxu0 0
  %9801 = vmatmul.mubr.bf16.gmra.mxu0 %v9670
  %v9802 = vpop.f32.mrf.mxu0
  %v9803 = vadd.f32 0.0, %v9802
  %v9804 = vpop.f32.mrf.mxu0
  %v9805 = vpop.f32.mrf.mxu0
  %v9806 = vadd.f32 0.0, %v9805
  %v9807 = vpop.f32.mrf.mxu0
  %9808 = vmatprep.mubr.bf16.mxu0 0
  %9809 = vmatmul.mubr.bf16.gmra.mxu0 %v9673
  %v9810 = vpop.f32.mrf.mxu0
  %v9811 = vadd.f32 0.0, %v9810
  %v9812 = vpop.f32.mrf.mxu0
  %v9813 = vpop.f32.mrf.mxu0
  %v9814 = vadd.f32 0.0, %v9813
  %v9815 = vpop.f32.mrf.mxu0
  %9816 = vmatprep.mubr.bf16.mxu0 0
  %9817 = vmatmul.mubr.bf16.gmra.mxu0 %v9676
  %v9818 = vpop.f32.mrf.mxu0
  %v9819 = vadd.f32 0.0, %v9818
  %v9820 = vpop.f32.mrf.mxu0
  %v9821 = vpop.f32.mrf.mxu0
  %v9822 = vadd.f32 0.0, %v9821
  %v9823 = vpop.f32.mrf.mxu0
  %9824 = vmatprep.mubr.bf16.mxu0 0
  %9825 = vmatmul.mubr.bf16.gmra.mxu0 %v9679
  %v9826 = vpop.f32.mrf.mxu0
  %v9827 = vadd.f32 0.0, %v9826
  %v9828 = vpop.f32.mrf.mxu0
  %v9829 = vpop.f32.mrf.mxu0
  %v9830 = vadd.f32 0.0, %v9829
  %v9831 = vpop.f32.mrf.mxu0
  %9832 = vmatprep.mubr.bf16.mxu0 0
  %9833 = vmatmul.mubr.bf16.gmra.mxu0 %v9682
  %v9834 = vpop.f32.mrf.mxu0
  %v9835 = vadd.f32 0.0, %v9834
  %v9836 = vpop.f32.mrf.mxu0
  %v9837 = vpop.f32.mrf.mxu0
  %v9838 = vadd.f32 0.0, %v9837
  %v9839 = vpop.f32.mrf.mxu0
  %9840 = vmatprep.mubr.bf16.mxu0 0
  %9841 = vmatmul.mubr.bf16.gmra.mxu0 %v9685
  %v9842 = vpop.f32.mrf.mxu0
  %v9843 = vadd.f32 0.0, %v9842
  %v9844 = vpop.f32.mrf.mxu0
  %v9845 = vpop.f32.mrf.mxu0
  %v9846 = vadd.f32 0.0, %v9845
  %v9847 = vpop.f32.mrf.mxu0
  %9848 = vmatprep.mubr.bf16.mxu0 0
  %9849 = vmatmul.mubr.bf16.gmra.mxu0 %v9688
  %v9850 = vpop.f32.mrf.mxu0
  %v9851 = vadd.f32 0.0, %v9850
  %v9852 = vpop.f32.mrf.mxu0
  %v9853 = vpop.f32.mrf.mxu0
  %v9854 = vadd.f32 0.0, %v9853
  %v9855 = vpop.f32.mrf.mxu0
  %9856 = vmatprep.mubr.bf16.mxu0 0
  %9857 = vmatmul.mubr.bf16.gmra.mxu0 %v9691
  %v9858 = vpop.f32.mrf.mxu0
  %v9859 = vadd.f32 0.0, %v9858
  %v9860 = vpop.f32.mrf.mxu0
  %v9861 = vpop.f32.mrf.mxu0
  %v9862 = vadd.f32 0.0, %v9861
  %v9863 = vpop.f32.mrf.mxu0
  %9864 = vmatprep.mubr.bf16.mxu0 0
  %9865 = vmatmul.mubr.bf16.gmra.mxu0 %v9694
  %v9866 = vpop.f32.mrf.mxu0
  %v9867 = vadd.f32 0.0, %v9866
  %v9868 = vpop.f32.mrf.mxu0
  %v9869 = vpop.f32.mrf.mxu0
  %v9870 = vadd.f32 0.0, %v9869
  %v9871 = vpop.f32.mrf.mxu0
  %9872 = vmatprep.mubr.bf16.mxu0 0
  %9873 = vmatmul.mubr.bf16.gmra.mxu0 %v9697
  %v9874 = vpop.f32.mrf.mxu0
  %v9875 = vadd.f32 0.0, %v9874
  %v9876 = vpop.f32.mrf.mxu0
  %v9877 = vpop.f32.mrf.mxu0
  %v9878 = vadd.f32 0.0, %v9877
  %v9879 = vpop.f32.mrf.mxu0
  %9880 = vmatprep.mubr.bf16.mxu0 0
  %9881 = vmatmul.mubr.bf16.gmra.mxu0 %v9700
  %v9882 = vpop.f32.mrf.mxu0
  %v9883 = vadd.f32 0.0, %v9882
  %v9884 = vpop.f32.mrf.mxu0
  %v9885 = vpop.f32.mrf.mxu0
  %v9886 = vadd.f32 0.0, %v9885
  %v9887 = vpop.f32.mrf.mxu0
  %9888 = vmatprep.mubr.bf16.mxu0 0
  %9889 = vmatmul.mubr.bf16.gmra.mxu0 %v9703
  %v9890 = vpop.f32.mrf.mxu0
  %v9891 = vadd.f32 0.0, %v9890
  %v9892 = vpop.f32.mrf.mxu0
  %v9893 = vpop.f32.mrf.mxu0
  %v9894 = vadd.f32 0.0, %v9893
  %v9895 = vpop.f32.mrf.mxu0
  %9896 = vmatprep.mubr.bf16.mxu0 0
  %9897 = vmatmul.mubr.bf16.gmra.mxu0 %v9706
  %v9898 = vpop.f32.mrf.mxu0
  %v9899 = vadd.f32 0.0, %v9898
  %v9900 = vpop.f32.mrf.mxu0
  %v9901 = vpop.f32.mrf.mxu0
  %v9902 = vadd.f32 0.0, %v9901
  %v9903 = vpop.f32.mrf.mxu0
  %9904 = vmatprep.mubr.bf16.mxu0 0
  %9905 = vmatmul.mubr.bf16.gmra.mxu0 %v9709
  %v9906 = vpop.f32.mrf.mxu0
  %v9907 = vadd.f32 0.0, %v9906
  %v9908 = vpop.f32.mrf.mxu0
  %v9909 = vpop.f32.mrf.mxu0
  %v9910 = vadd.f32 0.0, %v9909
  %v9911 = vpop.f32.mrf.mxu0
  %9912 = vmatprep.mubr.bf16.mxu0 0
  %9913 = vmatmul.mubr.bf16.gmra.mxu0 %v9712
  %v9914 = vpop.f32.mrf.mxu0
  %v9915 = vadd.f32 0.0, %v9914
  %v9916 = vpop.f32.mrf.mxu0
  %v9917 = vpop.f32.mrf.mxu0
  %v9918 = vadd.f32 0.0, %v9917
  %v9919 = vpop.f32.mrf.mxu0
  %9920 = vmatprep.mubr.bf16.mxu0 0
  %9921 = vmatmul.mubr.bf16.gmra.mxu0 %v9715
  %v9922 = vpop.f32.mrf.mxu0
  %v9923 = vadd.f32 0.0, %v9922
  %v9924 = vpop.f32.mrf.mxu0
  %v9925 = vpop.f32.mrf.mxu0
  %v9926 = vadd.f32 0.0, %v9925
  %v9927 = vpop.f32.mrf.mxu0
  %9928 = vmatprep.mubr.bf16.mxu0 0
  %9929 = vmatmul.mubr.bf16.gmra.mxu0 %v9718
  %v9930 = vpop.f32.mrf.mxu0
  %v9931 = vadd.f32 0.0, %v9930
  %v9932 = vpop.f32.mrf.mxu0
  %v9933 = vpop.f32.mrf.mxu0
  %v9934 = vadd.f32 0.0, %v9933
  %v9935 = vpop.f32.mrf.mxu0
  %9936 = vmatprep.mubr.bf16.mxu0 0
  %9937 = vmatmul.mubr.bf16.gmra.mxu0 %v9721
  %v9938 = vpop.f32.mrf.mxu0
  %v9939 = vadd.f32 0.0, %v9938
  %v9940 = vpop.f32.mrf.mxu0
  %v9941 = vpop.f32.mrf.mxu0
  %v9942 = vadd.f32 0.0, %v9941
  %v9943 = vpop.f32.mrf.mxu0
  %9944 = vmatprep.mubr.bf16.mxu0 0
  %9945 = vmatmul.mubr.bf16.gmra.mxu0 %v9724
  %v9946 = vpop.f32.mrf.mxu0
  %v9947 = vadd.f32 0.0, %v9946
  %v9948 = vpop.f32.mrf.mxu0
  %v9949 = vpop.f32.mrf.mxu0
  %v9950 = vadd.f32 0.0, %v9949
  %v9951 = vpop.f32.mrf.mxu0
  %9952 = vmatprep.mubr.bf16.mxu0 0
  %9953 = vmatmul.mubr.bf16.gmra.mxu0 %v9727
  %v9954 = vpop.f32.mrf.mxu0
  %v9955 = vadd.f32 0.0, %v9954
  %v9956 = vpop.f32.mrf.mxu0
  %v9957 = vpop.f32.mrf.mxu0
  %v9958 = vadd.f32 0.0, %v9957
  %v9959 = vpop.f32.mrf.mxu0
  %9960 = vmatprep.mubr.bf16.mxu0 0
  %9961 = vmatmul.mubr.bf16.gmra.mxu0 %v9730
  %v9962 = vpop.f32.mrf.mxu0
  %v9963 = vadd.f32 0.0, %v9962
  %v9964 = vpop.f32.mrf.mxu0
  %v9965 = vpop.f32.mrf.mxu0
  %v9966 = vadd.f32 0.0, %v9965
  %v9967 = vpop.f32.mrf.mxu0
  %9968 = vmatprep.mubr.bf16.mxu0 0
  %9969 = vmatmul.mubr.bf16.gmra.mxu0 %v9733
  %v9970 = vpop.f32.mrf.mxu0
  %v9971 = vadd.f32 0.0, %v9970
  %v9972 = vpop.f32.mrf.mxu0
  %v9973 = vpop.f32.mrf.mxu0
  %v9974 = vadd.f32 0.0, %v9973
  %v9975 = vpop.f32.mrf.mxu0
  %9976 = vmatprep.mubr.bf16.mxu0 0
  %9977 = vmatmul.mubr.bf16.gmra.mxu0 %v9736
  %v9978 = vpop.f32.mrf.mxu0
  %v9979 = vadd.f32 0.0, %v9978
  %v9980 = vpop.f32.mrf.mxu0
  %v9981 = vpop.f32.mrf.mxu0
  %v9982 = vadd.f32 0.0, %v9981
  %v9983 = vpop.f32.mrf.mxu0
  %9984 = vmatprep.mubr.bf16.mxu0 0
  %9985 = vmatmul.mubr.bf16.gmra.mxu0 %v9739
  %v9986 = vpop.f32.mrf.mxu0
  %v9987 = vadd.f32 0.0, %v9986
  %v9988 = vpop.f32.mrf.mxu0
  %v9989 = vpop.f32.mrf.mxu0
  %v9990 = vadd.f32 0.0, %v9989
  %v9991 = vpop.f32.mrf.mxu0
  %9992 = vmatprep.mubr.bf16.mxu0 0
  %9993 = vmatmul.mubr.bf16.gmra.mxu0 %v9742
  %v9994 = vpop.f32.mrf.mxu0
  %v9995 = vadd.f32 0.0, %v9994
  %v9996 = vpop.f32.mrf.mxu0
  %v9997 = vpop.f32.mrf.mxu0
  %v9998 = vadd.f32 0.0, %v9997
  %v9999 = vpop.f32.mrf.mxu0
  %10000 = vmatprep.mubr.bf16.mxu0 0
  %10001 = vmatmul.mubr.bf16.gmra.mxu0 %v9745
  %v10002 = vpop.f32.mrf.mxu0
  %v10003 = vadd.f32 0.0, %v10002
  %v10004 = vpop.f32.mrf.mxu0
  %v10005 = vpop.f32.mrf.mxu0
  %v10006 = vadd.f32 0.0, %v10005
  %v10007 = vpop.f32.mrf.mxu0
  %10008 = vmatprep.mubr.bf16.mxu0 0
  %10009 = vmatmul.mubr.bf16.gmra.mxu0 %v9748
  %v10010 = vpop.f32.mrf.mxu0
  %v10011 = vadd.f32 0.0, %v10010
  %v10012 = vpop.f32.mrf.mxu0
  %v10013 = vpop.f32.mrf.mxu0
  %v10014 = vadd.f32 0.0, %v10013
  %v10015 = vpop.f32.mrf.mxu0
  %10016 = vmatprep.mubr.bf16.mxu0 0
  %10017 = vmatmul.mubr.bf16.gmra.mxu0 %v9751
  %v10018 = vpop.f32.mrf.mxu0
  %v10019 = vadd.f32 0.0, %v10018
  %v10020 = vpop.f32.mrf.mxu0
  %v10021 = vpop.f32.mrf.mxu0
  %v10022 = vadd.f32 0.0, %v10021
  %v10023 = vpop.f32.mrf.mxu0
  %10024 = vmatprep.mubr.bf16.mxu0 0
  %10025 = vmatmul.mubr.bf16.gmra.mxu0 %v9754
  %v10026 = vpop.f32.mrf.mxu0
  %v10027 = vadd.f32 0.0, %v10026
  %v10028 = vpop.f32.mrf.mxu0
  %v10029 = vpop.f32.mrf.mxu0
  %v10030 = vadd.f32 0.0, %v10029
  %v10031 = vpop.f32.mrf.mxu0
  %10032 = vmatprep.mubr.bf16.mxu0 0
  %10033 = vmatmul.mubr.bf16.gmra.mxu0 %v9757
  %v10034 = vpop.f32.mrf.mxu0
  %v10035 = vadd.f32 0.0, %v10034
  %v10036 = vpop.f32.mrf.mxu0
  %v10037 = vpop.f32.mrf.mxu0
  %v10038 = vadd.f32 0.0, %v10037
  %v10039 = vpop.f32.mrf.mxu0
  %10040 = vmatprep.mubr.bf16.mxu0 0
  %10041 = vmatmul.mubr.bf16.gmra.mxu0 %v9760
  %v10042 = vpop.f32.mrf.mxu0
  %v10043 = vadd.f32 0.0, %v10042
  %v10044 = vpop.f32.mrf.mxu0
  %v10045 = vpop.f32.mrf.mxu0
  %v10046 = vadd.f32 0.0, %v10045
  %v10047 = vpop.f32.mrf.mxu0
  %10048 = vmatprep.mubr.bf16.mxu0 0
  %10049 = vmatmul.mubr.bf16.gmra.mxu0 %v9763
  %v10050 = vpop.f32.mrf.mxu0
  %v10051 = vadd.f32 0.0, %v10050
  %v10052 = vpop.f32.mrf.mxu0
  %v10053 = vpop.f32.mrf.mxu0
  %v10054 = vadd.f32 0.0, %v10053
  %v10055 = vpop.f32.mrf.mxu0
  %10056 = vdwg.mxu0
  %v10057 = vadd.f32 %v6967, %v9803
  %v10058 = vadd.f32 %v6970, %v9806
  %v10059 = vadd.f32 %v6975, %v9811
  %v10060 = vadd.f32 %v6978, %v9814
  %v10061 = vadd.f32 %v6983, %v9819
  %v10062 = vadd.f32 %v6986, %v9822
  %v10063 = vadd.f32 %v6991, %v9827
  %v10064 = vadd.f32 %v6994, %v9830
  %v10065 = vadd.f32 %v6999, %v9835
  %v10066 = vadd.f32 %v7002, %v9838
  %v10067 = vadd.f32 %v7007, %v9843
  %v10068 = vadd.f32 %v7010, %v9846
  %v10069 = vadd.f32 %v7015, %v9851
  %v10070 = vadd.f32 %v7018, %v9854
  %v10071 = vadd.f32 %v7023, %v9859
  %v10072 = vadd.f32 %v7026, %v9862
  %v10073 = vadd.f32 %v7031, %v9867
  %v10074 = vadd.f32 %v7034, %v9870
  %v10075 = vadd.f32 %v7039, %v9875
  %v10076 = vadd.f32 %v7042, %v9878
  %v10077 = vadd.f32 %v7047, %v9883
  %v10078 = vadd.f32 %v7050, %v9886
  %v10079 = vadd.f32 %v7055, %v9891
  %v10080 = vadd.f32 %v7058, %v9894
  %v10081 = vadd.f32 %v7063, %v9899
  %v10082 = vadd.f32 %v7066, %v9902
  %v10083 = vadd.f32 %v7071, %v9907
  %v10084 = vadd.f32 %v7074, %v9910
  %v10085 = vadd.f32 %v7079, %v9915
  %v10086 = vadd.f32 %v7082, %v9918
  %v10087 = vadd.f32 %v7087, %v9923
  %v10088 = vadd.f32 %v7090, %v9926
  %v10089 = vadd.f32 %v7095, %v9931
  %v10090 = vadd.f32 %v7098, %v9934
  %v10091 = vadd.f32 %v7103, %v9939
  %v10092 = vadd.f32 %v7106, %v9942
  %v10093 = vadd.f32 %v7111, %v9947
  %v10094 = vadd.f32 %v7114, %v9950
  %v10095 = vadd.f32 %v7119, %v9955
  %v10096 = vadd.f32 %v7122, %v9958
  %v10097 = vadd.f32 %v7127, %v9963
  %v10098 = vadd.f32 %v7130, %v9966
  %v10099 = vadd.f32 %v7135, %v9971
  %v10100 = vadd.f32 %v7138, %v9974
  %v10101 = vadd.f32 %v7143, %v9979
  %v10102 = vadd.f32 %v7146, %v9982
  %v10103 = vadd.f32 %v7151, %v9987
  %v10104 = vadd.f32 %v7154, %v9990
  %v10105 = vadd.f32 %v7159, %v9995
  %v10106 = vadd.f32 %v7162, %v9998
  %v10107 = vadd.f32 %v7167, %v10003
  %v10108 = vadd.f32 %v7170, %v10006
  %v10109 = vadd.f32 %v7175, %v10011
  %v10110 = vadd.f32 %v7178, %v10014
  %v10111 = vadd.f32 %v7183, %v10019
  %v10112 = vadd.f32 %v7186, %v10022
  %v10113 = vadd.f32 %v7191, %v10027
  %v10114 = vadd.f32 %v7194, %v10030
  %v10115 = vadd.f32 %v7199, %v10035
  %v10116 = vadd.f32 %v7202, %v10038
  %v10117 = vadd.f32 %v7207, %v10043
  %v10118 = vadd.f32 %v7210, %v10046
  %v10119 = vadd.f32 %v7215, %v10051
  %v10120 = vadd.f32 %v7218, %v10054
  %10121 = vrot.lane.b32.xlu0 %v1510, 104
  %v10122 = vpop.permute.xlu0 %10121
  %10123 = vrot.lane.b32.xlu0 %v1511, 104
  %v10124 = vpop.permute.xlu0 %10123
  %10125 = vrot.lane.b32.xlu0 %v1512, 104
  %v10126 = vpop.permute.xlu0 %10125
  %10127 = vrot.lane.b32.xlu0 %v1513, 104
  %v10128 = vpop.permute.xlu0 %10127
  %10129 = vrot.lane.b32.xlu0 %v1510, 72
  %v10130 = vpop.permute.xlu0 %10129
  %10131 = vrot.lane.b32.xlu0 %v1511, 72
  %v10132 = vpop.permute.xlu0 %10131
  %10133 = vrot.lane.b32.xlu0 %v1512, 72
  %v10134 = vpop.permute.xlu0 %10133
  %10135 = vrot.lane.b32.xlu0 %v1513, 72
  %v10136 = vpop.permute.xlu0 %10135
  %v10138 = vsel %vm1590, %v10122, 0
  %v10141 = vsel %vm1590, %v10124, 0
  %v10144 = vsel %vm1590, %v10126, 0
  %v10147 = vsel %vm1590, %v10128, 0
  %v10150 = vsel %vm1590, %v10130, 0
  %v10153 = vsel %vm1590, %v10132, 0
  %v10156 = vsel %vm1590, %v10134, 0
  %v10159 = vsel %vm1590, %v10136, 0
  %10161 = vmatprep.subr.bf16.mxu0 0
  %10162 = vmatpush1.bf16.xpose.msra.mxu0 0
  %10163 = vmatprep.subr.bf16.mxu0 0
  %10164 = vmatpush1.bf16.xpose.msra.mxu0 0
  %10165 = vmatprep.subr.bf16.mxu0 0
  %10166 = vmatpush1.bf16.xpose.msra.mxu0 0
  %10167 = vmatprep.subr.bf16.mxu0 0
  %10168 = vmatpush1.bf16.xpose.msra.mxu0 0
  %10169 = vmatprep.subr.bf16.mxu0 0
  %10170 = vmatpush1.bf16.xpose.msra.mxu0 %v10159
  %10171 = vmatprep.subr.bf16.mxu0 0
  %10172 = vmatpush1.bf16.xpose.msra.mxu0 %v10156
  %10173 = vmatprep.subr.bf16.mxu0 0
  %10174 = vmatpush1.bf16.xpose.msra.mxu0 %v10153
  %10175 = vmatprep.subr.bf16.mxu0 0
  %10176 = vmatpush1.bf16.xpose.msra.mxu0 %v10150
  %10177 = vmatprep.subr.bf16.mxu0 0
  %10178 = vmatpush2.bf16.xpose.msra.mxu0 0
  %10179 = vmatprep.subr.bf16.mxu0 0
  %10180 = vmatpush2.bf16.xpose.msra.mxu0 0
  %10181 = vmatprep.subr.bf16.mxu0 0
  %10182 = vmatpush2.bf16.xpose.msra.mxu0 0
  %10183 = vmatprep.subr.bf16.mxu0 0
  %10184 = vmatpush2.bf16.xpose.msra.mxu0 0
  %10185 = vmatprep.subr.bf16.mxu0 0
  %10186 = vmatpush2.bf16.xpose.msra.mxu0 0
  %10187 = vmatprep.subr.bf16.mxu0 0
  %10188 = vmatpush2.bf16.xpose.msra.mxu0 0
  %10189 = vmatprep.subr.bf16.mxu0 0
  %10190 = vmatpush2.bf16.xpose.msra.mxu0 0
  %10191 = vmatprep.subr.bf16.mxu0 0
  %10192 = vmatpush2.bf16.xpose.msra.mxu0 0
  %10193 = vmatprep.mubr.bf16.mxu0 0
  %10194 = vmatmul.mubr.bf16.gmra.mxu0 %v10138
  %v10195 = vpop.f32.mrf.mxu0
  %v10196 = vadd.f32 0.0, %v10195
  %v10197 = vpop.f32.mrf.mxu0
  %v10198 = vpop.f32.mrf.mxu0
  %v10199 = vadd.f32 0.0, %v10198
  %v10200 = vpop.f32.mrf.mxu0
  %10201 = vmatprep.mubr.bf16.mxu0 0
  %10202 = vmatmul.mubr.bf16.gmra.mxu0 %v10141
  %v10203 = vpop.f32.mrf.mxu0
  %v10204 = vadd.f32 0.0, %v10203
  %v10205 = vpop.f32.mrf.mxu0
  %v10206 = vpop.f32.mrf.mxu0
  %v10207 = vadd.f32 0.0, %v10206
  %v10208 = vpop.f32.mrf.mxu0
  %10209 = vmatprep.mubr.bf16.mxu0 0
  %10210 = vmatmul.mubr.bf16.gmra.mxu0 %v10144
  %v10211 = vpop.f32.mrf.mxu0
  %v10212 = vadd.f32 0.0, %v10211
  %v10213 = vpop.f32.mrf.mxu0
  %v10214 = vpop.f32.mrf.mxu0
  %v10215 = vadd.f32 0.0, %v10214
  %v10216 = vpop.f32.mrf.mxu0
  %10217 = vmatprep.mubr.bf16.mxu0 0
  %10218 = vmatmul.mubr.bf16.gmra.mxu0 %v10147
  %v10219 = vpop.f32.mrf.mxu0
  %v10220 = vadd.f32 0.0, %v10219
  %v10221 = vpop.f32.mrf.mxu0
  %v10222 = vpop.f32.mrf.mxu0
  %v10223 = vadd.f32 0.0, %v10222
  %v10224 = vpop.f32.mrf.mxu0
  %10225 = vdwg.mxu0
  %10226 = vrot.lane.b32.xlu0 %v1514, 104
  %v10227 = vpop.permute.xlu0 %10226
  %10228 = vrot.lane.b32.xlu0 %v1515, 104
  %v10229 = vpop.permute.xlu0 %10228
  %10230 = vrot.lane.b32.xlu0 %v1516, 104
  %v10231 = vpop.permute.xlu0 %10230
  %10232 = vrot.lane.b32.xlu0 %v1517, 104
  %v10233 = vpop.permute.xlu0 %10232
  %10234 = vrot.lane.b32.xlu0 %v1514, 72
  %v10235 = vpop.permute.xlu0 %10234
  %10236 = vrot.lane.b32.xlu0 %v1515, 72
  %v10237 = vpop.permute.xlu0 %10236
  %10238 = vrot.lane.b32.xlu0 %v1516, 72
  %v10239 = vpop.permute.xlu0 %10238
  %10240 = vrot.lane.b32.xlu0 %v1517, 72
  %v10241 = vpop.permute.xlu0 %10240
  %v10243 = vsel %vm1590, %v10227, 0
  %v10246 = vsel %vm1590, %v10229, 0
  %v10249 = vsel %vm1590, %v10231, 0
  %v10252 = vsel %vm1590, %v10233, 0
  %v10255 = vsel %vm1590, %v10235, 0
  %v10258 = vsel %vm1590, %v10237, 0
  %v10261 = vsel %vm1590, %v10239, 0
  %v10264 = vsel %vm1590, %v10241, 0
  %10266 = vmatprep.subr.bf16.mxu0 0
  %10267 = vmatpush1.bf16.xpose.msra.mxu0 0
  %10268 = vmatprep.subr.bf16.mxu0 0
  %10269 = vmatpush1.bf16.xpose.msra.mxu0 0
  %10270 = vmatprep.subr.bf16.mxu0 0
  %10271 = vmatpush1.bf16.xpose.msra.mxu0 0
  %10272 = vmatprep.subr.bf16.mxu0 0
  %10273 = vmatpush1.bf16.xpose.msra.mxu0 0
  %10274 = vmatprep.subr.bf16.mxu0 0
  %10275 = vmatpush1.bf16.xpose.msra.mxu0 %v10264
  %10276 = vmatprep.subr.bf16.mxu0 0
  %10277 = vmatpush1.bf16.xpose.msra.mxu0 %v10261
  %10278 = vmatprep.subr.bf16.mxu0 0
  %10279 = vmatpush1.bf16.xpose.msra.mxu0 %v10258
  %10280 = vmatprep.subr.bf16.mxu0 0
  %10281 = vmatpush1.bf16.xpose.msra.mxu0 %v10255
  %10282 = vmatprep.subr.bf16.mxu0 0
  %10283 = vmatpush2.bf16.xpose.msra.mxu0 0
  %10284 = vmatprep.subr.bf16.mxu0 0
  %10285 = vmatpush2.bf16.xpose.msra.mxu0 0
  %10286 = vmatprep.subr.bf16.mxu0 0
  %10287 = vmatpush2.bf16.xpose.msra.mxu0 0
  %10288 = vmatprep.subr.bf16.mxu0 0
  %10289 = vmatpush2.bf16.xpose.msra.mxu0 0
  %10290 = vmatprep.subr.bf16.mxu0 0
  %10291 = vmatpush2.bf16.xpose.msra.mxu0 0
  %10292 = vmatprep.subr.bf16.mxu0 0
  %10293 = vmatpush2.bf16.xpose.msra.mxu0 0
  %10294 = vmatprep.subr.bf16.mxu0 0
  %10295 = vmatpush2.bf16.xpose.msra.mxu0 0
  %10296 = vmatprep.subr.bf16.mxu0 0
  %10297 = vmatpush2.bf16.xpose.msra.mxu0 0
  %10298 = vmatprep.mubr.bf16.mxu0 0
  %10299 = vmatmul.mubr.bf16.gmra.mxu0 %v10243
  %v10300 = vpop.f32.mrf.mxu0
  %v10301 = vadd.f32 0.0, %v10300
  %v10302 = vpop.f32.mrf.mxu0
  %v10303 = vpop.f32.mrf.mxu0
  %v10304 = vadd.f32 0.0, %v10303
  %v10305 = vpop.f32.mrf.mxu0
  %10306 = vmatprep.mubr.bf16.mxu0 0
  %10307 = vmatmul.mubr.bf16.gmra.mxu0 %v10246
  %v10308 = vpop.f32.mrf.mxu0
  %v10309 = vadd.f32 0.0, %v10308
  %v10310 = vpop.f32.mrf.mxu0
  %v10311 = vpop.f32.mrf.mxu0
  %v10312 = vadd.f32 0.0, %v10311
  %v10313 = vpop.f32.mrf.mxu0
  %10314 = vmatprep.mubr.bf16.mxu0 0
  %10315 = vmatmul.mubr.bf16.gmra.mxu0 %v10249
  %v10316 = vpop.f32.mrf.mxu0
  %v10317 = vadd.f32 0.0, %v10316
  %v10318 = vpop.f32.mrf.mxu0
  %v10319 = vpop.f32.mrf.mxu0
  %v10320 = vadd.f32 0.0, %v10319
  %v10321 = vpop.f32.mrf.mxu0
  %10322 = vmatprep.mubr.bf16.mxu0 0
  %10323 = vmatmul.mubr.bf16.gmra.mxu0 %v10252
  %v10324 = vpop.f32.mrf.mxu0
  %v10325 = vadd.f32 0.0, %v10324
  %v10326 = vpop.f32.mrf.mxu0
  %v10327 = vpop.f32.mrf.mxu0
  %v10328 = vadd.f32 0.0, %v10327
  %v10329 = vpop.f32.mrf.mxu0
  %10330 = vdwg.mxu0
  %10331 = vrot.lane.b32.xlu0 %v1518, 104
  %v10332 = vpop.permute.xlu0 %10331
  %10333 = vrot.lane.b32.xlu0 %v1519, 104
  %v10334 = vpop.permute.xlu0 %10333
  %10335 = vrot.lane.b32.xlu0 %v1520, 104
  %v10336 = vpop.permute.xlu0 %10335
  %10337 = vrot.lane.b32.xlu0 %v1521, 104
  %v10338 = vpop.permute.xlu0 %10337
  %10339 = vrot.lane.b32.xlu0 %v1518, 72
  %v10340 = vpop.permute.xlu0 %10339
  %10341 = vrot.lane.b32.xlu0 %v1519, 72
  %v10342 = vpop.permute.xlu0 %10341
  %10343 = vrot.lane.b32.xlu0 %v1520, 72
  %v10344 = vpop.permute.xlu0 %10343
  %10345 = vrot.lane.b32.xlu0 %v1521, 72
  %v10346 = vpop.permute.xlu0 %10345
  %v10348 = vsel %vm1590, %v10332, 0
  %v10351 = vsel %vm1590, %v10334, 0
  %v10354 = vsel %vm1590, %v10336, 0
  %v10357 = vsel %vm1590, %v10338, 0
  %v10360 = vsel %vm1590, %v10340, 0
  %v10363 = vsel %vm1590, %v10342, 0
  %v10366 = vsel %vm1590, %v10344, 0
  %v10369 = vsel %vm1590, %v10346, 0
  %10371 = vmatprep.subr.bf16.mxu0 0
  %10372 = vmatpush1.bf16.xpose.msra.mxu0 0
  %10373 = vmatprep.subr.bf16.mxu0 0
  %10374 = vmatpush1.bf16.xpose.msra.mxu0 0
  %10375 = vmatprep.subr.bf16.mxu0 0
  %10376 = vmatpush1.bf16.xpose.msra.mxu0 0
  %10377 = vmatprep.subr.bf16.mxu0 0
  %10378 = vmatpush1.bf16.xpose.msra.mxu0 0
  %10379 = vmatprep.subr.bf16.mxu0 0
  %10380 = vmatpush1.bf16.xpose.msra.mxu0 %v10369
  %10381 = vmatprep.subr.bf16.mxu0 0
  %10382 = vmatpush1.bf16.xpose.msra.mxu0 %v10366
  %10383 = vmatprep.subr.bf16.mxu0 0
  %10384 = vmatpush1.bf16.xpose.msra.mxu0 %v10363
  %10385 = vmatprep.subr.bf16.mxu0 0
  %10386 = vmatpush1.bf16.xpose.msra.mxu0 %v10360
  %10387 = vmatprep.subr.bf16.mxu0 0
  %10388 = vmatpush2.bf16.xpose.msra.mxu0 0
  %10389 = vmatprep.subr.bf16.mxu0 0
  %10390 = vmatpush2.bf16.xpose.msra.mxu0 0
  %10391 = vmatprep.subr.bf16.mxu0 0
  %10392 = vmatpush2.bf16.xpose.msra.mxu0 0
  %10393 = vmatprep.subr.bf16.mxu0 0
  %10394 = vmatpush2.bf16.xpose.msra.mxu0 0
  %10395 = vmatprep.subr.bf16.mxu0 0
  %10396 = vmatpush2.bf16.xpose.msra.mxu0 0
  %10397 = vmatprep.subr.bf16.mxu0 0
  %10398 = vmatpush2.bf16.xpose.msra.mxu0 0
  %10399 = vmatprep.subr.bf16.mxu0 0
  %10400 = vmatpush2.bf16.xpose.msra.mxu0 0
  %10401 = vmatprep.subr.bf16.mxu0 0
  %10402 = vmatpush2.bf16.xpose.msra.mxu0 0
  %10403 = vmatprep.mubr.bf16.mxu0 0
  %10404 = vmatmul.mubr.bf16.gmra.mxu0 %v10348
  %v10405 = vpop.f32.mrf.mxu0
  %v10406 = vadd.f32 0.0, %v10405
  %v10407 = vpop.f32.mrf.mxu0
  %v10408 = vpop.f32.mrf.mxu0
  %v10409 = vadd.f32 0.0, %v10408
  %v10410 = vpop.f32.mrf.mxu0
  %10411 = vmatprep.mubr.bf16.mxu0 0
  %10412 = vmatmul.mubr.bf16.gmra.mxu0 %v10351
  %v10413 = vpop.f32.mrf.mxu0
  %v10414 = vadd.f32 0.0, %v10413
  %v10415 = vpop.f32.mrf.mxu0
  %v10416 = vpop.f32.mrf.mxu0
  %v10417 = vadd.f32 0.0, %v10416
  %v10418 = vpop.f32.mrf.mxu0
  %10419 = vmatprep.mubr.bf16.mxu0 0
  %10420 = vmatmul.mubr.bf16.gmra.mxu0 %v10354
  %v10421 = vpop.f32.mrf.mxu0
  %v10422 = vadd.f32 0.0, %v10421
  %v10423 = vpop.f32.mrf.mxu0
  %v10424 = vpop.f32.mrf.mxu0
  %v10425 = vadd.f32 0.0, %v10424
  %v10426 = vpop.f32.mrf.mxu0
  %10427 = vmatprep.mubr.bf16.mxu0 0
  %10428 = vmatmul.mubr.bf16.gmra.mxu0 %v10357
  %v10429 = vpop.f32.mrf.mxu0
  %v10430 = vadd.f32 0.0, %v10429
  %v10431 = vpop.f32.mrf.mxu0
  %v10432 = vpop.f32.mrf.mxu0
  %v10433 = vadd.f32 0.0, %v10432
  %v10434 = vpop.f32.mrf.mxu0
  %10435 = vdwg.mxu0
  %10436 = vrot.lane.b32.xlu0 %v1522, 104
  %v10437 = vpop.permute.xlu0 %10436
  %10438 = vrot.lane.b32.xlu0 %v1523, 104
  %v10439 = vpop.permute.xlu0 %10438
  %10440 = vrot.lane.b32.xlu0 %v1524, 104
  %v10441 = vpop.permute.xlu0 %10440
  %10442 = vrot.lane.b32.xlu0 %v1525, 104
  %v10443 = vpop.permute.xlu0 %10442
  %10444 = vrot.lane.b32.xlu0 %v1522, 72
  %v10445 = vpop.permute.xlu0 %10444
  %10446 = vrot.lane.b32.xlu0 %v1523, 72
  %v10447 = vpop.permute.xlu0 %10446
  %10448 = vrot.lane.b32.xlu0 %v1524, 72
  %v10449 = vpop.permute.xlu0 %10448
  %10450 = vrot.lane.b32.xlu0 %v1525, 72
  %v10451 = vpop.permute.xlu0 %10450
  %v10453 = vsel %vm1590, %v10437, 0
  %v10456 = vsel %vm1590, %v10439, 0
  %v10459 = vsel %vm1590, %v10441, 0
  %v10462 = vsel %vm1590, %v10443, 0
  %v10465 = vsel %vm1590, %v10445, 0
  %v10468 = vsel %vm1590, %v10447, 0
  %v10471 = vsel %vm1590, %v10449, 0
  %v10474 = vsel %vm1590, %v10451, 0
  %10476 = vmatprep.subr.bf16.mxu0 0
  %10477 = vmatpush1.bf16.xpose.msra.mxu0 0
  %10478 = vmatprep.subr.bf16.mxu0 0
  %10479 = vmatpush1.bf16.xpose.msra.mxu0 0
  %10480 = vmatprep.subr.bf16.mxu0 0
  %10481 = vmatpush1.bf16.xpose.msra.mxu0 0
  %10482 = vmatprep.subr.bf16.mxu0 0
  %10483 = vmatpush1.bf16.xpose.msra.mxu0 0
  %10484 = vmatprep.subr.bf16.mxu0 0
  %10485 = vmatpush1.bf16.xpose.msra.mxu0 %v10474
  %10486 = vmatprep.subr.bf16.mxu0 0
  %10487 = vmatpush1.bf16.xpose.msra.mxu0 %v10471
  %10488 = vmatprep.subr.bf16.mxu0 0
  %10489 = vmatpush1.bf16.xpose.msra.mxu0 %v10468
  %10490 = vmatprep.subr.bf16.mxu0 0
  %10491 = vmatpush1.bf16.xpose.msra.mxu0 %v10465
  %10492 = vmatprep.subr.bf16.mxu0 0
  %10493 = vmatpush2.bf16.xpose.msra.mxu0 0
  %10494 = vmatprep.subr.bf16.mxu0 0
  %10495 = vmatpush2.bf16.xpose.msra.mxu0 0
  %10496 = vmatprep.subr.bf16.mxu0 0
  %10497 = vmatpush2.bf16.xpose.msra.mxu0 0
  %10498 = vmatprep.subr.bf16.mxu0 0
  %10499 = vmatpush2.bf16.xpose.msra.mxu0 0
  %10500 = vmatprep.subr.bf16.mxu0 0
  %10501 = vmatpush2.bf16.xpose.msra.mxu0 0
  %10502 = vmatprep.subr.bf16.mxu0 0
  %10503 = vmatpush2.bf16.xpose.msra.mxu0 0
  %10504 = vmatprep.subr.bf16.mxu0 0
  %10505 = vmatpush2.bf16.xpose.msra.mxu0 0
  %10506 = vmatprep.subr.bf16.mxu0 0
  %10507 = vmatpush2.bf16.xpose.msra.mxu0 0
  %10508 = vmatprep.mubr.bf16.mxu0 0
  %10509 = vmatmul.mubr.bf16.gmra.mxu0 %v10453
  %v10510 = vpop.f32.mrf.mxu0
  %v10511 = vadd.f32 0.0, %v10510
  %v10512 = vpop.f32.mrf.mxu0
  %v10513 = vpop.f32.mrf.mxu0
  %v10514 = vadd.f32 0.0, %v10513
  %v10515 = vpop.f32.mrf.mxu0
  %10516 = vmatprep.mubr.bf16.mxu0 0
  %10517 = vmatmul.mubr.bf16.gmra.mxu0 %v10456
  %v10518 = vpop.f32.mrf.mxu0
  %v10519 = vadd.f32 0.0, %v10518
  %v10520 = vpop.f32.mrf.mxu0
  %v10521 = vpop.f32.mrf.mxu0
  %v10522 = vadd.f32 0.0, %v10521
  %v10523 = vpop.f32.mrf.mxu0
  %10524 = vmatprep.mubr.bf16.mxu0 0
  %10525 = vmatmul.mubr.bf16.gmra.mxu0 %v10459
  %v10526 = vpop.f32.mrf.mxu0
  %v10527 = vadd.f32 0.0, %v10526
  %v10528 = vpop.f32.mrf.mxu0
  %v10529 = vpop.f32.mrf.mxu0
  %v10530 = vadd.f32 0.0, %v10529
  %v10531 = vpop.f32.mrf.mxu0
  %10532 = vmatprep.mubr.bf16.mxu0 0
  %10533 = vmatmul.mubr.bf16.gmra.mxu0 %v10462
  %v10534 = vpop.f32.mrf.mxu0
  %v10535 = vadd.f32 0.0, %v10534
  %v10536 = vpop.f32.mrf.mxu0
  %v10537 = vpop.f32.mrf.mxu0
  %v10538 = vadd.f32 0.0, %v10537
  %v10539 = vpop.f32.mrf.mxu0
  %10540 = vdwg.mxu0
  %10541 = vrot.lane.b32.xlu0 %v1526, 104
  %v10542 = vpop.permute.xlu0 %10541
  %10543 = vrot.lane.b32.xlu0 %v1527, 104
  %v10544 = vpop.permute.xlu0 %10543
  %10545 = vrot.lane.b32.xlu0 %v1528, 104
  %v10546 = vpop.permute.xlu0 %10545
  %10547 = vrot.lane.b32.xlu0 %v1529, 104
  %v10548 = vpop.permute.xlu0 %10547
  %10549 = vrot.lane.b32.xlu0 %v1526, 72
  %v10550 = vpop.permute.xlu0 %10549
  %10551 = vrot.lane.b32.xlu0 %v1527, 72
  %v10552 = vpop.permute.xlu0 %10551
  %10553 = vrot.lane.b32.xlu0 %v1528, 72
  %v10554 = vpop.permute.xlu0 %10553
  %10555 = vrot.lane.b32.xlu0 %v1529, 72
  %v10556 = vpop.permute.xlu0 %10555
  %v10558 = vsel %vm1590, %v10542, 0
  %v10561 = vsel %vm1590, %v10544, 0
  %v10564 = vsel %vm1590, %v10546, 0
  %v10567 = vsel %vm1590, %v10548, 0
  %v10570 = vsel %vm1590, %v10550, 0
  %v10573 = vsel %vm1590, %v10552, 0
  %v10576 = vsel %vm1590, %v10554, 0
  %v10579 = vsel %vm1590, %v10556, 0
  %10581 = vmatprep.subr.bf16.mxu0 0
  %10582 = vmatpush1.bf16.xpose.msra.mxu0 0
  %10583 = vmatprep.subr.bf16.mxu0 0
  %10584 = vmatpush1.bf16.xpose.msra.mxu0 0
  %10585 = vmatprep.subr.bf16.mxu0 0
  %10586 = vmatpush1.bf16.xpose.msra.mxu0 0
  %10587 = vmatprep.subr.bf16.mxu0 0
  %10588 = vmatpush1.bf16.xpose.msra.mxu0 0
  %10589 = vmatprep.subr.bf16.mxu0 0
  %10590 = vmatpush1.bf16.xpose.msra.mxu0 %v10579
  %10591 = vmatprep.subr.bf16.mxu0 0
  %10592 = vmatpush1.bf16.xpose.msra.mxu0 %v10576
  %10593 = vmatprep.subr.bf16.mxu0 0
  %10594 = vmatpush1.bf16.xpose.msra.mxu0 %v10573
  %10595 = vmatprep.subr.bf16.mxu0 0
  %10596 = vmatpush1.bf16.xpose.msra.mxu0 %v10570
  %10597 = vmatprep.subr.bf16.mxu0 0
  %10598 = vmatpush2.bf16.xpose.msra.mxu0 0
  %10599 = vmatprep.subr.bf16.mxu0 0
  %10600 = vmatpush2.bf16.xpose.msra.mxu0 0
  %10601 = vmatprep.subr.bf16.mxu0 0
  %10602 = vmatpush2.bf16.xpose.msra.mxu0 0
  %10603 = vmatprep.subr.bf16.mxu0 0
  %10604 = vmatpush2.bf16.xpose.msra.mxu0 0
  %10605 = vmatprep.subr.bf16.mxu0 0
  %10606 = vmatpush2.bf16.xpose.msra.mxu0 0
  %10607 = vmatprep.subr.bf16.mxu0 0
  %10608 = vmatpush2.bf16.xpose.msra.mxu0 0
  %10609 = vmatprep.subr.bf16.mxu0 0
  %10610 = vmatpush2.bf16.xpose.msra.mxu0 0
  %10611 = vmatprep.subr.bf16.mxu0 0
  %10612 = vmatpush2.bf16.xpose.msra.mxu0 0
  %10613 = vmatprep.mubr.bf16.mxu0 0
  %10614 = vmatmul.mubr.bf16.gmra.mxu0 %v10558
  %v10615 = vpop.f32.mrf.mxu0
  %v10616 = vadd.f32 0.0, %v10615
  %v10617 = vpop.f32.mrf.mxu0
  %v10618 = vpop.f32.mrf.mxu0
  %v10619 = vadd.f32 0.0, %v10618
  %v10620 = vpop.f32.mrf.mxu0
  %10621 = vmatprep.mubr.bf16.mxu0 0
  %10622 = vmatmul.mubr.bf16.gmra.mxu0 %v10561
  %v10623 = vpop.f32.mrf.mxu0
  %v10624 = vadd.f32 0.0, %v10623
  %v10625 = vpop.f32.mrf.mxu0
  %v10626 = vpop.f32.mrf.mxu0
  %v10627 = vadd.f32 0.0, %v10626
  %v10628 = vpop.f32.mrf.mxu0
  %10629 = vmatprep.mubr.bf16.mxu0 0
  %10630 = vmatmul.mubr.bf16.gmra.mxu0 %v10564
  %v10631 = vpop.f32.mrf.mxu0
  %v10632 = vadd.f32 0.0, %v10631
  %v10633 = vpop.f32.mrf.mxu0
  %v10634 = vpop.f32.mrf.mxu0
  %v10635 = vadd.f32 0.0, %v10634
  %v10636 = vpop.f32.mrf.mxu0
  %10637 = vmatprep.mubr.bf16.mxu0 0
  %10638 = vmatmul.mubr.bf16.gmra.mxu0 %v10567
  %v10639 = vpop.f32.mrf.mxu0
  %v10640 = vadd.f32 0.0, %v10639
  %v10641 = vpop.f32.mrf.mxu0
  %v10642 = vpop.f32.mrf.mxu0
  %v10643 = vadd.f32 0.0, %v10642
  %v10644 = vpop.f32.mrf.mxu0
  %10645 = vdwg.mxu0
  %10646 = vrot.lane.b32.xlu0 %v1530, 104
  %v10647 = vpop.permute.xlu0 %10646
  %10648 = vrot.lane.b32.xlu0 %v1531, 104
  %v10649 = vpop.permute.xlu0 %10648
  %10650 = vrot.lane.b32.xlu0 %v1532, 104
  %v10651 = vpop.permute.xlu0 %10650
  %10652 = vrot.lane.b32.xlu0 %v1533, 104
  %v10653 = vpop.permute.xlu0 %10652
  %10654 = vrot.lane.b32.xlu0 %v1530, 72
  %v10655 = vpop.permute.xlu0 %10654
  %10656 = vrot.lane.b32.xlu0 %v1531, 72
  %v10657 = vpop.permute.xlu0 %10656
  %10658 = vrot.lane.b32.xlu0 %v1532, 72
  %v10659 = vpop.permute.xlu0 %10658
  %10660 = vrot.lane.b32.xlu0 %v1533, 72
  %v10661 = vpop.permute.xlu0 %10660
  %v10663 = vsel %vm1590, %v10647, 0
  %v10666 = vsel %vm1590, %v10649, 0
  %v10669 = vsel %vm1590, %v10651, 0
  %v10672 = vsel %vm1590, %v10653, 0
  %v10675 = vsel %vm1590, %v10655, 0
  %v10678 = vsel %vm1590, %v10657, 0
  %v10681 = vsel %vm1590, %v10659, 0
  %v10684 = vsel %vm1590, %v10661, 0
  %10686 = vmatprep.subr.bf16.mxu0 0
  %10687 = vmatpush1.bf16.xpose.msra.mxu0 0
  %10688 = vmatprep.subr.bf16.mxu0 0
  %10689 = vmatpush1.bf16.xpose.msra.mxu0 0
  %10690 = vmatprep.subr.bf16.mxu0 0
  %10691 = vmatpush1.bf16.xpose.msra.mxu0 0
  %10692 = vmatprep.subr.bf16.mxu0 0
  %10693 = vmatpush1.bf16.xpose.msra.mxu0 0
  %10694 = vmatprep.subr.bf16.mxu0 0
  %10695 = vmatpush1.bf16.xpose.msra.mxu0 %v10684
  %10696 = vmatprep.subr.bf16.mxu0 0
  %10697 = vmatpush1.bf16.xpose.msra.mxu0 %v10681
  %10698 = vmatprep.subr.bf16.mxu0 0
  %10699 = vmatpush1.bf16.xpose.msra.mxu0 %v10678
  %10700 = vmatprep.subr.bf16.mxu0 0
  %10701 = vmatpush1.bf16.xpose.msra.mxu0 %v10675
  %10702 = vmatprep.subr.bf16.mxu0 0
  %10703 = vmatpush2.bf16.xpose.msra.mxu0 0
  %10704 = vmatprep.subr.bf16.mxu0 0
  %10705 = vmatpush2.bf16.xpose.msra.mxu0 0
  %10706 = vmatprep.subr.bf16.mxu0 0
  %10707 = vmatpush2.bf16.xpose.msra.mxu0 0
  %10708 = vmatprep.subr.bf16.mxu0 0
  %10709 = vmatpush2.bf16.xpose.msra.mxu0 0
  %10710 = vmatprep.subr.bf16.mxu0 0
  %10711 = vmatpush2.bf16.xpose.msra.mxu0 0
  %10712 = vmatprep.subr.bf16.mxu0 0
  %10713 = vmatpush2.bf16.xpose.msra.mxu0 0
  %10714 = vmatprep.subr.bf16.mxu0 0
  %10715 = vmatpush2.bf16.xpose.msra.mxu0 0
  %10716 = vmatprep.subr.bf16.mxu0 0
  %10717 = vmatpush2.bf16.xpose.msra.mxu0 0
  %10718 = vmatprep.mubr.bf16.mxu0 0
  %10719 = vmatmul.mubr.bf16.gmra.mxu0 %v10663
  %v10720 = vpop.f32.mrf.mxu0
  %v10721 = vadd.f32 0.0, %v10720
  %v10722 = vpop.f32.mrf.mxu0
  %v10723 = vpop.f32.mrf.mxu0
  %v10724 = vadd.f32 0.0, %v10723
  %v10725 = vpop.f32.mrf.mxu0
  %10726 = vmatprep.mubr.bf16.mxu0 0
  %10727 = vmatmul.mubr.bf16.gmra.mxu0 %v10666
  %v10728 = vpop.f32.mrf.mxu0
  %v10729 = vadd.f32 0.0, %v10728
  %v10730 = vpop.f32.mrf.mxu0
  %v10731 = vpop.f32.mrf.mxu0
  %v10732 = vadd.f32 0.0, %v10731
  %v10733 = vpop.f32.mrf.mxu0
  %10734 = vmatprep.mubr.bf16.mxu0 0
  %10735 = vmatmul.mubr.bf16.gmra.mxu0 %v10669
  %v10736 = vpop.f32.mrf.mxu0
  %v10737 = vadd.f32 0.0, %v10736
  %v10738 = vpop.f32.mrf.mxu0
  %v10739 = vpop.f32.mrf.mxu0
  %v10740 = vadd.f32 0.0, %v10739
  %v10741 = vpop.f32.mrf.mxu0
  %10742 = vmatprep.mubr.bf16.mxu0 0
  %10743 = vmatmul.mubr.bf16.gmra.mxu0 %v10672
  %v10744 = vpop.f32.mrf.mxu0
  %v10745 = vadd.f32 0.0, %v10744
  %v10746 = vpop.f32.mrf.mxu0
  %v10747 = vpop.f32.mrf.mxu0
  %v10748 = vadd.f32 0.0, %v10747
  %v10749 = vpop.f32.mrf.mxu0
  %10750 = vdwg.mxu0
  %10751 = vrot.lane.b32.xlu0 %v1534, 104
  %v10752 = vpop.permute.xlu0 %10751
  %10753 = vrot.lane.b32.xlu0 %v1535, 104
  %v10754 = vpop.permute.xlu0 %10753
  %10755 = vrot.lane.b32.xlu0 %v1536, 104
  %v10756 = vpop.permute.xlu0 %10755
  %10757 = vrot.lane.b32.xlu0 %v1537, 104
  %v10758 = vpop.permute.xlu0 %10757
  %10759 = vrot.lane.b32.xlu0 %v1534, 72
  %v10760 = vpop.permute.xlu0 %10759
  %10761 = vrot.lane.b32.xlu0 %v1535, 72
  %v10762 = vpop.permute.xlu0 %10761
  %10763 = vrot.lane.b32.xlu0 %v1536, 72
  %v10764 = vpop.permute.xlu0 %10763
  %10765 = vrot.lane.b32.xlu0 %v1537, 72
  %v10766 = vpop.permute.xlu0 %10765
  %v10768 = vsel %vm1590, %v10752, 0
  %v10771 = vsel %vm1590, %v10754, 0
  %v10774 = vsel %vm1590, %v10756, 0
  %v10777 = vsel %vm1590, %v10758, 0
  %v10780 = vsel %vm1590, %v10760, 0
  %v10783 = vsel %vm1590, %v10762, 0
  %v10786 = vsel %vm1590, %v10764, 0
  %v10789 = vsel %vm1590, %v10766, 0
  %10791 = vmatprep.subr.bf16.mxu0 0
  %10792 = vmatpush1.bf16.xpose.msra.mxu0 0
  %10793 = vmatprep.subr.bf16.mxu0 0
  %10794 = vmatpush1.bf16.xpose.msra.mxu0 0
  %10795 = vmatprep.subr.bf16.mxu0 0
  %10796 = vmatpush1.bf16.xpose.msra.mxu0 0
  %10797 = vmatprep.subr.bf16.mxu0 0
  %10798 = vmatpush1.bf16.xpose.msra.mxu0 0
  %10799 = vmatprep.subr.bf16.mxu0 0
  %10800 = vmatpush1.bf16.xpose.msra.mxu0 %v10789
  %10801 = vmatprep.subr.bf16.mxu0 0
  %10802 = vmatpush1.bf16.xpose.msra.mxu0 %v10786
  %10803 = vmatprep.subr.bf16.mxu0 0
  %10804 = vmatpush1.bf16.xpose.msra.mxu0 %v10783
  %10805 = vmatprep.subr.bf16.mxu0 0
  %10806 = vmatpush1.bf16.xpose.msra.mxu0 %v10780
  %10807 = vmatprep.subr.bf16.mxu0 0
  %10808 = vmatpush2.bf16.xpose.msra.mxu0 0
  %10809 = vmatprep.subr.bf16.mxu0 0
  %10810 = vmatpush2.bf16.xpose.msra.mxu0 0
  %10811 = vmatprep.subr.bf16.mxu0 0
  %10812 = vmatpush2.bf16.xpose.msra.mxu0 0
  %10813 = vmatprep.subr.bf16.mxu0 0
  %10814 = vmatpush2.bf16.xpose.msra.mxu0 0
  %10815 = vmatprep.subr.bf16.mxu0 0
  %10816 = vmatpush2.bf16.xpose.msra.mxu0 0
  %10817 = vmatprep.subr.bf16.mxu0 0
  %10818 = vmatpush2.bf16.xpose.msra.mxu0 0
  %10819 = vmatprep.subr.bf16.mxu0 0
  %10820 = vmatpush2.bf16.xpose.msra.mxu0 0
  %10821 = vmatprep.subr.bf16.mxu0 0
  %10822 = vmatpush2.bf16.xpose.msra.mxu0 0
  %10823 = vmatprep.mubr.bf16.mxu0 0
  %10824 = vmatmul.mubr.bf16.gmra.mxu0 %v10768
  %v10825 = vpop.f32.mrf.mxu0
  %v10826 = vadd.f32 0.0, %v10825
  %v10827 = vpop.f32.mrf.mxu0
  %v10828 = vpop.f32.mrf.mxu0
  %v10829 = vadd.f32 0.0, %v10828
  %v10830 = vpop.f32.mrf.mxu0
  %10831 = vmatprep.mubr.bf16.mxu0 0
  %10832 = vmatmul.mubr.bf16.gmra.mxu0 %v10771
  %v10833 = vpop.f32.mrf.mxu0
  %v10834 = vadd.f32 0.0, %v10833
  %v10835 = vpop.f32.mrf.mxu0
  %v10836 = vpop.f32.mrf.mxu0
  %v10837 = vadd.f32 0.0, %v10836
  %v10838 = vpop.f32.mrf.mxu0
  %10839 = vmatprep.mubr.bf16.mxu0 0
  %10840 = vmatmul.mubr.bf16.gmra.mxu0 %v10774
  %v10841 = vpop.f32.mrf.mxu0
  %v10842 = vadd.f32 0.0, %v10841
  %v10843 = vpop.f32.mrf.mxu0
  %v10844 = vpop.f32.mrf.mxu0
  %v10845 = vadd.f32 0.0, %v10844
  %v10846 = vpop.f32.mrf.mxu0
  %10847 = vmatprep.mubr.bf16.mxu0 0
  %10848 = vmatmul.mubr.bf16.gmra.mxu0 %v10777
  %v10849 = vpop.f32.mrf.mxu0
  %v10850 = vadd.f32 0.0, %v10849
  %v10851 = vpop.f32.mrf.mxu0
  %v10852 = vpop.f32.mrf.mxu0
  %v10853 = vadd.f32 0.0, %v10852
  %v10854 = vpop.f32.mrf.mxu0
  %10855 = vdwg.mxu0
  %10856 = vrot.lane.b32.xlu0 %v1538, 104
  %v10857 = vpop.permute.xlu0 %10856
  %10858 = vrot.lane.b32.xlu0 %v1539, 104
  %v10859 = vpop.permute.xlu0 %10858
  %10860 = vrot.lane.b32.xlu0 %v1540, 104
  %v10861 = vpop.permute.xlu0 %10860
  %10862 = vrot.lane.b32.xlu0 %v1541, 104
  %v10863 = vpop.permute.xlu0 %10862
  %10864 = vrot.lane.b32.xlu0 %v1538, 72
  %v10865 = vpop.permute.xlu0 %10864
  %10866 = vrot.lane.b32.xlu0 %v1539, 72
  %v10867 = vpop.permute.xlu0 %10866
  %10868 = vrot.lane.b32.xlu0 %v1540, 72
  %v10869 = vpop.permute.xlu0 %10868
  %10870 = vrot.lane.b32.xlu0 %v1541, 72
  %v10871 = vpop.permute.xlu0 %10870
  %v10873 = vsel %vm1590, %v10857, 0
  %v10876 = vsel %vm1590, %v10859, 0
  %v10879 = vsel %vm1590, %v10861, 0
  %v10882 = vsel %vm1590, %v10863, 0
  %v10885 = vsel %vm1590, %v10865, 0
  %v10888 = vsel %vm1590, %v10867, 0
  %v10891 = vsel %vm1590, %v10869, 0
  %v10894 = vsel %vm1590, %v10871, 0
  %10896 = vmatprep.subr.bf16.mxu0 0
  %10897 = vmatpush1.bf16.xpose.msra.mxu0 0
  %10898 = vmatprep.subr.bf16.mxu0 0
  %10899 = vmatpush1.bf16.xpose.msra.mxu0 0
  %10900 = vmatprep.subr.bf16.mxu0 0
  %10901 = vmatpush1.bf16.xpose.msra.mxu0 0
  %10902 = vmatprep.subr.bf16.mxu0 0
  %10903 = vmatpush1.bf16.xpose.msra.mxu0 0
  %10904 = vmatprep.subr.bf16.mxu0 0
  %10905 = vmatpush1.bf16.xpose.msra.mxu0 %v10894
  %10906 = vmatprep.subr.bf16.mxu0 0
  %10907 = vmatpush1.bf16.xpose.msra.mxu0 %v10891
  %10908 = vmatprep.subr.bf16.mxu0 0
  %10909 = vmatpush1.bf16.xpose.msra.mxu0 %v10888
  %10910 = vmatprep.subr.bf16.mxu0 0
  %10911 = vmatpush1.bf16.xpose.msra.mxu0 %v10885
  %10912 = vmatprep.subr.bf16.mxu0 0
  %10913 = vmatpush2.bf16.xpose.msra.mxu0 0
  %10914 = vmatprep.subr.bf16.mxu0 0
  %10915 = vmatpush2.bf16.xpose.msra.mxu0 0
  %10916 = vmatprep.subr.bf16.mxu0 0
  %10917 = vmatpush2.bf16.xpose.msra.mxu0 0
  %10918 = vmatprep.subr.bf16.mxu0 0
  %10919 = vmatpush2.bf16.xpose.msra.mxu0 0
  %10920 = vmatprep.subr.bf16.mxu0 0
  %10921 = vmatpush2.bf16.xpose.msra.mxu0 0
  %10922 = vmatprep.subr.bf16.mxu0 0
  %10923 = vmatpush2.bf16.xpose.msra.mxu0 0
  %10924 = vmatprep.subr.bf16.mxu0 0
  %10925 = vmatpush2.bf16.xpose.msra.mxu0 0
  %10926 = vmatprep.subr.bf16.mxu0 0
  %10927 = vmatpush2.bf16.xpose.msra.mxu0 0
  %10928 = vmatprep.mubr.bf16.mxu0 0
  %10929 = vmatmul.mubr.bf16.gmra.mxu0 %v10873
  %v10930 = vpop.f32.mrf.mxu0
  %v10931 = vadd.f32 0.0, %v10930
  %v10932 = vpop.f32.mrf.mxu0
  %v10933 = vpop.f32.mrf.mxu0
  %v10934 = vadd.f32 0.0, %v10933
  %v10935 = vpop.f32.mrf.mxu0
  %10936 = vmatprep.mubr.bf16.mxu0 0
  %10937 = vmatmul.mubr.bf16.gmra.mxu0 %v10876
  %v10938 = vpop.f32.mrf.mxu0
  %v10939 = vadd.f32 0.0, %v10938
  %v10940 = vpop.f32.mrf.mxu0
  %v10941 = vpop.f32.mrf.mxu0
  %v10942 = vadd.f32 0.0, %v10941
  %v10943 = vpop.f32.mrf.mxu0
  %10944 = vmatprep.mubr.bf16.mxu0 0
  %10945 = vmatmul.mubr.bf16.gmra.mxu0 %v10879
  %v10946 = vpop.f32.mrf.mxu0
  %v10947 = vadd.f32 0.0, %v10946
  %v10948 = vpop.f32.mrf.mxu0
  %v10949 = vpop.f32.mrf.mxu0
  %v10950 = vadd.f32 0.0, %v10949
  %v10951 = vpop.f32.mrf.mxu0
  %10952 = vmatprep.mubr.bf16.mxu0 0
  %10953 = vmatmul.mubr.bf16.gmra.mxu0 %v10882
  %v10954 = vpop.f32.mrf.mxu0
  %v10955 = vadd.f32 0.0, %v10954
  %v10956 = vpop.f32.mrf.mxu0
  %v10957 = vpop.f32.mrf.mxu0
  %v10958 = vadd.f32 0.0, %v10957
  %v10959 = vpop.f32.mrf.mxu0
  %10960 = vdwg.mxu0
  %v10961 = vmul.f32 %v10196, 0.35355338
  %v10962 = vmul.f32 %v10199, 0.35355338
  %v10963 = vmul.f32 %v10204, 0.35355338
  %v10964 = vmul.f32 %v10207, 0.35355338
  %v10965 = vmul.f32 %v10212, 0.35355338
  %v10966 = vmul.f32 %v10215, 0.35355338
  %v10967 = vmul.f32 %v10220, 0.35355338
  %v10968 = vmul.f32 %v10223, 0.35355338
  %v10969 = vmul.f32 %v10301, 0.35355338
  %v10970 = vmul.f32 %v10304, 0.35355338
  %v10971 = vmul.f32 %v10309, 0.35355338
  %v10972 = vmul.f32 %v10312, 0.35355338
  %v10973 = vmul.f32 %v10317, 0.35355338
  %v10974 = vmul.f32 %v10320, 0.35355338
  %v10975 = vmul.f32 %v10325, 0.35355338
  %v10976 = vmul.f32 %v10328, 0.35355338
  %v10977 = vmul.f32 %v10406, 0.35355338
  %v10978 = vmul.f32 %v10409, 0.35355338
  %v10979 = vmul.f32 %v10414, 0.35355338
  %v10980 = vmul.f32 %v10417, 0.35355338
  %v10981 = vmul.f32 %v10422, 0.35355338
  %v10982 = vmul.f32 %v10425, 0.35355338
  %v10983 = vmul.f32 %v10430, 0.35355338
  %v10984 = vmul.f32 %v10433, 0.35355338
  %v10985 = vmul.f32 %v10511, 0.35355338
  %v10986 = vmul.f32 %v10514, 0.35355338
  %v10987 = vmul.f32 %v10519, 0.35355338
  %v10988 = vmul.f32 %v10522, 0.35355338
  %v10989 = vmul.f32 %v10527, 0.35355338
  %v10990 = vmul.f32 %v10530, 0.35355338
  %v10991 = vmul.f32 %v10535, 0.35355338
  %v10992 = vmul.f32 %v10538, 0.35355338
  %v10993 = vmul.f32 %v10616, 0.35355338
  %v10994 = vmul.f32 %v10619, 0.35355338
  %v10995 = vmul.f32 %v10624, 0.35355338
  %v10996 = vmul.f32 %v10627, 0.35355338
  %v10997 = vmul.f32 %v10632, 0.35355338
  %v10998 = vmul.f32 %v10635, 0.35355338
  %v10999 = vmul.f32 %v10640, 0.35355338
  %v11000 = vmul.f32 %v10643, 0.35355338
  %v11001 = vmul.f32 %v10721, 0.35355338
  %v11002 = vmul.f32 %v10724, 0.35355338
  %v11003 = vmul.f32 %v10729, 0.35355338
  %v11004 = vmul.f32 %v10732, 0.35355338
  %v11005 = vmul.f32 %v10737, 0.35355338
  %v11006 = vmul.f32 %v10740, 0.35355338
  %v11007 = vmul.f32 %v10745, 0.35355338
  %v11008 = vmul.f32 %v10748, 0.35355338
  %v11009 = vmul.f32 %v10826, 0.35355338
  %v11010 = vmul.f32 %v10829, 0.35355338
  %v11011 = vmul.f32 %v10834, 0.35355338
  %v11012 = vmul.f32 %v10837, 0.35355338
  %v11013 = vmul.f32 %v10842, 0.35355338
  %v11014 = vmul.f32 %v10845, 0.35355338
  %v11015 = vmul.f32 %v10850, 0.35355338
  %v11016 = vmul.f32 %v10853, 0.35355338
  %v11017 = vmul.f32 %v10931, 0.35355338
  %v11018 = vmul.f32 %v10934, 0.35355338
  %v11019 = vmul.f32 %v10939, 0.35355338
  %v11020 = vmul.f32 %v10942, 0.35355338
  %v11021 = vmul.f32 %v10947, 0.35355338
  %v11022 = vmul.f32 %v10950, 0.35355338
  %v11023 = vmul.f32 %v10955, 0.35355338
  %v11024 = vmul.f32 %v10958, 0.35355338
  %v11025 = vadd.f32 %v10961, %v1570
  %v11026 = vadd.f32 %v10962, %v1571
  %v11027 = vadd.f32 %v10963, %v1572
  %v11028 = vadd.f32 %v10964, %v1573
  %v11029 = vadd.f32 %v10965, %v1574
  %v11030 = vadd.f32 %v10966, %v1575
  %v11031 = vadd.f32 %v10967, %v1576
  %v11032 = vadd.f32 %v10968, %v1577
  %v11033 = vadd.f32 %v10969, %v1570
  %v11034 = vadd.f32 %v10970, %v1571
  %v11035 = vadd.f32 %v10971, %v1572
  %v11036 = vadd.f32 %v10972, %v1573
  %v11037 = vadd.f32 %v10973, %v1574
  %v11038 = vadd.f32 %v10974, %v1575
  %v11039 = vadd.f32 %v10975, %v1576
  %v11040 = vadd.f32 %v10976, %v1577
  %v11041 = vadd.f32 %v10977, %v1570
  %v11042 = vadd.f32 %v10978, %v1571
  %v11043 = vadd.f32 %v10979, %v1572
  %v11044 = vadd.f32 %v10980, %v1573
  %v11045 = vadd.f32 %v10981, %v1574
  %v11046 = vadd.f32 %v10982, %v1575
  %v11047 = vadd.f32 %v10983, %v1576
  %v11048 = vadd.f32 %v10984, %v1577
  %v11049 = vadd.f32 %v10985, %v1570
  %v11050 = vadd.f32 %v10986, %v1571
  %v11051 = vadd.f32 %v10987, %v1572
  %v11052 = vadd.f32 %v10988, %v1573
  %v11053 = vadd.f32 %v10989, %v1574
  %v11054 = vadd.f32 %v10990, %v1575
  %v11055 = vadd.f32 %v10991, %v1576
  %v11056 = vadd.f32 %v10992, %v1577
  %v11057 = vadd.f32 %v10993, %v1570
  %v11058 = vadd.f32 %v10994, %v1571
  %v11059 = vadd.f32 %v10995, %v1572
  %v11060 = vadd.f32 %v10996, %v1573
  %v11061 = vadd.f32 %v10997, %v1574
  %v11062 = vadd.f32 %v10998, %v1575
  %v11063 = vadd.f32 %v10999, %v1576
  %v11064 = vadd.f32 %v11000, %v1577
  %v11065 = vadd.f32 %v11001, %v1570
  %v11066 = vadd.f32 %v11002, %v1571
  %v11067 = vadd.f32 %v11003, %v1572
  %v11068 = vadd.f32 %v11004, %v1573
  %v11069 = vadd.f32 %v11005, %v1574
  %v11070 = vadd.f32 %v11006, %v1575
  %v11071 = vadd.f32 %v11007, %v1576
  %v11072 = vadd.f32 %v11008, %v1577
  %v11073 = vadd.f32 %v11009, %v1570
  %v11074 = vadd.f32 %v11010, %v1571
  %v11075 = vadd.f32 %v11011, %v1572
  %v11076 = vadd.f32 %v11012, %v1573
  %v11077 = vadd.f32 %v11013, %v1574
  %v11078 = vadd.f32 %v11014, %v1575
  %v11079 = vadd.f32 %v11015, %v1576
  %v11080 = vadd.f32 %v11016, %v1577
  %v11081 = vadd.f32 %v11017, %v1570
  %v11082 = vadd.f32 %v11018, %v1571
  %v11083 = vadd.f32 %v11019, %v1572
  %v11084 = vadd.f32 %v11020, %v1573
  %v11085 = vadd.f32 %v11021, %v1574
  %v11086 = vadd.f32 %v11022, %v1575
  %v11087 = vadd.f32 %v11023, %v1576
  %v11088 = vadd.f32 %v11024, %v1577
  %v11089 = vsel %vm2515, %v11025, -inf
  %11090 = vmax.xlane.f32.xlu0 %v11089
  %v11091 = vpop.xlane.xlu0 %11090
  %v11092 = vsel %vm2515, %v11026, -inf
  %11093 = vmax.xlane.f32.xlu0 %v11092
  %v11094 = vpop.xlane.xlu0 %11093
  %v11095 = vsel %vm2515, %v11027, -inf
  %11096 = vmax.xlane.f32.xlu0 %v11095
  %v11097 = vpop.xlane.xlu0 %11096
  %v11098 = vsel %vm2515, %v11028, -inf
  %11099 = vmax.xlane.f32.xlu0 %v11098
  %v11100 = vpop.xlane.xlu0 %11099
  %v11101 = vsel %vm2515, %v11029, -inf
  %11102 = vmax.xlane.f32.xlu0 %v11101
  %v11103 = vpop.xlane.xlu0 %11102
  %v11104 = vsel %vm2515, %v11030, -inf
  %11105 = vmax.xlane.f32.xlu0 %v11104
  %v11106 = vpop.xlane.xlu0 %11105
  %v11107 = vsel %vm2515, %v11031, -inf
  %11108 = vmax.xlane.f32.xlu0 %v11107
  %v11109 = vpop.xlane.xlu0 %11108
  %v11110 = vsel %vm2515, %v11032, -inf
  %11111 = vmax.xlane.f32.xlu0 %v11110
  %v11112 = vpop.xlane.xlu0 %11111
  %v11113 = vsel %vm2515, %v11033, -inf
  %11114 = vmax.xlane.f32.xlu0 %v11113
  %v11115 = vpop.xlane.xlu0 %11114
  %v11116 = vsel %vm2515, %v11034, -inf
  %11117 = vmax.xlane.f32.xlu0 %v11116
  %v11118 = vpop.xlane.xlu0 %11117
  %v11119 = vsel %vm2515, %v11035, -inf
  %11120 = vmax.xlane.f32.xlu0 %v11119
  %v11121 = vpop.xlane.xlu0 %11120
  %v11122 = vsel %vm2515, %v11036, -inf
  %11123 = vmax.xlane.f32.xlu0 %v11122
  %v11124 = vpop.xlane.xlu0 %11123
  %v11125 = vsel %vm2515, %v11037, -inf
  %11126 = vmax.xlane.f32.xlu0 %v11125
  %v11127 = vpop.xlane.xlu0 %11126
  %v11128 = vsel %vm2515, %v11038, -inf
  %11129 = vmax.xlane.f32.xlu0 %v11128
  %v11130 = vpop.xlane.xlu0 %11129
  %v11131 = vsel %vm2515, %v11039, -inf
  %11132 = vmax.xlane.f32.xlu0 %v11131
  %v11133 = vpop.xlane.xlu0 %11132
  %v11134 = vsel %vm2515, %v11040, -inf
  %11135 = vmax.xlane.f32.xlu0 %v11134
  %v11136 = vpop.xlane.xlu0 %11135
  %v11137 = vsel %vm2515, %v11041, -inf
  %11138 = vmax.xlane.f32.xlu0 %v11137
  %v11139 = vpop.xlane.xlu0 %11138
  %v11140 = vsel %vm2515, %v11042, -inf
  %11141 = vmax.xlane.f32.xlu0 %v11140
  %v11142 = vpop.xlane.xlu0 %11141
  %v11143 = vsel %vm2515, %v11043, -inf
  %11144 = vmax.xlane.f32.xlu0 %v11143
  %v11145 = vpop.xlane.xlu0 %11144
  %v11146 = vsel %vm2515, %v11044, -inf
  %11147 = vmax.xlane.f32.xlu0 %v11146
  %v11148 = vpop.xlane.xlu0 %11147
  %v11149 = vsel %vm2515, %v11045, -inf
  %11150 = vmax.xlane.f32.xlu0 %v11149
  %v11151 = vpop.xlane.xlu0 %11150
  %v11152 = vsel %vm2515, %v11046, -inf
  %11153 = vmax.xlane.f32.xlu0 %v11152
  %v11154 = vpop.xlane.xlu0 %11153
  %v11155 = vsel %vm2515, %v11047, -inf
  %11156 = vmax.xlane.f32.xlu0 %v11155
  %v11157 = vpop.xlane.xlu0 %11156
  %v11158 = vsel %vm2515, %v11048, -inf
  %11159 = vmax.xlane.f32.xlu0 %v11158
  %v11160 = vpop.xlane.xlu0 %11159
  %v11161 = vsel %vm2515, %v11049, -inf
  %11162 = vmax.xlane.f32.xlu0 %v11161
  %v11163 = vpop.xlane.xlu0 %11162
  %v11164 = vsel %vm2515, %v11050, -inf
  %11165 = vmax.xlane.f32.xlu0 %v11164
  %v11166 = vpop.xlane.xlu0 %11165
  %v11167 = vsel %vm2515, %v11051, -inf
  %11168 = vmax.xlane.f32.xlu0 %v11167
  %v11169 = vpop.xlane.xlu0 %11168
  %v11170 = vsel %vm2515, %v11052, -inf
  %11171 = vmax.xlane.f32.xlu0 %v11170
  %v11172 = vpop.xlane.xlu0 %11171
  %v11173 = vsel %vm2515, %v11053, -inf
  %11174 = vmax.xlane.f32.xlu0 %v11173
  %v11175 = vpop.xlane.xlu0 %11174
  %v11176 = vsel %vm2515, %v11054, -inf
  %11177 = vmax.xlane.f32.xlu0 %v11176
  %v11178 = vpop.xlane.xlu0 %11177
  %v11179 = vsel %vm2515, %v11055, -inf
  %11180 = vmax.xlane.f32.xlu0 %v11179
  %v11181 = vpop.xlane.xlu0 %11180
  %v11182 = vsel %vm2515, %v11056, -inf
  %11183 = vmax.xlane.f32.xlu0 %v11182
  %v11184 = vpop.xlane.xlu0 %11183
  %v11185 = vsel %vm2515, %v11057, -inf
  %11186 = vmax.xlane.f32.xlu0 %v11185
  %v11187 = vpop.xlane.xlu0 %11186
  %v11188 = vsel %vm2515, %v11058, -inf
  %11189 = vmax.xlane.f32.xlu0 %v11188
  %v11190 = vpop.xlane.xlu0 %11189
  %v11191 = vsel %vm2515, %v11059, -inf
  %11192 = vmax.xlane.f32.xlu0 %v11191
  %v11193 = vpop.xlane.xlu0 %11192
  %v11194 = vsel %vm2515, %v11060, -inf
  %11195 = vmax.xlane.f32.xlu0 %v11194
  %v11196 = vpop.xlane.xlu0 %11195
  %v11197 = vsel %vm2515, %v11061, -inf
  %11198 = vmax.xlane.f32.xlu0 %v11197
  %v11199 = vpop.xlane.xlu0 %11198
  %v11200 = vsel %vm2515, %v11062, -inf
  %11201 = vmax.xlane.f32.xlu0 %v11200
  %v11202 = vpop.xlane.xlu0 %11201
  %v11203 = vsel %vm2515, %v11063, -inf
  %11204 = vmax.xlane.f32.xlu0 %v11203
  %v11205 = vpop.xlane.xlu0 %11204
  %v11206 = vsel %vm2515, %v11064, -inf
  %11207 = vmax.xlane.f32.xlu0 %v11206
  %v11208 = vpop.xlane.xlu0 %11207
  %v11209 = vsel %vm2515, %v11065, -inf
  %11210 = vmax.xlane.f32.xlu0 %v11209
  %v11211 = vpop.xlane.xlu0 %11210
  %v11212 = vsel %vm2515, %v11066, -inf
  %11213 = vmax.xlane.f32.xlu0 %v11212
  %v11214 = vpop.xlane.xlu0 %11213
  %v11215 = vsel %vm2515, %v11067, -inf
  %11216 = vmax.xlane.f32.xlu0 %v11215
  %v11217 = vpop.xlane.xlu0 %11216
  %v11218 = vsel %vm2515, %v11068, -inf
  %11219 = vmax.xlane.f32.xlu0 %v11218
  %v11220 = vpop.xlane.xlu0 %11219
  %v11221 = vsel %vm2515, %v11069, -inf
  %11222 = vmax.xlane.f32.xlu0 %v11221
  %v11223 = vpop.xlane.xlu0 %11222
  %v11224 = vsel %vm2515, %v11070, -inf
  %11225 = vmax.xlane.f32.xlu0 %v11224
  %v11226 = vpop.xlane.xlu0 %11225
  %v11227 = vsel %vm2515, %v11071, -inf
  %11228 = vmax.xlane.f32.xlu0 %v11227
  %v11229 = vpop.xlane.xlu0 %11228
  %v11230 = vsel %vm2515, %v11072, -inf
  %11231 = vmax.xlane.f32.xlu0 %v11230
  %v11232 = vpop.xlane.xlu0 %11231
  %v11233 = vsel %vm2515, %v11073, -inf
  %11234 = vmax.xlane.f32.xlu0 %v11233
  %v11235 = vpop.xlane.xlu0 %11234
  %v11236 = vsel %vm2515, %v11074, -inf
  %11237 = vmax.xlane.f32.xlu0 %v11236
  %v11238 = vpop.xlane.xlu0 %11237
  %v11239 = vsel %vm2515, %v11075, -inf
  %11240 = vmax.xlane.f32.xlu0 %v11239
  %v11241 = vpop.xlane.xlu0 %11240
  %v11242 = vsel %vm2515, %v11076, -inf
  %11243 = vmax.xlane.f32.xlu0 %v11242
  %v11244 = vpop.xlane.xlu0 %11243
  %v11245 = vsel %vm2515, %v11077, -inf
  %11246 = vmax.xlane.f32.xlu0 %v11245
  %v11247 = vpop.xlane.xlu0 %11246
  %v11248 = vsel %vm2515, %v11078, -inf
  %11249 = vmax.xlane.f32.xlu0 %v11248
  %v11250 = vpop.xlane.xlu0 %11249
  %v11251 = vsel %vm2515, %v11079, -inf
  %11252 = vmax.xlane.f32.xlu0 %v11251
  %v11253 = vpop.xlane.xlu0 %11252
  %v11254 = vsel %vm2515, %v11080, -inf
  %11255 = vmax.xlane.f32.xlu0 %v11254
  %v11256 = vpop.xlane.xlu0 %11255
  %v11257 = vsel %vm2515, %v11081, -inf
  %11258 = vmax.xlane.f32.xlu0 %v11257
  %v11259 = vpop.xlane.xlu0 %11258
  %v11260 = vsel %vm2515, %v11082, -inf
  %11261 = vmax.xlane.f32.xlu0 %v11260
  %v11262 = vpop.xlane.xlu0 %11261
  %v11263 = vsel %vm2515, %v11083, -inf
  %11264 = vmax.xlane.f32.xlu0 %v11263
  %v11265 = vpop.xlane.xlu0 %11264
  %v11266 = vsel %vm2515, %v11084, -inf
  %11267 = vmax.xlane.f32.xlu0 %v11266
  %v11268 = vpop.xlane.xlu0 %11267
  %v11269 = vsel %vm2515, %v11085, -inf
  %11270 = vmax.xlane.f32.xlu0 %v11269
  %v11271 = vpop.xlane.xlu0 %11270
  %v11272 = vsel %vm2515, %v11086, -inf
  %11273 = vmax.xlane.f32.xlu0 %v11272
  %v11274 = vpop.xlane.xlu0 %11273
  %v11275 = vsel %vm2515, %v11087, -inf
  %11276 = vmax.xlane.f32.xlu0 %v11275
  %v11277 = vpop.xlane.xlu0 %11276
  %v11278 = vsel %vm2515, %v11088, -inf
  %11279 = vmax.xlane.f32.xlu0 %v11278
  %v11280 = vpop.xlane.xlu0 %11279
  %v11281 = vsub.f32 %v11025, %v11091
  %v11282 = vsub.f32 %v11026, %v11094
  %v11283 = vsub.f32 %v11027, %v11097
  %v11284 = vsub.f32 %v11028, %v11100
  %v11285 = vsub.f32 %v11029, %v11103
  %v11286 = vsub.f32 %v11030, %v11106
  %v11287 = vsub.f32 %v11031, %v11109
  %v11288 = vsub.f32 %v11032, %v11112
  %v11289 = vsub.f32 %v11033, %v11115
  %v11290 = vsub.f32 %v11034, %v11118
  %v11291 = vsub.f32 %v11035, %v11121
  %v11292 = vsub.f32 %v11036, %v11124
  %v11293 = vsub.f32 %v11037, %v11127
  %v11294 = vsub.f32 %v11038, %v11130
  %v11295 = vsub.f32 %v11039, %v11133
  %v11296 = vsub.f32 %v11040, %v11136
  %v11297 = vsub.f32 %v11041, %v11139
  %v11298 = vsub.f32 %v11042, %v11142
  %v11299 = vsub.f32 %v11043, %v11145
  %v11300 = vsub.f32 %v11044, %v11148
  %v11301 = vsub.f32 %v11045, %v11151
  %v11302 = vsub.f32 %v11046, %v11154
  %v11303 = vsub.f32 %v11047, %v11157
  %v11304 = vsub.f32 %v11048, %v11160
  %v11305 = vsub.f32 %v11049, %v11163
  %v11306 = vsub.f32 %v11050, %v11166
  %v11307 = vsub.f32 %v11051, %v11169
  %v11308 = vsub.f32 %v11052, %v11172
  %v11309 = vsub.f32 %v11053, %v11175
  %v11310 = vsub.f32 %v11054, %v11178
  %v11311 = vsub.f32 %v11055, %v11181
  %v11312 = vsub.f32 %v11056, %v11184
  %v11313 = vsub.f32 %v11057, %v11187
  %v11314 = vsub.f32 %v11058, %v11190
  %v11315 = vsub.f32 %v11059, %v11193
  %v11316 = vsub.f32 %v11060, %v11196
  %v11317 = vsub.f32 %v11061, %v11199
  %v11318 = vsub.f32 %v11062, %v11202
  %v11319 = vsub.f32 %v11063, %v11205
  %v11320 = vsub.f32 %v11064, %v11208
  %v11321 = vsub.f32 %v11065, %v11211
  %v11322 = vsub.f32 %v11066, %v11214
  %v11323 = vsub.f32 %v11067, %v11217
  %v11324 = vsub.f32 %v11068, %v11220
  %v11325 = vsub.f32 %v11069, %v11223
  %v11326 = vsub.f32 %v11070, %v11226
  %v11327 = vsub.f32 %v11071, %v11229
  %v11328 = vsub.f32 %v11072, %v11232
  %v11329 = vsub.f32 %v11073, %v11235
  %v11330 = vsub.f32 %v11074, %v11238
  %v11331 = vsub.f32 %v11075, %v11241
  %v11332 = vsub.f32 %v11076, %v11244
  %v11333 = vsub.f32 %v11077, %v11247
  %v11334 = vsub.f32 %v11078, %v11250
  %v11335 = vsub.f32 %v11079, %v11253
  %v11336 = vsub.f32 %v11080, %v11256
  %v11337 = vsub.f32 %v11081, %v11259
  %v11338 = vsub.f32 %v11082, %v11262
  %v11339 = vsub.f32 %v11083, %v11265
  %v11340 = vsub.f32 %v11084, %v11268
  %v11341 = vsub.f32 %v11085, %v11271
  %v11342 = vsub.f32 %v11086, %v11274
  %v11343 = vsub.f32 %v11087, %v11277
  %v11344 = vsub.f32 %v11088, %v11280
  %v11345 = vmul.f32 %v11281, 1.442695
  %v11346 = vpow.pop %v11345
  %v11347 = vmul.f32 %v11282, 1.442695
  %v11348 = vpow.pop %v11347
  %v11349 = vmul.f32 %v11283, 1.442695
  %v11350 = vpow.pop %v11349
  %v11351 = vmul.f32 %v11284, 1.442695
  %v11352 = vpow.pop %v11351
  %v11353 = vmul.f32 %v11285, 1.442695
  %v11354 = vpow.pop %v11353
  %v11355 = vmul.f32 %v11286, 1.442695
  %v11356 = vpow.pop %v11355
  %v11357 = vmul.f32 %v11287, 1.442695
  %v11358 = vpow.pop %v11357
  %v11359 = vmul.f32 %v11288, 1.442695
  %v11360 = vpow.pop %v11359
  %v11361 = vmul.f32 %v11289, 1.442695
  %v11362 = vpow.pop %v11361
  %v11363 = vmul.f32 %v11290, 1.442695
  %v11364 = vpow.pop %v11363
  %v11365 = vmul.f32 %v11291, 1.442695
  %v11366 = vpow.pop %v11365
  %v11367 = vmul.f32 %v11292, 1.442695
  %v11368 = vpow.pop %v11367
  %v11369 = vmul.f32 %v11293, 1.442695
  %v11370 = vpow.pop %v11369
  %v11371 = vmul.f32 %v11294, 1.442695
  %v11372 = vpow.pop %v11371
  %v11373 = vmul.f32 %v11295, 1.442695
  %v11374 = vpow.pop %v11373
  %v11375 = vmul.f32 %v11296, 1.442695
  %v11376 = vpow.pop %v11375
  %v11377 = vmul.f32 %v11297, 1.442695
  %v11378 = vpow.pop %v11377
  %v11379 = vmul.f32 %v11298, 1.442695
  %v11380 = vpow.pop %v11379
  %v11381 = vmul.f32 %v11299, 1.442695
  %v11382 = vpow.pop %v11381
  %v11383 = vmul.f32 %v11300, 1.442695
  %v11384 = vpow.pop %v11383
  %v11385 = vmul.f32 %v11301, 1.442695
  %v11386 = vpow.pop %v11385
  %v11387 = vmul.f32 %v11302, 1.442695
  %v11388 = vpow.pop %v11387
  %v11389 = vmul.f32 %v11303, 1.442695
  %v11390 = vpow.pop %v11389
  %v11391 = vmul.f32 %v11304, 1.442695
  %v11392 = vpow.pop %v11391
  %v11393 = vmul.f32 %v11305, 1.442695
  %v11394 = vpow.pop %v11393
  %v11395 = vmul.f32 %v11306, 1.442695
  %v11396 = vpow.pop %v11395
  %v11397 = vmul.f32 %v11307, 1.442695
  %v11398 = vpow.pop %v11397
  %v11399 = vmul.f32 %v11308, 1.442695
  %v11400 = vpow.pop %v11399
  %v11401 = vmul.f32 %v11309, 1.442695
  %v11402 = vpow.pop %v11401
  %v11403 = vmul.f32 %v11310, 1.442695
  %v11404 = vpow.pop %v11403
  %v11405 = vmul.f32 %v11311, 1.442695
  %v11406 = vpow.pop %v11405
  %v11407 = vmul.f32 %v11312, 1.442695
  %v11408 = vpow.pop %v11407
  %v11409 = vmul.f32 %v11313, 1.442695
  %v11410 = vpow.pop %v11409
  %v11411 = vmul.f32 %v11314, 1.442695
  %v11412 = vpow.pop %v11411
  %v11413 = vmul.f32 %v11315, 1.442695
  %v11414 = vpow.pop %v11413
  %v11415 = vmul.f32 %v11316, 1.442695
  %v11416 = vpow.pop %v11415
  %v11417 = vmul.f32 %v11317, 1.442695
  %v11418 = vpow.pop %v11417
  %v11419 = vmul.f32 %v11318, 1.442695
  %v11420 = vpow.pop %v11419
  %v11421 = vmul.f32 %v11319, 1.442695
  %v11422 = vpow.pop %v11421
  %v11423 = vmul.f32 %v11320, 1.442695
  %v11424 = vpow.pop %v11423
  %v11425 = vmul.f32 %v11321, 1.442695
  %v11426 = vpow.pop %v11425
  %v11427 = vmul.f32 %v11322, 1.442695
  %v11428 = vpow.pop %v11427
  %v11429 = vmul.f32 %v11323, 1.442695
  %v11430 = vpow.pop %v11429
  %v11431 = vmul.f32 %v11324, 1.442695
  %v11432 = vpow.pop %v11431
  %v11433 = vmul.f32 %v11325, 1.442695
  %v11434 = vpow.pop %v11433
  %v11435 = vmul.f32 %v11326, 1.442695
  %v11436 = vpow.pop %v11435
  %v11437 = vmul.f32 %v11327, 1.442695
  %v11438 = vpow.pop %v11437
  %v11439 = vmul.f32 %v11328, 1.442695
  %v11440 = vpow.pop %v11439
  %v11441 = vmul.f32 %v11329, 1.442695
  %v11442 = vpow.pop %v11441
  %v11443 = vmul.f32 %v11330, 1.442695
  %v11444 = vpow.pop %v11443
  %v11445 = vmul.f32 %v11331, 1.442695
  %v11446 = vpow.pop %v11445
  %v11447 = vmul.f32 %v11332, 1.442695
  %v11448 = vpow.pop %v11447
  %v11449 = vmul.f32 %v11333, 1.442695
  %v11450 = vpow.pop %v11449
  %v11451 = vmul.f32 %v11334, 1.442695
  %v11452 = vpow.pop %v11451
  %v11453 = vmul.f32 %v11335, 1.442695
  %v11454 = vpow.pop %v11453
  %v11455 = vmul.f32 %v11336, 1.442695
  %v11456 = vpow.pop %v11455
  %v11457 = vmul.f32 %v11337, 1.442695
  %v11458 = vpow.pop %v11457
  %v11459 = vmul.f32 %v11338, 1.442695
  %v11460 = vpow.pop %v11459
  %v11461 = vmul.f32 %v11339, 1.442695
  %v11462 = vpow.pop %v11461
  %v11463 = vmul.f32 %v11340, 1.442695
  %v11464 = vpow.pop %v11463
  %v11465 = vmul.f32 %v11341, 1.442695
  %v11466 = vpow.pop %v11465
  %v11467 = vmul.f32 %v11342, 1.442695
  %v11468 = vpow.pop %v11467
  %v11469 = vmul.f32 %v11343, 1.442695
  %v11470 = vpow.pop %v11469
  %v11471 = vmul.f32 %v11344, 1.442695
  %v11472 = vpow.pop %v11471
  %v11473 = vsel %vm2515, %v11346, 0.0
  %11474 = vadd.xlane.f32.xlu0 %v11473
  %v11475 = vpop.xlane.xlu0 %11474
  %v11476 = vsel %vm2515, %v11348, 0.0
  %11477 = vadd.xlane.f32.xlu0 %v11476
  %v11478 = vpop.xlane.xlu0 %11477
  %v11479 = vsel %vm2515, %v11350, 0.0
  %11480 = vadd.xlane.f32.xlu0 %v11479
  %v11481 = vpop.xlane.xlu0 %11480
  %v11482 = vsel %vm2515, %v11352, 0.0
  %11483 = vadd.xlane.f32.xlu0 %v11482
  %v11484 = vpop.xlane.xlu0 %11483
  %v11485 = vsel %vm2515, %v11354, 0.0
  %11486 = vadd.xlane.f32.xlu0 %v11485
  %v11487 = vpop.xlane.xlu0 %11486
  %v11488 = vsel %vm2515, %v11356, 0.0
  %11489 = vadd.xlane.f32.xlu0 %v11488
  %v11490 = vpop.xlane.xlu0 %11489
  %v11491 = vsel %vm2515, %v11358, 0.0
  %11492 = vadd.xlane.f32.xlu0 %v11491
  %v11493 = vpop.xlane.xlu0 %11492
  %v11494 = vsel %vm2515, %v11360, 0.0
  %11495 = vadd.xlane.f32.xlu0 %v11494
  %v11496 = vpop.xlane.xlu0 %11495
  %v11497 = vsel %vm2515, %v11362, 0.0
  %11498 = vadd.xlane.f32.xlu0 %v11497
  %v11499 = vpop.xlane.xlu0 %11498
  %v11500 = vsel %vm2515, %v11364, 0.0
  %11501 = vadd.xlane.f32.xlu0 %v11500
  %v11502 = vpop.xlane.xlu0 %11501
  %v11503 = vsel %vm2515, %v11366, 0.0
  %11504 = vadd.xlane.f32.xlu0 %v11503
  %v11505 = vpop.xlane.xlu0 %11504
  %v11506 = vsel %vm2515, %v11368, 0.0
  %11507 = vadd.xlane.f32.xlu0 %v11506
  %v11508 = vpop.xlane.xlu0 %11507
  %v11509 = vsel %vm2515, %v11370, 0.0
  %11510 = vadd.xlane.f32.xlu0 %v11509
  %v11511 = vpop.xlane.xlu0 %11510
  %v11512 = vsel %vm2515, %v11372, 0.0
  %11513 = vadd.xlane.f32.xlu0 %v11512
  %v11514 = vpop.xlane.xlu0 %11513
  %v11515 = vsel %vm2515, %v11374, 0.0
  %11516 = vadd.xlane.f32.xlu0 %v11515
  %v11517 = vpop.xlane.xlu0 %11516
  %v11518 = vsel %vm2515, %v11376, 0.0
  %11519 = vadd.xlane.f32.xlu0 %v11518
  %v11520 = vpop.xlane.xlu0 %11519
  %v11521 = vsel %vm2515, %v11378, 0.0
  %11522 = vadd.xlane.f32.xlu0 %v11521
  %v11523 = vpop.xlane.xlu0 %11522
  %v11524 = vsel %vm2515, %v11380, 0.0
  %11525 = vadd.xlane.f32.xlu0 %v11524
  %v11526 = vpop.xlane.xlu0 %11525
  %v11527 = vsel %vm2515, %v11382, 0.0
  %11528 = vadd.xlane.f32.xlu0 %v11527
  %v11529 = vpop.xlane.xlu0 %11528
  %v11530 = vsel %vm2515, %v11384, 0.0
  %11531 = vadd.xlane.f32.xlu0 %v11530
  %v11532 = vpop.xlane.xlu0 %11531
  %v11533 = vsel %vm2515, %v11386, 0.0
  %11534 = vadd.xlane.f32.xlu0 %v11533
  %v11535 = vpop.xlane.xlu0 %11534
  %v11536 = vsel %vm2515, %v11388, 0.0
  %11537 = vadd.xlane.f32.xlu0 %v11536
  %v11538 = vpop.xlane.xlu0 %11537
  %v11539 = vsel %vm2515, %v11390, 0.0
  %11540 = vadd.xlane.f32.xlu0 %v11539
  %v11541 = vpop.xlane.xlu0 %11540
  %v11542 = vsel %vm2515, %v11392, 0.0
  %11543 = vadd.xlane.f32.xlu0 %v11542
  %v11544 = vpop.xlane.xlu0 %11543
  %v11545 = vsel %vm2515, %v11394, 0.0
  %11546 = vadd.xlane.f32.xlu0 %v11545
  %v11547 = vpop.xlane.xlu0 %11546
  %v11548 = vsel %vm2515, %v11396, 0.0
  %11549 = vadd.xlane.f32.xlu0 %v11548
  %v11550 = vpop.xlane.xlu0 %11549
  %v11551 = vsel %vm2515, %v11398, 0.0
  %11552 = vadd.xlane.f32.xlu0 %v11551
  %v11553 = vpop.xlane.xlu0 %11552
  %v11554 = vsel %vm2515, %v11400, 0.0
  %11555 = vadd.xlane.f32.xlu0 %v11554
  %v11556 = vpop.xlane.xlu0 %11555
  %v11557 = vsel %vm2515, %v11402, 0.0
  %11558 = vadd.xlane.f32.xlu0 %v11557
  %v11559 = vpop.xlane.xlu0 %11558
  %v11560 = vsel %vm2515, %v11404, 0.0
  %11561 = vadd.xlane.f32.xlu0 %v11560
  %v11562 = vpop.xlane.xlu0 %11561
  %v11563 = vsel %vm2515, %v11406, 0.0
  %11564 = vadd.xlane.f32.xlu0 %v11563
  %v11565 = vpop.xlane.xlu0 %11564
  %v11566 = vsel %vm2515, %v11408, 0.0
  %11567 = vadd.xlane.f32.xlu0 %v11566
  %v11568 = vpop.xlane.xlu0 %11567
  %v11569 = vsel %vm2515, %v11410, 0.0
  %11570 = vadd.xlane.f32.xlu0 %v11569
  %v11571 = vpop.xlane.xlu0 %11570
  %v11572 = vsel %vm2515, %v11412, 0.0
  %11573 = vadd.xlane.f32.xlu0 %v11572
  %v11574 = vpop.xlane.xlu0 %11573
  %v11575 = vsel %vm2515, %v11414, 0.0
  %11576 = vadd.xlane.f32.xlu0 %v11575
  %v11577 = vpop.xlane.xlu0 %11576
  %v11578 = vsel %vm2515, %v11416, 0.0
  %11579 = vadd.xlane.f32.xlu0 %v11578
  %v11580 = vpop.xlane.xlu0 %11579
  %v11581 = vsel %vm2515, %v11418, 0.0
  %11582 = vadd.xlane.f32.xlu0 %v11581
  %v11583 = vpop.xlane.xlu0 %11582
  %v11584 = vsel %vm2515, %v11420, 0.0
  %11585 = vadd.xlane.f32.xlu0 %v11584
  %v11586 = vpop.xlane.xlu0 %11585
  %v11587 = vsel %vm2515, %v11422, 0.0
  %11588 = vadd.xlane.f32.xlu0 %v11587
  %v11589 = vpop.xlane.xlu0 %11588
  %v11590 = vsel %vm2515, %v11424, 0.0
  %11591 = vadd.xlane.f32.xlu0 %v11590
  %v11592 = vpop.xlane.xlu0 %11591
  %v11593 = vsel %vm2515, %v11426, 0.0
  %11594 = vadd.xlane.f32.xlu0 %v11593
  %v11595 = vpop.xlane.xlu0 %11594
  %v11596 = vsel %vm2515, %v11428, 0.0
  %11597 = vadd.xlane.f32.xlu0 %v11596
  %v11598 = vpop.xlane.xlu0 %11597
  %v11599 = vsel %vm2515, %v11430, 0.0
  %11600 = vadd.xlane.f32.xlu0 %v11599
  %v11601 = vpop.xlane.xlu0 %11600
  %v11602 = vsel %vm2515, %v11432, 0.0
  %11603 = vadd.xlane.f32.xlu0 %v11602
  %v11604 = vpop.xlane.xlu0 %11603
  %v11605 = vsel %vm2515, %v11434, 0.0
  %11606 = vadd.xlane.f32.xlu0 %v11605
  %v11607 = vpop.xlane.xlu0 %11606
  %v11608 = vsel %vm2515, %v11436, 0.0
  %11609 = vadd.xlane.f32.xlu0 %v11608
  %v11610 = vpop.xlane.xlu0 %11609
  %v11611 = vsel %vm2515, %v11438, 0.0
  %11612 = vadd.xlane.f32.xlu0 %v11611
  %v11613 = vpop.xlane.xlu0 %11612
  %v11614 = vsel %vm2515, %v11440, 0.0
  %11615 = vadd.xlane.f32.xlu0 %v11614
  %v11616 = vpop.xlane.xlu0 %11615
  %v11617 = vsel %vm2515, %v11442, 0.0
  %11618 = vadd.xlane.f32.xlu0 %v11617
  %v11619 = vpop.xlane.xlu0 %11618
  %v11620 = vsel %vm2515, %v11444, 0.0
  %11621 = vadd.xlane.f32.xlu0 %v11620
  %v11622 = vpop.xlane.xlu0 %11621
  %v11623 = vsel %vm2515, %v11446, 0.0
  %11624 = vadd.xlane.f32.xlu0 %v11623
  %v11625 = vpop.xlane.xlu0 %11624
  %v11626 = vsel %vm2515, %v11448, 0.0
  %11627 = vadd.xlane.f32.xlu0 %v11626
  %v11628 = vpop.xlane.xlu0 %11627
  %v11629 = vsel %vm2515, %v11450, 0.0
  %11630 = vadd.xlane.f32.xlu0 %v11629
  %v11631 = vpop.xlane.xlu0 %11630
  %v11632 = vsel %vm2515, %v11452, 0.0
  %11633 = vadd.xlane.f32.xlu0 %v11632
  %v11634 = vpop.xlane.xlu0 %11633
  %v11635 = vsel %vm2515, %v11454, 0.0
  %11636 = vadd.xlane.f32.xlu0 %v11635
  %v11637 = vpop.xlane.xlu0 %11636
  %v11638 = vsel %vm2515, %v11456, 0.0
  %11639 = vadd.xlane.f32.xlu0 %v11638
  %v11640 = vpop.xlane.xlu0 %11639
  %v11641 = vsel %vm2515, %v11458, 0.0
  %11642 = vadd.xlane.f32.xlu0 %v11641
  %v11643 = vpop.xlane.xlu0 %11642
  %v11644 = vsel %vm2515, %v11460, 0.0
  %11645 = vadd.xlane.f32.xlu0 %v11644
  %v11646 = vpop.xlane.xlu0 %11645
  %v11647 = vsel %vm2515, %v11462, 0.0
  %11648 = vadd.xlane.f32.xlu0 %v11647
  %v11649 = vpop.xlane.xlu0 %11648
  %v11650 = vsel %vm2515, %v11464, 0.0
  %11651 = vadd.xlane.f32.xlu0 %v11650
  %v11652 = vpop.xlane.xlu0 %11651
  %v11653 = vsel %vm2515, %v11466, 0.0
  %11654 = vadd.xlane.f32.xlu0 %v11653
  %v11655 = vpop.xlane.xlu0 %11654
  %v11656 = vsel %vm2515, %v11468, 0.0
  %11657 = vadd.xlane.f32.xlu0 %v11656
  %v11658 = vpop.xlane.xlu0 %11657
  %v11659 = vsel %vm2515, %v11470, 0.0
  %11660 = vadd.xlane.f32.xlu0 %v11659
  %v11661 = vpop.xlane.xlu0 %11660
  %v11662 = vsel %vm2515, %v11472, 0.0
  %11663 = vadd.xlane.f32.xlu0 %v11662
  %v11664 = vpop.xlane.xlu0 %11663
  %v11665 = vrcp.pop %v11475
  %v11666 = vrcp.pop %v11478
  %v11667 = vrcp.pop %v11481
  %v11668 = vrcp.pop %v11484
  %v11669 = vrcp.pop %v11487
  %v11670 = vrcp.pop %v11490
  %v11671 = vrcp.pop %v11493
  %v11672 = vrcp.pop %v11496
  %v11673 = vrcp.pop %v11499
  %v11674 = vrcp.pop %v11502
  %v11675 = vrcp.pop %v11505
  %v11676 = vrcp.pop %v11508
  %v11677 = vrcp.pop %v11511
  %v11678 = vrcp.pop %v11514
  %v11679 = vrcp.pop %v11517
  %v11680 = vrcp.pop %v11520
  %v11681 = vrcp.pop %v11523
  %v11682 = vrcp.pop %v11526
  %v11683 = vrcp.pop %v11529
  %v11684 = vrcp.pop %v11532
  %v11685 = vrcp.pop %v11535
  %v11686 = vrcp.pop %v11538
  %v11687 = vrcp.pop %v11541
  %v11688 = vrcp.pop %v11544
  %v11689 = vrcp.pop %v11547
  %v11690 = vrcp.pop %v11550
  %v11691 = vrcp.pop %v11553
  %v11692 = vrcp.pop %v11556
  %v11693 = vrcp.pop %v11559
  %v11694 = vrcp.pop %v11562
  %v11695 = vrcp.pop %v11565
  %v11696 = vrcp.pop %v11568
  %v11697 = vrcp.pop %v11571
  %v11698 = vrcp.pop %v11574
  %v11699 = vrcp.pop %v11577
  %v11700 = vrcp.pop %v11580
  %v11701 = vrcp.pop %v11583
  %v11702 = vrcp.pop %v11586
  %v11703 = vrcp.pop %v11589
  %v11704 = vrcp.pop %v11592
  %v11705 = vrcp.pop %v11595
  %v11706 = vrcp.pop %v11598
  %v11707 = vrcp.pop %v11601
  %v11708 = vrcp.pop %v11604
  %v11709 = vrcp.pop %v11607
  %v11710 = vrcp.pop %v11610
  %v11711 = vrcp.pop %v11613
  %v11712 = vrcp.pop %v11616
  %v11713 = vrcp.pop %v11619
  %v11714 = vrcp.pop %v11622
  %v11715 = vrcp.pop %v11625
  %v11716 = vrcp.pop %v11628
  %v11717 = vrcp.pop %v11631
  %v11718 = vrcp.pop %v11634
  %v11719 = vrcp.pop %v11637
  %v11720 = vrcp.pop %v11640
  %v11721 = vrcp.pop %v11643
  %v11722 = vrcp.pop %v11646
  %v11723 = vrcp.pop %v11649
  %v11724 = vrcp.pop %v11652
  %v11725 = vrcp.pop %v11655
  %v11726 = vrcp.pop %v11658
  %v11727 = vrcp.pop %v11661
  %v11728 = vrcp.pop %v11664
  %v11729 = vmul.f32 %v11346, %v11665
  %v11730 = vmul.f32 %v11348, %v11666
  %v11731 = vmul.f32 %v11350, %v11667
  %v11732 = vmul.f32 %v11352, %v11668
  %v11733 = vmul.f32 %v11354, %v11669
  %v11734 = vmul.f32 %v11356, %v11670
  %v11735 = vmul.f32 %v11358, %v11671
  %v11736 = vmul.f32 %v11360, %v11672
  %v11737 = vmul.f32 %v11362, %v11673
  %v11738 = vmul.f32 %v11364, %v11674
  %v11739 = vmul.f32 %v11366, %v11675
  %v11740 = vmul.f32 %v11368, %v11676
  %v11741 = vmul.f32 %v11370, %v11677
  %v11742 = vmul.f32 %v11372, %v11678
  %v11743 = vmul.f32 %v11374, %v11679
  %v11744 = vmul.f32 %v11376, %v11680
  %v11745 = vmul.f32 %v11378, %v11681
  %v11746 = vmul.f32 %v11380, %v11682
  %v11747 = vmul.f32 %v11382, %v11683
  %v11748 = vmul.f32 %v11384, %v11684
  %v11749 = vmul.f32 %v11386, %v11685
  %v11750 = vmul.f32 %v11388, %v11686
  %v11751 = vmul.f32 %v11390, %v11687
  %v11752 = vmul.f32 %v11392, %v11688
  %v11753 = vmul.f32 %v11394, %v11689
  %v11754 = vmul.f32 %v11396, %v11690
  %v11755 = vmul.f32 %v11398, %v11691
  %v11756 = vmul.f32 %v11400, %v11692
  %v11757 = vmul.f32 %v11402, %v11693
  %v11758 = vmul.f32 %v11404, %v11694
  %v11759 = vmul.f32 %v11406, %v11695
  %v11760 = vmul.f32 %v11408, %v11696
  %v11761 = vmul.f32 %v11410, %v11697
  %v11762 = vmul.f32 %v11412, %v11698
  %v11763 = vmul.f32 %v11414, %v11699
  %v11764 = vmul.f32 %v11416, %v11700
  %v11765 = vmul.f32 %v11418, %v11701
  %v11766 = vmul.f32 %v11420, %v11702
  %v11767 = vmul.f32 %v11422, %v11703
  %v11768 = vmul.f32 %v11424, %v11704
  %v11769 = vmul.f32 %v11426, %v11705
  %v11770 = vmul.f32 %v11428, %v11706
  %v11771 = vmul.f32 %v11430, %v11707
  %v11772 = vmul.f32 %v11432, %v11708
  %v11773 = vmul.f32 %v11434, %v11709
  %v11774 = vmul.f32 %v11436, %v11710
  %v11775 = vmul.f32 %v11438, %v11711
  %v11776 = vmul.f32 %v11440, %v11712
  %v11777 = vmul.f32 %v11442, %v11713
  %v11778 = vmul.f32 %v11444, %v11714
  %v11779 = vmul.f32 %v11446, %v11715
  %v11780 = vmul.f32 %v11448, %v11716
  %v11781 = vmul.f32 %v11450, %v11717
  %v11782 = vmul.f32 %v11452, %v11718
  %v11783 = vmul.f32 %v11454, %v11719
  %v11784 = vmul.f32 %v11456, %v11720
  %v11785 = vmul.f32 %v11458, %v11721
  %v11786 = vmul.f32 %v11460, %v11722
  %v11787 = vmul.f32 %v11462, %v11723
  %v11788 = vmul.f32 %v11464, %v11724
  %v11789 = vmul.f32 %v11466, %v11725
  %v11790 = vmul.f32 %v11468, %v11726
  %v11791 = vmul.f32 %v11470, %v11727
  %v11792 = vmul.f32 %v11472, %v11728
  %v11793 = vpack.c.bf16 %v11730, %v11729
  %v11794 = vpack.c.bf16 %v11732, %v11731
  %v11795 = vpack.c.bf16 %v11734, %v11733
  %v11796 = vpack.c.bf16 %v11736, %v11735
  %v11797 = vpack.c.bf16 %v11738, %v11737
  %v11798 = vpack.c.bf16 %v11740, %v11739
  %v11799 = vpack.c.bf16 %v11742, %v11741
  %v11800 = vpack.c.bf16 %v11744, %v11743
  %v11801 = vpack.c.bf16 %v11746, %v11745
  %v11802 = vpack.c.bf16 %v11748, %v11747
  %v11803 = vpack.c.bf16 %v11750, %v11749
  %v11804 = vpack.c.bf16 %v11752, %v11751
  %v11805 = vpack.c.bf16 %v11754, %v11753
  %v11806 = vpack.c.bf16 %v11756, %v11755
  %v11807 = vpack.c.bf16 %v11758, %v11757
  %v11808 = vpack.c.bf16 %v11760, %v11759
  %v11809 = vpack.c.bf16 %v11762, %v11761
  %v11810 = vpack.c.bf16 %v11764, %v11763
  %v11811 = vpack.c.bf16 %v11766, %v11765
  %v11812 = vpack.c.bf16 %v11768, %v11767
  %v11813 = vpack.c.bf16 %v11770, %v11769
  %v11814 = vpack.c.bf16 %v11772, %v11771
  %v11815 = vpack.c.bf16 %v11774, %v11773
  %v11816 = vpack.c.bf16 %v11776, %v11775
  %v11817 = vpack.c.bf16 %v11778, %v11777
  %v11818 = vpack.c.bf16 %v11780, %v11779
  %v11819 = vpack.c.bf16 %v11782, %v11781
  %v11820 = vpack.c.bf16 %v11784, %v11783
  %v11821 = vpack.c.bf16 %v11786, %v11785
  %v11822 = vpack.c.bf16 %v11788, %v11787
  %v11823 = vpack.c.bf16 %v11790, %v11789
  %v11824 = vpack.c.bf16 %v11792, %v11791
  %11825 = vrot.lane.b32.xlu0 %v1510, 40
  %v11826 = vpop.permute.xlu0 %11825
  %11827 = vrot.lane.b32.xlu0 %v1511, 40
  %v11828 = vpop.permute.xlu0 %11827
  %11829 = vrot.lane.b32.xlu0 %v1512, 40
  %v11830 = vpop.permute.xlu0 %11829
  %11831 = vrot.lane.b32.xlu0 %v1513, 40
  %v11832 = vpop.permute.xlu0 %11831
  %v11838 = vsel %vm2515, %v11793, 0
  %v11841 = vsel %vm2515, %v11794, 0
  %v11844 = vsel %vm2515, %v11795, 0
  %v11847 = vsel %vm2515, %v11796, 0
  %11849 = vmatprep.subr.bf16.mxu0 0
  %11850 = vmatpush1.bf16.msra.mxu0 0
  %11851 = vmatprep.subr.bf16.mxu0 0
  %11852 = vmatpush1.bf16.msra.mxu0 0
  %11853 = vmatprep.subr.bf16.mxu0 0
  %11854 = vmatpush1.bf16.msra.mxu0 0
  %11855 = vmatprep.subr.bf16.mxu0 0
  %11856 = vmatpush1.bf16.msra.mxu0 0
  %11857 = vmatprep.subr.bf16.mxu0 0
  %11858 = vmatpush1.bf16.msra.mxu0 %v11832
  %11859 = vmatprep.subr.bf16.mxu0 0
  %11860 = vmatpush1.bf16.msra.mxu0 %v11830
  %11861 = vmatprep.subr.bf16.mxu0 0
  %11862 = vmatpush1.bf16.msra.mxu0 %v11828
  %11863 = vmatprep.subr.bf16.mxu0 0
  %11864 = vmatpush1.bf16.msra.mxu0 %v11826
  %11865 = vmatprep.subr.bf16.mxu0 0
  %11866 = vmatpush2.bf16.msra.mxu0 0
  %11867 = vmatprep.subr.bf16.mxu0 0
  %11868 = vmatpush2.bf16.msra.mxu0 0
  %11869 = vmatprep.subr.bf16.mxu0 0
  %11870 = vmatpush2.bf16.msra.mxu0 0
  %11871 = vmatprep.subr.bf16.mxu0 0
  %11872 = vmatpush2.bf16.msra.mxu0 0
  %11873 = vmatprep.subr.bf16.mxu0 0
  %11874 = vmatpush2.bf16.msra.mxu0 0
  %11875 = vmatprep.subr.bf16.mxu0 0
  %11876 = vmatpush2.bf16.msra.mxu0 0
  %11877 = vmatprep.subr.bf16.mxu0 0
  %11878 = vmatpush2.bf16.msra.mxu0 0
  %11879 = vmatprep.subr.bf16.mxu0 0
  %11880 = vmatpush2.bf16.msra.mxu0 0
  %11881 = vmatprep.mubr.bf16.mxu0 0
  %11882 = vmatmul.mubr.bf16.gmra.mxu0 %v11838
  %v11883 = vpop.f32.mrf.mxu0
  %v11884 = vadd.f32 0.0, %v11883
  %v11885 = vpop.f32.mrf.mxu0
  %v11886 = vpop.f32.mrf.mxu0
  %v11887 = vadd.f32 0.0, %v11886
  %v11888 = vpop.f32.mrf.mxu0
  %11889 = vmatprep.mubr.bf16.mxu0 0
  %11890 = vmatmul.mubr.bf16.gmra.mxu0 %v11841
  %v11891 = vpop.f32.mrf.mxu0
  %v11892 = vadd.f32 0.0, %v11891
  %v11893 = vpop.f32.mrf.mxu0
  %v11894 = vpop.f32.mrf.mxu0
  %v11895 = vadd.f32 0.0, %v11894
  %v11896 = vpop.f32.mrf.mxu0
  %11897 = vmatprep.mubr.bf16.mxu0 0
  %11898 = vmatmul.mubr.bf16.gmra.mxu0 %v11844
  %v11899 = vpop.f32.mrf.mxu0
  %v11900 = vadd.f32 0.0, %v11899
  %v11901 = vpop.f32.mrf.mxu0
  %v11902 = vpop.f32.mrf.mxu0
  %v11903 = vadd.f32 0.0, %v11902
  %v11904 = vpop.f32.mrf.mxu0
  %11905 = vmatprep.mubr.bf16.mxu0 0
  %11906 = vmatmul.mubr.bf16.gmra.mxu0 %v11847
  %v11907 = vpop.f32.mrf.mxu0
  %v11908 = vadd.f32 0.0, %v11907
  %v11909 = vpop.f32.mrf.mxu0
  %v11910 = vpop.f32.mrf.mxu0
  %v11911 = vadd.f32 0.0, %v11910
  %v11912 = vpop.f32.mrf.mxu0
  %11913 = vdwg.mxu0
  %11914 = vrot.lane.b32.xlu0 %v1514, 40
  %v11915 = vpop.permute.xlu0 %11914
  %11916 = vrot.lane.b32.xlu0 %v1515, 40
  %v11917 = vpop.permute.xlu0 %11916
  %11918 = vrot.lane.b32.xlu0 %v1516, 40
  %v11919 = vpop.permute.xlu0 %11918
  %11920 = vrot.lane.b32.xlu0 %v1517, 40
  %v11921 = vpop.permute.xlu0 %11920
  %v11927 = vsel %vm2515, %v11797, 0
  %v11930 = vsel %vm2515, %v11798, 0
  %v11933 = vsel %vm2515, %v11799, 0
  %v11936 = vsel %vm2515, %v11800, 0
  %11938 = vmatprep.subr.bf16.mxu0 0
  %11939 = vmatpush1.bf16.msra.mxu0 0
  %11940 = vmatprep.subr.bf16.mxu0 0
  %11941 = vmatpush1.bf16.msra.mxu0 0
  %11942 = vmatprep.subr.bf16.mxu0 0
  %11943 = vmatpush1.bf16.msra.mxu0 0
  %11944 = vmatprep.subr.bf16.mxu0 0
  %11945 = vmatpush1.bf16.msra.mxu0 0
  %11946 = vmatprep.subr.bf16.mxu0 0
  %11947 = vmatpush1.bf16.msra.mxu0 %v11921
  %11948 = vmatprep.subr.bf16.mxu0 0
  %11949 = vmatpush1.bf16.msra.mxu0 %v11919
  %11950 = vmatprep.subr.bf16.mxu0 0
  %11951 = vmatpush1.bf16.msra.mxu0 %v11917
  %11952 = vmatprep.subr.bf16.mxu0 0
  %11953 = vmatpush1.bf16.msra.mxu0 %v11915
  %11954 = vmatprep.subr.bf16.mxu0 0
  %11955 = vmatpush2.bf16.msra.mxu0 0
  %11956 = vmatprep.subr.bf16.mxu0 0
  %11957 = vmatpush2.bf16.msra.mxu0 0
  %11958 = vmatprep.subr.bf16.mxu0 0
  %11959 = vmatpush2.bf16.msra.mxu0 0
  %11960 = vmatprep.subr.bf16.mxu0 0
  %11961 = vmatpush2.bf16.msra.mxu0 0
  %11962 = vmatprep.subr.bf16.mxu0 0
  %11963 = vmatpush2.bf16.msra.mxu0 0
  %11964 = vmatprep.subr.bf16.mxu0 0
  %11965 = vmatpush2.bf16.msra.mxu0 0
  %11966 = vmatprep.subr.bf16.mxu0 0
  %11967 = vmatpush2.bf16.msra.mxu0 0
  %11968 = vmatprep.subr.bf16.mxu0 0
  %11969 = vmatpush2.bf16.msra.mxu0 0
  %11970 = vmatprep.mubr.bf16.mxu0 0
  %11971 = vmatmul.mubr.bf16.gmra.mxu0 %v11927
  %v11972 = vpop.f32.mrf.mxu0
  %v11973 = vadd.f32 0.0, %v11972
  %v11974 = vpop.f32.mrf.mxu0
  %v11975 = vpop.f32.mrf.mxu0
  %v11976 = vadd.f32 0.0, %v11975
  %v11977 = vpop.f32.mrf.mxu0
  %11978 = vmatprep.mubr.bf16.mxu0 0
  %11979 = vmatmul.mubr.bf16.gmra.mxu0 %v11930
  %v11980 = vpop.f32.mrf.mxu0
  %v11981 = vadd.f32 0.0, %v11980
  %v11982 = vpop.f32.mrf.mxu0
  %v11983 = vpop.f32.mrf.mxu0
  %v11984 = vadd.f32 0.0, %v11983
  %v11985 = vpop.f32.mrf.mxu0
  %11986 = vmatprep.mubr.bf16.mxu0 0
  %11987 = vmatmul.mubr.bf16.gmra.mxu0 %v11933
  %v11988 = vpop.f32.mrf.mxu0
  %v11989 = vadd.f32 0.0, %v11988
  %v11990 = vpop.f32.mrf.mxu0
  %v11991 = vpop.f32.mrf.mxu0
  %v11992 = vadd.f32 0.0, %v11991
  %v11993 = vpop.f32.mrf.mxu0
  %11994 = vmatprep.mubr.bf16.mxu0 0
  %11995 = vmatmul.mubr.bf16.gmra.mxu0 %v11936
  %v11996 = vpop.f32.mrf.mxu0
  %v11997 = vadd.f32 0.0, %v11996
  %v11998 = vpop.f32.mrf.mxu0
  %v11999 = vpop.f32.mrf.mxu0
  %v12000 = vadd.f32 0.0, %v11999
  %v12001 = vpop.f32.mrf.mxu0
  %12002 = vdwg.mxu0
  %12003 = vrot.lane.b32.xlu0 %v1518, 40
  %v12004 = vpop.permute.xlu0 %12003
  %12005 = vrot.lane.b32.xlu0 %v1519, 40
  %v12006 = vpop.permute.xlu0 %12005
  %12007 = vrot.lane.b32.xlu0 %v1520, 40
  %v12008 = vpop.permute.xlu0 %12007
  %12009 = vrot.lane.b32.xlu0 %v1521, 40
  %v12010 = vpop.permute.xlu0 %12009
  %v12016 = vsel %vm2515, %v11801, 0
  %v12019 = vsel %vm2515, %v11802, 0
  %v12022 = vsel %vm2515, %v11803, 0
  %v12025 = vsel %vm2515, %v11804, 0
  %12027 = vmatprep.subr.bf16.mxu0 0
  %12028 = vmatpush1.bf16.msra.mxu0 0
  %12029 = vmatprep.subr.bf16.mxu0 0
  %12030 = vmatpush1.bf16.msra.mxu0 0
  %12031 = vmatprep.subr.bf16.mxu0 0
  %12032 = vmatpush1.bf16.msra.mxu0 0
  %12033 = vmatprep.subr.bf16.mxu0 0
  %12034 = vmatpush1.bf16.msra.mxu0 0
  %12035 = vmatprep.subr.bf16.mxu0 0
  %12036 = vmatpush1.bf16.msra.mxu0 %v12010
  %12037 = vmatprep.subr.bf16.mxu0 0
  %12038 = vmatpush1.bf16.msra.mxu0 %v12008
  %12039 = vmatprep.subr.bf16.mxu0 0
  %12040 = vmatpush1.bf16.msra.mxu0 %v12006
  %12041 = vmatprep.subr.bf16.mxu0 0
  %12042 = vmatpush1.bf16.msra.mxu0 %v12004
  %12043 = vmatprep.subr.bf16.mxu0 0
  %12044 = vmatpush2.bf16.msra.mxu0 0
  %12045 = vmatprep.subr.bf16.mxu0 0
  %12046 = vmatpush2.bf16.msra.mxu0 0
  %12047 = vmatprep.subr.bf16.mxu0 0
  %12048 = vmatpush2.bf16.msra.mxu0 0
  %12049 = vmatprep.subr.bf16.mxu0 0
  %12050 = vmatpush2.bf16.msra.mxu0 0
  %12051 = vmatprep.subr.bf16.mxu0 0
  %12052 = vmatpush2.bf16.msra.mxu0 0
  %12053 = vmatprep.subr.bf16.mxu0 0
  %12054 = vmatpush2.bf16.msra.mxu0 0
  %12055 = vmatprep.subr.bf16.mxu0 0
  %12056 = vmatpush2.bf16.msra.mxu0 0
  %12057 = vmatprep.subr.bf16.mxu0 0
  %12058 = vmatpush2.bf16.msra.mxu0 0
  %12059 = vmatprep.mubr.bf16.mxu0 0
  %12060 = vmatmul.mubr.bf16.gmra.mxu0 %v12016
  %v12061 = vpop.f32.mrf.mxu0
  %v12062 = vadd.f32 0.0, %v12061
  %v12063 = vpop.f32.mrf.mxu0
  %v12064 = vpop.f32.mrf.mxu0
  %v12065 = vadd.f32 0.0, %v12064
  %v12066 = vpop.f32.mrf.mxu0
  %12067 = vmatprep.mubr.bf16.mxu0 0
  %12068 = vmatmul.mubr.bf16.gmra.mxu0 %v12019
  %v12069 = vpop.f32.mrf.mxu0
  %v12070 = vadd.f32 0.0, %v12069
  %v12071 = vpop.f32.mrf.mxu0
  %v12072 = vpop.f32.mrf.mxu0
  %v12073 = vadd.f32 0.0, %v12072
  %v12074 = vpop.f32.mrf.mxu0
  %12075 = vmatprep.mubr.bf16.mxu0 0
  %12076 = vmatmul.mubr.bf16.gmra.mxu0 %v12022
  %v12077 = vpop.f32.mrf.mxu0
  %v12078 = vadd.f32 0.0, %v12077
  %v12079 = vpop.f32.mrf.mxu0
  %v12080 = vpop.f32.mrf.mxu0
  %v12081 = vadd.f32 0.0, %v12080
  %v12082 = vpop.f32.mrf.mxu0
  %12083 = vmatprep.mubr.bf16.mxu0 0
  %12084 = vmatmul.mubr.bf16.gmra.mxu0 %v12025
  %v12085 = vpop.f32.mrf.mxu0
  %v12086 = vadd.f32 0.0, %v12085
  %v12087 = vpop.f32.mrf.mxu0
  %v12088 = vpop.f32.mrf.mxu0
  %v12089 = vadd.f32 0.0, %v12088
  %v12090 = vpop.f32.mrf.mxu0
  %12091 = vdwg.mxu0
  %12092 = vrot.lane.b32.xlu0 %v1522, 40
  %v12093 = vpop.permute.xlu0 %12092
  %12094 = vrot.lane.b32.xlu0 %v1523, 40
  %v12095 = vpop.permute.xlu0 %12094
  %12096 = vrot.lane.b32.xlu0 %v1524, 40
  %v12097 = vpop.permute.xlu0 %12096
  %12098 = vrot.lane.b32.xlu0 %v1525, 40
  %v12099 = vpop.permute.xlu0 %12098
  %v12105 = vsel %vm2515, %v11805, 0
  %v12108 = vsel %vm2515, %v11806, 0
  %v12111 = vsel %vm2515, %v11807, 0
  %v12114 = vsel %vm2515, %v11808, 0
  %12116 = vmatprep.subr.bf16.mxu0 0
  %12117 = vmatpush1.bf16.msra.mxu0 0
  %12118 = vmatprep.subr.bf16.mxu0 0
  %12119 = vmatpush1.bf16.msra.mxu0 0
  %12120 = vmatprep.subr.bf16.mxu0 0
  %12121 = vmatpush1.bf16.msra.mxu0 0
  %12122 = vmatprep.subr.bf16.mxu0 0
  %12123 = vmatpush1.bf16.msra.mxu0 0
  %12124 = vmatprep.subr.bf16.mxu0 0
  %12125 = vmatpush1.bf16.msra.mxu0 %v12099
  %12126 = vmatprep.subr.bf16.mxu0 0
  %12127 = vmatpush1.bf16.msra.mxu0 %v12097
  %12128 = vmatprep.subr.bf16.mxu0 0
  %12129 = vmatpush1.bf16.msra.mxu0 %v12095
  %12130 = vmatprep.subr.bf16.mxu0 0
  %12131 = vmatpush1.bf16.msra.mxu0 %v12093
  %12132 = vmatprep.subr.bf16.mxu0 0
  %12133 = vmatpush2.bf16.msra.mxu0 0
  %12134 = vmatprep.subr.bf16.mxu0 0
  %12135 = vmatpush2.bf16.msra.mxu0 0
  %12136 = vmatprep.subr.bf16.mxu0 0
  %12137 = vmatpush2.bf16.msra.mxu0 0
  %12138 = vmatprep.subr.bf16.mxu0 0
  %12139 = vmatpush2.bf16.msra.mxu0 0
  %12140 = vmatprep.subr.bf16.mxu0 0
  %12141 = vmatpush2.bf16.msra.mxu0 0
  %12142 = vmatprep.subr.bf16.mxu0 0
  %12143 = vmatpush2.bf16.msra.mxu0 0
  %12144 = vmatprep.subr.bf16.mxu0 0
  %12145 = vmatpush2.bf16.msra.mxu0 0
  %12146 = vmatprep.subr.bf16.mxu0 0
  %12147 = vmatpush2.bf16.msra.mxu0 0
  %12148 = vmatprep.mubr.bf16.mxu0 0
  %12149 = vmatmul.mubr.bf16.gmra.mxu0 %v12105
  %v12150 = vpop.f32.mrf.mxu0
  %v12151 = vadd.f32 0.0, %v12150
  %v12152 = vpop.f32.mrf.mxu0
  %v12153 = vpop.f32.mrf.mxu0
  %v12154 = vadd.f32 0.0, %v12153
  %v12155 = vpop.f32.mrf.mxu0
  %12156 = vmatprep.mubr.bf16.mxu0 0
  %12157 = vmatmul.mubr.bf16.gmra.mxu0 %v12108
  %v12158 = vpop.f32.mrf.mxu0
  %v12159 = vadd.f32 0.0, %v12158
  %v12160 = vpop.f32.mrf.mxu0
  %v12161 = vpop.f32.mrf.mxu0
  %v12162 = vadd.f32 0.0, %v12161
  %v12163 = vpop.f32.mrf.mxu0
  %12164 = vmatprep.mubr.bf16.mxu0 0
  %12165 = vmatmul.mubr.bf16.gmra.mxu0 %v12111
  %v12166 = vpop.f32.mrf.mxu0
  %v12167 = vadd.f32 0.0, %v12166
  %v12168 = vpop.f32.mrf.mxu0
  %v12169 = vpop.f32.mrf.mxu0
  %v12170 = vadd.f32 0.0, %v12169
  %v12171 = vpop.f32.mrf.mxu0
  %12172 = vmatprep.mubr.bf16.mxu0 0
  %12173 = vmatmul.mubr.bf16.gmra.mxu0 %v12114
  %v12174 = vpop.f32.mrf.mxu0
  %v12175 = vadd.f32 0.0, %v12174
  %v12176 = vpop.f32.mrf.mxu0
  %v12177 = vpop.f32.mrf.mxu0
  %v12178 = vadd.f32 0.0, %v12177
  %v12179 = vpop.f32.mrf.mxu0
  %12180 = vdwg.mxu0
  %12181 = vrot.lane.b32.xlu0 %v1526, 40
  %v12182 = vpop.permute.xlu0 %12181
  %12183 = vrot.lane.b32.xlu0 %v1527, 40
  %v12184 = vpop.permute.xlu0 %12183
  %12185 = vrot.lane.b32.xlu0 %v1528, 40
  %v12186 = vpop.permute.xlu0 %12185
  %12187 = vrot.lane.b32.xlu0 %v1529, 40
  %v12188 = vpop.permute.xlu0 %12187
  %v12194 = vsel %vm2515, %v11809, 0
  %v12197 = vsel %vm2515, %v11810, 0
  %v12200 = vsel %vm2515, %v11811, 0
  %v12203 = vsel %vm2515, %v11812, 0
  %12205 = vmatprep.subr.bf16.mxu0 0
  %12206 = vmatpush1.bf16.msra.mxu0 0
  %12207 = vmatprep.subr.bf16.mxu0 0
  %12208 = vmatpush1.bf16.msra.mxu0 0
  %12209 = vmatprep.subr.bf16.mxu0 0
  %12210 = vmatpush1.bf16.msra.mxu0 0
  %12211 = vmatprep.subr.bf16.mxu0 0
  %12212 = vmatpush1.bf16.msra.mxu0 0
  %12213 = vmatprep.subr.bf16.mxu0 0
  %12214 = vmatpush1.bf16.msra.mxu0 %v12188
  %12215 = vmatprep.subr.bf16.mxu0 0
  %12216 = vmatpush1.bf16.msra.mxu0 %v12186
  %12217 = vmatprep.subr.bf16.mxu0 0
  %12218 = vmatpush1.bf16.msra.mxu0 %v12184
  %12219 = vmatprep.subr.bf16.mxu0 0
  %12220 = vmatpush1.bf16.msra.mxu0 %v12182
  %12221 = vmatprep.subr.bf16.mxu0 0
  %12222 = vmatpush2.bf16.msra.mxu0 0
  %12223 = vmatprep.subr.bf16.mxu0 0
  %12224 = vmatpush2.bf16.msra.mxu0 0
  %12225 = vmatprep.subr.bf16.mxu0 0
  %12226 = vmatpush2.bf16.msra.mxu0 0
  %12227 = vmatprep.subr.bf16.mxu0 0
  %12228 = vmatpush2.bf16.msra.mxu0 0
  %12229 = vmatprep.subr.bf16.mxu0 0
  %12230 = vmatpush2.bf16.msra.mxu0 0
  %12231 = vmatprep.subr.bf16.mxu0 0
  %12232 = vmatpush2.bf16.msra.mxu0 0
  %12233 = vmatprep.subr.bf16.mxu0 0
  %12234 = vmatpush2.bf16.msra.mxu0 0
  %12235 = vmatprep.subr.bf16.mxu0 0
  %12236 = vmatpush2.bf16.msra.mxu0 0
  %12237 = vmatprep.mubr.bf16.mxu0 0
  %12238 = vmatmul.mubr.bf16.gmra.mxu0 %v12194
  %v12239 = vpop.f32.mrf.mxu0
  %v12240 = vadd.f32 0.0, %v12239
  %v12241 = vpop.f32.mrf.mxu0
  %v12242 = vpop.f32.mrf.mxu0
  %v12243 = vadd.f32 0.0, %v12242
  %v12244 = vpop.f32.mrf.mxu0
  %12245 = vmatprep.mubr.bf16.mxu0 0
  %12246 = vmatmul.mubr.bf16.gmra.mxu0 %v12197
  %v12247 = vpop.f32.mrf.mxu0
  %v12248 = vadd.f32 0.0, %v12247
  %v12249 = vpop.f32.mrf.mxu0
  %v12250 = vpop.f32.mrf.mxu0
  %v12251 = vadd.f32 0.0, %v12250
  %v12252 = vpop.f32.mrf.mxu0
  %12253 = vmatprep.mubr.bf16.mxu0 0
  %12254 = vmatmul.mubr.bf16.gmra.mxu0 %v12200
  %v12255 = vpop.f32.mrf.mxu0
  %v12256 = vadd.f32 0.0, %v12255
  %v12257 = vpop.f32.mrf.mxu0
  %v12258 = vpop.f32.mrf.mxu0
  %v12259 = vadd.f32 0.0, %v12258
  %v12260 = vpop.f32.mrf.mxu0
  %12261 = vmatprep.mubr.bf16.mxu0 0
  %12262 = vmatmul.mubr.bf16.gmra.mxu0 %v12203
  %v12263 = vpop.f32.mrf.mxu0
  %v12264 = vadd.f32 0.0, %v12263
  %v12265 = vpop.f32.mrf.mxu0
  %v12266 = vpop.f32.mrf.mxu0
  %v12267 = vadd.f32 0.0, %v12266
  %v12268 = vpop.f32.mrf.mxu0
  %12269 = vdwg.mxu0
  %12270 = vrot.lane.b32.xlu0 %v1530, 40
  %v12271 = vpop.permute.xlu0 %12270
  %12272 = vrot.lane.b32.xlu0 %v1531, 40
  %v12273 = vpop.permute.xlu0 %12272
  %12274 = vrot.lane.b32.xlu0 %v1532, 40
  %v12275 = vpop.permute.xlu0 %12274
  %12276 = vrot.lane.b32.xlu0 %v1533, 40
  %v12277 = vpop.permute.xlu0 %12276
  %v12283 = vsel %vm2515, %v11813, 0
  %v12286 = vsel %vm2515, %v11814, 0
  %v12289 = vsel %vm2515, %v11815, 0
  %v12292 = vsel %vm2515, %v11816, 0
  %12294 = vmatprep.subr.bf16.mxu0 0
  %12295 = vmatpush1.bf16.msra.mxu0 0
  %12296 = vmatprep.subr.bf16.mxu0 0
  %12297 = vmatpush1.bf16.msra.mxu0 0
  %12298 = vmatprep.subr.bf16.mxu0 0
  %12299 = vmatpush1.bf16.msra.mxu0 0
  %12300 = vmatprep.subr.bf16.mxu0 0
  %12301 = vmatpush1.bf16.msra.mxu0 0
  %12302 = vmatprep.subr.bf16.mxu0 0
  %12303 = vmatpush1.bf16.msra.mxu0 %v12277
  %12304 = vmatprep.subr.bf16.mxu0 0
  %12305 = vmatpush1.bf16.msra.mxu0 %v12275
  %12306 = vmatprep.subr.bf16.mxu0 0
  %12307 = vmatpush1.bf16.msra.mxu0 %v12273
  %12308 = vmatprep.subr.bf16.mxu0 0
  %12309 = vmatpush1.bf16.msra.mxu0 %v12271
  %12310 = vmatprep.subr.bf16.mxu0 0
  %12311 = vmatpush2.bf16.msra.mxu0 0
  %12312 = vmatprep.subr.bf16.mxu0 0
  %12313 = vmatpush2.bf16.msra.mxu0 0
  %12314 = vmatprep.subr.bf16.mxu0 0
  %12315 = vmatpush2.bf16.msra.mxu0 0
  %12316 = vmatprep.subr.bf16.mxu0 0
  %12317 = vmatpush2.bf16.msra.mxu0 0
  %12318 = vmatprep.subr.bf16.mxu0 0
  %12319 = vmatpush2.bf16.msra.mxu0 0
  %12320 = vmatprep.subr.bf16.mxu0 0
  %12321 = vmatpush2.bf16.msra.mxu0 0
  %12322 = vmatprep.subr.bf16.mxu0 0
  %12323 = vmatpush2.bf16.msra.mxu0 0
  %12324 = vmatprep.subr.bf16.mxu0 0
  %12325 = vmatpush2.bf16.msra.mxu0 0
  %12326 = vmatprep.mubr.bf16.mxu0 0
  %12327 = vmatmul.mubr.bf16.gmra.mxu0 %v12283
  %v12328 = vpop.f32.mrf.mxu0
  %v12329 = vadd.f32 0.0, %v12328
  %v12330 = vpop.f32.mrf.mxu0
  %v12331 = vpop.f32.mrf.mxu0
  %v12332 = vadd.f32 0.0, %v12331
  %v12333 = vpop.f32.mrf.mxu0
  %12334 = vmatprep.mubr.bf16.mxu0 0
  %12335 = vmatmul.mubr.bf16.gmra.mxu0 %v12286
  %v12336 = vpop.f32.mrf.mxu0
  %v12337 = vadd.f32 0.0, %v12336
  %v12338 = vpop.f32.mrf.mxu0
  %v12339 = vpop.f32.mrf.mxu0
  %v12340 = vadd.f32 0.0, %v12339
  %v12341 = vpop.f32.mrf.mxu0
  %12342 = vmatprep.mubr.bf16.mxu0 0
  %12343 = vmatmul.mubr.bf16.gmra.mxu0 %v12289
  %v12344 = vpop.f32.mrf.mxu0
  %v12345 = vadd.f32 0.0, %v12344
  %v12346 = vpop.f32.mrf.mxu0
  %v12347 = vpop.f32.mrf.mxu0
  %v12348 = vadd.f32 0.0, %v12347
  %v12349 = vpop.f32.mrf.mxu0
  %12350 = vmatprep.mubr.bf16.mxu0 0
  %12351 = vmatmul.mubr.bf16.gmra.mxu0 %v12292
  %v12352 = vpop.f32.mrf.mxu0
  %v12353 = vadd.f32 0.0, %v12352
  %v12354 = vpop.f32.mrf.mxu0
  %v12355 = vpop.f32.mrf.mxu0
  %v12356 = vadd.f32 0.0, %v12355
  %v12357 = vpop.f32.mrf.mxu0
  %12358 = vdwg.mxu0
  %12359 = vrot.lane.b32.xlu0 %v1534, 40
  %v12360 = vpop.permute.xlu0 %12359
  %12361 = vrot.lane.b32.xlu0 %v1535, 40
  %v12362 = vpop.permute.xlu0 %12361
  %12363 = vrot.lane.b32.xlu0 %v1536, 40
  %v12364 = vpop.permute.xlu0 %12363
  %12365 = vrot.lane.b32.xlu0 %v1537, 40
  %v12366 = vpop.permute.xlu0 %12365
  %v12372 = vsel %vm2515, %v11817, 0
  %v12375 = vsel %vm2515, %v11818, 0
  %v12378 = vsel %vm2515, %v11819, 0
  %v12381 = vsel %vm2515, %v11820, 0
  %12383 = vmatprep.subr.bf16.mxu0 0
  %12384 = vmatpush1.bf16.msra.mxu0 0
  %12385 = vmatprep.subr.bf16.mxu0 0
  %12386 = vmatpush1.bf16.msra.mxu0 0
  %12387 = vmatprep.subr.bf16.mxu0 0
  %12388 = vmatpush1.bf16.msra.mxu0 0
  %12389 = vmatprep.subr.bf16.mxu0 0
  %12390 = vmatpush1.bf16.msra.mxu0 0
  %12391 = vmatprep.subr.bf16.mxu0 0
  %12392 = vmatpush1.bf16.msra.mxu0 %v12366
  %12393 = vmatprep.subr.bf16.mxu0 0
  %12394 = vmatpush1.bf16.msra.mxu0 %v12364
  %12395 = vmatprep.subr.bf16.mxu0 0
  %12396 = vmatpush1.bf16.msra.mxu0 %v12362
  %12397 = vmatprep.subr.bf16.mxu0 0
  %12398 = vmatpush1.bf16.msra.mxu0 %v12360
  %12399 = vmatprep.subr.bf16.mxu0 0
  %12400 = vmatpush2.bf16.msra.mxu0 0
  %12401 = vmatprep.subr.bf16.mxu0 0
  %12402 = vmatpush2.bf16.msra.mxu0 0
  %12403 = vmatprep.subr.bf16.mxu0 0
  %12404 = vmatpush2.bf16.msra.mxu0 0
  %12405 = vmatprep.subr.bf16.mxu0 0
  %12406 = vmatpush2.bf16.msra.mxu0 0
  %12407 = vmatprep.subr.bf16.mxu0 0
  %12408 = vmatpush2.bf16.msra.mxu0 0
  %12409 = vmatprep.subr.bf16.mxu0 0
  %12410 = vmatpush2.bf16.msra.mxu0 0
  %12411 = vmatprep.subr.bf16.mxu0 0
  %12412 = vmatpush2.bf16.msra.mxu0 0
  %12413 = vmatprep.subr.bf16.mxu0 0
  %12414 = vmatpush2.bf16.msra.mxu0 0
  %12415 = vmatprep.mubr.bf16.mxu0 0
  %12416 = vmatmul.mubr.bf16.gmra.mxu0 %v12372
  %v12417 = vpop.f32.mrf.mxu0
  %v12418 = vadd.f32 0.0, %v12417
  %v12419 = vpop.f32.mrf.mxu0
  %v12420 = vpop.f32.mrf.mxu0
  %v12421 = vadd.f32 0.0, %v12420
  %v12422 = vpop.f32.mrf.mxu0
  %12423 = vmatprep.mubr.bf16.mxu0 0
  %12424 = vmatmul.mubr.bf16.gmra.mxu0 %v12375
  %v12425 = vpop.f32.mrf.mxu0
  %v12426 = vadd.f32 0.0, %v12425
  %v12427 = vpop.f32.mrf.mxu0
  %v12428 = vpop.f32.mrf.mxu0
  %v12429 = vadd.f32 0.0, %v12428
  %v12430 = vpop.f32.mrf.mxu0
  %12431 = vmatprep.mubr.bf16.mxu0 0
  %12432 = vmatmul.mubr.bf16.gmra.mxu0 %v12378
  %v12433 = vpop.f32.mrf.mxu0
  %v12434 = vadd.f32 0.0, %v12433
  %v12435 = vpop.f32.mrf.mxu0
  %v12436 = vpop.f32.mrf.mxu0
  %v12437 = vadd.f32 0.0, %v12436
  %v12438 = vpop.f32.mrf.mxu0
  %12439 = vmatprep.mubr.bf16.mxu0 0
  %12440 = vmatmul.mubr.bf16.gmra.mxu0 %v12381
  %v12441 = vpop.f32.mrf.mxu0
  %v12442 = vadd.f32 0.0, %v12441
  %v12443 = vpop.f32.mrf.mxu0
  %v12444 = vpop.f32.mrf.mxu0
  %v12445 = vadd.f32 0.0, %v12444
  %v12446 = vpop.f32.mrf.mxu0
  %12447 = vdwg.mxu0
  %12448 = vrot.lane.b32.xlu0 %v1538, 40
  %v12449 = vpop.permute.xlu0 %12448
  %12450 = vrot.lane.b32.xlu0 %v1539, 40
  %v12451 = vpop.permute.xlu0 %12450
  %12452 = vrot.lane.b32.xlu0 %v1540, 40
  %v12453 = vpop.permute.xlu0 %12452
  %12454 = vrot.lane.b32.xlu0 %v1541, 40
  %v12455 = vpop.permute.xlu0 %12454
  %v12461 = vsel %vm2515, %v11821, 0
  %v12464 = vsel %vm2515, %v11822, 0
  %v12467 = vsel %vm2515, %v11823, 0
  %v12470 = vsel %vm2515, %v11824, 0
  %12472 = vmatprep.subr.bf16.mxu0 0
  %12473 = vmatpush1.bf16.msra.mxu0 0
  %12474 = vmatprep.subr.bf16.mxu0 0
  %12475 = vmatpush1.bf16.msra.mxu0 0
  %12476 = vmatprep.subr.bf16.mxu0 0
  %12477 = vmatpush1.bf16.msra.mxu0 0
  %12478 = vmatprep.subr.bf16.mxu0 0
  %12479 = vmatpush1.bf16.msra.mxu0 0
  %12480 = vmatprep.subr.bf16.mxu0 0
  %12481 = vmatpush1.bf16.msra.mxu0 %v12455
  %12482 = vmatprep.subr.bf16.mxu0 0
  %12483 = vmatpush1.bf16.msra.mxu0 %v12453
  %12484 = vmatprep.subr.bf16.mxu0 0
  %12485 = vmatpush1.bf16.msra.mxu0 %v12451
  %12486 = vmatprep.subr.bf16.mxu0 0
  %12487 = vmatpush1.bf16.msra.mxu0 %v12449
  %12488 = vmatprep.subr.bf16.mxu0 0
  %12489 = vmatpush2.bf16.msra.mxu0 0
  %12490 = vmatprep.subr.bf16.mxu0 0
  %12491 = vmatpush2.bf16.msra.mxu0 0
  %12492 = vmatprep.subr.bf16.mxu0 0
  %12493 = vmatpush2.bf16.msra.mxu0 0
  %12494 = vmatprep.subr.bf16.mxu0 0
  %12495 = vmatpush2.bf16.msra.mxu0 0
  %12496 = vmatprep.subr.bf16.mxu0 0
  %12497 = vmatpush2.bf16.msra.mxu0 0
  %12498 = vmatprep.subr.bf16.mxu0 0
  %12499 = vmatpush2.bf16.msra.mxu0 0
  %12500 = vmatprep.subr.bf16.mxu0 0
  %12501 = vmatpush2.bf16.msra.mxu0 0
  %12502 = vmatprep.subr.bf16.mxu0 0
  %12503 = vmatpush2.bf16.msra.mxu0 0
  %12504 = vmatprep.mubr.bf16.mxu0 0
  %12505 = vmatmul.mubr.bf16.gmra.mxu0 %v12461
  %v12506 = vpop.f32.mrf.mxu0
  %v12507 = vadd.f32 0.0, %v12506
  %v12508 = vpop.f32.mrf.mxu0
  %v12509 = vpop.f32.mrf.mxu0
  %v12510 = vadd.f32 0.0, %v12509
  %v12511 = vpop.f32.mrf.mxu0
  %12512 = vmatprep.mubr.bf16.mxu0 0
  %12513 = vmatmul.mubr.bf16.gmra.mxu0 %v12464
  %v12514 = vpop.f32.mrf.mxu0
  %v12515 = vadd.f32 0.0, %v12514
  %v12516 = vpop.f32.mrf.mxu0
  %v12517 = vpop.f32.mrf.mxu0
  %v12518 = vadd.f32 0.0, %v12517
  %v12519 = vpop.f32.mrf.mxu0
  %12520 = vmatprep.mubr.bf16.mxu0 0
  %12521 = vmatmul.mubr.bf16.gmra.mxu0 %v12467
  %v12522 = vpop.f32.mrf.mxu0
  %v12523 = vadd.f32 0.0, %v12522
  %v12524 = vpop.f32.mrf.mxu0
  %v12525 = vpop.f32.mrf.mxu0
  %v12526 = vadd.f32 0.0, %v12525
  %v12527 = vpop.f32.mrf.mxu0
  %12528 = vmatprep.mubr.bf16.mxu0 0
  %12529 = vmatmul.mubr.bf16.gmra.mxu0 %v12470
  %v12530 = vpop.f32.mrf.mxu0
  %v12531 = vadd.f32 0.0, %v12530
  %v12532 = vpop.f32.mrf.mxu0
  %v12533 = vpop.f32.mrf.mxu0
  %v12534 = vadd.f32 0.0, %v12533
  %v12535 = vpop.f32.mrf.mxu0
  %12536 = vdwg.mxu0
  %v12537 = vpack.c.bf16 %v11887, %v11884
  %v12538 = vpack.c.bf16 %v11895, %v11892
  %v12539 = vpack.c.bf16 %v11903, %v11900
  %v12540 = vpack.c.bf16 %v11911, %v11908
  %v12541 = vpack.c.bf16 %v11976, %v11973
  %v12542 = vpack.c.bf16 %v11984, %v11981
  %v12543 = vpack.c.bf16 %v11992, %v11989
  %v12544 = vpack.c.bf16 %v12000, %v11997
  %v12545 = vpack.c.bf16 %v12065, %v12062
  %v12546 = vpack.c.bf16 %v12073, %v12070
  %v12547 = vpack.c.bf16 %v12081, %v12078
  %v12548 = vpack.c.bf16 %v12089, %v12086
  %v12549 = vpack.c.bf16 %v12154, %v12151
  %v12550 = vpack.c.bf16 %v12162, %v12159
  %v12551 = vpack.c.bf16 %v12170, %v12167
  %v12552 = vpack.c.bf16 %v12178, %v12175
  %v12553 = vpack.c.bf16 %v12243, %v12240
  %v12554 = vpack.c.bf16 %v12251, %v12248
  %v12555 = vpack.c.bf16 %v12259, %v12256
  %v12556 = vpack.c.bf16 %v12267, %v12264
  %v12557 = vpack.c.bf16 %v12332, %v12329
  %v12558 = vpack.c.bf16 %v12340, %v12337
  %v12559 = vpack.c.bf16 %v12348, %v12345
  %v12560 = vpack.c.bf16 %v12356, %v12353
  %v12561 = vpack.c.bf16 %v12421, %v12418
  %v12562 = vpack.c.bf16 %v12429, %v12426
  %v12563 = vpack.c.bf16 %v12437, %v12434
  %v12564 = vpack.c.bf16 %v12445, %v12442
  %v12565 = vpack.c.bf16 %v12510, %v12507
  %v12566 = vpack.c.bf16 %v12518, %v12515
  %v12567 = vpack.c.bf16 %v12526, %v12523
  %v12568 = vpack.c.bf16 %v12534, %v12531
  %v12570 = vsel %vm1590, %v12537, 0
  %v12573 = vsel %vm1590, %v12538, 0
  %v12576 = vsel %vm1590, %v12539, 0
  %v12579 = vsel %vm1590, %v12540, 0
  %v12582 = vsel %vm1590, %v12541, 0
  %v12585 = vsel %vm1590, %v12542, 0
  %v12588 = vsel %vm1590, %v12543, 0
  %v12591 = vsel %vm1590, %v12544, 0
  %v12594 = vsel %vm1590, %v12545, 0
  %v12597 = vsel %vm1590, %v12546, 0
  %v12600 = vsel %vm1590, %v12547, 0
  %v12603 = vsel %vm1590, %v12548, 0
  %v12606 = vsel %vm1590, %v12549, 0
  %v12609 = vsel %vm1590, %v12550, 0
  %v12612 = vsel %vm1590, %v12551, 0
  %v12615 = vsel %vm1590, %v12552, 0
  %v12618 = vsel %vm1590, %v12553, 0
  %v12621 = vsel %vm1590, %v12554, 0
  %v12624 = vsel %vm1590, %v12555, 0
  %v12627 = vsel %vm1590, %v12556, 0
  %v12630 = vsel %vm1590, %v12557, 0
  %v12633 = vsel %vm1590, %v12558, 0
  %v12636 = vsel %vm1590, %v12559, 0
  %v12639 = vsel %vm1590, %v12560, 0
  %v12642 = vsel %vm1590, %v12561, 0
  %v12645 = vsel %vm1590, %v12562, 0
  %v12648 = vsel %vm1590, %v12563, 0
  %v12651 = vsel %vm1590, %v12564, 0
  %v12654 = vsel %vm1590, %v12565, 0
  %v12657 = vsel %vm1590, %v12566, 0
  %v12660 = vsel %vm1590, %v12567, 0
  %v12663 = vsel %vm1590, %v12568, 0
  %v12666 = vsel %vm6540, %v1545, 0
  %12668 = vmatprep.subr.bf16.mxu0 0
  %12669 = vmatpush1.bf16.msra.mxu0 0
  %12670 = vmatprep.subr.bf16.mxu0 0
  %12671 = vmatpush1.bf16.msra.mxu0 0
  %12672 = vmatprep.subr.bf16.mxu0 0
  %12673 = vmatpush1.bf16.msra.mxu0 0
  %12674 = vmatprep.subr.bf16.mxu0 0
  %12675 = vmatpush1.bf16.msra.mxu0 0
  %12676 = vmatprep.subr.bf16.mxu0 0
  %12677 = vmatpush1.bf16.msra.mxu0 0
  %12678 = vmatprep.subr.bf16.mxu0 0
  %12679 = vmatpush1.bf16.msra.mxu0 0
  %12680 = vmatprep.subr.bf16.mxu0 0
  %12681 = vmatpush1.bf16.msra.mxu0 0
  %12682 = vmatprep.subr.bf16.mxu0 0
  %12683 = vmatpush1.bf16.msra.mxu0 %v12666
  %12684 = vmatprep.subr.bf16.mxu0 0
  %12685 = vmatpush2.bf16.msra.mxu0 0
  %12686 = vmatprep.subr.bf16.mxu0 0
  %12687 = vmatpush2.bf16.msra.mxu0 0
  %12688 = vmatprep.subr.bf16.mxu0 0
  %12689 = vmatpush2.bf16.msra.mxu0 0
  %12690 = vmatprep.subr.bf16.mxu0 0
  %12691 = vmatpush2.bf16.msra.mxu0 0
  %12692 = vmatprep.subr.bf16.mxu0 0
  %12693 = vmatpush2.bf16.msra.mxu0 0
  %12694 = vmatprep.subr.bf16.mxu0 0
  %12695 = vmatpush2.bf16.msra.mxu0 0
  %12696 = vmatprep.subr.bf16.mxu0 0
  %12697 = vmatpush2.bf16.msra.mxu0 0
  %12698 = vmatprep.subr.bf16.mxu0 0
  %12699 = vmatpush2.bf16.msra.mxu0 0
  %12700 = vmatprep.mubr.bf16.mxu0 0
  %12701 = vmatmul.mubr.bf16.gmra.mxu0 %v12570
  %v12702 = vpop.f32.mrf.mxu0
  %v12703 = vadd.f32 0.0, %v12702
  %v12704 = vpop.f32.mrf.mxu0
  %v12705 = vpop.f32.mrf.mxu0
  %v12706 = vadd.f32 0.0, %v12705
  %v12707 = vpop.f32.mrf.mxu0
  %12708 = vmatprep.mubr.bf16.mxu0 0
  %12709 = vmatmul.mubr.bf16.gmra.mxu0 %v12573
  %v12710 = vpop.f32.mrf.mxu0
  %v12711 = vadd.f32 0.0, %v12710
  %v12712 = vpop.f32.mrf.mxu0
  %v12713 = vpop.f32.mrf.mxu0
  %v12714 = vadd.f32 0.0, %v12713
  %v12715 = vpop.f32.mrf.mxu0
  %12716 = vmatprep.mubr.bf16.mxu0 0
  %12717 = vmatmul.mubr.bf16.gmra.mxu0 %v12576
  %v12718 = vpop.f32.mrf.mxu0
  %v12719 = vadd.f32 0.0, %v12718
  %v12720 = vpop.f32.mrf.mxu0
  %v12721 = vpop.f32.mrf.mxu0
  %v12722 = vadd.f32 0.0, %v12721
  %v12723 = vpop.f32.mrf.mxu0
  %12724 = vmatprep.mubr.bf16.mxu0 0
  %12725 = vmatmul.mubr.bf16.gmra.mxu0 %v12579
  %v12726 = vpop.f32.mrf.mxu0
  %v12727 = vadd.f32 0.0, %v12726
  %v12728 = vpop.f32.mrf.mxu0
  %v12729 = vpop.f32.mrf.mxu0
  %v12730 = vadd.f32 0.0, %v12729
  %v12731 = vpop.f32.mrf.mxu0
  %12732 = vmatprep.mubr.bf16.mxu0 0
  %12733 = vmatmul.mubr.bf16.gmra.mxu0 %v12582
  %v12734 = vpop.f32.mrf.mxu0
  %v12735 = vadd.f32 0.0, %v12734
  %v12736 = vpop.f32.mrf.mxu0
  %v12737 = vpop.f32.mrf.mxu0
  %v12738 = vadd.f32 0.0, %v12737
  %v12739 = vpop.f32.mrf.mxu0
  %12740 = vmatprep.mubr.bf16.mxu0 0
  %12741 = vmatmul.mubr.bf16.gmra.mxu0 %v12585
  %v12742 = vpop.f32.mrf.mxu0
  %v12743 = vadd.f32 0.0, %v12742
  %v12744 = vpop.f32.mrf.mxu0
  %v12745 = vpop.f32.mrf.mxu0
  %v12746 = vadd.f32 0.0, %v12745
  %v12747 = vpop.f32.mrf.mxu0
  %12748 = vmatprep.mubr.bf16.mxu0 0
  %12749 = vmatmul.mubr.bf16.gmra.mxu0 %v12588
  %v12750 = vpop.f32.mrf.mxu0
  %v12751 = vadd.f32 0.0, %v12750
  %v12752 = vpop.f32.mrf.mxu0
  %v12753 = vpop.f32.mrf.mxu0
  %v12754 = vadd.f32 0.0, %v12753
  %v12755 = vpop.f32.mrf.mxu0
  %12756 = vmatprep.mubr.bf16.mxu0 0
  %12757 = vmatmul.mubr.bf16.gmra.mxu0 %v12591
  %v12758 = vpop.f32.mrf.mxu0
  %v12759 = vadd.f32 0.0, %v12758
  %v12760 = vpop.f32.mrf.mxu0
  %v12761 = vpop.f32.mrf.mxu0
  %v12762 = vadd.f32 0.0, %v12761
  %v12763 = vpop.f32.mrf.mxu0
  %12764 = vmatprep.mubr.bf16.mxu0 0
  %12765 = vmatmul.mubr.bf16.gmra.mxu0 %v12594
  %v12766 = vpop.f32.mrf.mxu0
  %v12767 = vadd.f32 0.0, %v12766
  %v12768 = vpop.f32.mrf.mxu0
  %v12769 = vpop.f32.mrf.mxu0
  %v12770 = vadd.f32 0.0, %v12769
  %v12771 = vpop.f32.mrf.mxu0
  %12772 = vmatprep.mubr.bf16.mxu0 0
  %12773 = vmatmul.mubr.bf16.gmra.mxu0 %v12597
  %v12774 = vpop.f32.mrf.mxu0
  %v12775 = vadd.f32 0.0, %v12774
  %v12776 = vpop.f32.mrf.mxu0
  %v12777 = vpop.f32.mrf.mxu0
  %v12778 = vadd.f32 0.0, %v12777
  %v12779 = vpop.f32.mrf.mxu0
  %12780 = vmatprep.mubr.bf16.mxu0 0
  %12781 = vmatmul.mubr.bf16.gmra.mxu0 %v12600
  %v12782 = vpop.f32.mrf.mxu0
  %v12783 = vadd.f32 0.0, %v12782
  %v12784 = vpop.f32.mrf.mxu0
  %v12785 = vpop.f32.mrf.mxu0
  %v12786 = vadd.f32 0.0, %v12785
  %v12787 = vpop.f32.mrf.mxu0
  %12788 = vmatprep.mubr.bf16.mxu0 0
  %12789 = vmatmul.mubr.bf16.gmra.mxu0 %v12603
  %v12790 = vpop.f32.mrf.mxu0
  %v12791 = vadd.f32 0.0, %v12790
  %v12792 = vpop.f32.mrf.mxu0
  %v12793 = vpop.f32.mrf.mxu0
  %v12794 = vadd.f32 0.0, %v12793
  %v12795 = vpop.f32.mrf.mxu0
  %12796 = vmatprep.mubr.bf16.mxu0 0
  %12797 = vmatmul.mubr.bf16.gmra.mxu0 %v12606
  %v12798 = vpop.f32.mrf.mxu0
  %v12799 = vadd.f32 0.0, %v12798
  %v12800 = vpop.f32.mrf.mxu0
  %v12801 = vpop.f32.mrf.mxu0
  %v12802 = vadd.f32 0.0, %v12801
  %v12803 = vpop.f32.mrf.mxu0
  %12804 = vmatprep.mubr.bf16.mxu0 0
  %12805 = vmatmul.mubr.bf16.gmra.mxu0 %v12609
  %v12806 = vpop.f32.mrf.mxu0
  %v12807 = vadd.f32 0.0, %v12806
  %v12808 = vpop.f32.mrf.mxu0
  %v12809 = vpop.f32.mrf.mxu0
  %v12810 = vadd.f32 0.0, %v12809
  %v12811 = vpop.f32.mrf.mxu0
  %12812 = vmatprep.mubr.bf16.mxu0 0
  %12813 = vmatmul.mubr.bf16.gmra.mxu0 %v12612
  %v12814 = vpop.f32.mrf.mxu0
  %v12815 = vadd.f32 0.0, %v12814
  %v12816 = vpop.f32.mrf.mxu0
  %v12817 = vpop.f32.mrf.mxu0
  %v12818 = vadd.f32 0.0, %v12817
  %v12819 = vpop.f32.mrf.mxu0
  %12820 = vmatprep.mubr.bf16.mxu0 0
  %12821 = vmatmul.mubr.bf16.gmra.mxu0 %v12615
  %v12822 = vpop.f32.mrf.mxu0
  %v12823 = vadd.f32 0.0, %v12822
  %v12824 = vpop.f32.mrf.mxu0
  %v12825 = vpop.f32.mrf.mxu0
  %v12826 = vadd.f32 0.0, %v12825
  %v12827 = vpop.f32.mrf.mxu0
  %12828 = vmatprep.mubr.bf16.mxu0 0
  %12829 = vmatmul.mubr.bf16.gmra.mxu0 %v12618
  %v12830 = vpop.f32.mrf.mxu0
  %v12831 = vadd.f32 0.0, %v12830
  %v12832 = vpop.f32.mrf.mxu0
  %v12833 = vpop.f32.mrf.mxu0
  %v12834 = vadd.f32 0.0, %v12833
  %v12835 = vpop.f32.mrf.mxu0
  %12836 = vmatprep.mubr.bf16.mxu0 0
  %12837 = vmatmul.mubr.bf16.gmra.mxu0 %v12621
  %v12838 = vpop.f32.mrf.mxu0
  %v12839 = vadd.f32 0.0, %v12838
  %v12840 = vpop.f32.mrf.mxu0
  %v12841 = vpop.f32.mrf.mxu0
  %v12842 = vadd.f32 0.0, %v12841
  %v12843 = vpop.f32.mrf.mxu0
  %12844 = vmatprep.mubr.bf16.mxu0 0
  %12845 = vmatmul.mubr.bf16.gmra.mxu0 %v12624
  %v12846 = vpop.f32.mrf.mxu0
  %v12847 = vadd.f32 0.0, %v12846
  %v12848 = vpop.f32.mrf.mxu0
  %v12849 = vpop.f32.mrf.mxu0
  %v12850 = vadd.f32 0.0, %v12849
  %v12851 = vpop.f32.mrf.mxu0
  %12852 = vmatprep.mubr.bf16.mxu0 0
  %12853 = vmatmul.mubr.bf16.gmra.mxu0 %v12627
  %v12854 = vpop.f32.mrf.mxu0
  %v12855 = vadd.f32 0.0, %v12854
  %v12856 = vpop.f32.mrf.mxu0
  %v12857 = vpop.f32.mrf.mxu0
  %v12858 = vadd.f32 0.0, %v12857
  %v12859 = vpop.f32.mrf.mxu0
  %12860 = vmatprep.mubr.bf16.mxu0 0
  %12861 = vmatmul.mubr.bf16.gmra.mxu0 %v12630
  %v12862 = vpop.f32.mrf.mxu0
  %v12863 = vadd.f32 0.0, %v12862
  %v12864 = vpop.f32.mrf.mxu0
  %v12865 = vpop.f32.mrf.mxu0
  %v12866 = vadd.f32 0.0, %v12865
  %v12867 = vpop.f32.mrf.mxu0
  %12868 = vmatprep.mubr.bf16.mxu0 0
  %12869 = vmatmul.mubr.bf16.gmra.mxu0 %v12633
  %v12870 = vpop.f32.mrf.mxu0
  %v12871 = vadd.f32 0.0, %v12870
  %v12872 = vpop.f32.mrf.mxu0
  %v12873 = vpop.f32.mrf.mxu0
  %v12874 = vadd.f32 0.0, %v12873
  %v12875 = vpop.f32.mrf.mxu0
  %12876 = vmatprep.mubr.bf16.mxu0 0
  %12877 = vmatmul.mubr.bf16.gmra.mxu0 %v12636
  %v12878 = vpop.f32.mrf.mxu0
  %v12879 = vadd.f32 0.0, %v12878
  %v12880 = vpop.f32.mrf.mxu0
  %v12881 = vpop.f32.mrf.mxu0
  %v12882 = vadd.f32 0.0, %v12881
  %v12883 = vpop.f32.mrf.mxu0
  %12884 = vmatprep.mubr.bf16.mxu0 0
  %12885 = vmatmul.mubr.bf16.gmra.mxu0 %v12639
  %v12886 = vpop.f32.mrf.mxu0
  %v12887 = vadd.f32 0.0, %v12886
  %v12888 = vpop.f32.mrf.mxu0
  %v12889 = vpop.f32.mrf.mxu0
  %v12890 = vadd.f32 0.0, %v12889
  %v12891 = vpop.f32.mrf.mxu0
  %12892 = vmatprep.mubr.bf16.mxu0 0
  %12893 = vmatmul.mubr.bf16.gmra.mxu0 %v12642
  %v12894 = vpop.f32.mrf.mxu0
  %v12895 = vadd.f32 0.0, %v12894
  %v12896 = vpop.f32.mrf.mxu0
  %v12897 = vpop.f32.mrf.mxu0
  %v12898 = vadd.f32 0.0, %v12897
  %v12899 = vpop.f32.mrf.mxu0
  %12900 = vmatprep.mubr.bf16.mxu0 0
  %12901 = vmatmul.mubr.bf16.gmra.mxu0 %v12645
  %v12902 = vpop.f32.mrf.mxu0
  %v12903 = vadd.f32 0.0, %v12902
  %v12904 = vpop.f32.mrf.mxu0
  %v12905 = vpop.f32.mrf.mxu0
  %v12906 = vadd.f32 0.0, %v12905
  %v12907 = vpop.f32.mrf.mxu0
  %12908 = vmatprep.mubr.bf16.mxu0 0
  %12909 = vmatmul.mubr.bf16.gmra.mxu0 %v12648
  %v12910 = vpop.f32.mrf.mxu0
  %v12911 = vadd.f32 0.0, %v12910
  %v12912 = vpop.f32.mrf.mxu0
  %v12913 = vpop.f32.mrf.mxu0
  %v12914 = vadd.f32 0.0, %v12913
  %v12915 = vpop.f32.mrf.mxu0
  %12916 = vmatprep.mubr.bf16.mxu0 0
  %12917 = vmatmul.mubr.bf16.gmra.mxu0 %v12651
  %v12918 = vpop.f32.mrf.mxu0
  %v12919 = vadd.f32 0.0, %v12918
  %v12920 = vpop.f32.mrf.mxu0
  %v12921 = vpop.f32.mrf.mxu0
  %v12922 = vadd.f32 0.0, %v12921
  %v12923 = vpop.f32.mrf.mxu0
  %12924 = vmatprep.mubr.bf16.mxu0 0
  %12925 = vmatmul.mubr.bf16.gmra.mxu0 %v12654
  %v12926 = vpop.f32.mrf.mxu0
  %v12927 = vadd.f32 0.0, %v12926
  %v12928 = vpop.f32.mrf.mxu0
  %v12929 = vpop.f32.mrf.mxu0
  %v12930 = vadd.f32 0.0, %v12929
  %v12931 = vpop.f32.mrf.mxu0
  %12932 = vmatprep.mubr.bf16.mxu0 0
  %12933 = vmatmul.mubr.bf16.gmra.mxu0 %v12657
  %v12934 = vpop.f32.mrf.mxu0
  %v12935 = vadd.f32 0.0, %v12934
  %v12936 = vpop.f32.mrf.mxu0
  %v12937 = vpop.f32.mrf.mxu0
  %v12938 = vadd.f32 0.0, %v12937
  %v12939 = vpop.f32.mrf.mxu0
  %12940 = vmatprep.mubr.bf16.mxu0 0
  %12941 = vmatmul.mubr.bf16.gmra.mxu0 %v12660
  %v12942 = vpop.f32.mrf.mxu0
  %v12943 = vadd.f32 0.0, %v12942
  %v12944 = vpop.f32.mrf.mxu0
  %v12945 = vpop.f32.mrf.mxu0
  %v12946 = vadd.f32 0.0, %v12945
  %v12947 = vpop.f32.mrf.mxu0
  %12948 = vmatprep.mubr.bf16.mxu0 0
  %12949 = vmatmul.mubr.bf16.gmra.mxu0 %v12663
  %v12950 = vpop.f32.mrf.mxu0
  %v12951 = vadd.f32 0.0, %v12950
  %v12952 = vpop.f32.mrf.mxu0
  %v12953 = vpop.f32.mrf.mxu0
  %v12954 = vadd.f32 0.0, %v12953
  %v12955 = vpop.f32.mrf.mxu0
  %12956 = vdwg.mxu0
  %v12957 = vadd.f32 %v10057, %v12703
  %v12958 = vadd.f32 %v10058, %v12706
  %v12959 = vadd.f32 %v10059, %v12711
  %v12960 = vadd.f32 %v10060, %v12714
  %v12961 = vadd.f32 %v10061, %v12719
  %v12962 = vadd.f32 %v10062, %v12722
  %v12963 = vadd.f32 %v10063, %v12727
  %v12964 = vadd.f32 %v10064, %v12730
  %v12965 = vadd.f32 %v10065, %v12735
  %v12966 = vadd.f32 %v10066, %v12738
  %v12967 = vadd.f32 %v10067, %v12743
  %v12968 = vadd.f32 %v10068, %v12746
  %v12969 = vadd.f32 %v10069, %v12751
  %v12970 = vadd.f32 %v10070, %v12754
  %v12971 = vadd.f32 %v10071, %v12759
  %v12972 = vadd.f32 %v10072, %v12762
  %v12973 = vadd.f32 %v10073, %v12767
  %v12974 = vadd.f32 %v10074, %v12770
  %v12975 = vadd.f32 %v10075, %v12775
  %v12976 = vadd.f32 %v10076, %v12778
  %v12977 = vadd.f32 %v10077, %v12783
  %v12978 = vadd.f32 %v10078, %v12786
  %v12979 = vadd.f32 %v10079, %v12791
  %v12980 = vadd.f32 %v10080, %v12794
  %v12981 = vadd.f32 %v10081, %v12799
  %v12982 = vadd.f32 %v10082, %v12802
  %v12983 = vadd.f32 %v10083, %v12807
  %v12984 = vadd.f32 %v10084, %v12810
  %v12985 = vadd.f32 %v10085, %v12815
  %v12986 = vadd.f32 %v10086, %v12818
  %v12987 = vadd.f32 %v10087, %v12823
  %v12988 = vadd.f32 %v10088, %v12826
  %v12989 = vadd.f32 %v10089, %v12831
  %v12990 = vadd.f32 %v10090, %v12834
  %v12991 = vadd.f32 %v10091, %v12839
  %v12992 = vadd.f32 %v10092, %v12842
  %v12993 = vadd.f32 %v10093, %v12847
  %v12994 = vadd.f32 %v10094, %v12850
  %v12995 = vadd.f32 %v10095, %v12855
  %v12996 = vadd.f32 %v10096, %v12858
  %v12997 = vadd.f32 %v10097, %v12863
  %v12998 = vadd.f32 %v10098, %v12866
  %v12999 = vadd.f32 %v10099, %v12871
  %v13000 = vadd.f32 %v10100, %v12874
  %v13001 = vadd.f32 %v10101, %v12879
  %v13002 = vadd.f32 %v10102, %v12882
  %v13003 = vadd.f32 %v10103, %v12887
  %v13004 = vadd.f32 %v10104, %v12890
  %v13005 = vadd.f32 %v10105, %v12895
  %v13006 = vadd.f32 %v10106, %v12898
  %v13007 = vadd.f32 %v10107, %v12903
  %v13008 = vadd.f32 %v10108, %v12906
  %v13009 = vadd.f32 %v10109, %v12911
  %v13010 = vadd.f32 %v10110, %v12914
  %v13011 = vadd.f32 %v10111, %v12919
  %v13012 = vadd.f32 %v10112, %v12922
  %v13013 = vadd.f32 %v10113, %v12927
  %v13014 = vadd.f32 %v10114, %v12930
  %v13015 = vadd.f32 %v10115, %v12935
  %v13016 = vadd.f32 %v10116, %v12938
  %v13017 = vadd.f32 %v10117, %v12943
  %v13018 = vadd.f32 %v10118, %v12946
  %v13019 = vadd.f32 %v10119, %v12951
  %v13020 = vadd.f32 %v10120, %v12954
  %v13021 = vld [vmem:[%s6] sm:$0x1]
  %v13023 = vlaneseq
  %v13024 = vshrl.u32 %v13023, 7
  %v13025 = vsub.s32 0, %v13024
  %v13026 = vrot.slane %v13021, %v13025
  %v13028 = vadd.f32 %v12957, %v13026
  %v13029 = vadd.f32 %v12958, %v13026
  %v13030 = vadd.f32 %v12959, %v13026
  %v13031 = vadd.f32 %v12960, %v13026
  %v13032 = vadd.f32 %v12961, %v13026
  %v13033 = vadd.f32 %v12962, %v13026
  %v13034 = vadd.f32 %v12963, %v13026
  %v13035 = vadd.f32 %v12964, %v13026
  %v13036 = vadd.f32 %v12965, %v13026
  %v13037 = vadd.f32 %v12966, %v13026
  %v13038 = vadd.f32 %v12967, %v13026
  %v13039 = vadd.f32 %v12968, %v13026
  %v13040 = vadd.f32 %v12969, %v13026
  %v13041 = vadd.f32 %v12970, %v13026
  %v13042 = vadd.f32 %v12971, %v13026
  %v13043 = vadd.f32 %v12972, %v13026
  %v13044 = vadd.f32 %v12973, %v13026
  %v13045 = vadd.f32 %v12974, %v13026
  %v13046 = vadd.f32 %v12975, %v13026
  %v13047 = vadd.f32 %v12976, %v13026
  %v13048 = vadd.f32 %v12977, %v13026
  %v13049 = vadd.f32 %v12978, %v13026
  %v13050 = vadd.f32 %v12979, %v13026
  %v13051 = vadd.f32 %v12980, %v13026
  %v13052 = vadd.f32 %v12981, %v13026
  %v13053 = vadd.f32 %v12982, %v13026
  %v13054 = vadd.f32 %v12983, %v13026
  %v13055 = vadd.f32 %v12984, %v13026
  %v13056 = vadd.f32 %v12985, %v13026
  %v13057 = vadd.f32 %v12986, %v13026
  %v13058 = vadd.f32 %v12987, %v13026
  %v13059 = vadd.f32 %v12988, %v13026
  %v13060 = vadd.f32 %v12989, %v13026
  %v13061 = vadd.f32 %v12990, %v13026
  %v13062 = vadd.f32 %v12991, %v13026
  %v13063 = vadd.f32 %v12992, %v13026
  %v13064 = vadd.f32 %v12993, %v13026
  %v13065 = vadd.f32 %v12994, %v13026
  %v13066 = vadd.f32 %v12995, %v13026
  %v13067 = vadd.f32 %v12996, %v13026
  %v13068 = vadd.f32 %v12997, %v13026
  %v13069 = vadd.f32 %v12998, %v13026
  %v13070 = vadd.f32 %v12999, %v13026
  %v13071 = vadd.f32 %v13000, %v13026
  %v13072 = vadd.f32 %v13001, %v13026
  %v13073 = vadd.f32 %v13002, %v13026
  %v13074 = vadd.f32 %v13003, %v13026
  %v13075 = vadd.f32 %v13004, %v13026
  %v13076 = vadd.f32 %v13005, %v13026
  %v13077 = vadd.f32 %v13006, %v13026
  %v13078 = vadd.f32 %v13007, %v13026
  %v13079 = vadd.f32 %v13008, %v13026
  %v13080 = vadd.f32 %v13009, %v13026
  %v13081 = vadd.f32 %v13010, %v13026
  %v13082 = vadd.f32 %v13011, %v13026
  %v13083 = vadd.f32 %v13012, %v13026
  %v13084 = vadd.f32 %v13013, %v13026
  %v13085 = vadd.f32 %v13014, %v13026
  %v13086 = vadd.f32 %v13015, %v13026
  %v13087 = vadd.f32 %v13016, %v13026
  %v13088 = vadd.f32 %v13017, %v13026
  %v13089 = vadd.f32 %v13018, %v13026
  %v13090 = vadd.f32 %v13019, %v13026
  %v13091 = vadd.f32 %v13020, %v13026
  %13092 = vst.msk [vmem:[%s8] sm:$0xff] %vm94, %v13028
  %13093 = vst.msk [vmem:[%s8 + $0x8] sm:$0xff] %vm94, %v13029
  %13094 = vst.msk [vmem:[%s8 + $0x10] sm:$0xff] %vm94, %v13030
  %13095 = vst.msk [vmem:[%s8 + $0x18] sm:$0xff] %vm94, %v13031
  %13096 = vst.msk [vmem:[%s8 + $0x20] sm:$0xff] %vm94, %v13032
  %13097 = vst.msk [vmem:[%s8 + $0x28] sm:$0xff] %vm94, %v13033
  %13098 = vst.msk [vmem:[%s8 + $0x30] sm:$0xff] %vm94, %v13034
  %13099 = vst.msk [vmem:[%s8 + $0x38] sm:$0xff] %vm94, %v13035
  %13100 = vst.msk [vmem:[%s8 + $0x40] sm:$0xff] %vm94, %v13036
  %13101 = vst.msk [vmem:[%s8 + $0x48] sm:$0xff] %vm94, %v13037
  %13102 = vst.msk [vmem:[%s8 + $0x50] sm:$0xff] %vm94, %v13038
  %13103 = vst.msk [vmem:[%s8 + $0x58] sm:$0xff] %vm94, %v13039
  %13104 = vst.msk [vmem:[%s8 + $0x60] sm:$0xff] %vm94, %v13040
  %13105 = vst.msk [vmem:[%s8 + $0x68] sm:$0xff] %vm94, %v13041
  %13106 = vst.msk [vmem:[%s8 + $0x70] sm:$0xff] %vm94, %v13042
  %13107 = vst.msk [vmem:[%s8 + $0x78] sm:$0xff] %vm94, %v13043
  %13108 = vst.msk [vmem:[%s8 + $0x80] sm:$0xff] %vm94, %v13044
  %13109 = vst.msk [vmem:[%s8 + $0x88] sm:$0xff] %vm94, %v13045
  %13110 = vst.msk [vmem:[%s8 + $0x90] sm:$0xff] %vm94, %v13046
  %13111 = vst.msk [vmem:[%s8 + $0x98] sm:$0xff] %vm94, %v13047
  %13112 = vst.msk [vmem:[%s8 + $0xa0] sm:$0xff] %vm94, %v13048
  %13113 = vst.msk [vmem:[%s8 + $0xa8] sm:$0xff] %vm94, %v13049
  %13114 = vst.msk [vmem:[%s8 + $0xb0] sm:$0xff] %vm94, %v13050
  %13115 = vst.msk [vmem:[%s8 + $0xb8] sm:$0xff] %vm94, %v13051
  %13116 = vst.msk [vmem:[%s8 + $0xc0] sm:$0xff] %vm94, %v13052
  %13117 = vst.msk [vmem:[%s8 + $0xc8] sm:$0xff] %vm94, %v13053
  %13118 = vst.msk [vmem:[%s8 + $0xd0] sm:$0xff] %vm94, %v13054
  %13119 = vst.msk [vmem:[%s8 + $0xd8] sm:$0xff] %vm94, %v13055
  %13120 = vst.msk [vmem:[%s8 + $0xe0] sm:$0xff] %vm94, %v13056
  %13121 = vst.msk [vmem:[%s8 + $0xe8] sm:$0xff] %vm94, %v13057
  %13122 = vst.msk [vmem:[%s8 + $0xf0] sm:$0xff] %vm94, %v13058
  %13123 = vst.msk [vmem:[%s8 + $0xf8] sm:$0xff] %vm94, %v13059
  %13124 = vst.msk [vmem:[%s8 + $0x100] sm:$0xff] %vm94, %v13060
  %13125 = vst.msk [vmem:[%s8 + $0x108] sm:$0xff] %vm94, %v13061
  %13126 = vst.msk [vmem:[%s8 + $0x110] sm:$0xff] %vm94, %v13062
  %13127 = vst.msk [vmem:[%s8 + $0x118] sm:$0xff] %vm94, %v13063
  %13128 = vst.msk [vmem:[%s8 + $0x120] sm:$0xff] %vm94, %v13064
  %13129 = vst.msk [vmem:[%s8 + $0x128] sm:$0xff] %vm94, %v13065
  %13130 = vst.msk [vmem:[%s8 + $0x130] sm:$0xff] %vm94, %v13066
  %13131 = vst.msk [vmem:[%s8 + $0x138] sm:$0xff] %vm94, %v13067
  %13132 = vst.msk [vmem:[%s8 + $0x140] sm:$0xff] %vm94, %v13068
  %13133 = vst.msk [vmem:[%s8 + $0x148] sm:$0xff] %vm94, %v13069
  %13134 = vst.msk [vmem:[%s8 + $0x150] sm:$0xff] %vm94, %v13070
  %13135 = vst.msk [vmem:[%s8 + $0x158] sm:$0xff] %vm94, %v13071
  %13136 = vst.msk [vmem:[%s8 + $0x160] sm:$0xff] %vm94, %v13072
  %13137 = vst.msk [vmem:[%s8 + $0x168] sm:$0xff] %vm94, %v13073
  %13138 = vst.msk [vmem:[%s8 + $0x170] sm:$0xff] %vm94, %v13074
  %13139 = vst.msk [vmem:[%s8 + $0x178] sm:$0xff] %vm94, %v13075
  %13140 = vst.msk [vmem:[%s8 + $0x180] sm:$0xff] %vm94, %v13076
  %13141 = vst.msk [vmem:[%s8 + $0x188] sm:$0xff] %vm94, %v13077
  %13142 = vst.msk [vmem:[%s8 + $0x190] sm:$0xff] %vm94, %v13078
  %13143 = vst.msk [vmem:[%s8 + $0x198] sm:$0xff] %vm94, %v13079
  %13144 = vst.msk [vmem:[%s8 + $0x1a0] sm:$0xff] %vm94, %v13080
  %13145 = vst.msk [vmem:[%s8 + $0x1a8] sm:$0xff] %vm94, %v13081
  %13146 = vst.msk [vmem:[%s8 + $0x1b0] sm:$0xff] %vm94, %v13082
  %13147 = vst.msk [vmem:[%s8 + $0x1b8] sm:$0xff] %vm94, %v13083
  %13148 = vst.msk [vmem:[%s8 + $0x1c0] sm:$0xff] %vm94, %v13084
  %13149 = vst.msk [vmem:[%s8 + $0x1c8] sm:$0xff] %vm94, %v13085
  %13150 = vst.msk [vmem:[%s8 + $0x1d0] sm:$0xff] %vm94, %v13086
  %13151 = vst.msk [vmem:[%s8 + $0x1d8] sm:$0xff] %vm94, %v13087
  %13152 = vst.msk [vmem:[%s8 + $0x1e0] sm:$0xff] %vm94, %v13088
  %13153 = vst.msk [vmem:[%s8 + $0x1e8] sm:$0xff] %vm94, %v13089
  %13154 = vst.msk [vmem:[%s8 + $0x1f0] sm:$0xff] %vm94, %v13090
  %13155 = vst.msk [vmem:[%s8 + $0x1f8] sm:$0xff] %vm94, %v13091
  // Predicated region
  $region34: #{tpu_custom_call.1} parent=0 // pred_check
    _
  $region35: #{tpu_custom_call.1} parent=0 // pred_check_branch
    %13157 = sbr.rel (0) target = $region37
  $region36: #{tpu_custom_call.1} parent=0 // pred_region
    _
  $region37: #{tpu_custom_call.1} parent=0 // pred_fallthru
    _
  // Predicated region
  $region38: #{tpu_custom_call.1} parent=0 // pred_check
    _
  $region39: #{tpu_custom_call.1} parent=0 // pred_check_branch
    %13159 = sbr.rel (0) target = $region41
  $region40: #{tpu_custom_call.1} parent=0 // pred_region
    _
  $region41: #{tpu_custom_call.1} parent=0 // pred_fallthru
    _

</llo_original>
